<compile_context>
chip_gen: v7x
topology: tpu7x:2x2x1
jax: 0.10.0
libtpu: 0.0.40
codegen_flags: <defaults>
</compile_context>

<pallas_src>
import math
from functools import partial

import jax
import jax.numpy as jnp
from jax import lax
from jax.experimental import pallas as pl
from jax.experimental.pallas import tpu as pltpu

NEG_SLOPE = 0.2


def leaky(x):
    return jnp.where(x >= 0, x, NEG_SLOPE * x)


def _round_up(x, m):
    return ((x + m - 1) // m) * m


# ----------------------------------------------------------------------------
# Pallas kernel: one grid step == (one batch element) x (TT timesteps).
# ----------------------------------------------------------------------------
def simplefc_kernel(volt_ref, bias1_ref, h0_ref,
                    wa0_ref, wb_ref, bb_ref,
                    w1t_ref, b1t_ref, w2t_ref, b2_ref,
                    wih_ref, whh_ref, bihh_ref,
                    wc_ref, bc_ref, wd_ref, bd_ref,
                    out_ref, hid_ref,
                    h_scr, sih_scr, hseq_scr,
                    *, TT, C, E, T_total):
    t_blk = pl.program_id(1)

    # New batch element starts -> load its initial hidden state.
    @pl.when(t_blk == 0)
    def _():
        h_scr[...] = h0_ref[0]

    volt = volt_ref[0]                        # (TT, C)   one batch element, TT steps
    bias1 = bias1_ref[0]                      # (C, E)    folded cw/cf/lin1 bias
    wa0 = wa0_ref[...]                        # (1, E)    lin1 weight column for volt
    wb = wb_ref[...]                          # (E, E)
    bb = bb_ref[...]                          # (1, E)

    # ---- stack2double (folded) + grouped Conv1d #1, accumulated per channel c.
    # acc[t, j, e] = b1[e, j] + sum_c w1[e, j, c] * d[t, c, e]
    acc = jnp.broadcast_to(b1t_ref[...][None, :, :], (TT, E, E))      # (TT, j, e)
    for c in range(C):
        # stage 1: VPU broadcast-FMA (volt * wa0 + folded bias), K=1 -> no MXU.
        a_c = leaky(volt[:, c:c + 1] * wa0 + bias1[c:c + 1, :])       # (TT, E)
        # stage 2: Linear(E -> E) on the MXU, M = TT rows.
        d_c = leaky(jnp.dot(a_c, wb, preferred_element_type=jnp.float32) + bb)
        # grouped conv1 contribution of channel c (contraction is over c only).
        acc = acc + d_c[:, None, :] * w1t_ref[c][None, :, :]          # (TT, E, E)

    u = leaky(acc)
    # ---- grouped Conv1d #2: per-group dot over j (sublane reduce), then leaky.
    s = leaky(jnp.sum(u * w2t_ref[...][None, :, :], axis=1) + b2_ref[...])   # (TT, E)

    # ---- RNN (tanh): hoist the input-side matmul out of the sequential loop.
    sih_scr[...] = (jnp.dot(s, wih_ref[...], preferred_element_type=jnp.float32)
                    + bihh_ref[...])                                  # (TT, E)
    whh = whh_ref[...]

    def rnn_step(t, h):
        pre = sih_scr[pl.ds(t, 1), :] + jnp.dot(
            h, whh, preferred_element_type=jnp.float32)
        h_new = jnp.tanh(pre)
        hseq_scr[pl.ds(t, 1), :] = h_new
        # Mask padded timesteps so the carried hidden state stays exact.
        keep = (t_blk * TT + t) < T_total
        return jnp.where(keep, h_new, h)

    h_last = lax.fori_loop(0, TT, rnn_step, h_scr[...])
    h_scr[...] = h_last

    # ---- after_rnn on the whole time block at once.
    y = leaky(jnp.dot(hseq_scr[...], wc_ref[...],
                      preferred_element_type=jnp.float32) + bc_ref[...])
    y = jnp.dot(y, wd_ref[...], preferred_element_type=jnp.float32) + bd_ref[...]
    out_ref[0] = y.astype(out_ref.dtype)                              # (TT, OUT)

    # Hidden output is resident; write it once, on the last time block.
    @pl.when(t_blk == pl.num_programs(1) - 1)
    def _():
        hid_ref[0] = h_scr[...].astype(hid_ref.dtype)


# ----------------------------------------------------------------------------
# Parameter initialization (deterministic, PyTorch-style uniform fan-in init).
# ----------------------------------------------------------------------------
def init_params(key, in_channel, out_channel):
    embed_dim = min(int(2 ** (math.floor(math.log2(in_channel)) + 1)), 64)
    ks = jax.random.split(key, 16)

    def u(k, shape, fan_in):
        bound = 1.0 / math.sqrt(fan_in)
        return jax.random.uniform(k, shape, jnp.float32, -bound, bound)

    E, C = embed_dim, in_channel
    return dict(
        E=E, C=C, OUT=out_channel,
        lin1_w=u(ks[0], (E, 3), 3),            lin1_b=u(ks[1], (E,), 3),
        lin2_w=u(ks[2], (E, E), E),            lin2_b=u(ks[3], (E,), E),
        conv1_w=u(ks[4], (E * E, C, 1), C),    conv1_b=u(ks[5], (E * E,), C),
        conv2_w=u(ks[6], (E, E, 1), E),        conv2_b=u(ks[7], (E,), E),
        rnn_wih=u(ks[8], (E, E), E),           rnn_whh=u(ks[9], (E, E), E),
        rnn_bih=u(ks[10], (E,), E),            rnn_bhh=u(ks[11], (E,), E),
        lin3_w=u(ks[12], (E, E), E),           lin3_b=u(ks[13], (E,), E),
        lin4_w=u(ks[14], (out_channel, E), E), lin4_b=u(ks[15], (out_channel,), E),
    )


def prep_kernel_weights(p):
    E, C, OUT = p['E'], p['C'], p['OUT']
    wa0 = p['lin1_w'][:, 0].reshape(1, E)          # volt column of lin1 weight
    wb = p['lin2_w'].T                             # (E_in, E_out)
    bb = p['lin2_b'].reshape(1, E)

    # Grouped Conv1d #1 (groups=E): w1[e, j, c] = conv1_w[e*E + j, c, 0]
    w1 = p['conv1_w'][:, :, 0].reshape(E, E, C)    # [e, j, c]
    w1t = jnp.transpose(w1, (2, 1, 0))             # [c, j, e]  -- true grouped form
    b1t = p['conv1_b'].reshape(E, E).T             # [j, e]

    # Grouped Conv1d #2 (groups=E): out[e] = sum_j w2[e, j] * in[e*E + j]
    w2t = p['conv2_w'][:, :, 0].T                  # [j, e]
    b2 = p['conv2_b'].reshape(1, E)

    wih = p['rnn_wih'].T
    whh = p['rnn_whh'].T
    bihh = (p['rnn_bih'] + p['rnn_bhh']).reshape(1, E)
    wc = p['lin3_w'].T
    bc = p['lin3_b'].reshape(1, E)
    wd = p['lin4_w'].T
    bd = p['lin4_b'].reshape(1, OUT)
    return (wa0, wb, bb, w1t, b1t, w2t, b2, wih, whh, bihh, wc, bc, wd, bd)


# ----------------------------------------------------------------------------
# Wrapper: folding / padding / transposes + pallas_call.
# ----------------------------------------------------------------------------
def simplefc_forward(params, input_volt, connect_weight, connect_feature, h0,
                     time_block=128):
    B, C, T = input_volt.shape
    E, OUT = params['E'], params['OUT']
    assert h0.shape == (B, E)

    TT = min(time_block, _round_up(T, 8))
    T_pad = _round_up(T, TT)
    n_t = T_pad // TT

    # Only volt is streamed per-timestep (1 feature instead of 3).
    volt = jnp.transpose(input_volt, (0, 2, 1))                       # (B, T, C)
    volt = jnp.pad(volt, ((0, 0), (0, T_pad - T), (0, 0)))            # (B, T_pad, C)

    # Fold time-invariant connect_weight / connect_feature + lin1 bias into a
    # per-(b, c) bias for the first linear layer.
    w1_full = params['lin1_w']                                        # (E, 3)
    bias1 = (connect_weight[:, :, None] * w1_full[:, 1][None, None, :]
             + connect_feature[:, :, None] * w1_full[:, 2][None, None, :]
             + params['lin1_b'][None, None, :])                       # (B, C, E)

    weights = prep_kernel_weights(params)

    def wspec(arr):
        return pl.BlockSpec(arr.shape, lambda b, t, n=arr.ndim: (0,) * n)

    in_specs = ([pl.BlockSpec((1, TT, C), lambda b, t: (b, t, 0)),    # volt block
                 pl.BlockSpec((1, C, E), lambda b, t: (b, 0, 0)),     # folded bias
                 pl.BlockSpec((1, 1, E), lambda b, t: (b, 0, 0))]     # h0
                + [wspec(w) for w in weights])

    out_specs = (pl.BlockSpec((1, TT, OUT), lambda b, t: (b, t, 0)),
                 pl.BlockSpec((1, 1, E), lambda b, t: (b, 0, 0)))
    out_shape = (jax.ShapeDtypeStruct((B, T_pad, OUT), jnp.float32),
                 jax.ShapeDtypeStruct((B, 1, E), jnp.float32))

    grid_spec = pltpu.PrefetchScalarGridSpec(
        num_scalar_prefetch=0,
        grid=(B, n_t),
        in_specs=in_specs,
        out_specs=out_specs,
        scratch_shapes=[pltpu.VMEM((1, E), jnp.float32),    # carried hidden state
                        pltpu.VMEM((TT, E), jnp.float32),   # s @ W_ih + b (per block)
                        pltpu.VMEM((TT, E), jnp.float32)],  # rnn outputs (per block)
    )

    kernel = partial(simplefc_kernel, TT=TT, C=C, E=E, T_total=T)

    out_pad, hid = pl.pallas_call(
        kernel,
        grid_spec=grid_spec,
        out_shape=out_shape,
        compiler_params=pltpu.CompilerParams(
            dimension_semantics=("parallel", "arbitrary"),
            vmem_limit_bytes=32 * 1024 * 1024),
    )(volt, bias1, h0.reshape(B, 1, E), *weights)

    out = jnp.transpose(out_pad[:, :T, :], (0, 2, 1))                 # (B, OUT, T)
    hidden = jnp.transpose(hid, (1, 0, 2))                            # (1, B, E)
    return out, hidden


# ----------------------------------------------------------------------------
# Pure-JAX reference (faithful to the torch module) for validation.
# ----------------------------------------------------------------------------
def reference_forward(p, input_volt, connect_weight, connect_feature, h0):
    with jax.default_matmul_precision("float32"):
        B, C, T = input_volt.shape
        E = p['E']
        cw = jnp.broadcast_to(connect_weight[:, :, None], (B, C, T))
        cf = jnp.broadcast_to(connect_feature[:, :, None], (B, C, T))
        syn = jnp.stack([jnp.transpose(input_volt, (2, 0, 1)),
                         jnp.transpose(cw, (2, 0, 1)),
                         jnp.transpose(cf, (2, 0, 1))], axis=-1)      # (T, B, C, 3)

        a = leaky(syn @ p['lin1_w'].T + p['lin1_b'])
        d = leaky(a @ p['lin2_w'].T + p['lin2_b'])                    # (T, B, C, E)

        w1 = p['conv1_w'][:, :, 0].reshape(E, E, C)                   # [e, j, c]
        b1 = p['conv1_b'].reshape(E, E)
        v = leaky(jnp.einsum('ejc,tbce->tbej', w1, d) + b1)           # (T, B, E, E)
        w2 = p['conv2_w'][:, :, 0]                                    # [e, j]
        s = leaky(jnp.einsum('ej,tbej->tbe', w2, v) + p['conv2_b'])   # (T, B, E)

        def step(h, x):
            h_new = jnp.tanh(x @ p['rnn_wih'].T + p['rnn_bih']
                             + h @ p['rnn_whh'].T + p['rnn_bhh'])
            return h_new, h_new

        h_last, rnn_out = jax.lax.scan(step, h0, s)
        y = leaky(rnn_out @ p['lin3_w'].T + p['lin3_b'])
        y = y @ p['lin4_w'].T + p['lin4_b']                           # (T, B, OUT)
        return jnp.transpose(y, (1, 2, 0)), h_last[None]


if __name__ == "__main__":
    B, C, T, OUT = 2, 4, 200, 3
    key = jax.random.PRNGKey(0)
    k_p, k_v, k_w, k_f, k_h = jax.random.split(key, 5)

    params = init_params(k_p, C, OUT)
    E = params['E']

    input_volt = jax.random.normal(k_v, (B, C, T), jnp.float32)
    connect_weight = jax.random.normal(k_w, (B, C), jnp.float32)
    connect_feature = jax.random.normal(k_f, (B, C), jnp.float32)
    # hidden=None, random_init=True  ->  randn(1, B, E); generated here once.
    h0 = jax.random.normal(k_h, (B, E), jnp.float32)

    out, hidden = simplefc_forward(params, input_volt, connect_weight,
                                   connect_feature, h0)
    out = jax.block_until_ready(out)
    hidden = jax.block_until_ready(hidden)

    assert out.shape == (B, OUT, T), out.shape
    assert hidden.shape == (1, B, E), hidden.shape

    ref_out, ref_hidden = reference_forward(params, input_volt, connect_weight,
                                            connect_feature, h0)
    err = max(float(jnp.max(jnp.abs(out - ref_out))),
              float(jnp.max(jnp.abs(hidden - ref_hidden))))
    assert err < 1e-3, f"max abs error vs reference: {err}"

    print("KERNEL_OK")
</pallas_src>

<mosaic_0001>
module attributes {stable_mosaic.version = 11 : i64} {
  func.func @simplefc_kernel(%arg0: i32, %arg1: i32, %arg2: memref<1x128x4xf32, #tpu.memory_space<vmem>>, %arg3: memref<1x4x8xf32, #tpu.memory_space<vmem>>, %arg4: memref<1x1x8xf32, #tpu.memory_space<vmem>>, %arg5: memref<1x8xf32, #tpu.memory_space<vmem>>, %arg6: memref<8x8xf32, #tpu.memory_space<vmem>>, %arg7: memref<1x8xf32, #tpu.memory_space<vmem>>, %arg8: memref<4x8x8xf32, #tpu.memory_space<vmem>>, %arg9: memref<8x8xf32, #tpu.memory_space<vmem>>, %arg10: memref<8x8xf32, #tpu.memory_space<vmem>>, %arg11: memref<1x8xf32, #tpu.memory_space<vmem>>, %arg12: memref<8x8xf32, #tpu.memory_space<vmem>>, %arg13: memref<8x8xf32, #tpu.memory_space<vmem>>, %arg14: memref<1x8xf32, #tpu.memory_space<vmem>>, %arg15: memref<8x8xf32, #tpu.memory_space<vmem>>, %arg16: memref<1x8xf32, #tpu.memory_space<vmem>>, %arg17: memref<8x3xf32, #tpu.memory_space<vmem>>, %arg18: memref<1x3xf32, #tpu.memory_space<vmem>>, %arg19: memref<1x128x3xf32, #tpu.memory_space<vmem>>, %arg20: memref<1x1x8xf32, #tpu.memory_space<vmem>>, %arg21: memref<1x8xf32, #tpu.memory_space<vmem>>, %arg22: memref<128x8xf32, #tpu.memory_space<vmem>>, %arg23: memref<128x8xf32, #tpu.memory_space<vmem>>) attributes {dimension_semantics = [#tpu.dimension_semantics<parallel>, #tpu.dimension_semantics<arbitrary>], iteration_bounds = array<i64: 2, 2>, scalar_prefetch = 0 : i64, scratch_operands = 3 : i64, tpu.core_type = #tpu.core_type<tc>, window_params = [{transform_indices = @transform_0, window_bounds = array<i64: 1, 128, 4>}, {transform_indices = @transform_1, window_bounds = array<i64: 1, 4, 8>}, {transform_indices = @transform_2, window_bounds = array<i64: 1, 1, 8>}, {pipeline_mode = #tpu.pipeline_mode<synchronous>, transform_indices = @transform_3, window_bounds = array<i64: 1, 8>}, {pipeline_mode = #tpu.pipeline_mode<synchronous>, transform_indices = @transform_4, window_bounds = array<i64: 8, 8>}, {pipeline_mode = #tpu.pipeline_mode<synchronous>, transform_indices = @transform_5, window_bounds = array<i64: 1, 8>}, {pipeline_mode = #tpu.pipeline_mode<synchronous>, transform_indices = @transform_6, window_bounds = array<i64: 4, 8, 8>}, {pipeline_mode = #tpu.pipeline_mode<synchronous>, transform_indices = @transform_7, window_bounds = array<i64: 8, 8>}, {pipeline_mode = #tpu.pipeline_mode<synchronous>, transform_indices = @transform_8, window_bounds = array<i64: 8, 8>}, {pipeline_mode = #tpu.pipeline_mode<synchronous>, transform_indices = @transform_9, window_bounds = array<i64: 1, 8>}, {pipeline_mode = #tpu.pipeline_mode<synchronous>, transform_indices = @transform_10, window_bounds = array<i64: 8, 8>}, {pipeline_mode = #tpu.pipeline_mode<synchronous>, transform_indices = @transform_11, window_bounds = array<i64: 8, 8>}, {pipeline_mode = #tpu.pipeline_mode<synchronous>, transform_indices = @transform_12, window_bounds = array<i64: 1, 8>}, {pipeline_mode = #tpu.pipeline_mode<synchronous>, transform_indices = @transform_13, window_bounds = array<i64: 8, 8>}, {pipeline_mode = #tpu.pipeline_mode<synchronous>, transform_indices = @transform_14, window_bounds = array<i64: 1, 8>}, {pipeline_mode = #tpu.pipeline_mode<synchronous>, transform_indices = @transform_15, window_bounds = array<i64: 8, 3>}, {pipeline_mode = #tpu.pipeline_mode<synchronous>, transform_indices = @transform_16, window_bounds = array<i64: 1, 3>}, {transform_indices = @transform_17, window_bounds = array<i64: 1, 128, 3>}, {transform_indices = @transform_18, window_bounds = array<i64: 1, 1, 8>}]} {
    %c0_i32 = arith.constant 0 : i32
    %0 = arith.cmpi eq, %arg1, %c0_i32 : i32
    %1 = arith.extui %0 : i1 to i32
    %c0_i32_0 = arith.constant 0 : i32
    %2 = arith.cmpi ne, %1, %c0_i32_0 : i32
    scf.if %2 {
      %c0_85 = arith.constant 0 : index
      %c0_86 = arith.constant 0 : index
      %c0_87 = arith.constant 0 : index
      %177 = vector.load %arg4[%c0_85, %c0_86, %c0_87] : memref<1x1x8xf32, #tpu.memory_space<vmem>>, vector<1x1x8xf32>
      %178 = vector.shape_cast %177 : vector<1x1x8xf32> to vector<1x8xf32>
      %c0_88 = arith.constant 0 : index
      %c0_89 = arith.constant 0 : index
      %179 = vector.load %arg21[%c0_88, %c0_89] : memref<1x8xf32, #tpu.memory_space<vmem>>, vector<1x8xf32>
      tpu.vector_store %arg21[%c0_88, %c0_89], %178 {strides = array<i32>} : memref<1x8xf32, #tpu.memory_space<vmem>>, vector<1x8xf32>,
    } else {
    }
    %c0 = arith.constant 0 : index
    %c0_1 = arith.constant 0 : index
    %c0_2 = arith.constant 0 : index
    %3 = vector.load %arg2[%c0, %c0_1, %c0_2] : memref<1x128x4xf32, #tpu.memory_space<vmem>>, vector<1x128x4xf32>
    %4 = vector.shape_cast %3 : vector<1x128x4xf32> to vector<128x4xf32>
    %c0_3 = arith.constant 0 : index
    %c0_4 = arith.constant 0 : index
    %c0_5 = arith.constant 0 : index
    %5 = vector.load %arg3[%c0_3, %c0_4, %c0_5] : memref<1x4x8xf32, #tpu.memory_space<vmem>>, vector<1x4x8xf32>
    %6 = vector.shape_cast %5 : vector<1x4x8xf32> to vector<4x8xf32>
    %c0_6 = arith.constant 0 : index
    %c0_7 = arith.constant 0 : index
    %7 = vector.load %arg5[%c0_6, %c0_7] : memref<1x8xf32, #tpu.memory_space<vmem>>, vector<1x8xf32>
    %c0_8 = arith.constant 0 : index
    %c0_9 = arith.constant 0 : index
    %8 = vector.load %arg6[%c0_8, %c0_9] : memref<8x8xf32, #tpu.memory_space<vmem>>, vector<8x8xf32>
    %c0_10 = arith.constant 0 : index
    %c0_11 = arith.constant 0 : index
    %9 = vector.load %arg7[%c0_10, %c0_11] : memref<1x8xf32, #tpu.memory_space<vmem>>, vector<1x8xf32>
    %c0_12 = arith.constant 0 : index
    %c0_13 = arith.constant 0 : index
    %10 = vector.load %arg9[%c0_12, %c0_13] : memref<8x8xf32, #tpu.memory_space<vmem>>, vector<8x8xf32>
    %11 = vector.shape_cast %10 : vector<8x8xf32> to vector<1x8x8xf32>
    %12 = vector.shape_cast %11 : vector<1x8x8xf32> to vector<1x8x8xf32>
    %13 = vector.broadcast %12 : vector<1x8x8xf32> to vector<128x8x8xf32>
    %14 = vector.extract_strided_slice %4 {offsets = [0, 0], sizes = [128, 1], strides = [1, 1]} : vector<128x4xf32> to vector<128x1xf32>
    %15 = vector.broadcast %14 : vector<128x1xf32> to vector<128x8xf32>
    %16 = vector.broadcast %7 : vector<1x8xf32> to vector<128x8xf32>
    %17 = arith.mulf %15, %16 : vector<128x8xf32>
    %18 = vector.extract_strided_slice %6 {offsets = [0, 0], sizes = [1, 8], strides = [1, 1]} : vector<4x8xf32> to vector<1x8xf32>
    %19 = vector.broadcast %18 : vector<1x8xf32> to vector<128x8xf32>
    %20 = arith.addf %17, %19 : vector<128x8xf32>
    %cst = arith.constant 0.000000e+00 : f32
    %21 = vector.broadcast %cst : f32 to vector<128x8xf32>
    %22 = arith.cmpf oge, %20, %21 : vector<128x8xf32>
    %cst_14 = arith.constant 2.000000e-01 : f32
    %23 = vector.broadcast %cst_14 : f32 to vector<128x8xf32>
    %24 = arith.mulf %23, %20 : vector<128x8xf32>
    %25 = arith.select %22, %20, %24 : vector<128x8xi1>, vector<128x8xf32>
    %cst_15 = arith.constant dense<0.000000e+00> : vector<128x8xf32>
    %26 = tpu.matmul %25, %8, %cst_15 {dimension_numbers = #tpu.dot_dimension_numbers<[1], [0], [0], [1], [0, 0, 1, 1], [], []>} : vector<128x8xf32>, vector<8x8xf32>, vector<128x8xf32> -> vector<128x8xf32>
    %27 = vector.broadcast %9 : vector<1x8xf32> to vector<128x8xf32>
    %28 = arith.addf %26, %27 : vector<128x8xf32>
    %cst_16 = arith.constant 0.000000e+00 : f32
    %29 = vector.broadcast %cst_16 : f32 to vector<128x8xf32>
    %30 = arith.cmpf oge, %28, %29 : vector<128x8xf32>
    %cst_17 = arith.constant 2.000000e-01 : f32
    %31 = vector.broadcast %cst_17 : f32 to vector<128x8xf32>
    %32 = arith.mulf %31, %28 : vector<128x8xf32>
    %33 = arith.select %30, %28, %32 : vector<128x8xi1>, vector<128x8xf32>
    %34 = vector.shape_cast %33 : vector<128x8xf32> to vector<128x1x8xf32>
    %c0_18 = arith.constant 0 : index
    %c0_19 = arith.constant 0 : index
    %c0_20 = arith.constant 0 : index
    %35 = vector.load %arg8[%c0_18, %c0_19, %c0_20] : memref<4x8x8xf32, #tpu.memory_space<vmem>>, vector<1x8x8xf32>
    %36 = vector.shape_cast %35 : vector<1x8x8xf32> to vector<8x8xf32>
    %37 = vector.shape_cast %36 : vector<8x8xf32> to vector<1x8x8xf32>
    %38 = vector.broadcast %34 : vector<128x1x8xf32> to vector<128x8x8xf32>
    %39 = vector.broadcast %37 : vector<1x8x8xf32> to vector<128x8x8xf32>
    %40 = arith.mulf %38, %39 : vector<128x8x8xf32>
    %41 = arith.addf %13, %40 : vector<128x8x8xf32>
    %42 = vector.extract_strided_slice %4 {offsets = [0, 1], sizes = [128, 1], strides = [1, 1]} : vector<128x4xf32> to vector<128x1xf32>
    %43 = vector.broadcast %42 : vector<128x1xf32> to vector<128x8xf32>
    %44 = vector.broadcast %7 : vector<1x8xf32> to vector<128x8xf32>
    %45 = arith.mulf %43, %44 : vector<128x8xf32>
    %46 = vector.extract_strided_slice %6 {offsets = [1, 0], sizes = [1, 8], strides = [1, 1]} : vector<4x8xf32> to vector<1x8xf32>
    %47 = vector.broadcast %46 : vector<1x8xf32> to vector<128x8xf32>
    %48 = arith.addf %45, %47 : vector<128x8xf32>
    %cst_21 = arith.constant 0.000000e+00 : f32
    %49 = vector.broadcast %cst_21 : f32 to vector<128x8xf32>
    %50 = arith.cmpf oge, %48, %49 : vector<128x8xf32>
    %cst_22 = arith.constant 2.000000e-01 : f32
    %51 = vector.broadcast %cst_22 : f32 to vector<128x8xf32>
    %52 = arith.mulf %51, %48 : vector<128x8xf32>
    %53 = arith.select %50, %48, %52 : vector<128x8xi1>, vector<128x8xf32>
    %cst_23 = arith.constant dense<0.000000e+00> : vector<128x8xf32>
    %54 = tpu.matmul %53, %8, %cst_23 {dimension_numbers = #tpu.dot_dimension_numbers<[1], [0], [0], [1], [0, 0, 1, 1], [], []>} : vector<128x8xf32>, vector<8x8xf32>, vector<128x8xf32> -> vector<128x8xf32>
    %55 = vector.broadcast %9 : vector<1x8xf32> to vector<128x8xf32>
    %56 = arith.addf %54, %55 : vector<128x8xf32>
    %cst_24 = arith.constant 0.000000e+00 : f32
    %57 = vector.broadcast %cst_24 : f32 to vector<128x8xf32>
    %58 = arith.cmpf oge, %56, %57 : vector<128x8xf32>
    %cst_25 = arith.constant 2.000000e-01 : f32
    %59 = vector.broadcast %cst_25 : f32 to vector<128x8xf32>
    %60 = arith.mulf %59, %56 : vector<128x8xf32>
    %61 = arith.select %58, %56, %60 : vector<128x8xi1>, vector<128x8xf32>
    %62 = vector.shape_cast %61 : vector<128x8xf32> to vector<128x1x8xf32>
    %c1 = arith.constant 1 : index
    %c0_26 = arith.constant 0 : index
    %c0_27 = arith.constant 0 : index
    %63 = vector.load %arg8[%c1, %c0_26, %c0_27] : memref<4x8x8xf32, #tpu.memory_space<vmem>>, vector<1x8x8xf32>
    %64 = vector.shape_cast %63 : vector<1x8x8xf32> to vector<8x8xf32>
    %65 = vector.shape_cast %64 : vector<8x8xf32> to vector<1x8x8xf32>
    %66 = vector.broadcast %62 : vector<128x1x8xf32> to vector<128x8x8xf32>
    %67 = vector.broadcast %65 : vector<1x8x8xf32> to vector<128x8x8xf32>
    %68 = arith.mulf %66, %67 : vector<128x8x8xf32>
    %69 = arith.addf %41, %68 : vector<128x8x8xf32>
    %70 = vector.extract_strided_slice %4 {offsets = [0, 2], sizes = [128, 1], strides = [1, 1]} : vector<128x4xf32> to vector<128x1xf32>
    %71 = vector.broadcast %70 : vector<128x1xf32> to vector<128x8xf32>
    %72 = vector.broadcast %7 : vector<1x8xf32> to vector<128x8xf32>
    %73 = arith.mulf %71, %72 : vector<128x8xf32>
    %74 = vector.extract_strided_slice %6 {offsets = [2, 0], sizes = [1, 8], strides = [1, 1]} : vector<4x8xf32> to vector<1x8xf32>
    %75 = vector.broadcast %74 : vector<1x8xf32> to vector<128x8xf32>
    %76 = arith.addf %73, %75 : vector<128x8xf32>
    %cst_28 = arith.constant 0.000000e+00 : f32
    %77 = vector.broadcast %cst_28 : f32 to vector<128x8xf32>
    %78 = arith.cmpf oge, %76, %77 : vector<128x8xf32>
    %cst_29 = arith.constant 2.000000e-01 : f32
    %79 = vector.broadcast %cst_29 : f32 to vector<128x8xf32>
    %80 = arith.mulf %79, %76 : vector<128x8xf32>
    %81 = arith.select %78, %76, %80 : vector<128x8xi1>, vector<128x8xf32>
    %cst_30 = arith.constant dense<0.000000e+00> : vector<128x8xf32>
    %82 = tpu.matmul %81, %8, %cst_30 {dimension_numbers = #tpu.dot_dimension_numbers<[1], [0], [0], [1], [0, 0, 1, 1], [], []>} : vector<128x8xf32>, vector<8x8xf32>, vector<128x8xf32> -> vector<128x8xf32>
    %83 = vector.broadcast %9 : vector<1x8xf32> to vector<128x8xf32>
    %84 = arith.addf %82, %83 : vector<128x8xf32>
    %cst_31 = arith.constant 0.000000e+00 : f32
    %85 = vector.broadcast %cst_31 : f32 to vector<128x8xf32>
    %86 = arith.cmpf oge, %84, %85 : vector<128x8xf32>
    %cst_32 = arith.constant 2.000000e-01 : f32
    %87 = vector.broadcast %cst_32 : f32 to vector<128x8xf32>
    %88 = arith.mulf %87, %84 : vector<128x8xf32>
    %89 = arith.select %86, %84, %88 : vector<128x8xi1>, vector<128x8xf32>
    %90 = vector.shape_cast %89 : vector<128x8xf32> to vector<128x1x8xf32>
    %c2 = arith.constant 2 : index
    %c0_33 = arith.constant 0 : index
    %c0_34 = arith.constant 0 : index
    %91 = vector.load %arg8[%c2, %c0_33, %c0_34] : memref<4x8x8xf32, #tpu.memory_space<vmem>>, vector<1x8x8xf32>
    %92 = vector.shape_cast %91 : vector<1x8x8xf32> to vector<8x8xf32>
    %93 = vector.shape_cast %92 : vector<8x8xf32> to vector<1x8x8xf32>
    %94 = vector.broadcast %90 : vector<128x1x8xf32> to vector<128x8x8xf32>
    %95 = vector.broadcast %93 : vector<1x8x8xf32> to vector<128x8x8xf32>
    %96 = arith.mulf %94, %95 : vector<128x8x8xf32>
    %97 = arith.addf %69, %96 : vector<128x8x8xf32>
    %98 = vector.extract_strided_slice %4 {offsets = [0, 3], sizes = [128, 1], strides = [1, 1]} : vector<128x4xf32> to vector<128x1xf32>
    %99 = vector.broadcast %98 : vector<128x1xf32> to vector<128x8xf32>
    %100 = vector.broadcast %7 : vector<1x8xf32> to vector<128x8xf32>
    %101 = arith.mulf %99, %100 : vector<128x8xf32>
    %102 = vector.extract_strided_slice %6 {offsets = [3, 0], sizes = [1, 8], strides = [1, 1]} : vector<4x8xf32> to vector<1x8xf32>
    %103 = vector.broadcast %102 : vector<1x8xf32> to vector<128x8xf32>
    %104 = arith.addf %101, %103 : vector<128x8xf32>
    %cst_35 = arith.constant 0.000000e+00 : f32
    %105 = vector.broadcast %cst_35 : f32 to vector<128x8xf32>
    %106 = arith.cmpf oge, %104, %105 : vector<128x8xf32>
    %cst_36 = arith.constant 2.000000e-01 : f32
    %107 = vector.broadcast %cst_36 : f32 to vector<128x8xf32>
    %108 = arith.mulf %107, %104 : vector<128x8xf32>
    %109 = arith.select %106, %104, %108 : vector<128x8xi1>, vector<128x8xf32>
    %cst_37 = arith.constant dense<0.000000e+00> : vector<128x8xf32>
    %110 = tpu.matmul %109, %8, %cst_37 {dimension_numbers = #tpu.dot_dimension_numbers<[1], [0], [0], [1], [0, 0, 1, 1], [], []>} : vector<128x8xf32>, vector<8x8xf32>, vector<128x8xf32> -> vector<128x8xf32>
    %111 = vector.broadcast %9 : vector<1x8xf32> to vector<128x8xf32>
    %112 = arith.addf %110, %111 : vector<128x8xf32>
    %cst_38 = arith.constant 0.000000e+00 : f32
    %113 = vector.broadcast %cst_38 : f32 to vector<128x8xf32>
    %114 = arith.cmpf oge, %112, %113 : vector<128x8xf32>
    %cst_39 = arith.constant 2.000000e-01 : f32
    %115 = vector.broadcast %cst_39 : f32 to vector<128x8xf32>
    %116 = arith.mulf %115, %112 : vector<128x8xf32>
    %117 = arith.select %114, %112, %116 : vector<128x8xi1>, vector<128x8xf32>
    %118 = vector.shape_cast %117 : vector<128x8xf32> to vector<128x1x8xf32>
    %c3 = arith.constant 3 : index
    %c0_40 = arith.constant 0 : index
    %c0_41 = arith.constant 0 : index
    %119 = vector.load %arg8[%c3, %c0_40, %c0_41] : memref<4x8x8xf32, #tpu.memory_space<vmem>>, vector<1x8x8xf32>
    %120 = vector.shape_cast %119 : vector<1x8x8xf32> to vector<8x8xf32>
    %121 = vector.shape_cast %120 : vector<8x8xf32> to vector<1x8x8xf32>
    %122 = vector.broadcast %118 : vector<128x1x8xf32> to vector<128x8x8xf32>
    %123 = vector.broadcast %121 : vector<1x8x8xf32> to vector<128x8x8xf32>
    %124 = arith.mulf %122, %123 : vector<128x8x8xf32>
    %125 = arith.addf %97, %124 : vector<128x8x8xf32>
    %cst_42 = arith.constant 0.000000e+00 : f32
    %126 = vector.broadcast %cst_42 : f32 to vector<128x8x8xf32>
    %127 = arith.cmpf oge, %125, %126 : vector<128x8x8xf32>
    %cst_43 = arith.constant 2.000000e-01 : f32
    %128 = vector.broadcast %cst_43 : f32 to vector<128x8x8xf32>
    %129 = arith.mulf %128, %125 : vector<128x8x8xf32>
    %130 = arith.select %127, %125, %129 : vector<128x8x8xi1>, vector<128x8x8xf32>
    %c0_44 = arith.constant 0 : index
    %c0_45 = arith.constant 0 : index
    %131 = vector.load %arg10[%c0_44, %c0_45] : memref<8x8xf32, #tpu.memory_space<vmem>>, vector<8x8xf32>
    %132 = vector.shape_cast %131 : vector<8x8xf32> to vector<1x8x8xf32>
    %133 = vector.broadcast %132 : vector<1x8x8xf32> to vector<128x8x8xf32>
    %134 = arith.mulf %130, %133 : vector<128x8x8xf32>
    %cst_46 = arith.constant dense<0.000000e+00> : vector<128x8xf32>
    %135 = vector.multi_reduction <add>, %134, %cst_46 [1] : vector<128x8x8xf32> to vector<128x8xf32>
    %c0_47 = arith.constant 0 : index
    %c0_48 = arith.constant 0 : index
    %136 = vector.load %arg11[%c0_47, %c0_48] : memref<1x8xf32, #tpu.memory_space<vmem>>, vector<1x8xf32>
    %137 = vector.broadcast %136 : vector<1x8xf32> to vector<128x8xf32>
    %138 = arith.addf %135, %137 : vector<128x8xf32>
    %cst_49 = arith.constant 0.000000e+00 : f32
    %139 = vector.broadcast %cst_49 : f32 to vector<128x8xf32>
    %140 = arith.cmpf oge, %138, %139 : vector<128x8xf32>
    %cst_50 = arith.constant 2.000000e-01 : f32
    %141 = vector.broadcast %cst_50 : f32 to vector<128x8xf32>
    %142 = arith.mulf %141, %138 : vector<128x8xf32>
    %143 = arith.select %140, %138, %142 : vector<128x8xi1>, vector<128x8xf32>
    %c0_51 = arith.constant 0 : index
    %c0_52 = arith.constant 0 : index
    %144 = vector.load %arg12[%c0_51, %c0_52] : memref<8x8xf32, #tpu.memory_space<vmem>>, vector<8x8xf32>
    %cst_53 = arith.constant dense<0.000000e+00> : vector<128x8xf32>
    %145 = tpu.matmul %143, %144, %cst_53 {dimension_numbers = #tpu.dot_dimension_numbers<[1], [0], [0], [1], [0, 0, 1, 1], [], []>} : vector<128x8xf32>, vector<8x8xf32>, vector<128x8xf32> -> vector<128x8xf32>
    %c0_54 = arith.constant 0 : index
    %c0_55 = arith.constant 0 : index
    %146 = vector.load %arg14[%c0_54, %c0_55] : memref<1x8xf32, #tpu.memory_space<vmem>>, vector<1x8xf32>
    %147 = vector.broadcast %146 : vector<1x8xf32> to vector<128x8xf32>
    %148 = arith.addf %145, %147 : vector<128x8xf32>
    %c0_56 = arith.constant 0 : index
    %c0_57 = arith.constant 0 : index
    %149 = vector.load %arg22[%c0_56, %c0_57] : memref<128x8xf32, #tpu.memory_space<vmem>>, vector<128x8xf32>
    tpu.vector_store %arg22[%c0_56, %c0_57], %148 {strides = array<i32>} : memref<128x8xf32, #tpu.memory_space<vmem>>, vector<128x8xf32>,
    %c0_58 = arith.constant 0 : index
    %c0_59 = arith.constant 0 : index
    %150 = vector.load %arg13[%c0_58, %c0_59] : memref<8x8xf32, #tpu.memory_space<vmem>>, vector<8x8xf32>
    %c0_60 = arith.constant 0 : index
    %c0_61 = arith.constant 0 : index
    %151 = vector.load %arg21[%c0_60, %c0_61] : memref<1x8xf32, #tpu.memory_space<vmem>>, vector<1x8xf32>
    %c0_i32_62 = arith.constant 0 : i32
    %c128_i32 = arith.constant 128 : i32
    %152 = arith.addi %c0_i32_62, %c128_i32 : i32
    %c1_i32 = arith.constant 1 : i32
    %153 = scf.for %arg24 = %c0_i32_62 to %152 step %c1_i32 iter_args(%arg25 = %151) -> (vector<1x8xf32>)  : i32 {
      %177 = arith.index_cast %arg24 : i32 to index
      %c0_85 = arith.constant 0 : index
      %178 = vector.load %arg22[%177, %c0_85] : memref<128x8xf32, #tpu.memory_space<vmem>>, vector<1x8xf32>
      %cst_86 = arith.constant dense<0.000000e+00> : vector<1x8xf32>
      %179 = tpu.matmul %arg25, %150, %cst_86 {dimension_numbers = #tpu.dot_dimension_numbers<[1], [0], [0], [1], [0, 0, 1, 1], [], []>} : vector<1x8xf32>, vector<8x8xf32>, vector<1x8xf32> -> vector<1x8xf32>
      %180 = arith.addf %178, %179 : vector<1x8xf32>
      %181 = math.tanh %180 : vector<1x8xf32>
      %182 = arith.index_cast %arg24 : i32 to index
      %c0_87 = arith.constant 0 : index
      %183 = vector.load %arg23[%182, %c0_87] : memref<128x8xf32, #tpu.memory_space<vmem>>, vector<1x8xf32>
      tpu.vector_store %arg23[%182, %c0_87], %181 {strides = array<i32>} : memref<128x8xf32, #tpu.memory_space<vmem>>, vector<1x8xf32>,
      %c128_i32_88 = arith.constant 128 : i32
      %184 = arith.muli %arg1, %c128_i32_88 : i32
      %185 = arith.addi %184, %arg24 : i32
      %c200_i32 = arith.constant 200 : i32
      %186 = arith.cmpi slt, %185, %c200_i32 : i32
      %187 = arith.select %186, %181, %arg25 : vector<1x8xf32>
      scf.yield %187 : vector<1x8xf32>
    }
    %c128_i32_63 = arith.constant 128 : i32
    %c0_64 = arith.constant 0 : index
    %c0_65 = arith.constant 0 : index
    %154 = vector.load %arg21[%c0_64, %c0_65] : memref<1x8xf32, #tpu.memory_space<vmem>>, vector<1x8xf32>
    tpu.vector_store %arg21[%c0_64, %c0_65], %153 {strides = array<i32>} : memref<1x8xf32, #tpu.memory_space<vmem>>, vector<1x8xf32>,
    %c0_66 = arith.constant 0 : index
    %c0_67 = arith.constant 0 : index
    %155 = vector.load %arg23[%c0_66, %c0_67] : memref<128x8xf32, #tpu.memory_space<vmem>>, vector<128x8xf32>
    %c0_68 = arith.constant 0 : index
    %c0_69 = arith.constant 0 : index
    %156 = vector.load %arg15[%c0_68, %c0_69] : memref<8x8xf32, #tpu.memory_space<vmem>>, vector<8x8xf32>
    %cst_70 = arith.constant dense<0.000000e+00> : vector<128x8xf32>
    %157 = tpu.matmul %155, %156, %cst_70 {dimension_numbers = #tpu.dot_dimension_numbers<[1], [0], [0], [1], [0, 0, 1, 1], [], []>} : vector<128x8xf32>, vector<8x8xf32>, vector<128x8xf32> -> vector<128x8xf32>
    %c0_71 = arith.constant 0 : index
    %c0_72 = arith.constant 0 : index
    %158 = vector.load %arg16[%c0_71, %c0_72] : memref<1x8xf32, #tpu.memory_space<vmem>>, vector<1x8xf32>
    %159 = vector.broadcast %158 : vector<1x8xf32> to vector<128x8xf32>
    %160 = arith.addf %157, %159 : vector<128x8xf32>
    %cst_73 = arith.constant 0.000000e+00 : f32
    %161 = vector.broadcast %cst_73 : f32 to vector<128x8xf32>
    %162 = arith.cmpf oge, %160, %161 : vector<128x8xf32>
    %cst_74 = arith.constant 2.000000e-01 : f32
    %163 = vector.broadcast %cst_74 : f32 to vector<128x8xf32>
    %164 = arith.mulf %163, %160 : vector<128x8xf32>
    %165 = arith.select %162, %160, %164 : vector<128x8xi1>, vector<128x8xf32>
    %c0_75 = arith.constant 0 : index
    %c0_76 = arith.constant 0 : index
    %166 = vector.load %arg17[%c0_75, %c0_76] : memref<8x3xf32, #tpu.memory_space<vmem>>, vector<8x3xf32>
    %cst_77 = arith.constant dense<0.000000e+00> : vector<128x3xf32>
    %167 = tpu.matmul %165, %166, %cst_77 {dimension_numbers = #tpu.dot_dimension_numbers<[1], [0], [0], [1], [0, 0, 1, 1], [], []>} : vector<128x8xf32>, vector<8x3xf32>, vector<128x3xf32> -> vector<128x3xf32>
    %c0_78 = arith.constant 0 : index
    %c0_79 = arith.constant 0 : index
    %168 = vector.load %arg18[%c0_78, %c0_79] : memref<1x3xf32, #tpu.memory_space<vmem>>, vector<1x3xf32>
    %169 = vector.broadcast %168 : vector<1x3xf32> to vector<128x3xf32>
    %170 = arith.addf %167, %169 : vector<128x3xf32>
    %c0_80 = arith.constant 0 : index
    %c0_81 = arith.constant 0 : index
    %c0_82 = arith.constant 0 : index
    %171 = vector.load %arg19[%c0_80, %c0_81, %c0_82] : memref<1x128x3xf32, #tpu.memory_space<vmem>>, vector<1x128x3xf32>
    %172 = vector.shape_cast %171 : vector<1x128x3xf32> to vector<128x3xf32>
    %173 = vector.shape_cast %170 : vector<128x3xf32> to vector<1x128x3xf32>
    tpu.vector_store %arg19[%c0_80, %c0_81, %c0_82], %173 {strides = array<i32>} : memref<1x128x3xf32, #tpu.memory_space<vmem>>, vector<1x128x3xf32>,
    %c1_i32_83 = arith.constant 1 : i32
    %174 = arith.cmpi eq, %arg1, %c1_i32_83 : i32
    %175 = arith.extui %174 : i1 to i32
    %c0_i32_84 = arith.constant 0 : i32
    %176 = arith.cmpi ne, %175, %c0_i32_84 : i32
    scf.if %176 {
      %c0_85 = arith.constant 0 : index
      %c0_86 = arith.constant 0 : index
      %177 = vector.load %arg21[%c0_85, %c0_86] : memref<1x8xf32, #tpu.memory_space<vmem>>, vector<1x8xf32>
      %c0_87 = arith.constant 0 : index
      %c0_88 = arith.constant 0 : index
      %c0_89 = arith.constant 0 : index
      %178 = vector.load %arg20[%c0_87, %c0_88, %c0_89] : memref<1x1x8xf32, #tpu.memory_space<vmem>>, vector<1x1x8xf32>
      %179 = vector.shape_cast %178 : vector<1x1x8xf32> to vector<1x8xf32>
      %180 = vector.shape_cast %177 : vector<1x8xf32> to vector<1x1x8xf32>
      tpu.vector_store %arg20[%c0_87, %c0_88, %c0_89], %180 {strides = array<i32>} : memref<1x1x8xf32, #tpu.memory_space<vmem>>, vector<1x1x8xf32>,
    } else {
    }
    return
  }
  func.func @transform_0(%arg0: i32, %arg1: i32) -> (i32, i32, i32) {
    %c0_i32 = arith.constant 0 : i32
    %c0_i32_0 = arith.constant 0 : i32
    return %arg0, %arg1, %c0_i32 : i32, i32, i32
  }
  func.func @transform_1(%arg0: i32, %arg1: i32) -> (i32, i32, i32) {
    %c0_i32 = arith.constant 0 : i32
    %c0_i32_0 = arith.constant 0 : i32
    %c0_i32_1 = arith.constant 0 : i32
    return %arg0, %c0_i32, %c0_i32_0 : i32, i32, i32
  }
  func.func @transform_2(%arg0: i32, %arg1: i32) -> (i32, i32, i32) {
    %c0_i32 = arith.constant 0 : i32
    %c0_i32_0 = arith.constant 0 : i32
    %c0_i32_1 = arith.constant 0 : i32
    return %arg0, %c0_i32, %c0_i32_0 : i32, i32, i32
  }
  func.func @transform_3(%arg0: i32, %arg1: i32) -> (i32, i32) {
    %c0_i32 = arith.constant 0 : i32
    %c0_i32_0 = arith.constant 0 : i32
    %c0_i32_1 = arith.constant 0 : i32
    return %c0_i32, %c0_i32_0 : i32, i32
  }
  func.func @transform_4(%arg0: i32, %arg1: i32) -> (i32, i32) {
    %c0_i32 = arith.constant 0 : i32
    %c0_i32_0 = arith.constant 0 : i32
    %c0_i32_1 = arith.constant 0 : i32
    return %c0_i32, %c0_i32_0 : i32, i32
  }
  func.func @transform_5(%arg0: i32, %arg1: i32) -> (i32, i32) {
    %c0_i32 = arith.constant 0 : i32
    %c0_i32_0 = arith.constant 0 : i32
    %c0_i32_1 = arith.constant 0 : i32
    return %c0_i32, %c0_i32_0 : i32, i32
  }
  func.func @transform_6(%arg0: i32, %arg1: i32) -> (i32, i32, i32) {
    %c0_i32 = arith.constant 0 : i32
    %c0_i32_0 = arith.constant 0 : i32
    %c0_i32_1 = arith.constant 0 : i32
    %c0_i32_2 = arith.constant 0 : i32
    return %c0_i32, %c0_i32_0, %c0_i32_1 : i32, i32, i32
  }
  func.func @transform_7(%arg0: i32, %arg1: i32) -> (i32, i32) {
    %c0_i32 = arith.constant 0 : i32
    %c0_i32_0 = arith.constant 0 : i32
    %c0_i32_1 = arith.constant 0 : i32
    return %c0_i32, %c0_i32_0 : i32, i32
  }
  func.func @transform_8(%arg0: i32, %arg1: i32) -> (i32, i32) {
    %c0_i32 = arith.constant 0 : i32
    %c0_i32_0 = arith.constant 0 : i32
    %c0_i32_1 = arith.constant 0 : i32
    return %c0_i32, %c0_i32_0 : i32, i32
  }
  func.func @transform_9(%arg0: i32, %arg1: i32) -> (i32, i32) {
    %c0_i32 = arith.constant 0 : i32
    %c0_i32_0 = arith.constant 0 : i32
    %c0_i32_1 = arith.constant 0 : i32
    return %c0_i32, %c0_i32_0 : i32, i32
  }
  func.func @transform_10(%arg0: i32, %arg1: i32) -> (i32, i32) {
    %c0_i32 = arith.constant 0 : i32
    %c0_i32_0 = arith.constant 0 : i32
    %c0_i32_1 = arith.constant 0 : i32
    return %c0_i32, %c0_i32_0 : i32, i32
  }
  func.func @transform_11(%arg0: i32, %arg1: i32) -> (i32, i32) {
    %c0_i32 = arith.constant 0 : i32
    %c0_i32_0 = arith.constant 0 : i32
    %c0_i32_1 = arith.constant 0 : i32
    return %c0_i32, %c0_i32_0 : i32, i32
  }
  func.func @transform_12(%arg0: i32, %arg1: i32) -> (i32, i32) {
    %c0_i32 = arith.constant 0 : i32
    %c0_i32_0 = arith.constant 0 : i32
    %c0_i32_1 = arith.constant 0 : i32
    return %c0_i32, %c0_i32_0 : i32, i32
  }
  func.func @transform_13(%arg0: i32, %arg1: i32) -> (i32, i32) {
    %c0_i32 = arith.constant 0 : i32
    %c0_i32_0 = arith.constant 0 : i32
    %c0_i32_1 = arith.constant 0 : i32
    return %c0_i32, %c0_i32_0 : i32, i32
  }
  func.func @transform_14(%arg0: i32, %arg1: i32) -> (i32, i32) {
    %c0_i32 = arith.constant 0 : i32
    %c0_i32_0 = arith.constant 0 : i32
    %c0_i32_1 = arith.constant 0 : i32
    return %c0_i32, %c0_i32_0 : i32, i32
  }
  func.func @transform_15(%arg0: i32, %arg1: i32) -> (i32, i32) {
    %c0_i32 = arith.constant 0 : i32
    %c0_i32_0 = arith.constant 0 : i32
    %c0_i32_1 = arith.constant 0 : i32
    return %c0_i32, %c0_i32_0 : i32, i32
  }
  func.func @transform_16(%arg0: i32, %arg1: i32) -> (i32, i32) {
    %c0_i32 = arith.constant 0 : i32
    %c0_i32_0 = arith.constant 0 : i32
    %c0_i32_1 = arith.constant 0 : i32
    return %c0_i32, %c0_i32_0 : i32, i32
  }
  func.func @transform_17(%arg0: i32, %arg1: i32) -> (i32, i32, i32) {
    %c0_i32 = arith.constant 0 : i32
    %c0_i32_0 = arith.constant 0 : i32
    return %arg0, %arg1, %c0_i32 : i32, i32, i32
  }
  func.func @transform_18(%arg0: i32, %arg1: i32) -> (i32, i32, i32) {
    %c0_i32 = arith.constant 0 : i32
    %c0_i32_0 = arith.constant 0 : i32
    %c0_i32_1 = arith.constant 0 : i32
    return %arg0, %c0_i32, %c0_i32_0 : i32, i32, i32
  }
}

</mosaic_0001>

<llo_original>
// kernel: tpu_custom_call.1
$region0: #{tpu_custom_call.1}
  #allocation0 [shape = 'u32[]', space=smem, size = 0x4, offset = 0x4, fixed_abs, tag = 'smem constant byte address 0x4 - core index']
  #allocation1 [shape = 'u32[144,128]{1,0:T(1,128)}', space=vmem, size = 0x12000, scoped, tag = 'internal scratch']
  #allocation2 [shape = 'f32[1,8]{1,0:T(1,128)}', space=vmem, size = 0x200, scoped, tag = 'scratch operand']
  #allocation3 [shape = 'f32[128,8]{1,0:T(8,128)}', space=vmem, size = 0x10000, scoped, tag = 'scratch operand']
  #allocation4 [shape = 'f32[128,8]{1,0:T(8,128)}', space=vmem, size = 0x10000, scoped, tag = 'scratch operand']
  %s0 = inlined_call_operand.vmem [shape: f32[2,256,4], index: 0, kind: input, shape index: {}]
  %s1 = inlined_call_operand.vmem [shape: f32[2,4,8], index: 1, kind: input, shape index: {}]
  %s2 = inlined_call_operand.vmem [shape: f32[2,1,8], index: 2, kind: input, shape index: {}]
  %s3 = inlined_call_operand.vmem [shape: f32[1,8], index: 3, kind: input, shape index: {}]
  %s4 = inlined_call_operand.vmem [shape: f32[8,8], index: 4, kind: input, shape index: {}]
  %s5 = inlined_call_operand.vmem [shape: f32[1,8], index: 5, kind: input, shape index: {}]
  %s6 = inlined_call_operand.vmem [shape: f32[4,8,8], index: 6, kind: input, shape index: {}]
  %s7 = inlined_call_operand.vmem [shape: f32[8,8], index: 7, kind: input, shape index: {}]
  %s8 = inlined_call_operand.vmem [shape: f32[8,8], index: 8, kind: input, shape index: {}]
  %s9 = inlined_call_operand.vmem [shape: f32[1,8], index: 9, kind: input, shape index: {}]
  %s10 = inlined_call_operand.vmem [shape: f32[8,8], index: 10, kind: input, shape index: {}]
  %s11 = inlined_call_operand.vmem [shape: f32[8,8], index: 11, kind: input, shape index: {}]
  %s12 = inlined_call_operand.vmem [shape: f32[1,8], index: 12, kind: input, shape index: {}]
  %s13 = inlined_call_operand.vmem [shape: f32[8,8], index: 13, kind: input, shape index: {}]
  %s14 = inlined_call_operand.vmem [shape: f32[1,8], index: 14, kind: input, shape index: {}]
  %s15 = inlined_call_operand.vmem [shape: f32[8,3], index: 15, kind: input, shape index: {}]
  %s16 = inlined_call_operand.vmem [shape: f32[1,3], index: 16, kind: input, shape index: {}]
  %s17 = inlined_call_operand.vmem [shape: f32[2,256,3], index: 17, kind: output, shape index: {0}]
  %s18 = inlined_call_operand.hbm [shape: f32[2,1,8], index: 18, kind: output, shape index: {1}]
  %19 = xla_tuple %s17, %s18
  %s20 = sld [smem:[#allocation0]]
  $region124: #{tpu_custom_call.1} parent=0
    _
  %s22 = ssub.s32 1, %s20
  %s23 = scalar_select 0, %s22, %s20
  $region1: #{tpu_custom_call.1} parent=0
    #allocation5 [shape = 'u8[1024]{0}', space=vmem, size = 0x400, scoped, tag = 'output window, operand 1']
    #allocation6 [shape = 's32[2]{0}', space=sflag, size = 0x8, scoped, tag = 'scoped memory for tpu_custom_call.1']
    %24 = vsyncpa [#allocation6], 0
    %s25 = scalar_lea.sflag [#allocation6], 1
    %26 = vsyncpa %s25, 0
    loop: start=0, step=1, limit=6
    $region2: #{tpu_custom_call.1} parent=1 // loop_pre_header
      _
    $region3: #{tpu_custom_call.1} parent=1 // loop_header
      %s28 = sphi 0, %s32
      %p29 = scmp.ge.s32.totalorder %s28, 6
      %s35 = sphi 0, %s47
      %s36 = sphi 0, %s43
      %s37 = sphi 0, %s35
      %s38 = sphi 0, %s36
      %s39 = sphi 0, %s37
      %s40 = sphi 0, %s38
      %s52 = sphi 0, %s54
      %s55 = sphi 0, %s52
      %s56 = sphi 0, %s55
      %s72 = sphi 0, %s56
      %s78 = sphi 0, %s80
      %s81 = sphi 0, %s78
      %s82 = sphi 0, %s81
      %s98 = sphi 0, %s82
      %s104 = sphi 0, %s106
      %s107 = sphi 0, %s104
      %s108 = sphi 0, %s107
      %s124 = sphi 0, %s108
      %s128 = sphi 0, %s128
      %s130 = sphi 0, %s128
      %s131 = sphi 0, %s130
      %s145 = sphi 0, %s131
      %s149 = sphi 0, %s149
      %s151 = sphi 0, %s149
      %s152 = sphi 0, %s151
      %s166 = sphi 0, %s152
      %s170 = sphi 0, %s170
      %s172 = sphi 0, %s170
      %s173 = sphi 0, %s172
      %s187 = sphi 0, %s173
      %s191 = sphi 0, %s191
      %s193 = sphi 0, %s191
      %s194 = sphi 0, %s193
      %s208 = sphi 0, %s194
      %s212 = sphi 0, %s212
      %s214 = sphi 0, %s212
      %s215 = sphi 0, %s214
      %s229 = sphi 0, %s215
      %s233 = sphi 0, %s233
      %s235 = sphi 0, %s233
      %s236 = sphi 0, %s235
      %s250 = sphi 0, %s236
      %s254 = sphi 0, %s254
      %s256 = sphi 0, %s254
      %s257 = sphi 0, %s256
      %s271 = sphi 0, %s257
      %s275 = sphi 0, %s275
      %s277 = sphi 0, %s275
      %s278 = sphi 0, %s277
      %s292 = sphi 0, %s278
      %s296 = sphi 0, %s296
      %s298 = sphi 0, %s296
      %s299 = sphi 0, %s298
      %s313 = sphi 0, %s299
      %s317 = sphi 0, %s317
      %s319 = sphi 0, %s317
      %s320 = sphi 0, %s319
      %s334 = sphi 0, %s320
      %s338 = sphi 0, %s338
      %s340 = sphi 0, %s338
      %s341 = sphi 0, %s340
      %s355 = sphi 0, %s341
      %s359 = sphi 0, %s359
      %s361 = sphi 0, %s359
      %s362 = sphi 0, %s361
      %s376 = sphi 0, %s362
      %s380 = sphi 0, %s380
      %s382 = sphi 0, %s380
      %s383 = sphi 0, %s382
      %s397 = sphi 0, %s383
      %s401 = sphi 0, %s401
      %s403 = sphi 0, %s401
      %s404 = sphi 0, %s403
      %s418 = sphi 0, %s404
      %s426 = sphi 0, %s428
      %s429 = sphi 0, %s426
      %s430 = sphi 0, %s429
      %s446 = sphi 0, %s430
      %s452 = sphi 0, %s454
      %s455 = sphi 0, %s452
      %s456 = sphi 0, %s455
      %s472 = sphi 0, %s456
    $region4: #{tpu_custom_call.1} parent=1 // loop_header_branch
      %31 = sbr.rel (%p29) target = $region8
    $region5: #{tpu_custom_call.1} parent=1 // loop_body
      %s33 = ssub.s32 %s28, 1
      %s34 = ssub.s32 %s28, 2
      %s41 = sadd.s32 1, %s36
      %p42 = scmp.ge.s32.totalorder %s41, 2
      %s43 = scalar_select %p42, 0, %s41
      %s44 = sadd.s32 1, %s35
      %s45 = scalar_select %p42, %s44, %s35
      %p46 = scmp.ge.s32.totalorder %s45, 2
      %s47 = scalar_select %p46, 0, %s45
      %s48 = ssub.s32 %s35, %s47
      %s49 = ssub.s32 %s36, %s43
      %s50 = sor.u32 %s48, %s49
      %p51 = scmp.eq.s32.totalorder %s50, 0
      %s53 = sadd.s32 %s52, 1
      %s54 = scalar_select %p51, %s52, %s53
      %p57 = pneg %p51
      %p58 = scmp.eq.s32.totalorder %s28, 3
      %p59 = por %p57, %p58
      %p60 = scmp.ne.s32.totalorder %s52, %s55
      %p61 = scmp.eq.s32.totalorder %s28, 0
      %p62 = por %p60, %p61
      %p63 = scmp.ne.s32.totalorder %s52, %s55
      %p64 = scmp.eq.s32.totalorder %s33, 3
      %p65 = por %p63, %p64
      %p66 = scmp.ne.s32.totalorder %s55, %s56
      %p67 = scmp.eq.s32.totalorder %s33, 0
      %p68 = por %p66, %p67
      %p69 = scmp.ne.s32.totalorder %s55, %s56
      %p70 = scmp.eq.s32.totalorder %s34, 3
      %p71 = por %p69, %p70
      %p73 = scmp.ne.s32.totalorder %s56, %s72
      %p74 = scmp.eq.s32.totalorder %s34, 0
      %p75 = por %p73, %p74
      %s76 = ssub.s32 %s35, %s47
      %p77 = scmp.eq.s32.totalorder %s76, 0
      %s79 = sadd.s32 %s78, 1
      %s80 = scalar_select %p77, %s78, %s79
      %p83 = pneg %p77
      %p84 = scmp.eq.s32.totalorder %s28, 3
      %p85 = por %p83, %p84
      %p86 = scmp.ne.s32.totalorder %s78, %s81
      %p87 = scmp.eq.s32.totalorder %s28, 0
      %p88 = por %p86, %p87
      %p89 = scmp.ne.s32.totalorder %s78, %s81
      %p90 = scmp.eq.s32.totalorder %s33, 3
      %p91 = por %p89, %p90
      %p92 = scmp.ne.s32.totalorder %s81, %s82
      %p93 = scmp.eq.s32.totalorder %s33, 0
      %p94 = por %p92, %p93
      %p95 = scmp.ne.s32.totalorder %s81, %s82
      %p96 = scmp.eq.s32.totalorder %s34, 3
      %p97 = por %p95, %p96
      %p99 = scmp.ne.s32.totalorder %s82, %s98
      %p100 = scmp.eq.s32.totalorder %s34, 0
      %p101 = por %p99, %p100
      %s102 = ssub.s32 %s35, %s47
      %p103 = scmp.eq.s32.totalorder %s102, 0
      %s105 = sadd.s32 %s104, 1
      %s106 = scalar_select %p103, %s104, %s105
      %p109 = pneg %p103
      %p110 = scmp.eq.s32.totalorder %s28, 3
      %p111 = por %p109, %p110
      %p112 = scmp.ne.s32.totalorder %s104, %s107
      %p113 = scmp.eq.s32.totalorder %s28, 0
      %p114 = por %p112, %p113
      %p115 = scmp.ne.s32.totalorder %s104, %s107
      %p116 = scmp.eq.s32.totalorder %s33, 3
      %p117 = por %p115, %p116
      %p118 = scmp.ne.s32.totalorder %s107, %s108
      %p119 = scmp.eq.s32.totalorder %s33, 0
      %p120 = por %p118, %p119
      %p121 = scmp.ne.s32.totalorder %s107, %s108
      %p122 = scmp.eq.s32.totalorder %s34, 3
      %p123 = por %p121, %p122
      %p125 = scmp.ne.s32.totalorder %s108, %s124
      %p126 = scmp.eq.s32.totalorder %s34, 0
      %p127 = por %p125, %p126
      %s129 = sadd.s32 %s128, 1
      %p132 = scmp.eq.s32.totalorder %s28, 3
      %p133 = scmp.ne.s32.totalorder %s128, %s130
      %p134 = scmp.eq.s32.totalorder %s28, 0
      %p135 = por %p133, %p134
      %p136 = scmp.ne.s32.totalorder %s128, %s130
      %p137 = scmp.eq.s32.totalorder %s33, 3
      %p138 = por %p136, %p137
      %p139 = scmp.ne.s32.totalorder %s130, %s131
      %p140 = scmp.eq.s32.totalorder %s33, 0
      %p141 = por %p139, %p140
      %p142 = scmp.ne.s32.totalorder %s130, %s131
      %p143 = scmp.eq.s32.totalorder %s34, 3
      %p144 = por %p142, %p143
      %p146 = scmp.ne.s32.totalorder %s131, %s145
      %p147 = scmp.eq.s32.totalorder %s34, 0
      %p148 = por %p146, %p147
      %s150 = sadd.s32 %s149, 1
      %p153 = scmp.eq.s32.totalorder %s28, 3
      %p154 = scmp.ne.s32.totalorder %s149, %s151
      %p155 = scmp.eq.s32.totalorder %s28, 0
      %p156 = por %p154, %p155
      %p157 = scmp.ne.s32.totalorder %s149, %s151
      %p158 = scmp.eq.s32.totalorder %s33, 3
      %p159 = por %p157, %p158
      %p160 = scmp.ne.s32.totalorder %s151, %s152
      %p161 = scmp.eq.s32.totalorder %s33, 0
      %p162 = por %p160, %p161
      %p163 = scmp.ne.s32.totalorder %s151, %s152
      %p164 = scmp.eq.s32.totalorder %s34, 3
      %p165 = por %p163, %p164
      %p167 = scmp.ne.s32.totalorder %s152, %s166
      %p168 = scmp.eq.s32.totalorder %s34, 0
      %p169 = por %p167, %p168
      %s171 = sadd.s32 %s170, 1
      %p174 = scmp.eq.s32.totalorder %s28, 3
      %p175 = scmp.ne.s32.totalorder %s170, %s172
      %p176 = scmp.eq.s32.totalorder %s28, 0
      %p177 = por %p175, %p176
      %p178 = scmp.ne.s32.totalorder %s170, %s172
      %p179 = scmp.eq.s32.totalorder %s33, 3
      %p180 = por %p178, %p179
      %p181 = scmp.ne.s32.totalorder %s172, %s173
      %p182 = scmp.eq.s32.totalorder %s33, 0
      %p183 = por %p181, %p182
      %p184 = scmp.ne.s32.totalorder %s172, %s173
      %p185 = scmp.eq.s32.totalorder %s34, 3
      %p186 = por %p184, %p185
      %p188 = scmp.ne.s32.totalorder %s173, %s187
      %p189 = scmp.eq.s32.totalorder %s34, 0
      %p190 = por %p188, %p189
      %s192 = sadd.s32 %s191, 1
      %p195 = scmp.eq.s32.totalorder %s28, 3
      %p196 = scmp.ne.s32.totalorder %s191, %s193
      %p197 = scmp.eq.s32.totalorder %s28, 0
      %p198 = por %p196, %p197
      %p199 = scmp.ne.s32.totalorder %s191, %s193
      %p200 = scmp.eq.s32.totalorder %s33, 3
      %p201 = por %p199, %p200
      %p202 = scmp.ne.s32.totalorder %s193, %s194
      %p203 = scmp.eq.s32.totalorder %s33, 0
      %p204 = por %p202, %p203
      %p205 = scmp.ne.s32.totalorder %s193, %s194
      %p206 = scmp.eq.s32.totalorder %s34, 3
      %p207 = por %p205, %p206
      %p209 = scmp.ne.s32.totalorder %s194, %s208
      %p210 = scmp.eq.s32.totalorder %s34, 0
      %p211 = por %p209, %p210
      %s213 = sadd.s32 %s212, 1
      %p216 = scmp.eq.s32.totalorder %s28, 3
      %p217 = scmp.ne.s32.totalorder %s212, %s214
      %p218 = scmp.eq.s32.totalorder %s28, 0
      %p219 = por %p217, %p218
      %p220 = scmp.ne.s32.totalorder %s212, %s214
      %p221 = scmp.eq.s32.totalorder %s33, 3
      %p222 = por %p220, %p221
      %p223 = scmp.ne.s32.totalorder %s214, %s215
      %p224 = scmp.eq.s32.totalorder %s33, 0
      %p225 = por %p223, %p224
      %p226 = scmp.ne.s32.totalorder %s214, %s215
      %p227 = scmp.eq.s32.totalorder %s34, 3
      %p228 = por %p226, %p227
      %p230 = scmp.ne.s32.totalorder %s215, %s229
      %p231 = scmp.eq.s32.totalorder %s34, 0
      %p232 = por %p230, %p231
      %s234 = sadd.s32 %s233, 1
      %p237 = scmp.eq.s32.totalorder %s28, 3
      %p238 = scmp.ne.s32.totalorder %s233, %s235
      %p239 = scmp.eq.s32.totalorder %s28, 0
      %p240 = por %p238, %p239
      %p241 = scmp.ne.s32.totalorder %s233, %s235
      %p242 = scmp.eq.s32.totalorder %s33, 3
      %p243 = por %p241, %p242
      %p244 = scmp.ne.s32.totalorder %s235, %s236
      %p245 = scmp.eq.s32.totalorder %s33, 0
      %p246 = por %p244, %p245
      %p247 = scmp.ne.s32.totalorder %s235, %s236
      %p248 = scmp.eq.s32.totalorder %s34, 3
      %p249 = por %p247, %p248
      %p251 = scmp.ne.s32.totalorder %s236, %s250
      %p252 = scmp.eq.s32.totalorder %s34, 0
      %p253 = por %p251, %p252
      %s255 = sadd.s32 %s254, 1
      %p258 = scmp.eq.s32.totalorder %s28, 3
      %p259 = scmp.ne.s32.totalorder %s254, %s256
      %p260 = scmp.eq.s32.totalorder %s28, 0
      %p261 = por %p259, %p260
      %p262 = scmp.ne.s32.totalorder %s254, %s256
      %p263 = scmp.eq.s32.totalorder %s33, 3
      %p264 = por %p262, %p263
      %p265 = scmp.ne.s32.totalorder %s256, %s257
      %p266 = scmp.eq.s32.totalorder %s33, 0
      %p267 = por %p265, %p266
      %p268 = scmp.ne.s32.totalorder %s256, %s257
      %p269 = scmp.eq.s32.totalorder %s34, 3
      %p270 = por %p268, %p269
      %p272 = scmp.ne.s32.totalorder %s257, %s271
      %p273 = scmp.eq.s32.totalorder %s34, 0
      %p274 = por %p272, %p273
      %s276 = sadd.s32 %s275, 1
      %p279 = scmp.eq.s32.totalorder %s28, 3
      %p280 = scmp.ne.s32.totalorder %s275, %s277
      %p281 = scmp.eq.s32.totalorder %s28, 0
      %p282 = por %p280, %p281
      %p283 = scmp.ne.s32.totalorder %s275, %s277
      %p284 = scmp.eq.s32.totalorder %s33, 3
      %p285 = por %p283, %p284
      %p286 = scmp.ne.s32.totalorder %s277, %s278
      %p287 = scmp.eq.s32.totalorder %s33, 0
      %p288 = por %p286, %p287
      %p289 = scmp.ne.s32.totalorder %s277, %s278
      %p290 = scmp.eq.s32.totalorder %s34, 3
      %p291 = por %p289, %p290
      %p293 = scmp.ne.s32.totalorder %s278, %s292
      %p294 = scmp.eq.s32.totalorder %s34, 0
      %p295 = por %p293, %p294
      %s297 = sadd.s32 %s296, 1
      %p300 = scmp.eq.s32.totalorder %s28, 3
      %p301 = scmp.ne.s32.totalorder %s296, %s298
      %p302 = scmp.eq.s32.totalorder %s28, 0
      %p303 = por %p301, %p302
      %p304 = scmp.ne.s32.totalorder %s296, %s298
      %p305 = scmp.eq.s32.totalorder %s33, 3
      %p306 = por %p304, %p305
      %p307 = scmp.ne.s32.totalorder %s298, %s299
      %p308 = scmp.eq.s32.totalorder %s33, 0
      %p309 = por %p307, %p308
      %p310 = scmp.ne.s32.totalorder %s298, %s299
      %p311 = scmp.eq.s32.totalorder %s34, 3
      %p312 = por %p310, %p311
      %p314 = scmp.ne.s32.totalorder %s299, %s313
      %p315 = scmp.eq.s32.totalorder %s34, 0
      %p316 = por %p314, %p315
      %s318 = sadd.s32 %s317, 1
      %p321 = scmp.eq.s32.totalorder %s28, 3
      %p322 = scmp.ne.s32.totalorder %s317, %s319
      %p323 = scmp.eq.s32.totalorder %s28, 0
      %p324 = por %p322, %p323
      %p325 = scmp.ne.s32.totalorder %s317, %s319
      %p326 = scmp.eq.s32.totalorder %s33, 3
      %p327 = por %p325, %p326
      %p328 = scmp.ne.s32.totalorder %s319, %s320
      %p329 = scmp.eq.s32.totalorder %s33, 0
      %p330 = por %p328, %p329
      %p331 = scmp.ne.s32.totalorder %s319, %s320
      %p332 = scmp.eq.s32.totalorder %s34, 3
      %p333 = por %p331, %p332
      %p335 = scmp.ne.s32.totalorder %s320, %s334
      %p336 = scmp.eq.s32.totalorder %s34, 0
      %p337 = por %p335, %p336
      %s339 = sadd.s32 %s338, 1
      %p342 = scmp.eq.s32.totalorder %s28, 3
      %p343 = scmp.ne.s32.totalorder %s338, %s340
      %p344 = scmp.eq.s32.totalorder %s28, 0
      %p345 = por %p343, %p344
      %p346 = scmp.ne.s32.totalorder %s338, %s340
      %p347 = scmp.eq.s32.totalorder %s33, 3
      %p348 = por %p346, %p347
      %p349 = scmp.ne.s32.totalorder %s340, %s341
      %p350 = scmp.eq.s32.totalorder %s33, 0
      %p351 = por %p349, %p350
      %p352 = scmp.ne.s32.totalorder %s340, %s341
      %p353 = scmp.eq.s32.totalorder %s34, 3
      %p354 = por %p352, %p353
      %p356 = scmp.ne.s32.totalorder %s341, %s355
      %p357 = scmp.eq.s32.totalorder %s34, 0
      %p358 = por %p356, %p357
      %s360 = sadd.s32 %s359, 1
      %p363 = scmp.eq.s32.totalorder %s28, 3
      %p364 = scmp.ne.s32.totalorder %s359, %s361
      %p365 = scmp.eq.s32.totalorder %s28, 0
      %p366 = por %p364, %p365
      %p367 = scmp.ne.s32.totalorder %s359, %s361
      %p368 = scmp.eq.s32.totalorder %s33, 3
      %p369 = por %p367, %p368
      %p370 = scmp.ne.s32.totalorder %s361, %s362
      %p371 = scmp.eq.s32.totalorder %s33, 0
      %p372 = por %p370, %p371
      %p373 = scmp.ne.s32.totalorder %s361, %s362
      %p374 = scmp.eq.s32.totalorder %s34, 3
      %p375 = por %p373, %p374
      %p377 = scmp.ne.s32.totalorder %s362, %s376
      %p378 = scmp.eq.s32.totalorder %s34, 0
      %p379 = por %p377, %p378
      %s381 = sadd.s32 %s380, 1
      %p384 = scmp.eq.s32.totalorder %s28, 3
      %p385 = scmp.ne.s32.totalorder %s380, %s382
      %p386 = scmp.eq.s32.totalorder %s28, 0
      %p387 = por %p385, %p386
      %p388 = scmp.ne.s32.totalorder %s380, %s382
      %p389 = scmp.eq.s32.totalorder %s33, 3
      %p390 = por %p388, %p389
      %p391 = scmp.ne.s32.totalorder %s382, %s383
      %p392 = scmp.eq.s32.totalorder %s33, 0
      %p393 = por %p391, %p392
      %p394 = scmp.ne.s32.totalorder %s382, %s383
      %p395 = scmp.eq.s32.totalorder %s34, 3
      %p396 = por %p394, %p395
      %p398 = scmp.ne.s32.totalorder %s383, %s397
      %p399 = scmp.eq.s32.totalorder %s34, 0
      %p400 = por %p398, %p399
      %s402 = sadd.s32 %s401, 1
      %p405 = scmp.eq.s32.totalorder %s28, 3
      %p406 = scmp.ne.s32.totalorder %s401, %s403
      %p407 = scmp.eq.s32.totalorder %s28, 0
      %p408 = por %p406, %p407
      %p409 = scmp.ne.s32.totalorder %s401, %s403
      %p410 = scmp.eq.s32.totalorder %s33, 3
      %p411 = por %p409, %p410
      %p412 = scmp.ne.s32.totalorder %s403, %s404
      %p413 = scmp.eq.s32.totalorder %s33, 0
      %p414 = por %p412, %p413
      %p415 = scmp.ne.s32.totalorder %s403, %s404
      %p416 = scmp.eq.s32.totalorder %s34, 3
      %p417 = por %p415, %p416
      %p419 = scmp.ne.s32.totalorder %s404, %s418
      %p420 = scmp.eq.s32.totalorder %s34, 0
      %p421 = por %p419, %p420
      %s422 = ssub.s32 %s35, %s47
      %s423 = ssub.s32 %s36, %s43
      %s424 = sor.u32 %s422, %s423
      %p425 = scmp.eq.s32.totalorder %s424, 0
      %s427 = sadd.s32 %s426, 1
      %s428 = scalar_select %p425, %s426, %s427
      %p431 = pneg %p425
      %p432 = scmp.eq.s32.totalorder %s28, 3
      %p433 = por %p431, %p432
      %p434 = scmp.ne.s32.totalorder %s426, %s429
      %p435 = scmp.eq.s32.totalorder %s28, 0
      %p436 = por %p434, %p435
      %p437 = scmp.ne.s32.totalorder %s426, %s429
      %p438 = scmp.eq.s32.totalorder %s33, 3
      %p439 = por %p437, %p438
      %p440 = scmp.ne.s32.totalorder %s429, %s430
      %p441 = scmp.eq.s32.totalorder %s33, 0
      %p442 = por %p440, %p441
      %p443 = scmp.ne.s32.totalorder %s429, %s430
      %p444 = scmp.eq.s32.totalorder %s34, 3
      %p445 = por %p443, %p444
      %p447 = scmp.ne.s32.totalorder %s430, %s446
      %p448 = scmp.eq.s32.totalorder %s34, 0
      %p449 = por %p447, %p448
      %s450 = ssub.s32 %s35, %s47
      %p451 = scmp.eq.s32.totalorder %s450, 0
      %s453 = sadd.s32 %s452, 1
      %s454 = scalar_select %p451, %s452, %s453
      %p457 = pneg %p451
      %p458 = scmp.eq.s32.totalorder %s28, 3
      %p459 = por %p457, %p458
      %p460 = scmp.ne.s32.totalorder %s452, %s455
      %p461 = scmp.eq.s32.totalorder %s28, 0
      %p462 = por %p460, %p461
      %p463 = scmp.ne.s32.totalorder %s452, %s455
      %p464 = scmp.eq.s32.totalorder %s33, 3
      %p465 = por %p463, %p464
      %p466 = scmp.ne.s32.totalorder %s455, %s456
      %p467 = scmp.eq.s32.totalorder %s33, 0
      %p468 = por %p466, %p467
      %p469 = scmp.ne.s32.totalorder %s455, %s456
      %p470 = scmp.eq.s32.totalorder %s34, 3
      %p471 = por %p469, %p470
      %p473 = scmp.ne.s32.totalorder %s456, %s472
      %p474 = scmp.eq.s32.totalorder %s34, 0
      %p475 = por %p473, %p474
      %p476 = scmp.le.s32.totalorder 1, %s28
      %p477 = scmp.lt.s32.totalorder %s28, 5
      %p478 = pnand %p476, %p477
      %p479 = pneg %p478
      // Predicated region
      $region9: #{tpu_custom_call.1} parent=5 // pred_check
        _
      $region10: #{tpu_custom_call.1} parent=5 // pred_check_branch
        %481 = sbr.rel (%p478) target = $region12
      $region11: #{tpu_custom_call.1} parent=5 // pred_region
        %s482 = ssub.s32 %s28, 1
        // Predicated region
        $region13: #{tpu_custom_call.1} parent=11 // pred_check
          %p483 = pneg %p141
        $region14: #{tpu_custom_call.1} parent=11 // pred_check_branch
          %485 = sbr.rel (%p483) target = $region16
        $region15: #{tpu_custom_call.1} parent=11 // pred_region
          _
        $region16: #{tpu_custom_call.1} parent=11 // pred_fallthru
          _
        // Predicated region
        $region17: #{tpu_custom_call.1} parent=11 // pred_check
          %p486 = pneg %p162
        $region18: #{tpu_custom_call.1} parent=11 // pred_check_branch
          %488 = sbr.rel (%p486) target = $region20
        $region19: #{tpu_custom_call.1} parent=11 // pred_region
          _
        $region20: #{tpu_custom_call.1} parent=11 // pred_fallthru
          _
        // Predicated region
        $region21: #{tpu_custom_call.1} parent=11 // pred_check
          %p489 = pneg %p183
        $region22: #{tpu_custom_call.1} parent=11 // pred_check_branch
          %491 = sbr.rel (%p489) target = $region24
        $region23: #{tpu_custom_call.1} parent=11 // pred_region
          _
        $region24: #{tpu_custom_call.1} parent=11 // pred_fallthru
          _
        // Predicated region
        $region25: #{tpu_custom_call.1} parent=11 // pred_check
          %p492 = pneg %p204
        $region26: #{tpu_custom_call.1} parent=11 // pred_check_branch
          %494 = sbr.rel (%p492) target = $region28
        $region27: #{tpu_custom_call.1} parent=11 // pred_region
          _
        $region28: #{tpu_custom_call.1} parent=11 // pred_fallthru
          _
        // Predicated region
        $region29: #{tpu_custom_call.1} parent=11 // pred_check
          %p495 = pneg %p225
        $region30: #{tpu_custom_call.1} parent=11 // pred_check_branch
          %497 = sbr.rel (%p495) target = $region32
        $region31: #{tpu_custom_call.1} parent=11 // pred_region
          _
        $region32: #{tpu_custom_call.1} parent=11 // pred_fallthru
          _
        // Predicated region
        $region33: #{tpu_custom_call.1} parent=11 // pred_check
          %p498 = pneg %p246
        $region34: #{tpu_custom_call.1} parent=11 // pred_check_branch
          %500 = sbr.rel (%p498) target = $region36
        $region35: #{tpu_custom_call.1} parent=11 // pred_region
          _
        $region36: #{tpu_custom_call.1} parent=11 // pred_fallthru
          _
        // Predicated region
        $region37: #{tpu_custom_call.1} parent=11 // pred_check
          %p501 = pneg %p267
        $region38: #{tpu_custom_call.1} parent=11 // pred_check_branch
          %503 = sbr.rel (%p501) target = $region40
        $region39: #{tpu_custom_call.1} parent=11 // pred_region
          _
        $region40: #{tpu_custom_call.1} parent=11 // pred_fallthru
          _
        // Predicated region
        $region41: #{tpu_custom_call.1} parent=11 // pred_check
          %p504 = pneg %p288
        $region42: #{tpu_custom_call.1} parent=11 // pred_check_branch
          %506 = sbr.rel (%p504) target = $region44
        $region43: #{tpu_custom_call.1} parent=11 // pred_region
          _
        $region44: #{tpu_custom_call.1} parent=11 // pred_fallthru
          _
        // Predicated region
        $region45: #{tpu_custom_call.1} parent=11 // pred_check
          %p507 = pneg %p309
        $region46: #{tpu_custom_call.1} parent=11 // pred_check_branch
          %509 = sbr.rel (%p507) target = $region48
        $region47: #{tpu_custom_call.1} parent=11 // pred_region
          _
        $region48: #{tpu_custom_call.1} parent=11 // pred_fallthru
          _
        // Predicated region
        $region49: #{tpu_custom_call.1} parent=11 // pred_check
          %p510 = pneg %p330
        $region50: #{tpu_custom_call.1} parent=11 // pred_check_branch
          %512 = sbr.rel (%p510) target = $region52
        $region51: #{tpu_custom_call.1} parent=11 // pred_region
          _
        $region52: #{tpu_custom_call.1} parent=11 // pred_fallthru
          _
        // Predicated region
        $region53: #{tpu_custom_call.1} parent=11 // pred_check
          %p513 = pneg %p351
        $region54: #{tpu_custom_call.1} parent=11 // pred_check_branch
          %515 = sbr.rel (%p513) target = $region56
        $region55: #{tpu_custom_call.1} parent=11 // pred_region
          _
        $region56: #{tpu_custom_call.1} parent=11 // pred_fallthru
          _
        // Predicated region
        $region57: #{tpu_custom_call.1} parent=11 // pred_check
          %p516 = pneg %p372
        $region58: #{tpu_custom_call.1} parent=11 // pred_check_branch
          %518 = sbr.rel (%p516) target = $region60
        $region59: #{tpu_custom_call.1} parent=11 // pred_region
          _
        $region60: #{tpu_custom_call.1} parent=11 // pred_fallthru
          _
        // Predicated region
        $region61: #{tpu_custom_call.1} parent=11 // pred_check
          %p519 = pneg %p393
        $region62: #{tpu_custom_call.1} parent=11 // pred_check_branch
          %521 = sbr.rel (%p519) target = $region64
        $region63: #{tpu_custom_call.1} parent=11 // pred_region
          _
        $region64: #{tpu_custom_call.1} parent=11 // pred_fallthru
          _
        // Predicated region
        $region65: #{tpu_custom_call.1} parent=11 // pred_check
          %p522 = pneg %p414
        $region66: #{tpu_custom_call.1} parent=11 // pred_check_branch
          %524 = sbr.rel (%p522) target = $region68
        $region67: #{tpu_custom_call.1} parent=11 // pred_region
          _
        $region68: #{tpu_custom_call.1} parent=11 // pred_fallthru
          _
      $region12: #{tpu_custom_call.1} parent=5 // pred_fallthru
        _
      %p525 = scmp.lt.s32.totalorder %s28, 4
      // Predicated region
      $region69: #{tpu_custom_call.1} parent=5 // pred_check
        %p526 = pneg %p525
      $region70: #{tpu_custom_call.1} parent=5 // pred_check_branch
        %528 = sbr.rel (%p526) target = $region72
      $region71: #{tpu_custom_call.1} parent=5 // pred_region
        // Predicated region
        $region73: #{tpu_custom_call.1} parent=71 // pred_check
          %p529 = pneg %p62
        $region74: #{tpu_custom_call.1} parent=71 // pred_check_branch
          %531 = sbr.rel (%p529) target = $region76
        $region75: #{tpu_custom_call.1} parent=71 // pred_region
          %s532 = smul.u32 16, %s36
          %p533 = scmp.lt.s32.totalorder %s35, 1
          %s534 = scalar_select %p533, %s35, 1
          %p535 = scmp.lt.s32.totalorder %s532, 31
          %s536 = scalar_select %p535, %s532, 31
          %s537 = smul.addr %s534, 32
          %s538 = sadd.s32 %s536, %s537
          %s539 = smul.addr %s538, 8
          %s540 = scalar_lea.vmem %s0, %s539
          %s541 = smul.u32 16, %s36
        $region76: #{tpu_custom_call.1} parent=71 // pred_fallthru
          _
        // Predicated region
        $region77: #{tpu_custom_call.1} parent=71 // pred_check
          %p542 = pneg %p88
        $region78: #{tpu_custom_call.1} parent=71 // pred_check_branch
          %544 = sbr.rel (%p542) target = $region80
        $region79: #{tpu_custom_call.1} parent=71 // pred_region
          %p545 = scmp.lt.s32.totalorder %s35, 1
          %s546 = scalar_select %p545, %s35, 1
          %s547 = smul.addr %s546, 4
          %s548 = scalar_lea.vmem %s1, %s547
        $region80: #{tpu_custom_call.1} parent=71 // pred_fallthru
          _
        // Predicated region
        $region81: #{tpu_custom_call.1} parent=71 // pred_check
          %p549 = pneg %p114
        $region82: #{tpu_custom_call.1} parent=71 // pred_check_branch
          %551 = sbr.rel (%p549) target = $region84
        $region83: #{tpu_custom_call.1} parent=71 // pred_region
          %p552 = scmp.lt.s32.totalorder %s35, 1
          %s553 = scalar_select %p552, %s35, 1
          %s554 = scalar_lea.vmem %s2, %s553
        $region84: #{tpu_custom_call.1} parent=71 // pred_fallthru
          _
      $region72: #{tpu_custom_call.1} parent=5 // pred_fallthru
        _
      %p555 = scmp.le.s32.totalorder 1, %s28
      %p556 = scmp.lt.s32.totalorder %s28, 5
      %p557 = pnand %p555, %p556
      %p558 = pneg %p557
      // Predicated region
      $region85: #{tpu_custom_call.1} parent=5 // pred_check
        _
      $region86: #{tpu_custom_call.1} parent=5 // pred_check_branch
        %560 = sbr.rel (%p557) target = $region88
      $region87: #{tpu_custom_call.1} parent=5 // pred_region
        %s561 = ssub.s32 %s28, 1
        %s562 = smul.u32 16, %s38
        %p563 = scmp.lt.s32.totalorder %s37, 1
        %s564 = scalar_select %p563, %s37, 1
        %p565 = scmp.lt.s32.totalorder %s562, 31
        %s566 = scalar_select %p565, %s562, 31
        %s567 = smul.addr %s564, 32
        %s568 = sadd.s32 %s566, %s567
        %s569 = smul.addr %s568, 8
        %s570 = scalar_lea.vmem %s0, %s569
        %p571 = pneg %p68
        %p572 = pneg %p65
        %p573 = scmp.lt.s32.totalorder %s37, 1
        %s574 = scalar_select %p573, %s37, 1
        %s575 = smul.addr %s574, 4
        %s576 = scalar_lea.vmem %s1, %s575
        %p577 = pneg %p94
        %p578 = pneg %p91
        %p579 = scmp.lt.s32.totalorder %s37, 1
        %s580 = scalar_select %p579, %s37, 1
        %s581 = scalar_lea.vmem %s2, %s580
        %p582 = pneg %p120
        %p583 = pneg %p117
        %p584 = pneg %p141
        %p585 = pneg %p138
        %p586 = pneg %p162
        %p587 = pneg %p159
        %p588 = pneg %p183
        %p589 = pneg %p180
        %p590 = pneg %p204
        %p591 = pneg %p201
        %p592 = pneg %p225
        %p593 = pneg %p222
        %p594 = pneg %p246
        %p595 = pneg %p243
        %p596 = pneg %p267
        %p597 = pneg %p264
        %p598 = pneg %p288
        %p599 = pneg %p285
        %p600 = pneg %p309
        %p601 = pneg %p306
        %p602 = pneg %p330
        %p603 = pneg %p327
        %p604 = pneg %p351
        %p605 = pneg %p348
        %p606 = pneg %p372
        %p607 = pneg %p369
        %p608 = pneg %p393
        %p609 = pneg %p390
        %p610 = pneg %p414
        %p611 = pneg %p411
        %p612 = pneg %p442
        %p613 = pneg %p439
        %s614 = smul.u32 16, %s38
        %p615 = scmp.lt.s32.totalorder %s37, 1
        %s616 = scalar_select %p615, %s37, 1
        %p617 = scmp.lt.s32.totalorder %s614, 31
        %s618 = scalar_select %p617, %s614, 31
        %s619 = smul.addr %s616, 32
        %s620 = sadd.s32 %s618, %s619
        %s621 = smul.addr %s620, 8
        %s622 = scalar_lea.vmem %s17, %s621
        %p623 = pneg %p468
        %p624 = pneg %p465
        %s625 = sand.u32 %s455, 1
        %s626 = scalar_lea.sflag [#allocation6], %s625
        %s627 = sand.u32 %s455, 1
        %s628 = scalar_lea.vmem [#allocation5], %s627
        %s629 = smul.u32 16, %s38
        %p630 = scmp.lt.s32.totalorder %s37, 1
        %s631 = scalar_select %p630, %s37, 1
        %p632 = scmp.lt.s32.totalorder %s629, 31
        %s633 = scalar_select %p632, %s629, 31
        %s634 = smul.addr %s631, 32
        %s635 = sadd.s32 %s633, %s634
        %s636 = smul.addr %s635, 8
        %s637 = scalar_lea.vmem %s0, %s636
        %s638 = smul.u32 16, %s38
        %p639 = scmp.lt.s32.totalorder %s37, 1
        %s640 = scalar_select %p639, %s37, 1
        %s641 = smul.addr %s640, 4
        %s642 = scalar_lea.vmem %s1, %s641
        %p643 = scmp.lt.s32.totalorder %s37, 1
        %s644 = scalar_select %p643, %s37, 1
        %s645 = scalar_lea.vmem %s2, %s644
        %s646 = smul.u32 16, %s38
        %p647 = scmp.lt.s32.totalorder %s37, 1
        %s648 = scalar_select %p647, %s37, 1
        %p649 = scmp.lt.s32.totalorder %s646, 31
        %s650 = scalar_select %p649, %s646, 31
        %s651 = smul.addr %s648, 32
        %s652 = sadd.s32 %s650, %s651
        %s653 = smul.addr %s652, 8
        %s654 = scalar_lea.vmem %s17, %s653
        %s655 = smul.u32 16, %s38
        %p656 = scmp.eq.s32.totalorder %s38, 0
        // Predicated region
        $region89: #{tpu_custom_call.1} parent=87 // pred_check
          %p657 = pneg %p656
        $region90: #{tpu_custom_call.1} parent=87 // pred_check_branch
          %659 = sbr.rel (%p657) target = $region92
        $region91: #{tpu_custom_call.1} parent=87 // pred_region
          %v660 = vld [vmem:[%s645] sm:$0x1]
          %vm661 = vcmask 57344
          %662 = vst.msk [vmem:[#allocation2] sm:$0x1] %vm661, %v660
        $region92: #{tpu_custom_call.1} parent=87 // pred_fallthru
          _
        %v663 = vld [vmem:[%s637] sm:$0xff]
        %v664 = vld [vmem:[%s637 + $0x8] sm:$0xff]
        %v665 = vld [vmem:[%s637 + $0x10] sm:$0xff]
        %v666 = vld [vmem:[%s637 + $0x18] sm:$0xff]
        %v667 = vld [vmem:[%s637 + $0x20] sm:$0xff]
        %v668 = vld [vmem:[%s637 + $0x28] sm:$0xff]
        %v669 = vld [vmem:[%s637 + $0x30] sm:$0xff]
        %v670 = vld [vmem:[%s637 + $0x38] sm:$0xff]
        %v671 = vld [vmem:[%s637 + $0x40] sm:$0xff]
        %v672 = vld [vmem:[%s637 + $0x48] sm:$0xff]
        %v673 = vld [vmem:[%s637 + $0x50] sm:$0xff]
        %v674 = vld [vmem:[%s637 + $0x58] sm:$0xff]
        %v675 = vld [vmem:[%s637 + $0x60] sm:$0xff]
        %v676 = vld [vmem:[%s637 + $0x68] sm:$0xff]
        %v677 = vld [vmem:[%s637 + $0x70] sm:$0xff]
        %v678 = vld [vmem:[%s637 + $0x78] sm:$0xff]
        %v679 = vld [vmem:[%s642] sm:$0xf]
        %v680 = vld [vmem:[%s3] sm:$0x1]
        %v681 = vld [vmem:[%s4] sm:$0xff]
        %v682 = vld [vmem:[%s5] sm:$0x1]
        %v683 = vld [vmem:[%s7] sm:$0xff]
        %685 = vset.pattern.permute.xlu0 0
        %686 = vperm.xlu0 %685, %v663
        %v687 = vpop.permute.xlu0 %686
        %690 = vset.pattern.permute.xlu0 0
        %691 = vperm.xlu0 %690, %v664
        %v692 = vpop.permute.xlu0 %691
        %695 = vset.pattern.permute.xlu0 0
        %696 = vperm.xlu0 %695, %v665
        %v697 = vpop.permute.xlu0 %696
        %700 = vset.pattern.permute.xlu0 0
        %701 = vperm.xlu0 %700, %v666
        %v702 = vpop.permute.xlu0 %701
        %705 = vset.pattern.permute.xlu0 0
        %706 = vperm.xlu0 %705, %v667
        %v707 = vpop.permute.xlu0 %706
        %710 = vset.pattern.permute.xlu0 0
        %711 = vperm.xlu0 %710, %v668
        %v712 = vpop.permute.xlu0 %711
        %715 = vset.pattern.permute.xlu0 0
        %716 = vperm.xlu0 %715, %v669
        %v717 = vpop.permute.xlu0 %716
        %720 = vset.pattern.permute.xlu0 0
        %721 = vperm.xlu0 %720, %v670
        %v722 = vpop.permute.xlu0 %721
        %725 = vset.pattern.permute.xlu0 0
        %726 = vperm.xlu0 %725, %v671
        %v727 = vpop.permute.xlu0 %726
        %730 = vset.pattern.permute.xlu0 0
        %731 = vperm.xlu0 %730, %v672
        %v732 = vpop.permute.xlu0 %731
        %735 = vset.pattern.permute.xlu0 0
        %736 = vperm.xlu0 %735, %v673
        %v737 = vpop.permute.xlu0 %736
        %740 = vset.pattern.permute.xlu0 0
        %741 = vperm.xlu0 %740, %v674
        %v742 = vpop.permute.xlu0 %741
        %745 = vset.pattern.permute.xlu0 0
        %746 = vperm.xlu0 %745, %v675
        %v747 = vpop.permute.xlu0 %746
        %750 = vset.pattern.permute.xlu0 0
        %751 = vperm.xlu0 %750, %v676
        %v752 = vpop.permute.xlu0 %751
        %755 = vset.pattern.permute.xlu0 0
        %756 = vperm.xlu0 %755, %v677
        %v757 = vpop.permute.xlu0 %756
        %760 = vset.pattern.permute.xlu0 0
        %761 = vperm.xlu0 %760, %v678
        %v762 = vpop.permute.xlu0 %761
        %v765 = vlaneseq
        %v766 = vshrl.u32 %v765, 7
        %v767 = vsub.s32 0, %v766
        %v768 = vrot.slane %v680, %v767
        %v770 = vmul.f32 %v687, %v768
        %v771 = vmul.f32 %v692, %v768
        %v772 = vmul.f32 %v697, %v768
        %v773 = vmul.f32 %v702, %v768
        %v774 = vmul.f32 %v707, %v768
        %v775 = vmul.f32 %v712, %v768
        %v776 = vmul.f32 %v717, %v768
        %v777 = vmul.f32 %v722, %v768
        %v778 = vmul.f32 %v727, %v768
        %v779 = vmul.f32 %v732, %v768
        %v780 = vmul.f32 %v737, %v768
        %v781 = vmul.f32 %v742, %v768
        %v782 = vmul.f32 %v747, %v768
        %v783 = vmul.f32 %v752, %v768
        %v784 = vmul.f32 %v757, %v768
        %v785 = vmul.f32 %v762, %v768
        %v786 = vlaneseq
        %v787 = vshrl.u32 %v786, 7
        %v788 = vsub.s32 0, %v787
        %v789 = vrot.slane %v679, %v788
        %v790 = vadd.f32 %v770, %v789
        %v791 = vadd.f32 %v771, %v789
        %v792 = vadd.f32 %v772, %v789
        %v793 = vadd.f32 %v773, %v789
        %v794 = vadd.f32 %v774, %v789
        %v795 = vadd.f32 %v775, %v789
        %v796 = vadd.f32 %v776, %v789
        %v797 = vadd.f32 %v777, %v789
        %v798 = vadd.f32 %v778, %v789
        %v799 = vadd.f32 %v779, %v789
        %v800 = vadd.f32 %v780, %v789
        %v801 = vadd.f32 %v781, %v789
        %v802 = vadd.f32 %v782, %v789
        %v803 = vadd.f32 %v783, %v789
        %v804 = vadd.f32 %v784, %v789
        %v805 = vadd.f32 %v785, %v789
        %vm806 = vcmp.ge.f32.partialorder %v790, 0.0
        %vm807 = vcmp.ge.f32.partialorder %v791, 0.0
        %vm808 = vcmp.ge.f32.partialorder %v792, 0.0
        %vm809 = vcmp.ge.f32.partialorder %v793, 0.0
        %vm810 = vcmp.ge.f32.partialorder %v794, 0.0
        %vm811 = vcmp.ge.f32.partialorder %v795, 0.0
        %vm812 = vcmp.ge.f32.partialorder %v796, 0.0
        %vm813 = vcmp.ge.f32.partialorder %v797, 0.0
        %vm814 = vcmp.ge.f32.partialorder %v798, 0.0
        %vm815 = vcmp.ge.f32.partialorder %v799, 0.0
        %vm816 = vcmp.ge.f32.partialorder %v800, 0.0
        %vm817 = vcmp.ge.f32.partialorder %v801, 0.0
        %vm818 = vcmp.ge.f32.partialorder %v802, 0.0
        %vm819 = vcmp.ge.f32.partialorder %v803, 0.0
        %vm820 = vcmp.ge.f32.partialorder %v804, 0.0
        %vm821 = vcmp.ge.f32.partialorder %v805, 0.0
        %v822 = vmul.f32 %v790, 0.2
        %v823 = vmul.f32 %v791, 0.2
        %v824 = vmul.f32 %v792, 0.2
        %v825 = vmul.f32 %v793, 0.2
        %v826 = vmul.f32 %v794, 0.2
        %v827 = vmul.f32 %v795, 0.2
        %v828 = vmul.f32 %v796, 0.2
        %v829 = vmul.f32 %v797, 0.2
        %v830 = vmul.f32 %v798, 0.2
        %v831 = vmul.f32 %v799, 0.2
        %v832 = vmul.f32 %v800, 0.2
        %v833 = vmul.f32 %v801, 0.2
        %v834 = vmul.f32 %v802, 0.2
        %v835 = vmul.f32 %v803, 0.2
        %v836 = vmul.f32 %v804, 0.2
        %v837 = vmul.f32 %v805, 0.2
        %v838 = vsel %vm806, %v790, %v822
        %v839 = vsel %vm807, %v791, %v823
        %v840 = vsel %vm808, %v792, %v824
        %v841 = vsel %vm809, %v793, %v825
        %v842 = vsel %vm810, %v794, %v826
        %v843 = vsel %vm811, %v795, %v827
        %v844 = vsel %vm812, %v796, %v828
        %v845 = vsel %vm813, %v797, %v829
        %v846 = vsel %vm814, %v798, %v830
        %v847 = vsel %vm815, %v799, %v831
        %v848 = vsel %vm816, %v800, %v832
        %v849 = vsel %vm817, %v801, %v833
        %v850 = vsel %vm818, %v802, %v834
        %v851 = vsel %vm819, %v803, %v835
        %v852 = vsel %vm820, %v804, %v836
        %v853 = vsel %vm821, %v805, %v837
        %v855 = vlaneseq
        %v856 = vshrl.u32 %v855, 7
        %v857 = vsub.s32 0, %v856
        %v858 = vrot.slane %v682, %v857
        %vm860 = vcmask 64512
        %v862 = vsel %vm860, %v838, 0
        %v865 = vsel %vm860, %v839, 0
        %v868 = vsel %vm860, %v840, 0
        %v871 = vsel %vm860, %v841, 0
        %v874 = vsel %vm860, %v842, 0
        %v877 = vsel %vm860, %v843, 0
        %v880 = vsel %vm860, %v844, 0
        %v883 = vsel %vm860, %v845, 0
        %v886 = vsel %vm860, %v846, 0
        %v889 = vsel %vm860, %v847, 0
        %v892 = vsel %vm860, %v848, 0
        %v895 = vsel %vm860, %v849, 0
        %v898 = vsel %vm860, %v850, 0
        %v901 = vsel %vm860, %v851, 0
        %v904 = vsel %vm860, %v852, 0
        %v907 = vsel %vm860, %v853, 0
        %909 = vmatprep.subr.mxu0 0.0
        %910 = vmatpush1.msra.mxu0 %v681
        %911 = vmatprep.subr.mxu0 0.0
        %912 = vmatpush1.msra.mxu0 0.0
        %913 = vmatprep.subr.mxu0 0.0
        %914 = vmatpush1.msra.mxu0 0.0
        %915 = vmatprep.subr.mxu0 0.0
        %916 = vmatpush1.msra.mxu0 0.0
        %917 = vmatprep.subr.mxu0 0.0
        %918 = vmatpush1.msra.mxu0 0.0
        %919 = vmatprep.subr.mxu0 0.0
        %920 = vmatpush1.msra.mxu0 0.0
        %921 = vmatprep.subr.mxu0 0.0
        %922 = vmatpush1.msra.mxu0 0.0
        %923 = vmatprep.subr.mxu0 0.0
        %924 = vmatpush1.msra.mxu0 0.0
        %925 = vmatprep.subr.mxu0 0.0
        %926 = vmatpush1.msra.mxu0 0.0
        %927 = vmatprep.subr.mxu0 0.0
        %928 = vmatpush1.msra.mxu0 0.0
        %929 = vmatprep.subr.mxu0 0.0
        %930 = vmatpush1.msra.mxu0 0.0
        %931 = vmatprep.subr.mxu0 0.0
        %932 = vmatpush1.msra.mxu0 0.0
        %933 = vmatprep.subr.mxu0 0.0
        %934 = vmatpush1.msra.mxu0 0.0
        %935 = vmatprep.subr.mxu0 0.0
        %936 = vmatpush1.msra.mxu0 0.0
        %937 = vmatprep.subr.mxu0 0.0
        %938 = vmatpush1.msra.mxu0 0.0
        %939 = vmatprep.subr.mxu0 0.0
        %940 = vmatpush1.msra.mxu0 0.0
        %941 = vmatprep.subr.mxu0 0.0
        %942 = vmatpush1.msra.mxu0 0.0
        %943 = vmatprep.subr.mxu0 0.0
        %944 = vmatpush1.msra.mxu0 0.0
        %945 = vmatprep.subr.mxu0 0.0
        %946 = vmatpush1.msra.mxu0 0.0
        %947 = vmatprep.subr.mxu0 0.0
        %948 = vmatpush1.msra.mxu0 0.0
        %949 = vmatprep.subr.mxu0 0.0
        %950 = vmatpush1.msra.mxu0 0.0
        %951 = vmatprep.subr.mxu0 0.0
        %952 = vmatpush1.msra.mxu0 0.0
        %953 = vmatprep.subr.mxu0 0.0
        %954 = vmatpush1.msra.mxu0 0.0
        %955 = vmatprep.subr.mxu0 0.0
        %956 = vmatpush1.msra.mxu0 0.0
        %957 = vmatprep.subr.mxu0 0.0
        %958 = vmatpush1.msra.mxu0 0.0
        %959 = vmatprep.subr.mxu0 0.0
        %960 = vmatpush1.msra.mxu0 0.0
        %961 = vmatprep.subr.mxu0 0.0
        %962 = vmatpush1.msra.mxu0 0.0
        %963 = vmatprep.subr.mxu0 0.0
        %964 = vmatpush1.msra.mxu0 0.0
        %965 = vmatprep.subr.mxu0 0.0
        %966 = vmatpush1.msra.mxu0 0.0
        %967 = vmatprep.subr.mxu0 0.0
        %968 = vmatpush1.msra.mxu0 0.0
        %969 = vmatprep.subr.mxu0 0.0
        %970 = vmatpush1.msra.mxu0 0.0
        %971 = vmatprep.subr.mxu0 0.0
        %972 = vmatpush1.msra.mxu0 0.0
        %973 = vmatprep.mubr.f32.mxu0 0.0
        %974 = vmatmul.mubr.f32.gmra.mrb[0].mxu0 %v862
        %v975 = vpop.f32.mrb[0].mxu0
        %v976 = vadd.f32 %v858, %v975
        %v977 = vpop.f32.mrb[0].mxu0
        %978 = vmatprep.mubr.f32.mxu0 0.0
        %979 = vmatmul.mubr.f32.gmra.mrb[0].mxu0 %v865
        %v980 = vpop.f32.mrb[0].mxu0
        %v981 = vadd.f32 %v858, %v980
        %v982 = vpop.f32.mrb[0].mxu0
        %983 = vmatprep.mubr.f32.mxu0 0.0
        %984 = vmatmul.mubr.f32.gmra.mrb[0].mxu0 %v868
        %v985 = vpop.f32.mrb[0].mxu0
        %v986 = vadd.f32 %v858, %v985
        %v987 = vpop.f32.mrb[0].mxu0
        %988 = vmatprep.mubr.f32.mxu0 0.0
        %989 = vmatmul.mubr.f32.gmra.mrb[0].mxu0 %v871
        %v990 = vpop.f32.mrb[0].mxu0
        %v991 = vadd.f32 %v858, %v990
        %v992 = vpop.f32.mrb[0].mxu0
        %993 = vmatprep.mubr.f32.mxu0 0.0
        %994 = vmatmul.mubr.f32.gmra.mrb[0].mxu0 %v874
        %v995 = vpop.f32.mrb[0].mxu0
        %v996 = vadd.f32 %v858, %v995
        %v997 = vpop.f32.mrb[0].mxu0
        %998 = vmatprep.mubr.f32.mxu0 0.0
        %999 = vmatmul.mubr.f32.gmra.mrb[0].mxu0 %v877
        %v1000 = vpop.f32.mrb[0].mxu0
        %v1001 = vadd.f32 %v858, %v1000
        %v1002 = vpop.f32.mrb[0].mxu0
        %1003 = vmatprep.mubr.f32.mxu0 0.0
        %1004 = vmatmul.mubr.f32.gmra.mrb[0].mxu0 %v880
        %v1005 = vpop.f32.mrb[0].mxu0
        %v1006 = vadd.f32 %v858, %v1005
        %v1007 = vpop.f32.mrb[0].mxu0
        %1008 = vmatprep.mubr.f32.mxu0 0.0
        %1009 = vmatmul.mubr.f32.gmra.mrb[0].mxu0 %v883
        %v1010 = vpop.f32.mrb[0].mxu0
        %v1011 = vadd.f32 %v858, %v1010
        %v1012 = vpop.f32.mrb[0].mxu0
        %1013 = vmatprep.mubr.f32.mxu0 0.0
        %1014 = vmatmul.mubr.f32.gmra.mrb[0].mxu0 %v886
        %v1015 = vpop.f32.mrb[0].mxu0
        %v1016 = vadd.f32 %v858, %v1015
        %v1017 = vpop.f32.mrb[0].mxu0
        %1018 = vmatprep.mubr.f32.mxu0 0.0
        %1019 = vmatmul.mubr.f32.gmra.mrb[0].mxu0 %v889
        %v1020 = vpop.f32.mrb[0].mxu0
        %v1021 = vadd.f32 %v858, %v1020
        %v1022 = vpop.f32.mrb[0].mxu0
        %1023 = vmatprep.mubr.f32.mxu0 0.0
        %1024 = vmatmul.mubr.f32.gmra.mrb[0].mxu0 %v892
        %v1025 = vpop.f32.mrb[0].mxu0
        %v1026 = vadd.f32 %v858, %v1025
        %v1027 = vpop.f32.mrb[0].mxu0
        %1028 = vmatprep.mubr.f32.mxu0 0.0
        %1029 = vmatmul.mubr.f32.gmra.mrb[0].mxu0 %v895
        %v1030 = vpop.f32.mrb[0].mxu0
        %v1031 = vadd.f32 %v858, %v1030
        %v1032 = vpop.f32.mrb[0].mxu0
        %1033 = vmatprep.mubr.f32.mxu0 0.0
        %1034 = vmatmul.mubr.f32.gmra.mrb[0].mxu0 %v898
        %v1035 = vpop.f32.mrb[0].mxu0
        %v1036 = vadd.f32 %v858, %v1035
        %v1037 = vpop.f32.mrb[0].mxu0
        %1038 = vmatprep.mubr.f32.mxu0 0.0
        %1039 = vmatmul.mubr.f32.gmra.mrb[0].mxu0 %v901
        %v1040 = vpop.f32.mrb[0].mxu0
        %v1041 = vadd.f32 %v858, %v1040
        %v1042 = vpop.f32.mrb[0].mxu0
        %1043 = vmatprep.mubr.f32.mxu0 0.0
        %1044 = vmatmul.mubr.f32.gmra.mrb[0].mxu0 %v904
        %v1045 = vpop.f32.mrb[0].mxu0
        %v1046 = vadd.f32 %v858, %v1045
        %v1047 = vpop.f32.mrb[0].mxu0
        %1048 = vmatprep.mubr.f32.mxu0 0.0
        %1049 = vmatmul.mubr.f32.gmra.mrb[0].mxu0 %v907
        %v1050 = vpop.f32.mrb[0].mxu0
        %v1051 = vadd.f32 %v858, %v1050
        %v1052 = vpop.f32.mrb[0].mxu0
        %1053 = vdwg.mxu0
        %vm1054 = vcmp.ge.f32.partialorder %v976, 0.0
        %vm1055 = vcmp.ge.f32.partialorder %v981, 0.0
        %vm1056 = vcmp.ge.f32.partialorder %v986, 0.0
        %vm1057 = vcmp.ge.f32.partialorder %v991, 0.0
        %vm1058 = vcmp.ge.f32.partialorder %v996, 0.0
        %vm1059 = vcmp.ge.f32.partialorder %v1001, 0.0
        %vm1060 = vcmp.ge.f32.partialorder %v1006, 0.0
        %vm1061 = vcmp.ge.f32.partialorder %v1011, 0.0
        %vm1062 = vcmp.ge.f32.partialorder %v1016, 0.0
        %vm1063 = vcmp.ge.f32.partialorder %v1021, 0.0
        %vm1064 = vcmp.ge.f32.partialorder %v1026, 0.0
        %vm1065 = vcmp.ge.f32.partialorder %v1031, 0.0
        %vm1066 = vcmp.ge.f32.partialorder %v1036, 0.0
        %vm1067 = vcmp.ge.f32.partialorder %v1041, 0.0
        %vm1068 = vcmp.ge.f32.partialorder %v1046, 0.0
        %vm1069 = vcmp.ge.f32.partialorder %v1051, 0.0
        %v1070 = vmul.f32 %v976, 0.2
        %v1071 = vmul.f32 %v981, 0.2
        %v1072 = vmul.f32 %v986, 0.2
        %v1073 = vmul.f32 %v991, 0.2
        %v1074 = vmul.f32 %v996, 0.2
        %v1075 = vmul.f32 %v1001, 0.2
        %v1076 = vmul.f32 %v1006, 0.2
        %v1077 = vmul.f32 %v1011, 0.2
        %v1078 = vmul.f32 %v1016, 0.2
        %v1079 = vmul.f32 %v1021, 0.2
        %v1080 = vmul.f32 %v1026, 0.2
        %v1081 = vmul.f32 %v1031, 0.2
        %v1082 = vmul.f32 %v1036, 0.2
        %v1083 = vmul.f32 %v1041, 0.2
        %v1084 = vmul.f32 %v1046, 0.2
        %v1085 = vmul.f32 %v1051, 0.2
        %v1086 = vsel %vm1054, %v976, %v1070
        %v1087 = vsel %vm1055, %v981, %v1071
        %v1088 = vsel %vm1056, %v986, %v1072
        %v1089 = vsel %vm1057, %v991, %v1073
        %v1090 = vsel %vm1058, %v996, %v1074
        %v1091 = vsel %vm1059, %v1001, %v1075
        %v1092 = vsel %vm1060, %v1006, %v1076
        %v1093 = vsel %vm1061, %v1011, %v1077
        %v1094 = vsel %vm1062, %v1016, %v1078
        %v1095 = vsel %vm1063, %v1021, %v1079
        %v1096 = vsel %vm1064, %v1026, %v1080
        %v1097 = vsel %vm1065, %v1031, %v1081
        %v1098 = vsel %vm1066, %v1036, %v1082
        %v1099 = vsel %vm1067, %v1041, %v1083
        %v1100 = vsel %vm1068, %v1046, %v1084
        %v1101 = vsel %vm1069, %v1051, %v1085
        %v1118 = vcombine.high %v1086, %v1086
        %v1120 = vunpack.c.l.s4 1966171168
        %v1121 = vunpack.c.0.s8 %v1120
        %v1122 = vlaneseq
        %v1123 = vshrl.u32 %v1122, 7
        %v1124 = vsub.s32 %v1121, %v1123
        %v1125 = vrot.slane %v1086, %v1124
        %v1127 = vunpack.c.l.s4 1966171168
        %v1128 = vunpack.c.0.s8 %v1127
        %v1129 = vlaneseq
        %v1130 = vshrl.u32 %v1129, 7
        %v1131 = vsub.s32 %v1128, %v1130
        %v1132 = vrot.slane %v1118, %v1131
        %v1133 = vcombine.high %v1125, %v1125
        %v1134 = vcombine.high %v1132, %v1132
        %v1136 = vunpack.c.l.s4 1966171168
        %v1137 = vunpack.c.0.s8 %v1136
        %v1138 = vlaneseq
        %v1139 = vshrl.u32 %v1138, 7
        %v1140 = vsub.s32 %v1137, %v1139
        %v1141 = vrot.slane %v1125, %v1140
        %v1143 = vunpack.c.l.s4 1966171168
        %v1144 = vunpack.c.0.s8 %v1143
        %v1145 = vlaneseq
        %v1146 = vshrl.u32 %v1145, 7
        %v1147 = vsub.s32 %v1144, %v1146
        %v1148 = vrot.slane %v1132, %v1147
        %v1150 = vunpack.c.l.s4 1966171168
        %v1151 = vunpack.c.0.s8 %v1150
        %v1152 = vlaneseq
        %v1153 = vshrl.u32 %v1152, 7
        %v1154 = vsub.s32 %v1151, %v1153
        %v1155 = vrot.slane %v1133, %v1154
        %v1157 = vunpack.c.l.s4 1966171168
        %v1158 = vunpack.c.0.s8 %v1157
        %v1159 = vlaneseq
        %v1160 = vshrl.u32 %v1159, 7
        %v1161 = vsub.s32 %v1158, %v1160
        %v1162 = vrot.slane %v1134, %v1161
        %v1163 = vcombine.high %v1141, %v1141
        %v1164 = vcombine.high %v1148, %v1148
        %v1165 = vcombine.high %v1155, %v1155
        %v1166 = vcombine.high %v1162, %v1162
        %v1167 = vcombine.high %v1087, %v1087
        %v1169 = vunpack.c.l.s4 1966171168
        %v1170 = vunpack.c.0.s8 %v1169
        %v1171 = vlaneseq
        %v1172 = vshrl.u32 %v1171, 7
        %v1173 = vsub.s32 %v1170, %v1172
        %v1174 = vrot.slane %v1087, %v1173
        %v1176 = vunpack.c.l.s4 1966171168
        %v1177 = vunpack.c.0.s8 %v1176
        %v1178 = vlaneseq
        %v1179 = vshrl.u32 %v1178, 7
        %v1180 = vsub.s32 %v1177, %v1179
        %v1181 = vrot.slane %v1167, %v1180
        %v1182 = vcombine.high %v1174, %v1174
        %v1183 = vcombine.high %v1181, %v1181
        %v1185 = vunpack.c.l.s4 1966171168
        %v1186 = vunpack.c.0.s8 %v1185
        %v1187 = vlaneseq
        %v1188 = vshrl.u32 %v1187, 7
        %v1189 = vsub.s32 %v1186, %v1188
        %v1190 = vrot.slane %v1174, %v1189
        %v1192 = vunpack.c.l.s4 1966171168
        %v1193 = vunpack.c.0.s8 %v1192
        %v1194 = vlaneseq
        %v1195 = vshrl.u32 %v1194, 7
        %v1196 = vsub.s32 %v1193, %v1195
        %v1197 = vrot.slane %v1181, %v1196
        %v1199 = vunpack.c.l.s4 1966171168
        %v1200 = vunpack.c.0.s8 %v1199
        %v1201 = vlaneseq
        %v1202 = vshrl.u32 %v1201, 7
        %v1203 = vsub.s32 %v1200, %v1202
        %v1204 = vrot.slane %v1182, %v1203
        %v1206 = vunpack.c.l.s4 1966171168
        %v1207 = vunpack.c.0.s8 %v1206
        %v1208 = vlaneseq
        %v1209 = vshrl.u32 %v1208, 7
        %v1210 = vsub.s32 %v1207, %v1209
        %v1211 = vrot.slane %v1183, %v1210
        %v1212 = vcombine.high %v1190, %v1190
        %v1213 = vcombine.high %v1197, %v1197
        %v1214 = vcombine.high %v1204, %v1204
        %v1215 = vcombine.high %v1211, %v1211
        %v1216 = vcombine.high %v1088, %v1088
        %v1218 = vunpack.c.l.s4 1966171168
        %v1219 = vunpack.c.0.s8 %v1218
        %v1220 = vlaneseq
        %v1221 = vshrl.u32 %v1220, 7
        %v1222 = vsub.s32 %v1219, %v1221
        %v1223 = vrot.slane %v1088, %v1222
        %v1225 = vunpack.c.l.s4 1966171168
        %v1226 = vunpack.c.0.s8 %v1225
        %v1227 = vlaneseq
        %v1228 = vshrl.u32 %v1227, 7
        %v1229 = vsub.s32 %v1226, %v1228
        %v1230 = vrot.slane %v1216, %v1229
        %v1231 = vcombine.high %v1223, %v1223
        %v1232 = vcombine.high %v1230, %v1230
        %v1234 = vunpack.c.l.s4 1966171168
        %v1235 = vunpack.c.0.s8 %v1234
        %v1236 = vlaneseq
        %v1237 = vshrl.u32 %v1236, 7
        %v1238 = vsub.s32 %v1235, %v1237
        %v1239 = vrot.slane %v1223, %v1238
        %v1241 = vunpack.c.l.s4 1966171168
        %v1242 = vunpack.c.0.s8 %v1241
        %v1243 = vlaneseq
        %v1244 = vshrl.u32 %v1243, 7
        %v1245 = vsub.s32 %v1242, %v1244
        %v1246 = vrot.slane %v1230, %v1245
        %v1248 = vunpack.c.l.s4 1966171168
        %v1249 = vunpack.c.0.s8 %v1248
        %v1250 = vlaneseq
        %v1251 = vshrl.u32 %v1250, 7
        %v1252 = vsub.s32 %v1249, %v1251
        %v1253 = vrot.slane %v1231, %v1252
        %v1255 = vunpack.c.l.s4 1966171168
        %v1256 = vunpack.c.0.s8 %v1255
        %v1257 = vlaneseq
        %v1258 = vshrl.u32 %v1257, 7
        %v1259 = vsub.s32 %v1256, %v1258
        %v1260 = vrot.slane %v1232, %v1259
        %v1261 = vcombine.high %v1239, %v1239
        %v1262 = vcombine.high %v1246, %v1246
        %v1263 = vcombine.high %v1253, %v1253
        %v1264 = vcombine.high %v1260, %v1260
        %v1265 = vcombine.high %v1089, %v1089
        %v1267 = vunpack.c.l.s4 1966171168
        %v1268 = vunpack.c.0.s8 %v1267
        %v1269 = vlaneseq
        %v1270 = vshrl.u32 %v1269, 7
        %v1271 = vsub.s32 %v1268, %v1270
        %v1272 = vrot.slane %v1089, %v1271
        %v1274 = vunpack.c.l.s4 1966171168
        %v1275 = vunpack.c.0.s8 %v1274
        %v1276 = vlaneseq
        %v1277 = vshrl.u32 %v1276, 7
        %v1278 = vsub.s32 %v1275, %v1277
        %v1279 = vrot.slane %v1265, %v1278
        %v1280 = vcombine.high %v1272, %v1272
        %v1281 = vcombine.high %v1279, %v1279
        %v1283 = vunpack.c.l.s4 1966171168
        %v1284 = vunpack.c.0.s8 %v1283
        %v1285 = vlaneseq
        %v1286 = vshrl.u32 %v1285, 7
        %v1287 = vsub.s32 %v1284, %v1286
        %v1288 = vrot.slane %v1272, %v1287
        %v1290 = vunpack.c.l.s4 1966171168
        %v1291 = vunpack.c.0.s8 %v1290
        %v1292 = vlaneseq
        %v1293 = vshrl.u32 %v1292, 7
        %v1294 = vsub.s32 %v1291, %v1293
        %v1295 = vrot.slane %v1279, %v1294
        %v1297 = vunpack.c.l.s4 1966171168
        %v1298 = vunpack.c.0.s8 %v1297
        %v1299 = vlaneseq
        %v1300 = vshrl.u32 %v1299, 7
        %v1301 = vsub.s32 %v1298, %v1300
        %v1302 = vrot.slane %v1280, %v1301
        %v1304 = vunpack.c.l.s4 1966171168
        %v1305 = vunpack.c.0.s8 %v1304
        %v1306 = vlaneseq
        %v1307 = vshrl.u32 %v1306, 7
        %v1308 = vsub.s32 %v1305, %v1307
        %v1309 = vrot.slane %v1281, %v1308
        %v1310 = vcombine.high %v1288, %v1288
        %v1311 = vcombine.high %v1295, %v1295
        %v1312 = vcombine.high %v1302, %v1302
        %v1313 = vcombine.high %v1309, %v1309
        %v1314 = vcombine.high %v1090, %v1090
        %v1316 = vunpack.c.l.s4 1966171168
        %v1317 = vunpack.c.0.s8 %v1316
        %v1318 = vlaneseq
        %v1319 = vshrl.u32 %v1318, 7
        %v1320 = vsub.s32 %v1317, %v1319
        %v1321 = vrot.slane %v1090, %v1320
        %v1323 = vunpack.c.l.s4 1966171168
        %v1324 = vunpack.c.0.s8 %v1323
        %v1325 = vlaneseq
        %v1326 = vshrl.u32 %v1325, 7
        %v1327 = vsub.s32 %v1324, %v1326
        %v1328 = vrot.slane %v1314, %v1327
        %v1329 = vcombine.high %v1321, %v1321
        %v1330 = vcombine.high %v1328, %v1328
        %v1332 = vunpack.c.l.s4 1966171168
        %v1333 = vunpack.c.0.s8 %v1332
        %v1334 = vlaneseq
        %v1335 = vshrl.u32 %v1334, 7
        %v1336 = vsub.s32 %v1333, %v1335
        %v1337 = vrot.slane %v1321, %v1336
        %v1339 = vunpack.c.l.s4 1966171168
        %v1340 = vunpack.c.0.s8 %v1339
        %v1341 = vlaneseq
        %v1342 = vshrl.u32 %v1341, 7
        %v1343 = vsub.s32 %v1340, %v1342
        %v1344 = vrot.slane %v1328, %v1343
        %v1346 = vunpack.c.l.s4 1966171168
        %v1347 = vunpack.c.0.s8 %v1346
        %v1348 = vlaneseq
        %v1349 = vshrl.u32 %v1348, 7
        %v1350 = vsub.s32 %v1347, %v1349
        %v1351 = vrot.slane %v1329, %v1350
        %v1353 = vunpack.c.l.s4 1966171168
        %v1354 = vunpack.c.0.s8 %v1353
        %v1355 = vlaneseq
        %v1356 = vshrl.u32 %v1355, 7
        %v1357 = vsub.s32 %v1354, %v1356
        %v1358 = vrot.slane %v1330, %v1357
        %v1359 = vcombine.high %v1337, %v1337
        %v1360 = vcombine.high %v1344, %v1344
        %v1361 = vcombine.high %v1351, %v1351
        %v1362 = vcombine.high %v1358, %v1358
        %v1363 = vcombine.high %v1091, %v1091
        %v1365 = vunpack.c.l.s4 1966171168
        %v1366 = vunpack.c.0.s8 %v1365
        %v1367 = vlaneseq
        %v1368 = vshrl.u32 %v1367, 7
        %v1369 = vsub.s32 %v1366, %v1368
        %v1370 = vrot.slane %v1091, %v1369
        %v1372 = vunpack.c.l.s4 1966171168
        %v1373 = vunpack.c.0.s8 %v1372
        %v1374 = vlaneseq
        %v1375 = vshrl.u32 %v1374, 7
        %v1376 = vsub.s32 %v1373, %v1375
        %v1377 = vrot.slane %v1363, %v1376
        %v1378 = vcombine.high %v1370, %v1370
        %v1379 = vcombine.high %v1377, %v1377
        %v1381 = vunpack.c.l.s4 1966171168
        %v1382 = vunpack.c.0.s8 %v1381
        %v1383 = vlaneseq
        %v1384 = vshrl.u32 %v1383, 7
        %v1385 = vsub.s32 %v1382, %v1384
        %v1386 = vrot.slane %v1370, %v1385
        %v1388 = vunpack.c.l.s4 1966171168
        %v1389 = vunpack.c.0.s8 %v1388
        %v1390 = vlaneseq
        %v1391 = vshrl.u32 %v1390, 7
        %v1392 = vsub.s32 %v1389, %v1391
        %v1393 = vrot.slane %v1377, %v1392
        %v1395 = vunpack.c.l.s4 1966171168
        %v1396 = vunpack.c.0.s8 %v1395
        %v1397 = vlaneseq
        %v1398 = vshrl.u32 %v1397, 7
        %v1399 = vsub.s32 %v1396, %v1398
        %v1400 = vrot.slane %v1378, %v1399
        %v1402 = vunpack.c.l.s4 1966171168
        %v1403 = vunpack.c.0.s8 %v1402
        %v1404 = vlaneseq
        %v1405 = vshrl.u32 %v1404, 7
        %v1406 = vsub.s32 %v1403, %v1405
        %v1407 = vrot.slane %v1379, %v1406
        %v1408 = vcombine.high %v1386, %v1386
        %v1409 = vcombine.high %v1393, %v1393
        %v1410 = vcombine.high %v1400, %v1400
        %v1411 = vcombine.high %v1407, %v1407
        %v1412 = vcombine.high %v1092, %v1092
        %v1414 = vunpack.c.l.s4 1966171168
        %v1415 = vunpack.c.0.s8 %v1414
        %v1416 = vlaneseq
        %v1417 = vshrl.u32 %v1416, 7
        %v1418 = vsub.s32 %v1415, %v1417
        %v1419 = vrot.slane %v1092, %v1418
        %v1421 = vunpack.c.l.s4 1966171168
        %v1422 = vunpack.c.0.s8 %v1421
        %v1423 = vlaneseq
        %v1424 = vshrl.u32 %v1423, 7
        %v1425 = vsub.s32 %v1422, %v1424
        %v1426 = vrot.slane %v1412, %v1425
        %v1427 = vcombine.high %v1419, %v1419
        %v1428 = vcombine.high %v1426, %v1426
        %v1430 = vunpack.c.l.s4 1966171168
        %v1431 = vunpack.c.0.s8 %v1430
        %v1432 = vlaneseq
        %v1433 = vshrl.u32 %v1432, 7
        %v1434 = vsub.s32 %v1431, %v1433
        %v1435 = vrot.slane %v1419, %v1434
        %v1437 = vunpack.c.l.s4 1966171168
        %v1438 = vunpack.c.0.s8 %v1437
        %v1439 = vlaneseq
        %v1440 = vshrl.u32 %v1439, 7
        %v1441 = vsub.s32 %v1438, %v1440
        %v1442 = vrot.slane %v1426, %v1441
        %v1444 = vunpack.c.l.s4 1966171168
        %v1445 = vunpack.c.0.s8 %v1444
        %v1446 = vlaneseq
        %v1447 = vshrl.u32 %v1446, 7
        %v1448 = vsub.s32 %v1445, %v1447
        %v1449 = vrot.slane %v1427, %v1448
        %v1451 = vunpack.c.l.s4 1966171168
        %v1452 = vunpack.c.0.s8 %v1451
        %v1453 = vlaneseq
        %v1454 = vshrl.u32 %v1453, 7
        %v1455 = vsub.s32 %v1452, %v1454
        %v1456 = vrot.slane %v1428, %v1455
        %v1457 = vcombine.high %v1435, %v1435
        %v1458 = vcombine.high %v1442, %v1442
        %v1459 = vcombine.high %v1449, %v1449
        %v1460 = vcombine.high %v1456, %v1456
        %v1461 = vcombine.high %v1093, %v1093
        %v1463 = vunpack.c.l.s4 1966171168
        %v1464 = vunpack.c.0.s8 %v1463
        %v1465 = vlaneseq
        %v1466 = vshrl.u32 %v1465, 7
        %v1467 = vsub.s32 %v1464, %v1466
        %v1468 = vrot.slane %v1093, %v1467
        %v1470 = vunpack.c.l.s4 1966171168
        %v1471 = vunpack.c.0.s8 %v1470
        %v1472 = vlaneseq
        %v1473 = vshrl.u32 %v1472, 7
        %v1474 = vsub.s32 %v1471, %v1473
        %v1475 = vrot.slane %v1461, %v1474
        %v1476 = vcombine.high %v1468, %v1468
        %v1477 = vcombine.high %v1475, %v1475
        %v1479 = vunpack.c.l.s4 1966171168
        %v1480 = vunpack.c.0.s8 %v1479
        %v1481 = vlaneseq
        %v1482 = vshrl.u32 %v1481, 7
        %v1483 = vsub.s32 %v1480, %v1482
        %v1484 = vrot.slane %v1468, %v1483
        %v1486 = vunpack.c.l.s4 1966171168
        %v1487 = vunpack.c.0.s8 %v1486
        %v1488 = vlaneseq
        %v1489 = vshrl.u32 %v1488, 7
        %v1490 = vsub.s32 %v1487, %v1489
        %v1491 = vrot.slane %v1475, %v1490
        %v1493 = vunpack.c.l.s4 1966171168
        %v1494 = vunpack.c.0.s8 %v1493
        %v1495 = vlaneseq
        %v1496 = vshrl.u32 %v1495, 7
        %v1497 = vsub.s32 %v1494, %v1496
        %v1498 = vrot.slane %v1476, %v1497
        %v1500 = vunpack.c.l.s4 1966171168
        %v1501 = vunpack.c.0.s8 %v1500
        %v1502 = vlaneseq
        %v1503 = vshrl.u32 %v1502, 7
        %v1504 = vsub.s32 %v1501, %v1503
        %v1505 = vrot.slane %v1477, %v1504
        %v1506 = vcombine.high %v1484, %v1484
        %v1507 = vcombine.high %v1491, %v1491
        %v1508 = vcombine.high %v1498, %v1498
        %v1509 = vcombine.high %v1505, %v1505
        %v1510 = vcombine.high %v1094, %v1094
        %v1512 = vunpack.c.l.s4 1966171168
        %v1513 = vunpack.c.0.s8 %v1512
        %v1514 = vlaneseq
        %v1515 = vshrl.u32 %v1514, 7
        %v1516 = vsub.s32 %v1513, %v1515
        %v1517 = vrot.slane %v1094, %v1516
        %v1519 = vunpack.c.l.s4 1966171168
        %v1520 = vunpack.c.0.s8 %v1519
        %v1521 = vlaneseq
        %v1522 = vshrl.u32 %v1521, 7
        %v1523 = vsub.s32 %v1520, %v1522
        %v1524 = vrot.slane %v1510, %v1523
        %v1525 = vcombine.high %v1517, %v1517
        %v1526 = vcombine.high %v1524, %v1524
        %v1528 = vunpack.c.l.s4 1966171168
        %v1529 = vunpack.c.0.s8 %v1528
        %v1530 = vlaneseq
        %v1531 = vshrl.u32 %v1530, 7
        %v1532 = vsub.s32 %v1529, %v1531
        %v1533 = vrot.slane %v1517, %v1532
        %v1535 = vunpack.c.l.s4 1966171168
        %v1536 = vunpack.c.0.s8 %v1535
        %v1537 = vlaneseq
        %v1538 = vshrl.u32 %v1537, 7
        %v1539 = vsub.s32 %v1536, %v1538
        %v1540 = vrot.slane %v1524, %v1539
        %v1542 = vunpack.c.l.s4 1966171168
        %v1543 = vunpack.c.0.s8 %v1542
        %v1544 = vlaneseq
        %v1545 = vshrl.u32 %v1544, 7
        %v1546 = vsub.s32 %v1543, %v1545
        %v1547 = vrot.slane %v1525, %v1546
        %v1549 = vunpack.c.l.s4 1966171168
        %v1550 = vunpack.c.0.s8 %v1549
        %v1551 = vlaneseq
        %v1552 = vshrl.u32 %v1551, 7
        %v1553 = vsub.s32 %v1550, %v1552
        %v1554 = vrot.slane %v1526, %v1553
        %v1555 = vcombine.high %v1533, %v1533
        %v1556 = vcombine.high %v1540, %v1540
        %v1557 = vcombine.high %v1547, %v1547
        %v1558 = vcombine.high %v1554, %v1554
        %v1559 = vcombine.high %v1095, %v1095
        %v1561 = vunpack.c.l.s4 1966171168
        %v1562 = vunpack.c.0.s8 %v1561
        %v1563 = vlaneseq
        %v1564 = vshrl.u32 %v1563, 7
        %v1565 = vsub.s32 %v1562, %v1564
        %v1566 = vrot.slane %v1095, %v1565
        %v1568 = vunpack.c.l.s4 1966171168
        %v1569 = vunpack.c.0.s8 %v1568
        %v1570 = vlaneseq
        %v1571 = vshrl.u32 %v1570, 7
        %v1572 = vsub.s32 %v1569, %v1571
        %v1573 = vrot.slane %v1559, %v1572
        %v1574 = vcombine.high %v1566, %v1566
        %v1575 = vcombine.high %v1573, %v1573
        %v1577 = vunpack.c.l.s4 1966171168
        %v1578 = vunpack.c.0.s8 %v1577
        %v1579 = vlaneseq
        %v1580 = vshrl.u32 %v1579, 7
        %v1581 = vsub.s32 %v1578, %v1580
        %v1582 = vrot.slane %v1566, %v1581
        %v1584 = vunpack.c.l.s4 1966171168
        %v1585 = vunpack.c.0.s8 %v1584
        %v1586 = vlaneseq
        %v1587 = vshrl.u32 %v1586, 7
        %v1588 = vsub.s32 %v1585, %v1587
        %v1589 = vrot.slane %v1573, %v1588
        %v1591 = vunpack.c.l.s4 1966171168
        %v1592 = vunpack.c.0.s8 %v1591
        %v1593 = vlaneseq
        %v1594 = vshrl.u32 %v1593, 7
        %v1595 = vsub.s32 %v1592, %v1594
        %v1596 = vrot.slane %v1574, %v1595
        %v1598 = vunpack.c.l.s4 1966171168
        %v1599 = vunpack.c.0.s8 %v1598
        %v1600 = vlaneseq
        %v1601 = vshrl.u32 %v1600, 7
        %v1602 = vsub.s32 %v1599, %v1601
        %v1603 = vrot.slane %v1575, %v1602
        %v1604 = vcombine.high %v1582, %v1582
        %v1605 = vcombine.high %v1589, %v1589
        %v1606 = vcombine.high %v1596, %v1596
        %v1607 = vcombine.high %v1603, %v1603
        %v1608 = vcombine.high %v1096, %v1096
        %v1610 = vunpack.c.l.s4 1966171168
        %v1611 = vunpack.c.0.s8 %v1610
        %v1612 = vlaneseq
        %v1613 = vshrl.u32 %v1612, 7
        %v1614 = vsub.s32 %v1611, %v1613
        %v1615 = vrot.slane %v1096, %v1614
        %v1617 = vunpack.c.l.s4 1966171168
        %v1618 = vunpack.c.0.s8 %v1617
        %v1619 = vlaneseq
        %v1620 = vshrl.u32 %v1619, 7
        %v1621 = vsub.s32 %v1618, %v1620
        %v1622 = vrot.slane %v1608, %v1621
        %v1623 = vcombine.high %v1615, %v1615
        %v1624 = vcombine.high %v1622, %v1622
        %v1626 = vunpack.c.l.s4 1966171168
        %v1627 = vunpack.c.0.s8 %v1626
        %v1628 = vlaneseq
        %v1629 = vshrl.u32 %v1628, 7
        %v1630 = vsub.s32 %v1627, %v1629
        %v1631 = vrot.slane %v1615, %v1630
        %v1633 = vunpack.c.l.s4 1966171168
        %v1634 = vunpack.c.0.s8 %v1633
        %v1635 = vlaneseq
        %v1636 = vshrl.u32 %v1635, 7
        %v1637 = vsub.s32 %v1634, %v1636
        %v1638 = vrot.slane %v1622, %v1637
        %v1640 = vunpack.c.l.s4 1966171168
        %v1641 = vunpack.c.0.s8 %v1640
        %v1642 = vlaneseq
        %v1643 = vshrl.u32 %v1642, 7
        %v1644 = vsub.s32 %v1641, %v1643
        %v1645 = vrot.slane %v1623, %v1644
        %v1647 = vunpack.c.l.s4 1966171168
        %v1648 = vunpack.c.0.s8 %v1647
        %v1649 = vlaneseq
        %v1650 = vshrl.u32 %v1649, 7
        %v1651 = vsub.s32 %v1648, %v1650
        %v1652 = vrot.slane %v1624, %v1651
        %v1653 = vcombine.high %v1631, %v1631
        %v1654 = vcombine.high %v1638, %v1638
        %v1655 = vcombine.high %v1645, %v1645
        %v1656 = vcombine.high %v1652, %v1652
        %v1657 = vcombine.high %v1097, %v1097
        %v1659 = vunpack.c.l.s4 1966171168
        %v1660 = vunpack.c.0.s8 %v1659
        %v1661 = vlaneseq
        %v1662 = vshrl.u32 %v1661, 7
        %v1663 = vsub.s32 %v1660, %v1662
        %v1664 = vrot.slane %v1097, %v1663
        %v1666 = vunpack.c.l.s4 1966171168
        %v1667 = vunpack.c.0.s8 %v1666
        %v1668 = vlaneseq
        %v1669 = vshrl.u32 %v1668, 7
        %v1670 = vsub.s32 %v1667, %v1669
        %v1671 = vrot.slane %v1657, %v1670
        %v1672 = vcombine.high %v1664, %v1664
        %v1673 = vcombine.high %v1671, %v1671
        %v1675 = vunpack.c.l.s4 1966171168
        %v1676 = vunpack.c.0.s8 %v1675
        %v1677 = vlaneseq
        %v1678 = vshrl.u32 %v1677, 7
        %v1679 = vsub.s32 %v1676, %v1678
        %v1680 = vrot.slane %v1664, %v1679
        %v1682 = vunpack.c.l.s4 1966171168
        %v1683 = vunpack.c.0.s8 %v1682
        %v1684 = vlaneseq
        %v1685 = vshrl.u32 %v1684, 7
        %v1686 = vsub.s32 %v1683, %v1685
        %v1687 = vrot.slane %v1671, %v1686
        %v1689 = vunpack.c.l.s4 1966171168
        %v1690 = vunpack.c.0.s8 %v1689
        %v1691 = vlaneseq
        %v1692 = vshrl.u32 %v1691, 7
        %v1693 = vsub.s32 %v1690, %v1692
        %v1694 = vrot.slane %v1672, %v1693
        %v1696 = vunpack.c.l.s4 1966171168
        %v1697 = vunpack.c.0.s8 %v1696
        %v1698 = vlaneseq
        %v1699 = vshrl.u32 %v1698, 7
        %v1700 = vsub.s32 %v1697, %v1699
        %v1701 = vrot.slane %v1673, %v1700
        %v1702 = vcombine.high %v1680, %v1680
        %v1703 = vcombine.high %v1687, %v1687
        %v1704 = vcombine.high %v1694, %v1694
        %v1705 = vcombine.high %v1701, %v1701
        %v1706 = vcombine.high %v1098, %v1098
        %v1708 = vunpack.c.l.s4 1966171168
        %v1709 = vunpack.c.0.s8 %v1708
        %v1710 = vlaneseq
        %v1711 = vshrl.u32 %v1710, 7
        %v1712 = vsub.s32 %v1709, %v1711
        %v1713 = vrot.slane %v1098, %v1712
        %v1715 = vunpack.c.l.s4 1966171168
        %v1716 = vunpack.c.0.s8 %v1715
        %v1717 = vlaneseq
        %v1718 = vshrl.u32 %v1717, 7
        %v1719 = vsub.s32 %v1716, %v1718
        %v1720 = vrot.slane %v1706, %v1719
        %v1721 = vcombine.high %v1713, %v1713
        %v1722 = vcombine.high %v1720, %v1720
        %v1724 = vunpack.c.l.s4 1966171168
        %v1725 = vunpack.c.0.s8 %v1724
        %v1726 = vlaneseq
        %v1727 = vshrl.u32 %v1726, 7
        %v1728 = vsub.s32 %v1725, %v1727
        %v1729 = vrot.slane %v1713, %v1728
        %v1731 = vunpack.c.l.s4 1966171168
        %v1732 = vunpack.c.0.s8 %v1731
        %v1733 = vlaneseq
        %v1734 = vshrl.u32 %v1733, 7
        %v1735 = vsub.s32 %v1732, %v1734
        %v1736 = vrot.slane %v1720, %v1735
        %v1738 = vunpack.c.l.s4 1966171168
        %v1739 = vunpack.c.0.s8 %v1738
        %v1740 = vlaneseq
        %v1741 = vshrl.u32 %v1740, 7
        %v1742 = vsub.s32 %v1739, %v1741
        %v1743 = vrot.slane %v1721, %v1742
        %v1745 = vunpack.c.l.s4 1966171168
        %v1746 = vunpack.c.0.s8 %v1745
        %v1747 = vlaneseq
        %v1748 = vshrl.u32 %v1747, 7
        %v1749 = vsub.s32 %v1746, %v1748
        %v1750 = vrot.slane %v1722, %v1749
        %v1751 = vcombine.high %v1729, %v1729
        %v1752 = vcombine.high %v1736, %v1736
        %v1753 = vcombine.high %v1743, %v1743
        %v1754 = vcombine.high %v1750, %v1750
        %v1755 = vcombine.high %v1099, %v1099
        %v1757 = vunpack.c.l.s4 1966171168
        %v1758 = vunpack.c.0.s8 %v1757
        %v1759 = vlaneseq
        %v1760 = vshrl.u32 %v1759, 7
        %v1761 = vsub.s32 %v1758, %v1760
        %v1762 = vrot.slane %v1099, %v1761
        %v1764 = vunpack.c.l.s4 1966171168
        %v1765 = vunpack.c.0.s8 %v1764
        %v1766 = vlaneseq
        %v1767 = vshrl.u32 %v1766, 7
        %v1768 = vsub.s32 %v1765, %v1767
        %v1769 = vrot.slane %v1755, %v1768
        %v1770 = vcombine.high %v1762, %v1762
        %v1771 = vcombine.high %v1769, %v1769
        %v1773 = vunpack.c.l.s4 1966171168
        %v1774 = vunpack.c.0.s8 %v1773
        %v1775 = vlaneseq
        %v1776 = vshrl.u32 %v1775, 7
        %v1777 = vsub.s32 %v1774, %v1776
        %v1778 = vrot.slane %v1762, %v1777
        %v1780 = vunpack.c.l.s4 1966171168
        %v1781 = vunpack.c.0.s8 %v1780
        %v1782 = vlaneseq
        %v1783 = vshrl.u32 %v1782, 7
        %v1784 = vsub.s32 %v1781, %v1783
        %v1785 = vrot.slane %v1769, %v1784
        %v1787 = vunpack.c.l.s4 1966171168
        %v1788 = vunpack.c.0.s8 %v1787
        %v1789 = vlaneseq
        %v1790 = vshrl.u32 %v1789, 7
        %v1791 = vsub.s32 %v1788, %v1790
        %v1792 = vrot.slane %v1770, %v1791
        %v1794 = vunpack.c.l.s4 1966171168
        %v1795 = vunpack.c.0.s8 %v1794
        %v1796 = vlaneseq
        %v1797 = vshrl.u32 %v1796, 7
        %v1798 = vsub.s32 %v1795, %v1797
        %v1799 = vrot.slane %v1771, %v1798
        %v1800 = vcombine.high %v1778, %v1778
        %v1801 = vcombine.high %v1785, %v1785
        %v1802 = vcombine.high %v1792, %v1792
        %v1803 = vcombine.high %v1799, %v1799
        %v1804 = vcombine.high %v1100, %v1100
        %v1806 = vunpack.c.l.s4 1966171168
        %v1807 = vunpack.c.0.s8 %v1806
        %v1808 = vlaneseq
        %v1809 = vshrl.u32 %v1808, 7
        %v1810 = vsub.s32 %v1807, %v1809
        %v1811 = vrot.slane %v1100, %v1810
        %v1813 = vunpack.c.l.s4 1966171168
        %v1814 = vunpack.c.0.s8 %v1813
        %v1815 = vlaneseq
        %v1816 = vshrl.u32 %v1815, 7
        %v1817 = vsub.s32 %v1814, %v1816
        %v1818 = vrot.slane %v1804, %v1817
        %v1819 = vcombine.high %v1811, %v1811
        %v1820 = vcombine.high %v1818, %v1818
        %v1822 = vunpack.c.l.s4 1966171168
        %v1823 = vunpack.c.0.s8 %v1822
        %v1824 = vlaneseq
        %v1825 = vshrl.u32 %v1824, 7
        %v1826 = vsub.s32 %v1823, %v1825
        %v1827 = vrot.slane %v1811, %v1826
        %v1829 = vunpack.c.l.s4 1966171168
        %v1830 = vunpack.c.0.s8 %v1829
        %v1831 = vlaneseq
        %v1832 = vshrl.u32 %v1831, 7
        %v1833 = vsub.s32 %v1830, %v1832
        %v1834 = vrot.slane %v1818, %v1833
        %v1836 = vunpack.c.l.s4 1966171168
        %v1837 = vunpack.c.0.s8 %v1836
        %v1838 = vlaneseq
        %v1839 = vshrl.u32 %v1838, 7
        %v1840 = vsub.s32 %v1837, %v1839
        %v1841 = vrot.slane %v1819, %v1840
        %v1843 = vunpack.c.l.s4 1966171168
        %v1844 = vunpack.c.0.s8 %v1843
        %v1845 = vlaneseq
        %v1846 = vshrl.u32 %v1845, 7
        %v1847 = vsub.s32 %v1844, %v1846
        %v1848 = vrot.slane %v1820, %v1847
        %v1849 = vcombine.high %v1827, %v1827
        %v1850 = vcombine.high %v1834, %v1834
        %v1851 = vcombine.high %v1841, %v1841
        %v1852 = vcombine.high %v1848, %v1848
        %v1853 = vcombine.high %v1101, %v1101
        %v1855 = vunpack.c.l.s4 1966171168
        %v1856 = vunpack.c.0.s8 %v1855
        %v1857 = vlaneseq
        %v1858 = vshrl.u32 %v1857, 7
        %v1859 = vsub.s32 %v1856, %v1858
        %v1860 = vrot.slane %v1101, %v1859
        %v1862 = vunpack.c.l.s4 1966171168
        %v1863 = vunpack.c.0.s8 %v1862
        %v1864 = vlaneseq
        %v1865 = vshrl.u32 %v1864, 7
        %v1866 = vsub.s32 %v1863, %v1865
        %v1867 = vrot.slane %v1853, %v1866
        %v1868 = vcombine.high %v1860, %v1860
        %v1869 = vcombine.high %v1867, %v1867
        %v1871 = vunpack.c.l.s4 1966171168
        %v1872 = vunpack.c.0.s8 %v1871
        %v1873 = vlaneseq
        %v1874 = vshrl.u32 %v1873, 7
        %v1875 = vsub.s32 %v1872, %v1874
        %v1876 = vrot.slane %v1860, %v1875
        %v1878 = vunpack.c.l.s4 1966171168
        %v1879 = vunpack.c.0.s8 %v1878
        %v1880 = vlaneseq
        %v1881 = vshrl.u32 %v1880, 7
        %v1882 = vsub.s32 %v1879, %v1881
        %v1883 = vrot.slane %v1867, %v1882
        %v1885 = vunpack.c.l.s4 1966171168
        %v1886 = vunpack.c.0.s8 %v1885
        %v1887 = vlaneseq
        %v1888 = vshrl.u32 %v1887, 7
        %v1889 = vsub.s32 %v1886, %v1888
        %v1890 = vrot.slane %v1868, %v1889
        %v1892 = vunpack.c.l.s4 1966171168
        %v1893 = vunpack.c.0.s8 %v1892
        %v1894 = vlaneseq
        %v1895 = vshrl.u32 %v1894, 7
        %v1896 = vsub.s32 %v1893, %v1895
        %v1897 = vrot.slane %v1869, %v1896
        %v1898 = vcombine.high %v1876, %v1876
        %v1899 = vcombine.high %v1883, %v1883
        %v1900 = vcombine.high %v1890, %v1890
        %v1901 = vcombine.high %v1897, %v1897
        %v1902 = vld [vmem:[%s6] sm:$0xff]
        %v1903 = vlaneseq
        %v1904 = vshrl.u32 %v1903, 7
        %v1905 = vsub.s32 0, %v1904
        %v1906 = vrot.slane %v1141, %v1905
        %v1907 = vlaneseq
        %v1908 = vshrl.u32 %v1907, 7
        %v1909 = vsub.s32 0, %v1908
        %v1910 = vrot.slane %v1155, %v1909
        %v1911 = vlaneseq
        %v1912 = vshrl.u32 %v1911, 7
        %v1913 = vsub.s32 0, %v1912
        %v1914 = vrot.slane %v1163, %v1913
        %v1915 = vlaneseq
        %v1916 = vshrl.u32 %v1915, 7
        %v1917 = vsub.s32 0, %v1916
        %v1918 = vrot.slane %v1165, %v1917
        %v1919 = vlaneseq
        %v1920 = vshrl.u32 %v1919, 7
        %v1921 = vsub.s32 0, %v1920
        %v1922 = vrot.slane %v1148, %v1921
        %v1923 = vlaneseq
        %v1924 = vshrl.u32 %v1923, 7
        %v1925 = vsub.s32 0, %v1924
        %v1926 = vrot.slane %v1162, %v1925
        %v1927 = vlaneseq
        %v1928 = vshrl.u32 %v1927, 7
        %v1929 = vsub.s32 0, %v1928
        %v1930 = vrot.slane %v1164, %v1929
        %v1931 = vlaneseq
        %v1932 = vshrl.u32 %v1931, 7
        %v1933 = vsub.s32 0, %v1932
        %v1934 = vrot.slane %v1166, %v1933
        %v1935 = vlaneseq
        %v1936 = vshrl.u32 %v1935, 7
        %v1937 = vsub.s32 0, %v1936
        %v1938 = vrot.slane %v1190, %v1937
        %v1939 = vlaneseq
        %v1940 = vshrl.u32 %v1939, 7
        %v1941 = vsub.s32 0, %v1940
        %v1942 = vrot.slane %v1204, %v1941
        %v1943 = vlaneseq
        %v1944 = vshrl.u32 %v1943, 7
        %v1945 = vsub.s32 0, %v1944
        %v1946 = vrot.slane %v1212, %v1945
        %v1947 = vlaneseq
        %v1948 = vshrl.u32 %v1947, 7
        %v1949 = vsub.s32 0, %v1948
        %v1950 = vrot.slane %v1214, %v1949
        %v1951 = vlaneseq
        %v1952 = vshrl.u32 %v1951, 7
        %v1953 = vsub.s32 0, %v1952
        %v1954 = vrot.slane %v1197, %v1953
        %v1955 = vlaneseq
        %v1956 = vshrl.u32 %v1955, 7
        %v1957 = vsub.s32 0, %v1956
        %v1958 = vrot.slane %v1211, %v1957
        %v1959 = vlaneseq
        %v1960 = vshrl.u32 %v1959, 7
        %v1961 = vsub.s32 0, %v1960
        %v1962 = vrot.slane %v1213, %v1961
        %v1963 = vlaneseq
        %v1964 = vshrl.u32 %v1963, 7
        %v1965 = vsub.s32 0, %v1964
        %v1966 = vrot.slane %v1215, %v1965
        %v1967 = vlaneseq
        %v1968 = vshrl.u32 %v1967, 7
        %v1969 = vsub.s32 0, %v1968
        %v1970 = vrot.slane %v1239, %v1969
        %v1971 = vlaneseq
        %v1972 = vshrl.u32 %v1971, 7
        %v1973 = vsub.s32 0, %v1972
        %v1974 = vrot.slane %v1253, %v1973
        %v1975 = vlaneseq
        %v1976 = vshrl.u32 %v1975, 7
        %v1977 = vsub.s32 0, %v1976
        %v1978 = vrot.slane %v1261, %v1977
        %v1979 = vlaneseq
        %v1980 = vshrl.u32 %v1979, 7
        %v1981 = vsub.s32 0, %v1980
        %v1982 = vrot.slane %v1263, %v1981
        %v1983 = vlaneseq
        %v1984 = vshrl.u32 %v1983, 7
        %v1985 = vsub.s32 0, %v1984
        %v1986 = vrot.slane %v1246, %v1985
        %v1987 = vlaneseq
        %v1988 = vshrl.u32 %v1987, 7
        %v1989 = vsub.s32 0, %v1988
        %v1990 = vrot.slane %v1260, %v1989
        %v1991 = vlaneseq
        %v1992 = vshrl.u32 %v1991, 7
        %v1993 = vsub.s32 0, %v1992
        %v1994 = vrot.slane %v1262, %v1993
        %v1995 = vlaneseq
        %v1996 = vshrl.u32 %v1995, 7
        %v1997 = vsub.s32 0, %v1996
        %v1998 = vrot.slane %v1264, %v1997
        %v1999 = vlaneseq
        %v2000 = vshrl.u32 %v1999, 7
        %v2001 = vsub.s32 0, %v2000
        %v2002 = vrot.slane %v1288, %v2001
        %v2003 = vlaneseq
        %v2004 = vshrl.u32 %v2003, 7
        %v2005 = vsub.s32 0, %v2004
        %v2006 = vrot.slane %v1302, %v2005
        %v2007 = vlaneseq
        %v2008 = vshrl.u32 %v2007, 7
        %v2009 = vsub.s32 0, %v2008
        %v2010 = vrot.slane %v1310, %v2009
        %v2011 = vlaneseq
        %v2012 = vshrl.u32 %v2011, 7
        %v2013 = vsub.s32 0, %v2012
        %v2014 = vrot.slane %v1312, %v2013
        %v2015 = vlaneseq
        %v2016 = vshrl.u32 %v2015, 7
        %v2017 = vsub.s32 0, %v2016
        %v2018 = vrot.slane %v1295, %v2017
        %v2019 = vlaneseq
        %v2020 = vshrl.u32 %v2019, 7
        %v2021 = vsub.s32 0, %v2020
        %v2022 = vrot.slane %v1309, %v2021
        %v2023 = vlaneseq
        %v2024 = vshrl.u32 %v2023, 7
        %v2025 = vsub.s32 0, %v2024
        %v2026 = vrot.slane %v1311, %v2025
        %v2027 = vlaneseq
        %v2028 = vshrl.u32 %v2027, 7
        %v2029 = vsub.s32 0, %v2028
        %v2030 = vrot.slane %v1313, %v2029
        %v2031 = vlaneseq
        %v2032 = vshrl.u32 %v2031, 7
        %v2033 = vsub.s32 0, %v2032
        %v2034 = vrot.slane %v1337, %v2033
        %v2035 = vlaneseq
        %v2036 = vshrl.u32 %v2035, 7
        %v2037 = vsub.s32 0, %v2036
        %v2038 = vrot.slane %v1351, %v2037
        %v2039 = vlaneseq
        %v2040 = vshrl.u32 %v2039, 7
        %v2041 = vsub.s32 0, %v2040
        %v2042 = vrot.slane %v1359, %v2041
        %v2043 = vlaneseq
        %v2044 = vshrl.u32 %v2043, 7
        %v2045 = vsub.s32 0, %v2044
        %v2046 = vrot.slane %v1361, %v2045
        %v2047 = vlaneseq
        %v2048 = vshrl.u32 %v2047, 7
        %v2049 = vsub.s32 0, %v2048
        %v2050 = vrot.slane %v1344, %v2049
        %v2051 = vlaneseq
        %v2052 = vshrl.u32 %v2051, 7
        %v2053 = vsub.s32 0, %v2052
        %v2054 = vrot.slane %v1358, %v2053
        %v2055 = vlaneseq
        %v2056 = vshrl.u32 %v2055, 7
        %v2057 = vsub.s32 0, %v2056
        %v2058 = vrot.slane %v1360, %v2057
        %v2059 = vlaneseq
        %v2060 = vshrl.u32 %v2059, 7
        %v2061 = vsub.s32 0, %v2060
        %v2062 = vrot.slane %v1362, %v2061
        %v2063 = vlaneseq
        %v2064 = vshrl.u32 %v2063, 7
        %v2065 = vsub.s32 0, %v2064
        %v2066 = vrot.slane %v1386, %v2065
        %v2067 = vlaneseq
        %v2068 = vshrl.u32 %v2067, 7
        %v2069 = vsub.s32 0, %v2068
        %v2070 = vrot.slane %v1400, %v2069
        %v2071 = vlaneseq
        %v2072 = vshrl.u32 %v2071, 7
        %v2073 = vsub.s32 0, %v2072
        %v2074 = vrot.slane %v1408, %v2073
        %v2075 = vlaneseq
        %v2076 = vshrl.u32 %v2075, 7
        %v2077 = vsub.s32 0, %v2076
        %v2078 = vrot.slane %v1410, %v2077
        %v2079 = vlaneseq
        %v2080 = vshrl.u32 %v2079, 7
        %v2081 = vsub.s32 0, %v2080
        %v2082 = vrot.slane %v1393, %v2081
        %v2083 = vlaneseq
        %v2084 = vshrl.u32 %v2083, 7
        %v2085 = vsub.s32 0, %v2084
        %v2086 = vrot.slane %v1407, %v2085
        %v2087 = vlaneseq
        %v2088 = vshrl.u32 %v2087, 7
        %v2089 = vsub.s32 0, %v2088
        %v2090 = vrot.slane %v1409, %v2089
        %v2091 = vlaneseq
        %v2092 = vshrl.u32 %v2091, 7
        %v2093 = vsub.s32 0, %v2092
        %v2094 = vrot.slane %v1411, %v2093
        %v2095 = vlaneseq
        %v2096 = vshrl.u32 %v2095, 7
        %v2097 = vsub.s32 0, %v2096
        %v2098 = vrot.slane %v1435, %v2097
        %v2099 = vlaneseq
        %v2100 = vshrl.u32 %v2099, 7
        %v2101 = vsub.s32 0, %v2100
        %v2102 = vrot.slane %v1449, %v2101
        %v2103 = vlaneseq
        %v2104 = vshrl.u32 %v2103, 7
        %v2105 = vsub.s32 0, %v2104
        %v2106 = vrot.slane %v1457, %v2105
        %v2107 = vlaneseq
        %v2108 = vshrl.u32 %v2107, 7
        %v2109 = vsub.s32 0, %v2108
        %v2110 = vrot.slane %v1459, %v2109
        %v2111 = vlaneseq
        %v2112 = vshrl.u32 %v2111, 7
        %v2113 = vsub.s32 0, %v2112
        %v2114 = vrot.slane %v1442, %v2113
        %v2115 = vlaneseq
        %v2116 = vshrl.u32 %v2115, 7
        %v2117 = vsub.s32 0, %v2116
        %v2118 = vrot.slane %v1456, %v2117
        %v2119 = vlaneseq
        %v2120 = vshrl.u32 %v2119, 7
        %v2121 = vsub.s32 0, %v2120
        %v2122 = vrot.slane %v1458, %v2121
        %v2123 = vlaneseq
        %v2124 = vshrl.u32 %v2123, 7
        %v2125 = vsub.s32 0, %v2124
        %v2126 = vrot.slane %v1460, %v2125
        %v2127 = vlaneseq
        %v2128 = vshrl.u32 %v2127, 7
        %v2129 = vsub.s32 0, %v2128
        %v2130 = vrot.slane %v1484, %v2129
        %v2131 = vlaneseq
        %v2132 = vshrl.u32 %v2131, 7
        %v2133 = vsub.s32 0, %v2132
        %v2134 = vrot.slane %v1498, %v2133
        %v2135 = vlaneseq
        %v2136 = vshrl.u32 %v2135, 7
        %v2137 = vsub.s32 0, %v2136
        %v2138 = vrot.slane %v1506, %v2137
        %v2139 = vlaneseq
        %v2140 = vshrl.u32 %v2139, 7
        %v2141 = vsub.s32 0, %v2140
        %v2142 = vrot.slane %v1508, %v2141
        %v2143 = vlaneseq
        %v2144 = vshrl.u32 %v2143, 7
        %v2145 = vsub.s32 0, %v2144
        %v2146 = vrot.slane %v1491, %v2145
        %v2147 = vlaneseq
        %v2148 = vshrl.u32 %v2147, 7
        %v2149 = vsub.s32 0, %v2148
        %v2150 = vrot.slane %v1505, %v2149
        %v2151 = vlaneseq
        %v2152 = vshrl.u32 %v2151, 7
        %v2153 = vsub.s32 0, %v2152
        %v2154 = vrot.slane %v1507, %v2153
        %v2155 = vlaneseq
        %v2156 = vshrl.u32 %v2155, 7
        %v2157 = vsub.s32 0, %v2156
        %v2158 = vrot.slane %v1509, %v2157
        %v2159 = vlaneseq
        %v2160 = vshrl.u32 %v2159, 7
        %v2161 = vsub.s32 0, %v2160
        %v2162 = vrot.slane %v1533, %v2161
        %v2163 = vlaneseq
        %v2164 = vshrl.u32 %v2163, 7
        %v2165 = vsub.s32 0, %v2164
        %v2166 = vrot.slane %v1547, %v2165
        %v2167 = vlaneseq
        %v2168 = vshrl.u32 %v2167, 7
        %v2169 = vsub.s32 0, %v2168
        %v2170 = vrot.slane %v1555, %v2169
        %v2171 = vlaneseq
        %v2172 = vshrl.u32 %v2171, 7
        %v2173 = vsub.s32 0, %v2172
        %v2174 = vrot.slane %v1557, %v2173
        %v2175 = vlaneseq
        %v2176 = vshrl.u32 %v2175, 7
        %v2177 = vsub.s32 0, %v2176
        %v2178 = vrot.slane %v1540, %v2177
        %v2179 = vlaneseq
        %v2180 = vshrl.u32 %v2179, 7
        %v2181 = vsub.s32 0, %v2180
        %v2182 = vrot.slane %v1554, %v2181
        %v2183 = vlaneseq
        %v2184 = vshrl.u32 %v2183, 7
        %v2185 = vsub.s32 0, %v2184
        %v2186 = vrot.slane %v1556, %v2185
        %v2187 = vlaneseq
        %v2188 = vshrl.u32 %v2187, 7
        %v2189 = vsub.s32 0, %v2188
        %v2190 = vrot.slane %v1558, %v2189
        %v2191 = vlaneseq
        %v2192 = vshrl.u32 %v2191, 7
        %v2193 = vsub.s32 0, %v2192
        %v2194 = vrot.slane %v1582, %v2193
        %v2195 = vlaneseq
        %v2196 = vshrl.u32 %v2195, 7
        %v2197 = vsub.s32 0, %v2196
        %v2198 = vrot.slane %v1596, %v2197
        %v2199 = vlaneseq
        %v2200 = vshrl.u32 %v2199, 7
        %v2201 = vsub.s32 0, %v2200
        %v2202 = vrot.slane %v1604, %v2201
        %v2203 = vlaneseq
        %v2204 = vshrl.u32 %v2203, 7
        %v2205 = vsub.s32 0, %v2204
        %v2206 = vrot.slane %v1606, %v2205
        %v2207 = vlaneseq
        %v2208 = vshrl.u32 %v2207, 7
        %v2209 = vsub.s32 0, %v2208
        %v2210 = vrot.slane %v1589, %v2209
        %v2211 = vlaneseq
        %v2212 = vshrl.u32 %v2211, 7
        %v2213 = vsub.s32 0, %v2212
        %v2214 = vrot.slane %v1603, %v2213
        %v2215 = vlaneseq
        %v2216 = vshrl.u32 %v2215, 7
        %v2217 = vsub.s32 0, %v2216
        %v2218 = vrot.slane %v1605, %v2217
        %v2219 = vlaneseq
        %v2220 = vshrl.u32 %v2219, 7
        %v2221 = vsub.s32 0, %v2220
        %v2222 = vrot.slane %v1607, %v2221
        %v2223 = vlaneseq
        %v2224 = vshrl.u32 %v2223, 7
        %v2225 = vsub.s32 0, %v2224
        %v2226 = vrot.slane %v1631, %v2225
        %v2227 = vlaneseq
        %v2228 = vshrl.u32 %v2227, 7
        %v2229 = vsub.s32 0, %v2228
        %v2230 = vrot.slane %v1645, %v2229
        %v2231 = vlaneseq
        %v2232 = vshrl.u32 %v2231, 7
        %v2233 = vsub.s32 0, %v2232
        %v2234 = vrot.slane %v1653, %v2233
        %v2235 = vlaneseq
        %v2236 = vshrl.u32 %v2235, 7
        %v2237 = vsub.s32 0, %v2236
        %v2238 = vrot.slane %v1655, %v2237
        %v2239 = vlaneseq
        %v2240 = vshrl.u32 %v2239, 7
        %v2241 = vsub.s32 0, %v2240
        %v2242 = vrot.slane %v1638, %v2241
        %v2243 = vlaneseq
        %v2244 = vshrl.u32 %v2243, 7
        %v2245 = vsub.s32 0, %v2244
        %v2246 = vrot.slane %v1652, %v2245
        %v2247 = vlaneseq
        %v2248 = vshrl.u32 %v2247, 7
        %v2249 = vsub.s32 0, %v2248
        %v2250 = vrot.slane %v1654, %v2249
        %v2251 = vlaneseq
        %v2252 = vshrl.u32 %v2251, 7
        %v2253 = vsub.s32 0, %v2252
        %v2254 = vrot.slane %v1656, %v2253
        %v2255 = vlaneseq
        %v2256 = vshrl.u32 %v2255, 7
        %v2257 = vsub.s32 0, %v2256
        %v2258 = vrot.slane %v1680, %v2257
        %v2259 = vlaneseq
        %v2260 = vshrl.u32 %v2259, 7
        %v2261 = vsub.s32 0, %v2260
        %v2262 = vrot.slane %v1694, %v2261
        %v2263 = vlaneseq
        %v2264 = vshrl.u32 %v2263, 7
        %v2265 = vsub.s32 0, %v2264
        %v2266 = vrot.slane %v1702, %v2265
        %v2267 = vlaneseq
        %v2268 = vshrl.u32 %v2267, 7
        %v2269 = vsub.s32 0, %v2268
        %v2270 = vrot.slane %v1704, %v2269
        %v2271 = vlaneseq
        %v2272 = vshrl.u32 %v2271, 7
        %v2273 = vsub.s32 0, %v2272
        %v2274 = vrot.slane %v1687, %v2273
        %v2275 = vlaneseq
        %v2276 = vshrl.u32 %v2275, 7
        %v2277 = vsub.s32 0, %v2276
        %v2278 = vrot.slane %v1701, %v2277
        %v2279 = vlaneseq
        %v2280 = vshrl.u32 %v2279, 7
        %v2281 = vsub.s32 0, %v2280
        %v2282 = vrot.slane %v1703, %v2281
        %v2283 = vlaneseq
        %v2284 = vshrl.u32 %v2283, 7
        %v2285 = vsub.s32 0, %v2284
        %v2286 = vrot.slane %v1705, %v2285
        %v2287 = vlaneseq
        %v2288 = vshrl.u32 %v2287, 7
        %v2289 = vsub.s32 0, %v2288
        %v2290 = vrot.slane %v1729, %v2289
        %v2291 = vlaneseq
        %v2292 = vshrl.u32 %v2291, 7
        %v2293 = vsub.s32 0, %v2292
        %v2294 = vrot.slane %v1743, %v2293
        %v2295 = vlaneseq
        %v2296 = vshrl.u32 %v2295, 7
        %v2297 = vsub.s32 0, %v2296
        %v2298 = vrot.slane %v1751, %v2297
        %v2299 = vlaneseq
        %v2300 = vshrl.u32 %v2299, 7
        %v2301 = vsub.s32 0, %v2300
        %v2302 = vrot.slane %v1753, %v2301
        %v2303 = vlaneseq
        %v2304 = vshrl.u32 %v2303, 7
        %v2305 = vsub.s32 0, %v2304
        %v2306 = vrot.slane %v1736, %v2305
        %v2307 = vlaneseq
        %v2308 = vshrl.u32 %v2307, 7
        %v2309 = vsub.s32 0, %v2308
        %v2310 = vrot.slane %v1750, %v2309
        %v2311 = vlaneseq
        %v2312 = vshrl.u32 %v2311, 7
        %v2313 = vsub.s32 0, %v2312
        %v2314 = vrot.slane %v1752, %v2313
        %v2315 = vlaneseq
        %v2316 = vshrl.u32 %v2315, 7
        %v2317 = vsub.s32 0, %v2316
        %v2318 = vrot.slane %v1754, %v2317
        %v2319 = vlaneseq
        %v2320 = vshrl.u32 %v2319, 7
        %v2321 = vsub.s32 0, %v2320
        %v2322 = vrot.slane %v1778, %v2321
        %v2323 = vlaneseq
        %v2324 = vshrl.u32 %v2323, 7
        %v2325 = vsub.s32 0, %v2324
        %v2326 = vrot.slane %v1792, %v2325
        %v2327 = vlaneseq
        %v2328 = vshrl.u32 %v2327, 7
        %v2329 = vsub.s32 0, %v2328
        %v2330 = vrot.slane %v1800, %v2329
        %v2331 = vlaneseq
        %v2332 = vshrl.u32 %v2331, 7
        %v2333 = vsub.s32 0, %v2332
        %v2334 = vrot.slane %v1802, %v2333
        %v2335 = vlaneseq
        %v2336 = vshrl.u32 %v2335, 7
        %v2337 = vsub.s32 0, %v2336
        %v2338 = vrot.slane %v1785, %v2337
        %v2339 = vlaneseq
        %v2340 = vshrl.u32 %v2339, 7
        %v2341 = vsub.s32 0, %v2340
        %v2342 = vrot.slane %v1799, %v2341
        %v2343 = vlaneseq
        %v2344 = vshrl.u32 %v2343, 7
        %v2345 = vsub.s32 0, %v2344
        %v2346 = vrot.slane %v1801, %v2345
        %v2347 = vlaneseq
        %v2348 = vshrl.u32 %v2347, 7
        %v2349 = vsub.s32 0, %v2348
        %v2350 = vrot.slane %v1803, %v2349
        %v2351 = vlaneseq
        %v2352 = vshrl.u32 %v2351, 7
        %v2353 = vsub.s32 0, %v2352
        %v2354 = vrot.slane %v1827, %v2353
        %v2355 = vlaneseq
        %v2356 = vshrl.u32 %v2355, 7
        %v2357 = vsub.s32 0, %v2356
        %v2358 = vrot.slane %v1841, %v2357
        %v2359 = vlaneseq
        %v2360 = vshrl.u32 %v2359, 7
        %v2361 = vsub.s32 0, %v2360
        %v2362 = vrot.slane %v1849, %v2361
        %v2363 = vlaneseq
        %v2364 = vshrl.u32 %v2363, 7
        %v2365 = vsub.s32 0, %v2364
        %v2366 = vrot.slane %v1851, %v2365
        %v2367 = vlaneseq
        %v2368 = vshrl.u32 %v2367, 7
        %v2369 = vsub.s32 0, %v2368
        %v2370 = vrot.slane %v1834, %v2369
        %v2371 = vlaneseq
        %v2372 = vshrl.u32 %v2371, 7
        %v2373 = vsub.s32 0, %v2372
        %v2374 = vrot.slane %v1848, %v2373
        %v2375 = vlaneseq
        %v2376 = vshrl.u32 %v2375, 7
        %v2377 = vsub.s32 0, %v2376
        %v2378 = vrot.slane %v1850, %v2377
        %v2379 = vlaneseq
        %v2380 = vshrl.u32 %v2379, 7
        %v2381 = vsub.s32 0, %v2380
        %v2382 = vrot.slane %v1852, %v2381
        %v2383 = vlaneseq
        %v2384 = vshrl.u32 %v2383, 7
        %v2385 = vsub.s32 0, %v2384
        %v2386 = vrot.slane %v1876, %v2385
        %v2387 = vlaneseq
        %v2388 = vshrl.u32 %v2387, 7
        %v2389 = vsub.s32 0, %v2388
        %v2390 = vrot.slane %v1890, %v2389
        %v2391 = vlaneseq
        %v2392 = vshrl.u32 %v2391, 7
        %v2393 = vsub.s32 0, %v2392
        %v2394 = vrot.slane %v1898, %v2393
        %v2395 = vlaneseq
        %v2396 = vshrl.u32 %v2395, 7
        %v2397 = vsub.s32 0, %v2396
        %v2398 = vrot.slane %v1900, %v2397
        %v2399 = vlaneseq
        %v2400 = vshrl.u32 %v2399, 7
        %v2401 = vsub.s32 0, %v2400
        %v2402 = vrot.slane %v1883, %v2401
        %v2403 = vlaneseq
        %v2404 = vshrl.u32 %v2403, 7
        %v2405 = vsub.s32 0, %v2404
        %v2406 = vrot.slane %v1897, %v2405
        %v2407 = vlaneseq
        %v2408 = vshrl.u32 %v2407, 7
        %v2409 = vsub.s32 0, %v2408
        %v2410 = vrot.slane %v1899, %v2409
        %v2411 = vlaneseq
        %v2412 = vshrl.u32 %v2411, 7
        %v2413 = vsub.s32 0, %v2412
        %v2414 = vrot.slane %v1901, %v2413
        %v2543 = vmul.f32 %v1906, %v1902
        %v2544 = vmul.f32 %v1910, %v1902
        %v2545 = vmul.f32 %v1914, %v1902
        %v2546 = vmul.f32 %v1918, %v1902
        %v2547 = vmul.f32 %v1922, %v1902
        %v2548 = vmul.f32 %v1926, %v1902
        %v2549 = vmul.f32 %v1930, %v1902
        %v2550 = vmul.f32 %v1934, %v1902
        %v2551 = vmul.f32 %v1938, %v1902
        %v2552 = vmul.f32 %v1942, %v1902
        %v2553 = vmul.f32 %v1946, %v1902
        %v2554 = vmul.f32 %v1950, %v1902
        %v2555 = vmul.f32 %v1954, %v1902
        %v2556 = vmul.f32 %v1958, %v1902
        %v2557 = vmul.f32 %v1962, %v1902
        %v2558 = vmul.f32 %v1966, %v1902
        %v2559 = vmul.f32 %v1970, %v1902
        %v2560 = vmul.f32 %v1974, %v1902
        %v2561 = vmul.f32 %v1978, %v1902
        %v2562 = vmul.f32 %v1982, %v1902
        %v2563 = vmul.f32 %v1986, %v1902
        %v2564 = vmul.f32 %v1990, %v1902
        %v2565 = vmul.f32 %v1994, %v1902
        %v2566 = vmul.f32 %v1998, %v1902
        %v2567 = vmul.f32 %v2002, %v1902
        %v2568 = vmul.f32 %v2006, %v1902
        %v2569 = vmul.f32 %v2010, %v1902
        %v2570 = vmul.f32 %v2014, %v1902
        %v2571 = vmul.f32 %v2018, %v1902
        %v2572 = vmul.f32 %v2022, %v1902
        %v2573 = vmul.f32 %v2026, %v1902
        %v2574 = vmul.f32 %v2030, %v1902
        %v2575 = vmul.f32 %v2034, %v1902
        %v2576 = vmul.f32 %v2038, %v1902
        %v2577 = vmul.f32 %v2042, %v1902
        %v2578 = vmul.f32 %v2046, %v1902
        %v2579 = vmul.f32 %v2050, %v1902
        %v2580 = vmul.f32 %v2054, %v1902
        %v2581 = vmul.f32 %v2058, %v1902
        %v2582 = vmul.f32 %v2062, %v1902
        %v2583 = vmul.f32 %v2066, %v1902
        %v2584 = vmul.f32 %v2070, %v1902
        %v2585 = vmul.f32 %v2074, %v1902
        %v2586 = vmul.f32 %v2078, %v1902
        %v2587 = vmul.f32 %v2082, %v1902
        %v2588 = vmul.f32 %v2086, %v1902
        %v2589 = vmul.f32 %v2090, %v1902
        %v2590 = vmul.f32 %v2094, %v1902
        %v2591 = vmul.f32 %v2098, %v1902
        %v2592 = vmul.f32 %v2102, %v1902
        %v2593 = vmul.f32 %v2106, %v1902
        %v2594 = vmul.f32 %v2110, %v1902
        %v2595 = vmul.f32 %v2114, %v1902
        %v2596 = vmul.f32 %v2118, %v1902
        %v2597 = vmul.f32 %v2122, %v1902
        %v2598 = vmul.f32 %v2126, %v1902
        %v2599 = vmul.f32 %v2130, %v1902
        %v2600 = vmul.f32 %v2134, %v1902
        %v2601 = vmul.f32 %v2138, %v1902
        %v2602 = vmul.f32 %v2142, %v1902
        %v2603 = vmul.f32 %v2146, %v1902
        %v2604 = vmul.f32 %v2150, %v1902
        %v2605 = vmul.f32 %v2154, %v1902
        %v2606 = vmul.f32 %v2158, %v1902
        %v2607 = vmul.f32 %v2162, %v1902
        %v2608 = vmul.f32 %v2166, %v1902
        %v2609 = vmul.f32 %v2170, %v1902
        %v2610 = vmul.f32 %v2174, %v1902
        %v2611 = vmul.f32 %v2178, %v1902
        %v2612 = vmul.f32 %v2182, %v1902
        %v2613 = vmul.f32 %v2186, %v1902
        %v2614 = vmul.f32 %v2190, %v1902
        %v2615 = vmul.f32 %v2194, %v1902
        %v2616 = vmul.f32 %v2198, %v1902
        %v2617 = vmul.f32 %v2202, %v1902
        %v2618 = vmul.f32 %v2206, %v1902
        %v2619 = vmul.f32 %v2210, %v1902
        %v2620 = vmul.f32 %v2214, %v1902
        %v2621 = vmul.f32 %v2218, %v1902
        %v2622 = vmul.f32 %v2222, %v1902
        %v2623 = vmul.f32 %v2226, %v1902
        %v2624 = vmul.f32 %v2230, %v1902
        %v2625 = vmul.f32 %v2234, %v1902
        %v2626 = vmul.f32 %v2238, %v1902
        %v2627 = vmul.f32 %v2242, %v1902
        %v2628 = vmul.f32 %v2246, %v1902
        %v2629 = vmul.f32 %v2250, %v1902
        %v2630 = vmul.f32 %v2254, %v1902
        %v2631 = vmul.f32 %v2258, %v1902
        %v2632 = vmul.f32 %v2262, %v1902
        %v2633 = vmul.f32 %v2266, %v1902
        %v2634 = vmul.f32 %v2270, %v1902
        %v2635 = vmul.f32 %v2274, %v1902
        %v2636 = vmul.f32 %v2278, %v1902
        %v2637 = vmul.f32 %v2282, %v1902
        %v2638 = vmul.f32 %v2286, %v1902
        %v2639 = vmul.f32 %v2290, %v1902
        %v2640 = vmul.f32 %v2294, %v1902
        %v2641 = vmul.f32 %v2298, %v1902
        %v2642 = vmul.f32 %v2302, %v1902
        %v2643 = vmul.f32 %v2306, %v1902
        %v2644 = vmul.f32 %v2310, %v1902
        %v2645 = vmul.f32 %v2314, %v1902
        %v2646 = vmul.f32 %v2318, %v1902
        %v2647 = vmul.f32 %v2322, %v1902
        %v2648 = vmul.f32 %v2326, %v1902
        %v2649 = vmul.f32 %v2330, %v1902
        %v2650 = vmul.f32 %v2334, %v1902
        %v2651 = vmul.f32 %v2338, %v1902
        %v2652 = vmul.f32 %v2342, %v1902
        %v2653 = vmul.f32 %v2346, %v1902
        %v2654 = vmul.f32 %v2350, %v1902
        %v2655 = vmul.f32 %v2354, %v1902
        %v2656 = vmul.f32 %v2358, %v1902
        %v2657 = vmul.f32 %v2362, %v1902
        %v2658 = vmul.f32 %v2366, %v1902
        %v2659 = vmul.f32 %v2370, %v1902
        %v2660 = vmul.f32 %v2374, %v1902
        %v2661 = vmul.f32 %v2378, %v1902
        %v2662 = vmul.f32 %v2382, %v1902
        %v2663 = vmul.f32 %v2386, %v1902
        %v2664 = vmul.f32 %v2390, %v1902
        %v2665 = vmul.f32 %v2394, %v1902
        %v2666 = vmul.f32 %v2398, %v1902
        %v2667 = vmul.f32 %v2402, %v1902
        %v2668 = vmul.f32 %v2406, %v1902
        %v2669 = vmul.f32 %v2410, %v1902
        %v2670 = vmul.f32 %v2414, %v1902
        %v2671 = vadd.f32 %v683, %v2543
        %v2672 = vadd.f32 %v683, %v2544
        %v2673 = vadd.f32 %v683, %v2545
        %v2674 = vadd.f32 %v683, %v2546
        %v2675 = vadd.f32 %v683, %v2547
        %v2676 = vadd.f32 %v683, %v2548
        %v2677 = vadd.f32 %v683, %v2549
        %v2678 = vadd.f32 %v683, %v2550
        %v2679 = vadd.f32 %v683, %v2551
        %v2680 = vadd.f32 %v683, %v2552
        %v2681 = vadd.f32 %v683, %v2553
        %v2682 = vadd.f32 %v683, %v2554
        %v2683 = vadd.f32 %v683, %v2555
        %v2684 = vadd.f32 %v683, %v2556
        %v2685 = vadd.f32 %v683, %v2557
        %v2686 = vadd.f32 %v683, %v2558
        %v2687 = vadd.f32 %v683, %v2559
        %v2688 = vadd.f32 %v683, %v2560
        %v2689 = vadd.f32 %v683, %v2561
        %v2690 = vadd.f32 %v683, %v2562
        %v2691 = vadd.f32 %v683, %v2563
        %v2692 = vadd.f32 %v683, %v2564
        %v2693 = vadd.f32 %v683, %v2565
        %v2694 = vadd.f32 %v683, %v2566
        %v2695 = vadd.f32 %v683, %v2567
        %v2696 = vadd.f32 %v683, %v2568
        %v2697 = vadd.f32 %v683, %v2569
        %v2698 = vadd.f32 %v683, %v2570
        %v2699 = vadd.f32 %v683, %v2571
        %v2700 = vadd.f32 %v683, %v2572
        %v2701 = vadd.f32 %v683, %v2573
        %v2702 = vadd.f32 %v683, %v2574
        %v2703 = vadd.f32 %v683, %v2575
        %v2704 = vadd.f32 %v683, %v2576
        %v2705 = vadd.f32 %v683, %v2577
        %v2706 = vadd.f32 %v683, %v2578
        %v2707 = vadd.f32 %v683, %v2579
        %v2708 = vadd.f32 %v683, %v2580
        %v2709 = vadd.f32 %v683, %v2581
        %v2710 = vadd.f32 %v683, %v2582
        %v2711 = vadd.f32 %v683, %v2583
        %v2712 = vadd.f32 %v683, %v2584
        %v2713 = vadd.f32 %v683, %v2585
        %v2714 = vadd.f32 %v683, %v2586
        %v2715 = vadd.f32 %v683, %v2587
        %v2716 = vadd.f32 %v683, %v2588
        %v2717 = vadd.f32 %v683, %v2589
        %v2718 = vadd.f32 %v683, %v2590
        %v2719 = vadd.f32 %v683, %v2591
        %v2720 = vadd.f32 %v683, %v2592
        %v2721 = vadd.f32 %v683, %v2593
        %v2722 = vadd.f32 %v683, %v2594
        %v2723 = vadd.f32 %v683, %v2595
        %v2724 = vadd.f32 %v683, %v2596
        %v2725 = vadd.f32 %v683, %v2597
        %v2726 = vadd.f32 %v683, %v2598
        %v2727 = vadd.f32 %v683, %v2599
        %v2728 = vadd.f32 %v683, %v2600
        %v2729 = vadd.f32 %v683, %v2601
        %v2730 = vadd.f32 %v683, %v2602
        %v2731 = vadd.f32 %v683, %v2603
        %v2732 = vadd.f32 %v683, %v2604
        %v2733 = vadd.f32 %v683, %v2605
        %v2734 = vadd.f32 %v683, %v2606
        %v2735 = vadd.f32 %v683, %v2607
        %v2736 = vadd.f32 %v683, %v2608
        %v2737 = vadd.f32 %v683, %v2609
        %v2738 = vadd.f32 %v683, %v2610
        %v2739 = vadd.f32 %v683, %v2611
        %v2740 = vadd.f32 %v683, %v2612
        %v2741 = vadd.f32 %v683, %v2613
        %v2742 = vadd.f32 %v683, %v2614
        %v2743 = vadd.f32 %v683, %v2615
        %v2744 = vadd.f32 %v683, %v2616
        %v2745 = vadd.f32 %v683, %v2617
        %v2746 = vadd.f32 %v683, %v2618
        %v2747 = vadd.f32 %v683, %v2619
        %v2748 = vadd.f32 %v683, %v2620
        %v2749 = vadd.f32 %v683, %v2621
        %v2750 = vadd.f32 %v683, %v2622
        %v2751 = vadd.f32 %v683, %v2623
        %v2752 = vadd.f32 %v683, %v2624
        %v2753 = vadd.f32 %v683, %v2625
        %v2754 = vadd.f32 %v683, %v2626
        %v2755 = vadd.f32 %v683, %v2627
        %v2756 = vadd.f32 %v683, %v2628
        %v2757 = vadd.f32 %v683, %v2629
        %v2758 = vadd.f32 %v683, %v2630
        %v2759 = vadd.f32 %v683, %v2631
        %v2760 = vadd.f32 %v683, %v2632
        %v2761 = vadd.f32 %v683, %v2633
        %v2762 = vadd.f32 %v683, %v2634
        %v2763 = vadd.f32 %v683, %v2635
        %v2764 = vadd.f32 %v683, %v2636
        %v2765 = vadd.f32 %v683, %v2637
        %v2766 = vadd.f32 %v683, %v2638
        %v2767 = vadd.f32 %v683, %v2639
        %v2768 = vadd.f32 %v683, %v2640
        %v2769 = vadd.f32 %v683, %v2641
        %v2770 = vadd.f32 %v683, %v2642
        %v2771 = vadd.f32 %v683, %v2643
        %v2772 = vadd.f32 %v683, %v2644
        %v2773 = vadd.f32 %v683, %v2645
        %v2774 = vadd.f32 %v683, %v2646
        %v2775 = vadd.f32 %v683, %v2647
        %v2776 = vadd.f32 %v683, %v2648
        %v2777 = vadd.f32 %v683, %v2649
        %v2778 = vadd.f32 %v683, %v2650
        %v2779 = vadd.f32 %v683, %v2651
        %v2780 = vadd.f32 %v683, %v2652
        %v2781 = vadd.f32 %v683, %v2653
        %v2782 = vadd.f32 %v683, %v2654
        %v2783 = vadd.f32 %v683, %v2655
        %v2784 = vadd.f32 %v683, %v2656
        %v2785 = vadd.f32 %v683, %v2657
        %v2786 = vadd.f32 %v683, %v2658
        %v2787 = vadd.f32 %v683, %v2659
        %v2788 = vadd.f32 %v683, %v2660
        %v2789 = vadd.f32 %v683, %v2661
        %v2790 = vadd.f32 %v683, %v2662
        %v2791 = vadd.f32 %v683, %v2663
        %v2792 = vadd.f32 %v683, %v2664
        %v2793 = vadd.f32 %v683, %v2665
        %v2794 = vadd.f32 %v683, %v2666
        %v2795 = vadd.f32 %v683, %v2667
        %v2796 = vadd.f32 %v683, %v2668
        %v2797 = vadd.f32 %v683, %v2669
        %v2798 = vadd.f32 %v683, %v2670
        %2799 = vset.pattern.permute.xlu0 1
        %2800 = vperm.xlu0 %2799, %v663
        %v2801 = vpop.permute.xlu0 %2800
        %2803 = vset.pattern.permute.xlu0 1
        %2804 = vperm.xlu0 %2803, %v664
        %v2805 = vpop.permute.xlu0 %2804
        %2807 = vset.pattern.permute.xlu0 1
        %2808 = vperm.xlu0 %2807, %v665
        %v2809 = vpop.permute.xlu0 %2808
        %2811 = vset.pattern.permute.xlu0 1
        %2812 = vperm.xlu0 %2811, %v666
        %v2813 = vpop.permute.xlu0 %2812
        %2815 = vset.pattern.permute.xlu0 1
        %2816 = vperm.xlu0 %2815, %v667
        %v2817 = vpop.permute.xlu0 %2816
        %2819 = vset.pattern.permute.xlu0 1
        %2820 = vperm.xlu0 %2819, %v668
        %v2821 = vpop.permute.xlu0 %2820
        %2823 = vset.pattern.permute.xlu0 1
        %2824 = vperm.xlu0 %2823, %v669
        %v2825 = vpop.permute.xlu0 %2824
        %2827 = vset.pattern.permute.xlu0 1
        %2828 = vperm.xlu0 %2827, %v670
        %v2829 = vpop.permute.xlu0 %2828
        %2831 = vset.pattern.permute.xlu0 1
        %2832 = vperm.xlu0 %2831, %v671
        %v2833 = vpop.permute.xlu0 %2832
        %2835 = vset.pattern.permute.xlu0 1
        %2836 = vperm.xlu0 %2835, %v672
        %v2837 = vpop.permute.xlu0 %2836
        %2839 = vset.pattern.permute.xlu0 1
        %2840 = vperm.xlu0 %2839, %v673
        %v2841 = vpop.permute.xlu0 %2840
        %2843 = vset.pattern.permute.xlu0 1
        %2844 = vperm.xlu0 %2843, %v674
        %v2845 = vpop.permute.xlu0 %2844
        %2847 = vset.pattern.permute.xlu0 1
        %2848 = vperm.xlu0 %2847, %v675
        %v2849 = vpop.permute.xlu0 %2848
        %2851 = vset.pattern.permute.xlu0 1
        %2852 = vperm.xlu0 %2851, %v676
        %v2853 = vpop.permute.xlu0 %2852
        %2855 = vset.pattern.permute.xlu0 1
        %2856 = vperm.xlu0 %2855, %v677
        %v2857 = vpop.permute.xlu0 %2856
        %2859 = vset.pattern.permute.xlu0 1
        %2860 = vperm.xlu0 %2859, %v678
        %v2861 = vpop.permute.xlu0 %2860
        %v2863 = vmul.f32 %v2801, %v768
        %v2864 = vmul.f32 %v2805, %v768
        %v2865 = vmul.f32 %v2809, %v768
        %v2866 = vmul.f32 %v2813, %v768
        %v2867 = vmul.f32 %v2817, %v768
        %v2868 = vmul.f32 %v2821, %v768
        %v2869 = vmul.f32 %v2825, %v768
        %v2870 = vmul.f32 %v2829, %v768
        %v2871 = vmul.f32 %v2833, %v768
        %v2872 = vmul.f32 %v2837, %v768
        %v2873 = vmul.f32 %v2841, %v768
        %v2874 = vmul.f32 %v2845, %v768
        %v2875 = vmul.f32 %v2849, %v768
        %v2876 = vmul.f32 %v2853, %v768
        %v2877 = vmul.f32 %v2857, %v768
        %v2878 = vmul.f32 %v2861, %v768
        %v2879 = vlaneseq
        %v2880 = vshrl.u32 %v2879, 7
        %v2881 = vsub.s32 1, %v2880
        %v2882 = vrot.slane %v679, %v2881
        %v2883 = vadd.f32 %v2863, %v2882
        %v2884 = vadd.f32 %v2864, %v2882
        %v2885 = vadd.f32 %v2865, %v2882
        %v2886 = vadd.f32 %v2866, %v2882
        %v2887 = vadd.f32 %v2867, %v2882
        %v2888 = vadd.f32 %v2868, %v2882
        %v2889 = vadd.f32 %v2869, %v2882
        %v2890 = vadd.f32 %v2870, %v2882
        %v2891 = vadd.f32 %v2871, %v2882
        %v2892 = vadd.f32 %v2872, %v2882
        %v2893 = vadd.f32 %v2873, %v2882
        %v2894 = vadd.f32 %v2874, %v2882
        %v2895 = vadd.f32 %v2875, %v2882
        %v2896 = vadd.f32 %v2876, %v2882
        %v2897 = vadd.f32 %v2877, %v2882
        %v2898 = vadd.f32 %v2878, %v2882
        %vm2899 = vcmp.ge.f32.partialorder %v2883, 0.0
        %vm2900 = vcmp.ge.f32.partialorder %v2884, 0.0
        %vm2901 = vcmp.ge.f32.partialorder %v2885, 0.0
        %vm2902 = vcmp.ge.f32.partialorder %v2886, 0.0
        %vm2903 = vcmp.ge.f32.partialorder %v2887, 0.0
        %vm2904 = vcmp.ge.f32.partialorder %v2888, 0.0
        %vm2905 = vcmp.ge.f32.partialorder %v2889, 0.0
        %vm2906 = vcmp.ge.f32.partialorder %v2890, 0.0
        %vm2907 = vcmp.ge.f32.partialorder %v2891, 0.0
        %vm2908 = vcmp.ge.f32.partialorder %v2892, 0.0
        %vm2909 = vcmp.ge.f32.partialorder %v2893, 0.0
        %vm2910 = vcmp.ge.f32.partialorder %v2894, 0.0
        %vm2911 = vcmp.ge.f32.partialorder %v2895, 0.0
        %vm2912 = vcmp.ge.f32.partialorder %v2896, 0.0
        %vm2913 = vcmp.ge.f32.partialorder %v2897, 0.0
        %vm2914 = vcmp.ge.f32.partialorder %v2898, 0.0
        %v2915 = vmul.f32 %v2883, 0.2
        %v2916 = vmul.f32 %v2884, 0.2
        %v2917 = vmul.f32 %v2885, 0.2
        %v2918 = vmul.f32 %v2886, 0.2
        %v2919 = vmul.f32 %v2887, 0.2
        %v2920 = vmul.f32 %v2888, 0.2
        %v2921 = vmul.f32 %v2889, 0.2
        %v2922 = vmul.f32 %v2890, 0.2
        %v2923 = vmul.f32 %v2891, 0.2
        %v2924 = vmul.f32 %v2892, 0.2
        %v2925 = vmul.f32 %v2893, 0.2
        %v2926 = vmul.f32 %v2894, 0.2
        %v2927 = vmul.f32 %v2895, 0.2
        %v2928 = vmul.f32 %v2896, 0.2
        %v2929 = vmul.f32 %v2897, 0.2
        %v2930 = vmul.f32 %v2898, 0.2
        %v2931 = vsel %vm2899, %v2883, %v2915
        %v2932 = vsel %vm2900, %v2884, %v2916
        %v2933 = vsel %vm2901, %v2885, %v2917
        %v2934 = vsel %vm2902, %v2886, %v2918
        %v2935 = vsel %vm2903, %v2887, %v2919
        %v2936 = vsel %vm2904, %v2888, %v2920
        %v2937 = vsel %vm2905, %v2889, %v2921
        %v2938 = vsel %vm2906, %v2890, %v2922
        %v2939 = vsel %vm2907, %v2891, %v2923
        %v2940 = vsel %vm2908, %v2892, %v2924
        %v2941 = vsel %vm2909, %v2893, %v2925
        %v2942 = vsel %vm2910, %v2894, %v2926
        %v2943 = vsel %vm2911, %v2895, %v2927
        %v2944 = vsel %vm2912, %v2896, %v2928
        %v2945 = vsel %vm2913, %v2897, %v2929
        %v2946 = vsel %vm2914, %v2898, %v2930
        %v2948 = vsel %vm860, %v2931, 0
        %v2951 = vsel %vm860, %v2932, 0
        %v2954 = vsel %vm860, %v2933, 0
        %v2957 = vsel %vm860, %v2934, 0
        %v2960 = vsel %vm860, %v2935, 0
        %v2963 = vsel %vm860, %v2936, 0
        %v2966 = vsel %vm860, %v2937, 0
        %v2969 = vsel %vm860, %v2938, 0
        %v2972 = vsel %vm860, %v2939, 0
        %v2975 = vsel %vm860, %v2940, 0
        %v2978 = vsel %vm860, %v2941, 0
        %v2981 = vsel %vm860, %v2942, 0
        %v2984 = vsel %vm860, %v2943, 0
        %v2987 = vsel %vm860, %v2944, 0
        %v2990 = vsel %vm860, %v2945, 0
        %v2993 = vsel %vm860, %v2946, 0
        %2995 = vmatprep.subr.mxu0 0.0
        %2996 = vmatpush1.msra.mxu0 %v681
        %2997 = vmatprep.subr.mxu0 0.0
        %2998 = vmatpush1.msra.mxu0 0.0
        %2999 = vmatprep.subr.mxu0 0.0
        %3000 = vmatpush1.msra.mxu0 0.0
        %3001 = vmatprep.subr.mxu0 0.0
        %3002 = vmatpush1.msra.mxu0 0.0
        %3003 = vmatprep.subr.mxu0 0.0
        %3004 = vmatpush1.msra.mxu0 0.0
        %3005 = vmatprep.subr.mxu0 0.0
        %3006 = vmatpush1.msra.mxu0 0.0
        %3007 = vmatprep.subr.mxu0 0.0
        %3008 = vmatpush1.msra.mxu0 0.0
        %3009 = vmatprep.subr.mxu0 0.0
        %3010 = vmatpush1.msra.mxu0 0.0
        %3011 = vmatprep.subr.mxu0 0.0
        %3012 = vmatpush1.msra.mxu0 0.0
        %3013 = vmatprep.subr.mxu0 0.0
        %3014 = vmatpush1.msra.mxu0 0.0
        %3015 = vmatprep.subr.mxu0 0.0
        %3016 = vmatpush1.msra.mxu0 0.0
        %3017 = vmatprep.subr.mxu0 0.0
        %3018 = vmatpush1.msra.mxu0 0.0
        %3019 = vmatprep.subr.mxu0 0.0
        %3020 = vmatpush1.msra.mxu0 0.0
        %3021 = vmatprep.subr.mxu0 0.0
        %3022 = vmatpush1.msra.mxu0 0.0
        %3023 = vmatprep.subr.mxu0 0.0
        %3024 = vmatpush1.msra.mxu0 0.0
        %3025 = vmatprep.subr.mxu0 0.0
        %3026 = vmatpush1.msra.mxu0 0.0
        %3027 = vmatprep.subr.mxu0 0.0
        %3028 = vmatpush1.msra.mxu0 0.0
        %3029 = vmatprep.subr.mxu0 0.0
        %3030 = vmatpush1.msra.mxu0 0.0
        %3031 = vmatprep.subr.mxu0 0.0
        %3032 = vmatpush1.msra.mxu0 0.0
        %3033 = vmatprep.subr.mxu0 0.0
        %3034 = vmatpush1.msra.mxu0 0.0
        %3035 = vmatprep.subr.mxu0 0.0
        %3036 = vmatpush1.msra.mxu0 0.0
        %3037 = vmatprep.subr.mxu0 0.0
        %3038 = vmatpush1.msra.mxu0 0.0
        %3039 = vmatprep.subr.mxu0 0.0
        %3040 = vmatpush1.msra.mxu0 0.0
        %3041 = vmatprep.subr.mxu0 0.0
        %3042 = vmatpush1.msra.mxu0 0.0
        %3043 = vmatprep.subr.mxu0 0.0
        %3044 = vmatpush1.msra.mxu0 0.0
        %3045 = vmatprep.subr.mxu0 0.0
        %3046 = vmatpush1.msra.mxu0 0.0
        %3047 = vmatprep.subr.mxu0 0.0
        %3048 = vmatpush1.msra.mxu0 0.0
        %3049 = vmatprep.subr.mxu0 0.0
        %3050 = vmatpush1.msra.mxu0 0.0
        %3051 = vmatprep.subr.mxu0 0.0
        %3052 = vmatpush1.msra.mxu0 0.0
        %3053 = vmatprep.subr.mxu0 0.0
        %3054 = vmatpush1.msra.mxu0 0.0
        %3055 = vmatprep.subr.mxu0 0.0
        %3056 = vmatpush1.msra.mxu0 0.0
        %3057 = vmatprep.subr.mxu0 0.0
        %3058 = vmatpush1.msra.mxu0 0.0
        %3059 = vmatprep.mubr.f32.mxu0 0.0
        %3060 = vmatmul.mubr.f32.gmra.mrb[0].mxu0 %v2948
        %v3061 = vpop.f32.mrb[0].mxu0
        %v3062 = vadd.f32 %v858, %v3061
        %v3063 = vpop.f32.mrb[0].mxu0
        %3064 = vmatprep.mubr.f32.mxu0 0.0
        %3065 = vmatmul.mubr.f32.gmra.mrb[0].mxu0 %v2951
        %v3066 = vpop.f32.mrb[0].mxu0
        %v3067 = vadd.f32 %v858, %v3066
        %v3068 = vpop.f32.mrb[0].mxu0
        %3069 = vmatprep.mubr.f32.mxu0 0.0
        %3070 = vmatmul.mubr.f32.gmra.mrb[0].mxu0 %v2954
        %v3071 = vpop.f32.mrb[0].mxu0
        %v3072 = vadd.f32 %v858, %v3071
        %v3073 = vpop.f32.mrb[0].mxu0
        %3074 = vmatprep.mubr.f32.mxu0 0.0
        %3075 = vmatmul.mubr.f32.gmra.mrb[0].mxu0 %v2957
        %v3076 = vpop.f32.mrb[0].mxu0
        %v3077 = vadd.f32 %v858, %v3076
        %v3078 = vpop.f32.mrb[0].mxu0
        %3079 = vmatprep.mubr.f32.mxu0 0.0
        %3080 = vmatmul.mubr.f32.gmra.mrb[0].mxu0 %v2960
        %v3081 = vpop.f32.mrb[0].mxu0
        %v3082 = vadd.f32 %v858, %v3081
        %v3083 = vpop.f32.mrb[0].mxu0
        %3084 = vmatprep.mubr.f32.mxu0 0.0
        %3085 = vmatmul.mubr.f32.gmra.mrb[0].mxu0 %v2963
        %v3086 = vpop.f32.mrb[0].mxu0
        %v3087 = vadd.f32 %v858, %v3086
        %v3088 = vpop.f32.mrb[0].mxu0
        %3089 = vmatprep.mubr.f32.mxu0 0.0
        %3090 = vmatmul.mubr.f32.gmra.mrb[0].mxu0 %v2966
        %v3091 = vpop.f32.mrb[0].mxu0
        %v3092 = vadd.f32 %v858, %v3091
        %v3093 = vpop.f32.mrb[0].mxu0
        %3094 = vmatprep.mubr.f32.mxu0 0.0
        %3095 = vmatmul.mubr.f32.gmra.mrb[0].mxu0 %v2969
        %v3096 = vpop.f32.mrb[0].mxu0
        %v3097 = vadd.f32 %v858, %v3096
        %v3098 = vpop.f32.mrb[0].mxu0
        %3099 = vmatprep.mubr.f32.mxu0 0.0
        %3100 = vmatmul.mubr.f32.gmra.mrb[0].mxu0 %v2972
        %v3101 = vpop.f32.mrb[0].mxu0
        %v3102 = vadd.f32 %v858, %v3101
        %v3103 = vpop.f32.mrb[0].mxu0
        %3104 = vmatprep.mubr.f32.mxu0 0.0
        %3105 = vmatmul.mubr.f32.gmra.mrb[0].mxu0 %v2975
        %v3106 = vpop.f32.mrb[0].mxu0
        %v3107 = vadd.f32 %v858, %v3106
        %v3108 = vpop.f32.mrb[0].mxu0
        %3109 = vmatprep.mubr.f32.mxu0 0.0
        %3110 = vmatmul.mubr.f32.gmra.mrb[0].mxu0 %v2978
        %v3111 = vpop.f32.mrb[0].mxu0
        %v3112 = vadd.f32 %v858, %v3111
        %v3113 = vpop.f32.mrb[0].mxu0
        %3114 = vmatprep.mubr.f32.mxu0 0.0
        %3115 = vmatmul.mubr.f32.gmra.mrb[0].mxu0 %v2981
        %v3116 = vpop.f32.mrb[0].mxu0
        %v3117 = vadd.f32 %v858, %v3116
        %v3118 = vpop.f32.mrb[0].mxu0
        %3119 = vmatprep.mubr.f32.mxu0 0.0
        %3120 = vmatmul.mubr.f32.gmra.mrb[0].mxu0 %v2984
        %v3121 = vpop.f32.mrb[0].mxu0
        %v3122 = vadd.f32 %v858, %v3121
        %v3123 = vpop.f32.mrb[0].mxu0
        %3124 = vmatprep.mubr.f32.mxu0 0.0
        %3125 = vmatmul.mubr.f32.gmra.mrb[0].mxu0 %v2987
        %v3126 = vpop.f32.mrb[0].mxu0
        %v3127 = vadd.f32 %v858, %v3126
        %v3128 = vpop.f32.mrb[0].mxu0
        %3129 = vmatprep.mubr.f32.mxu0 0.0
        %3130 = vmatmul.mubr.f32.gmra.mrb[0].mxu0 %v2990
        %v3131 = vpop.f32.mrb[0].mxu0
        %v3132 = vadd.f32 %v858, %v3131
        %v3133 = vpop.f32.mrb[0].mxu0
        %3134 = vmatprep.mubr.f32.mxu0 0.0
        %3135 = vmatmul.mubr.f32.gmra.mrb[0].mxu0 %v2993
        %v3136 = vpop.f32.mrb[0].mxu0
        %v3137 = vadd.f32 %v858, %v3136
        %v3138 = vpop.f32.mrb[0].mxu0
        %3139 = vdwg.mxu0
        %vm3140 = vcmp.ge.f32.partialorder %v3062, 0.0
        %vm3141 = vcmp.ge.f32.partialorder %v3067, 0.0
        %vm3142 = vcmp.ge.f32.partialorder %v3072, 0.0
        %vm3143 = vcmp.ge.f32.partialorder %v3077, 0.0
        %vm3144 = vcmp.ge.f32.partialorder %v3082, 0.0
        %vm3145 = vcmp.ge.f32.partialorder %v3087, 0.0
        %vm3146 = vcmp.ge.f32.partialorder %v3092, 0.0
        %vm3147 = vcmp.ge.f32.partialorder %v3097, 0.0
        %vm3148 = vcmp.ge.f32.partialorder %v3102, 0.0
        %vm3149 = vcmp.ge.f32.partialorder %v3107, 0.0
        %vm3150 = vcmp.ge.f32.partialorder %v3112, 0.0
        %vm3151 = vcmp.ge.f32.partialorder %v3117, 0.0
        %vm3152 = vcmp.ge.f32.partialorder %v3122, 0.0
        %vm3153 = vcmp.ge.f32.partialorder %v3127, 0.0
        %vm3154 = vcmp.ge.f32.partialorder %v3132, 0.0
        %vm3155 = vcmp.ge.f32.partialorder %v3137, 0.0
        %v3156 = vmul.f32 %v3062, 0.2
        %v3157 = vmul.f32 %v3067, 0.2
        %v3158 = vmul.f32 %v3072, 0.2
        %v3159 = vmul.f32 %v3077, 0.2
        %v3160 = vmul.f32 %v3082, 0.2
        %v3161 = vmul.f32 %v3087, 0.2
        %v3162 = vmul.f32 %v3092, 0.2
        %v3163 = vmul.f32 %v3097, 0.2
        %v3164 = vmul.f32 %v3102, 0.2
        %v3165 = vmul.f32 %v3107, 0.2
        %v3166 = vmul.f32 %v3112, 0.2
        %v3167 = vmul.f32 %v3117, 0.2
        %v3168 = vmul.f32 %v3122, 0.2
        %v3169 = vmul.f32 %v3127, 0.2
        %v3170 = vmul.f32 %v3132, 0.2
        %v3171 = vmul.f32 %v3137, 0.2
        %v3172 = vsel %vm3140, %v3062, %v3156
        %v3173 = vsel %vm3141, %v3067, %v3157
        %v3174 = vsel %vm3142, %v3072, %v3158
        %v3175 = vsel %vm3143, %v3077, %v3159
        %v3176 = vsel %vm3144, %v3082, %v3160
        %v3177 = vsel %vm3145, %v3087, %v3161
        %v3178 = vsel %vm3146, %v3092, %v3162
        %v3179 = vsel %vm3147, %v3097, %v3163
        %v3180 = vsel %vm3148, %v3102, %v3164
        %v3181 = vsel %vm3149, %v3107, %v3165
        %v3182 = vsel %vm3150, %v3112, %v3166
        %v3183 = vsel %vm3151, %v3117, %v3167
        %v3184 = vsel %vm3152, %v3122, %v3168
        %v3185 = vsel %vm3153, %v3127, %v3169
        %v3186 = vsel %vm3154, %v3132, %v3170
        %v3187 = vsel %vm3155, %v3137, %v3171
        %v3204 = vcombine.high %v3172, %v3172
        %v3206 = vunpack.c.l.s4 1966171168
        %v3207 = vunpack.c.0.s8 %v3206
        %v3208 = vlaneseq
        %v3209 = vshrl.u32 %v3208, 7
        %v3210 = vsub.s32 %v3207, %v3209
        %v3211 = vrot.slane %v3172, %v3210
        %v3213 = vunpack.c.l.s4 1966171168
        %v3214 = vunpack.c.0.s8 %v3213
        %v3215 = vlaneseq
        %v3216 = vshrl.u32 %v3215, 7
        %v3217 = vsub.s32 %v3214, %v3216
        %v3218 = vrot.slane %v3204, %v3217
        %v3219 = vcombine.high %v3211, %v3211
        %v3220 = vcombine.high %v3218, %v3218
        %v3222 = vunpack.c.l.s4 1966171168
        %v3223 = vunpack.c.0.s8 %v3222
        %v3224 = vlaneseq
        %v3225 = vshrl.u32 %v3224, 7
        %v3226 = vsub.s32 %v3223, %v3225
        %v3227 = vrot.slane %v3211, %v3226
        %v3229 = vunpack.c.l.s4 1966171168
        %v3230 = vunpack.c.0.s8 %v3229
        %v3231 = vlaneseq
        %v3232 = vshrl.u32 %v3231, 7
        %v3233 = vsub.s32 %v3230, %v3232
        %v3234 = vrot.slane %v3218, %v3233
        %v3236 = vunpack.c.l.s4 1966171168
        %v3237 = vunpack.c.0.s8 %v3236
        %v3238 = vlaneseq
        %v3239 = vshrl.u32 %v3238, 7
        %v3240 = vsub.s32 %v3237, %v3239
        %v3241 = vrot.slane %v3219, %v3240
        %v3243 = vunpack.c.l.s4 1966171168
        %v3244 = vunpack.c.0.s8 %v3243
        %v3245 = vlaneseq
        %v3246 = vshrl.u32 %v3245, 7
        %v3247 = vsub.s32 %v3244, %v3246
        %v3248 = vrot.slane %v3220, %v3247
        %v3249 = vcombine.high %v3227, %v3227
        %v3250 = vcombine.high %v3234, %v3234
        %v3251 = vcombine.high %v3241, %v3241
        %v3252 = vcombine.high %v3248, %v3248
        %v3253 = vcombine.high %v3173, %v3173
        %v3255 = vunpack.c.l.s4 1966171168
        %v3256 = vunpack.c.0.s8 %v3255
        %v3257 = vlaneseq
        %v3258 = vshrl.u32 %v3257, 7
        %v3259 = vsub.s32 %v3256, %v3258
        %v3260 = vrot.slane %v3173, %v3259
        %v3262 = vunpack.c.l.s4 1966171168
        %v3263 = vunpack.c.0.s8 %v3262
        %v3264 = vlaneseq
        %v3265 = vshrl.u32 %v3264, 7
        %v3266 = vsub.s32 %v3263, %v3265
        %v3267 = vrot.slane %v3253, %v3266
        %v3268 = vcombine.high %v3260, %v3260
        %v3269 = vcombine.high %v3267, %v3267
        %v3271 = vunpack.c.l.s4 1966171168
        %v3272 = vunpack.c.0.s8 %v3271
        %v3273 = vlaneseq
        %v3274 = vshrl.u32 %v3273, 7
        %v3275 = vsub.s32 %v3272, %v3274
        %v3276 = vrot.slane %v3260, %v3275
        %v3278 = vunpack.c.l.s4 1966171168
        %v3279 = vunpack.c.0.s8 %v3278
        %v3280 = vlaneseq
        %v3281 = vshrl.u32 %v3280, 7
        %v3282 = vsub.s32 %v3279, %v3281
        %v3283 = vrot.slane %v3267, %v3282
        %v3285 = vunpack.c.l.s4 1966171168
        %v3286 = vunpack.c.0.s8 %v3285
        %v3287 = vlaneseq
        %v3288 = vshrl.u32 %v3287, 7
        %v3289 = vsub.s32 %v3286, %v3288
        %v3290 = vrot.slane %v3268, %v3289
        %v3292 = vunpack.c.l.s4 1966171168
        %v3293 = vunpack.c.0.s8 %v3292
        %v3294 = vlaneseq
        %v3295 = vshrl.u32 %v3294, 7
        %v3296 = vsub.s32 %v3293, %v3295
        %v3297 = vrot.slane %v3269, %v3296
        %v3298 = vcombine.high %v3276, %v3276
        %v3299 = vcombine.high %v3283, %v3283
        %v3300 = vcombine.high %v3290, %v3290
        %v3301 = vcombine.high %v3297, %v3297
        %v3302 = vcombine.high %v3174, %v3174
        %v3304 = vunpack.c.l.s4 1966171168
        %v3305 = vunpack.c.0.s8 %v3304
        %v3306 = vlaneseq
        %v3307 = vshrl.u32 %v3306, 7
        %v3308 = vsub.s32 %v3305, %v3307
        %v3309 = vrot.slane %v3174, %v3308
        %v3311 = vunpack.c.l.s4 1966171168
        %v3312 = vunpack.c.0.s8 %v3311
        %v3313 = vlaneseq
        %v3314 = vshrl.u32 %v3313, 7
        %v3315 = vsub.s32 %v3312, %v3314
        %v3316 = vrot.slane %v3302, %v3315
        %v3317 = vcombine.high %v3309, %v3309
        %v3318 = vcombine.high %v3316, %v3316
        %v3320 = vunpack.c.l.s4 1966171168
        %v3321 = vunpack.c.0.s8 %v3320
        %v3322 = vlaneseq
        %v3323 = vshrl.u32 %v3322, 7
        %v3324 = vsub.s32 %v3321, %v3323
        %v3325 = vrot.slane %v3309, %v3324
        %v3327 = vunpack.c.l.s4 1966171168
        %v3328 = vunpack.c.0.s8 %v3327
        %v3329 = vlaneseq
        %v3330 = vshrl.u32 %v3329, 7
        %v3331 = vsub.s32 %v3328, %v3330
        %v3332 = vrot.slane %v3316, %v3331
        %v3334 = vunpack.c.l.s4 1966171168
        %v3335 = vunpack.c.0.s8 %v3334
        %v3336 = vlaneseq
        %v3337 = vshrl.u32 %v3336, 7
        %v3338 = vsub.s32 %v3335, %v3337
        %v3339 = vrot.slane %v3317, %v3338
        %v3341 = vunpack.c.l.s4 1966171168
        %v3342 = vunpack.c.0.s8 %v3341
        %v3343 = vlaneseq
        %v3344 = vshrl.u32 %v3343, 7
        %v3345 = vsub.s32 %v3342, %v3344
        %v3346 = vrot.slane %v3318, %v3345
        %v3347 = vcombine.high %v3325, %v3325
        %v3348 = vcombine.high %v3332, %v3332
        %v3349 = vcombine.high %v3339, %v3339
        %v3350 = vcombine.high %v3346, %v3346
        %v3351 = vcombine.high %v3175, %v3175
        %v3353 = vunpack.c.l.s4 1966171168
        %v3354 = vunpack.c.0.s8 %v3353
        %v3355 = vlaneseq
        %v3356 = vshrl.u32 %v3355, 7
        %v3357 = vsub.s32 %v3354, %v3356
        %v3358 = vrot.slane %v3175, %v3357
        %v3360 = vunpack.c.l.s4 1966171168
        %v3361 = vunpack.c.0.s8 %v3360
        %v3362 = vlaneseq
        %v3363 = vshrl.u32 %v3362, 7
        %v3364 = vsub.s32 %v3361, %v3363
        %v3365 = vrot.slane %v3351, %v3364
        %v3366 = vcombine.high %v3358, %v3358
        %v3367 = vcombine.high %v3365, %v3365
        %v3369 = vunpack.c.l.s4 1966171168
        %v3370 = vunpack.c.0.s8 %v3369
        %v3371 = vlaneseq
        %v3372 = vshrl.u32 %v3371, 7
        %v3373 = vsub.s32 %v3370, %v3372
        %v3374 = vrot.slane %v3358, %v3373
        %v3376 = vunpack.c.l.s4 1966171168
        %v3377 = vunpack.c.0.s8 %v3376
        %v3378 = vlaneseq
        %v3379 = vshrl.u32 %v3378, 7
        %v3380 = vsub.s32 %v3377, %v3379
        %v3381 = vrot.slane %v3365, %v3380
        %v3383 = vunpack.c.l.s4 1966171168
        %v3384 = vunpack.c.0.s8 %v3383
        %v3385 = vlaneseq
        %v3386 = vshrl.u32 %v3385, 7
        %v3387 = vsub.s32 %v3384, %v3386
        %v3388 = vrot.slane %v3366, %v3387
        %v3390 = vunpack.c.l.s4 1966171168
        %v3391 = vunpack.c.0.s8 %v3390
        %v3392 = vlaneseq
        %v3393 = vshrl.u32 %v3392, 7
        %v3394 = vsub.s32 %v3391, %v3393
        %v3395 = vrot.slane %v3367, %v3394
        %v3396 = vcombine.high %v3374, %v3374
        %v3397 = vcombine.high %v3381, %v3381
        %v3398 = vcombine.high %v3388, %v3388
        %v3399 = vcombine.high %v3395, %v3395
        %v3400 = vcombine.high %v3176, %v3176
        %v3402 = vunpack.c.l.s4 1966171168
        %v3403 = vunpack.c.0.s8 %v3402
        %v3404 = vlaneseq
        %v3405 = vshrl.u32 %v3404, 7
        %v3406 = vsub.s32 %v3403, %v3405
        %v3407 = vrot.slane %v3176, %v3406
        %v3409 = vunpack.c.l.s4 1966171168
        %v3410 = vunpack.c.0.s8 %v3409
        %v3411 = vlaneseq
        %v3412 = vshrl.u32 %v3411, 7
        %v3413 = vsub.s32 %v3410, %v3412
        %v3414 = vrot.slane %v3400, %v3413
        %v3415 = vcombine.high %v3407, %v3407
        %v3416 = vcombine.high %v3414, %v3414
        %v3418 = vunpack.c.l.s4 1966171168
        %v3419 = vunpack.c.0.s8 %v3418
        %v3420 = vlaneseq
        %v3421 = vshrl.u32 %v3420, 7
        %v3422 = vsub.s32 %v3419, %v3421
        %v3423 = vrot.slane %v3407, %v3422
        %v3425 = vunpack.c.l.s4 1966171168
        %v3426 = vunpack.c.0.s8 %v3425
        %v3427 = vlaneseq
        %v3428 = vshrl.u32 %v3427, 7
        %v3429 = vsub.s32 %v3426, %v3428
        %v3430 = vrot.slane %v3414, %v3429
        %v3432 = vunpack.c.l.s4 1966171168
        %v3433 = vunpack.c.0.s8 %v3432
        %v3434 = vlaneseq
        %v3435 = vshrl.u32 %v3434, 7
        %v3436 = vsub.s32 %v3433, %v3435
        %v3437 = vrot.slane %v3415, %v3436
        %v3439 = vunpack.c.l.s4 1966171168
        %v3440 = vunpack.c.0.s8 %v3439
        %v3441 = vlaneseq
        %v3442 = vshrl.u32 %v3441, 7
        %v3443 = vsub.s32 %v3440, %v3442
        %v3444 = vrot.slane %v3416, %v3443
        %v3445 = vcombine.high %v3423, %v3423
        %v3446 = vcombine.high %v3430, %v3430
        %v3447 = vcombine.high %v3437, %v3437
        %v3448 = vcombine.high %v3444, %v3444
        %v3449 = vcombine.high %v3177, %v3177
        %v3451 = vunpack.c.l.s4 1966171168
        %v3452 = vunpack.c.0.s8 %v3451
        %v3453 = vlaneseq
        %v3454 = vshrl.u32 %v3453, 7
        %v3455 = vsub.s32 %v3452, %v3454
        %v3456 = vrot.slane %v3177, %v3455
        %v3458 = vunpack.c.l.s4 1966171168
        %v3459 = vunpack.c.0.s8 %v3458
        %v3460 = vlaneseq
        %v3461 = vshrl.u32 %v3460, 7
        %v3462 = vsub.s32 %v3459, %v3461
        %v3463 = vrot.slane %v3449, %v3462
        %v3464 = vcombine.high %v3456, %v3456
        %v3465 = vcombine.high %v3463, %v3463
        %v3467 = vunpack.c.l.s4 1966171168
        %v3468 = vunpack.c.0.s8 %v3467
        %v3469 = vlaneseq
        %v3470 = vshrl.u32 %v3469, 7
        %v3471 = vsub.s32 %v3468, %v3470
        %v3472 = vrot.slane %v3456, %v3471
        %v3474 = vunpack.c.l.s4 1966171168
        %v3475 = vunpack.c.0.s8 %v3474
        %v3476 = vlaneseq
        %v3477 = vshrl.u32 %v3476, 7
        %v3478 = vsub.s32 %v3475, %v3477
        %v3479 = vrot.slane %v3463, %v3478
        %v3481 = vunpack.c.l.s4 1966171168
        %v3482 = vunpack.c.0.s8 %v3481
        %v3483 = vlaneseq
        %v3484 = vshrl.u32 %v3483, 7
        %v3485 = vsub.s32 %v3482, %v3484
        %v3486 = vrot.slane %v3464, %v3485
        %v3488 = vunpack.c.l.s4 1966171168
        %v3489 = vunpack.c.0.s8 %v3488
        %v3490 = vlaneseq
        %v3491 = vshrl.u32 %v3490, 7
        %v3492 = vsub.s32 %v3489, %v3491
        %v3493 = vrot.slane %v3465, %v3492
        %v3494 = vcombine.high %v3472, %v3472
        %v3495 = vcombine.high %v3479, %v3479
        %v3496 = vcombine.high %v3486, %v3486
        %v3497 = vcombine.high %v3493, %v3493
        %v3498 = vcombine.high %v3178, %v3178
        %v3500 = vunpack.c.l.s4 1966171168
        %v3501 = vunpack.c.0.s8 %v3500
        %v3502 = vlaneseq
        %v3503 = vshrl.u32 %v3502, 7
        %v3504 = vsub.s32 %v3501, %v3503
        %v3505 = vrot.slane %v3178, %v3504
        %v3507 = vunpack.c.l.s4 1966171168
        %v3508 = vunpack.c.0.s8 %v3507
        %v3509 = vlaneseq
        %v3510 = vshrl.u32 %v3509, 7
        %v3511 = vsub.s32 %v3508, %v3510
        %v3512 = vrot.slane %v3498, %v3511
        %v3513 = vcombine.high %v3505, %v3505
        %v3514 = vcombine.high %v3512, %v3512
        %v3516 = vunpack.c.l.s4 1966171168
        %v3517 = vunpack.c.0.s8 %v3516
        %v3518 = vlaneseq
        %v3519 = vshrl.u32 %v3518, 7
        %v3520 = vsub.s32 %v3517, %v3519
        %v3521 = vrot.slane %v3505, %v3520
        %v3523 = vunpack.c.l.s4 1966171168
        %v3524 = vunpack.c.0.s8 %v3523
        %v3525 = vlaneseq
        %v3526 = vshrl.u32 %v3525, 7
        %v3527 = vsub.s32 %v3524, %v3526
        %v3528 = vrot.slane %v3512, %v3527
        %v3530 = vunpack.c.l.s4 1966171168
        %v3531 = vunpack.c.0.s8 %v3530
        %v3532 = vlaneseq
        %v3533 = vshrl.u32 %v3532, 7
        %v3534 = vsub.s32 %v3531, %v3533
        %v3535 = vrot.slane %v3513, %v3534
        %v3537 = vunpack.c.l.s4 1966171168
        %v3538 = vunpack.c.0.s8 %v3537
        %v3539 = vlaneseq
        %v3540 = vshrl.u32 %v3539, 7
        %v3541 = vsub.s32 %v3538, %v3540
        %v3542 = vrot.slane %v3514, %v3541
        %v3543 = vcombine.high %v3521, %v3521
        %v3544 = vcombine.high %v3528, %v3528
        %v3545 = vcombine.high %v3535, %v3535
        %v3546 = vcombine.high %v3542, %v3542
        %v3547 = vcombine.high %v3179, %v3179
        %v3549 = vunpack.c.l.s4 1966171168
        %v3550 = vunpack.c.0.s8 %v3549
        %v3551 = vlaneseq
        %v3552 = vshrl.u32 %v3551, 7
        %v3553 = vsub.s32 %v3550, %v3552
        %v3554 = vrot.slane %v3179, %v3553
        %v3556 = vunpack.c.l.s4 1966171168
        %v3557 = vunpack.c.0.s8 %v3556
        %v3558 = vlaneseq
        %v3559 = vshrl.u32 %v3558, 7
        %v3560 = vsub.s32 %v3557, %v3559
        %v3561 = vrot.slane %v3547, %v3560
        %v3562 = vcombine.high %v3554, %v3554
        %v3563 = vcombine.high %v3561, %v3561
        %v3565 = vunpack.c.l.s4 1966171168
        %v3566 = vunpack.c.0.s8 %v3565
        %v3567 = vlaneseq
        %v3568 = vshrl.u32 %v3567, 7
        %v3569 = vsub.s32 %v3566, %v3568
        %v3570 = vrot.slane %v3554, %v3569
        %v3572 = vunpack.c.l.s4 1966171168
        %v3573 = vunpack.c.0.s8 %v3572
        %v3574 = vlaneseq
        %v3575 = vshrl.u32 %v3574, 7
        %v3576 = vsub.s32 %v3573, %v3575
        %v3577 = vrot.slane %v3561, %v3576
        %v3579 = vunpack.c.l.s4 1966171168
        %v3580 = vunpack.c.0.s8 %v3579
        %v3581 = vlaneseq
        %v3582 = vshrl.u32 %v3581, 7
        %v3583 = vsub.s32 %v3580, %v3582
        %v3584 = vrot.slane %v3562, %v3583
        %v3586 = vunpack.c.l.s4 1966171168
        %v3587 = vunpack.c.0.s8 %v3586
        %v3588 = vlaneseq
        %v3589 = vshrl.u32 %v3588, 7
        %v3590 = vsub.s32 %v3587, %v3589
        %v3591 = vrot.slane %v3563, %v3590
        %v3592 = vcombine.high %v3570, %v3570
        %v3593 = vcombine.high %v3577, %v3577
        %v3594 = vcombine.high %v3584, %v3584
        %v3595 = vcombine.high %v3591, %v3591
        %v3596 = vcombine.high %v3180, %v3180
        %v3598 = vunpack.c.l.s4 1966171168
        %v3599 = vunpack.c.0.s8 %v3598
        %v3600 = vlaneseq
        %v3601 = vshrl.u32 %v3600, 7
        %v3602 = vsub.s32 %v3599, %v3601
        %v3603 = vrot.slane %v3180, %v3602
        %v3605 = vunpack.c.l.s4 1966171168
        %v3606 = vunpack.c.0.s8 %v3605
        %v3607 = vlaneseq
        %v3608 = vshrl.u32 %v3607, 7
        %v3609 = vsub.s32 %v3606, %v3608
        %v3610 = vrot.slane %v3596, %v3609
        %v3611 = vcombine.high %v3603, %v3603
        %v3612 = vcombine.high %v3610, %v3610
        %v3614 = vunpack.c.l.s4 1966171168
        %v3615 = vunpack.c.0.s8 %v3614
        %v3616 = vlaneseq
        %v3617 = vshrl.u32 %v3616, 7
        %v3618 = vsub.s32 %v3615, %v3617
        %v3619 = vrot.slane %v3603, %v3618
        %v3621 = vunpack.c.l.s4 1966171168
        %v3622 = vunpack.c.0.s8 %v3621
        %v3623 = vlaneseq
        %v3624 = vshrl.u32 %v3623, 7
        %v3625 = vsub.s32 %v3622, %v3624
        %v3626 = vrot.slane %v3610, %v3625
        %v3628 = vunpack.c.l.s4 1966171168
        %v3629 = vunpack.c.0.s8 %v3628
        %v3630 = vlaneseq
        %v3631 = vshrl.u32 %v3630, 7
        %v3632 = vsub.s32 %v3629, %v3631
        %v3633 = vrot.slane %v3611, %v3632
        %v3635 = vunpack.c.l.s4 1966171168
        %v3636 = vunpack.c.0.s8 %v3635
        %v3637 = vlaneseq
        %v3638 = vshrl.u32 %v3637, 7
        %v3639 = vsub.s32 %v3636, %v3638
        %v3640 = vrot.slane %v3612, %v3639
        %v3641 = vcombine.high %v3619, %v3619
        %v3642 = vcombine.high %v3626, %v3626
        %v3643 = vcombine.high %v3633, %v3633
        %v3644 = vcombine.high %v3640, %v3640
        %v3645 = vcombine.high %v3181, %v3181
        %v3647 = vunpack.c.l.s4 1966171168
        %v3648 = vunpack.c.0.s8 %v3647
        %v3649 = vlaneseq
        %v3650 = vshrl.u32 %v3649, 7
        %v3651 = vsub.s32 %v3648, %v3650
        %v3652 = vrot.slane %v3181, %v3651
        %v3654 = vunpack.c.l.s4 1966171168
        %v3655 = vunpack.c.0.s8 %v3654
        %v3656 = vlaneseq
        %v3657 = vshrl.u32 %v3656, 7
        %v3658 = vsub.s32 %v3655, %v3657
        %v3659 = vrot.slane %v3645, %v3658
        %v3660 = vcombine.high %v3652, %v3652
        %v3661 = vcombine.high %v3659, %v3659
        %v3663 = vunpack.c.l.s4 1966171168
        %v3664 = vunpack.c.0.s8 %v3663
        %v3665 = vlaneseq
        %v3666 = vshrl.u32 %v3665, 7
        %v3667 = vsub.s32 %v3664, %v3666
        %v3668 = vrot.slane %v3652, %v3667
        %v3670 = vunpack.c.l.s4 1966171168
        %v3671 = vunpack.c.0.s8 %v3670
        %v3672 = vlaneseq
        %v3673 = vshrl.u32 %v3672, 7
        %v3674 = vsub.s32 %v3671, %v3673
        %v3675 = vrot.slane %v3659, %v3674
        %v3677 = vunpack.c.l.s4 1966171168
        %v3678 = vunpack.c.0.s8 %v3677
        %v3679 = vlaneseq
        %v3680 = vshrl.u32 %v3679, 7
        %v3681 = vsub.s32 %v3678, %v3680
        %v3682 = vrot.slane %v3660, %v3681
        %v3684 = vunpack.c.l.s4 1966171168
        %v3685 = vunpack.c.0.s8 %v3684
        %v3686 = vlaneseq
        %v3687 = vshrl.u32 %v3686, 7
        %v3688 = vsub.s32 %v3685, %v3687
        %v3689 = vrot.slane %v3661, %v3688
        %v3690 = vcombine.high %v3668, %v3668
        %v3691 = vcombine.high %v3675, %v3675
        %v3692 = vcombine.high %v3682, %v3682
        %v3693 = vcombine.high %v3689, %v3689
        %v3694 = vcombine.high %v3182, %v3182
        %v3696 = vunpack.c.l.s4 1966171168
        %v3697 = vunpack.c.0.s8 %v3696
        %v3698 = vlaneseq
        %v3699 = vshrl.u32 %v3698, 7
        %v3700 = vsub.s32 %v3697, %v3699
        %v3701 = vrot.slane %v3182, %v3700
        %v3703 = vunpack.c.l.s4 1966171168
        %v3704 = vunpack.c.0.s8 %v3703
        %v3705 = vlaneseq
        %v3706 = vshrl.u32 %v3705, 7
        %v3707 = vsub.s32 %v3704, %v3706
        %v3708 = vrot.slane %v3694, %v3707
        %v3709 = vcombine.high %v3701, %v3701
        %v3710 = vcombine.high %v3708, %v3708
        %v3712 = vunpack.c.l.s4 1966171168
        %v3713 = vunpack.c.0.s8 %v3712
        %v3714 = vlaneseq
        %v3715 = vshrl.u32 %v3714, 7
        %v3716 = vsub.s32 %v3713, %v3715
        %v3717 = vrot.slane %v3701, %v3716
        %v3719 = vunpack.c.l.s4 1966171168
        %v3720 = vunpack.c.0.s8 %v3719
        %v3721 = vlaneseq
        %v3722 = vshrl.u32 %v3721, 7
        %v3723 = vsub.s32 %v3720, %v3722
        %v3724 = vrot.slane %v3708, %v3723
        %v3726 = vunpack.c.l.s4 1966171168
        %v3727 = vunpack.c.0.s8 %v3726
        %v3728 = vlaneseq
        %v3729 = vshrl.u32 %v3728, 7
        %v3730 = vsub.s32 %v3727, %v3729
        %v3731 = vrot.slane %v3709, %v3730
        %v3733 = vunpack.c.l.s4 1966171168
        %v3734 = vunpack.c.0.s8 %v3733
        %v3735 = vlaneseq
        %v3736 = vshrl.u32 %v3735, 7
        %v3737 = vsub.s32 %v3734, %v3736
        %v3738 = vrot.slane %v3710, %v3737
        %v3739 = vcombine.high %v3717, %v3717
        %v3740 = vcombine.high %v3724, %v3724
        %v3741 = vcombine.high %v3731, %v3731
        %v3742 = vcombine.high %v3738, %v3738
        %v3743 = vcombine.high %v3183, %v3183
        %v3745 = vunpack.c.l.s4 1966171168
        %v3746 = vunpack.c.0.s8 %v3745
        %v3747 = vlaneseq
        %v3748 = vshrl.u32 %v3747, 7
        %v3749 = vsub.s32 %v3746, %v3748
        %v3750 = vrot.slane %v3183, %v3749
        %v3752 = vunpack.c.l.s4 1966171168
        %v3753 = vunpack.c.0.s8 %v3752
        %v3754 = vlaneseq
        %v3755 = vshrl.u32 %v3754, 7
        %v3756 = vsub.s32 %v3753, %v3755
        %v3757 = vrot.slane %v3743, %v3756
        %v3758 = vcombine.high %v3750, %v3750
        %v3759 = vcombine.high %v3757, %v3757
        %v3761 = vunpack.c.l.s4 1966171168
        %v3762 = vunpack.c.0.s8 %v3761
        %v3763 = vlaneseq
        %v3764 = vshrl.u32 %v3763, 7
        %v3765 = vsub.s32 %v3762, %v3764
        %v3766 = vrot.slane %v3750, %v3765
        %v3768 = vunpack.c.l.s4 1966171168
        %v3769 = vunpack.c.0.s8 %v3768
        %v3770 = vlaneseq
        %v3771 = vshrl.u32 %v3770, 7
        %v3772 = vsub.s32 %v3769, %v3771
        %v3773 = vrot.slane %v3757, %v3772
        %v3775 = vunpack.c.l.s4 1966171168
        %v3776 = vunpack.c.0.s8 %v3775
        %v3777 = vlaneseq
        %v3778 = vshrl.u32 %v3777, 7
        %v3779 = vsub.s32 %v3776, %v3778
        %v3780 = vrot.slane %v3758, %v3779
        %v3782 = vunpack.c.l.s4 1966171168
        %v3783 = vunpack.c.0.s8 %v3782
        %v3784 = vlaneseq
        %v3785 = vshrl.u32 %v3784, 7
        %v3786 = vsub.s32 %v3783, %v3785
        %v3787 = vrot.slane %v3759, %v3786
        %v3788 = vcombine.high %v3766, %v3766
        %v3789 = vcombine.high %v3773, %v3773
        %v3790 = vcombine.high %v3780, %v3780
        %v3791 = vcombine.high %v3787, %v3787
        %v3792 = vcombine.high %v3184, %v3184
        %v3794 = vunpack.c.l.s4 1966171168
        %v3795 = vunpack.c.0.s8 %v3794
        %v3796 = vlaneseq
        %v3797 = vshrl.u32 %v3796, 7
        %v3798 = vsub.s32 %v3795, %v3797
        %v3799 = vrot.slane %v3184, %v3798
        %v3801 = vunpack.c.l.s4 1966171168
        %v3802 = vunpack.c.0.s8 %v3801
        %v3803 = vlaneseq
        %v3804 = vshrl.u32 %v3803, 7
        %v3805 = vsub.s32 %v3802, %v3804
        %v3806 = vrot.slane %v3792, %v3805
        %v3807 = vcombine.high %v3799, %v3799
        %v3808 = vcombine.high %v3806, %v3806
        %v3810 = vunpack.c.l.s4 1966171168
        %v3811 = vunpack.c.0.s8 %v3810
        %v3812 = vlaneseq
        %v3813 = vshrl.u32 %v3812, 7
        %v3814 = vsub.s32 %v3811, %v3813
        %v3815 = vrot.slane %v3799, %v3814
        %v3817 = vunpack.c.l.s4 1966171168
        %v3818 = vunpack.c.0.s8 %v3817
        %v3819 = vlaneseq
        %v3820 = vshrl.u32 %v3819, 7
        %v3821 = vsub.s32 %v3818, %v3820
        %v3822 = vrot.slane %v3806, %v3821
        %v3824 = vunpack.c.l.s4 1966171168
        %v3825 = vunpack.c.0.s8 %v3824
        %v3826 = vlaneseq
        %v3827 = vshrl.u32 %v3826, 7
        %v3828 = vsub.s32 %v3825, %v3827
        %v3829 = vrot.slane %v3807, %v3828
        %v3831 = vunpack.c.l.s4 1966171168
        %v3832 = vunpack.c.0.s8 %v3831
        %v3833 = vlaneseq
        %v3834 = vshrl.u32 %v3833, 7
        %v3835 = vsub.s32 %v3832, %v3834
        %v3836 = vrot.slane %v3808, %v3835
        %v3837 = vcombine.high %v3815, %v3815
        %v3838 = vcombine.high %v3822, %v3822
        %v3839 = vcombine.high %v3829, %v3829
        %v3840 = vcombine.high %v3836, %v3836
        %v3841 = vcombine.high %v3185, %v3185
        %v3843 = vunpack.c.l.s4 1966171168
        %v3844 = vunpack.c.0.s8 %v3843
        %v3845 = vlaneseq
        %v3846 = vshrl.u32 %v3845, 7
        %v3847 = vsub.s32 %v3844, %v3846
        %v3848 = vrot.slane %v3185, %v3847
        %v3850 = vunpack.c.l.s4 1966171168
        %v3851 = vunpack.c.0.s8 %v3850
        %v3852 = vlaneseq
        %v3853 = vshrl.u32 %v3852, 7
        %v3854 = vsub.s32 %v3851, %v3853
        %v3855 = vrot.slane %v3841, %v3854
        %v3856 = vcombine.high %v3848, %v3848
        %v3857 = vcombine.high %v3855, %v3855
        %v3859 = vunpack.c.l.s4 1966171168
        %v3860 = vunpack.c.0.s8 %v3859
        %v3861 = vlaneseq
        %v3862 = vshrl.u32 %v3861, 7
        %v3863 = vsub.s32 %v3860, %v3862
        %v3864 = vrot.slane %v3848, %v3863
        %v3866 = vunpack.c.l.s4 1966171168
        %v3867 = vunpack.c.0.s8 %v3866
        %v3868 = vlaneseq
        %v3869 = vshrl.u32 %v3868, 7
        %v3870 = vsub.s32 %v3867, %v3869
        %v3871 = vrot.slane %v3855, %v3870
        %v3873 = vunpack.c.l.s4 1966171168
        %v3874 = vunpack.c.0.s8 %v3873
        %v3875 = vlaneseq
        %v3876 = vshrl.u32 %v3875, 7
        %v3877 = vsub.s32 %v3874, %v3876
        %v3878 = vrot.slane %v3856, %v3877
        %v3880 = vunpack.c.l.s4 1966171168
        %v3881 = vunpack.c.0.s8 %v3880
        %v3882 = vlaneseq
        %v3883 = vshrl.u32 %v3882, 7
        %v3884 = vsub.s32 %v3881, %v3883
        %v3885 = vrot.slane %v3857, %v3884
        %v3886 = vcombine.high %v3864, %v3864
        %v3887 = vcombine.high %v3871, %v3871
        %v3888 = vcombine.high %v3878, %v3878
        %v3889 = vcombine.high %v3885, %v3885
        %v3890 = vcombine.high %v3186, %v3186
        %v3892 = vunpack.c.l.s4 1966171168
        %v3893 = vunpack.c.0.s8 %v3892
        %v3894 = vlaneseq
        %v3895 = vshrl.u32 %v3894, 7
        %v3896 = vsub.s32 %v3893, %v3895
        %v3897 = vrot.slane %v3186, %v3896
        %v3899 = vunpack.c.l.s4 1966171168
        %v3900 = vunpack.c.0.s8 %v3899
        %v3901 = vlaneseq
        %v3902 = vshrl.u32 %v3901, 7
        %v3903 = vsub.s32 %v3900, %v3902
        %v3904 = vrot.slane %v3890, %v3903
        %v3905 = vcombine.high %v3897, %v3897
        %v3906 = vcombine.high %v3904, %v3904
        %v3908 = vunpack.c.l.s4 1966171168
        %v3909 = vunpack.c.0.s8 %v3908
        %v3910 = vlaneseq
        %v3911 = vshrl.u32 %v3910, 7
        %v3912 = vsub.s32 %v3909, %v3911
        %v3913 = vrot.slane %v3897, %v3912
        %v3915 = vunpack.c.l.s4 1966171168
        %v3916 = vunpack.c.0.s8 %v3915
        %v3917 = vlaneseq
        %v3918 = vshrl.u32 %v3917, 7
        %v3919 = vsub.s32 %v3916, %v3918
        %v3920 = vrot.slane %v3904, %v3919
        %v3922 = vunpack.c.l.s4 1966171168
        %v3923 = vunpack.c.0.s8 %v3922
        %v3924 = vlaneseq
        %v3925 = vshrl.u32 %v3924, 7
        %v3926 = vsub.s32 %v3923, %v3925
        %v3927 = vrot.slane %v3905, %v3926
        %v3929 = vunpack.c.l.s4 1966171168
        %v3930 = vunpack.c.0.s8 %v3929
        %v3931 = vlaneseq
        %v3932 = vshrl.u32 %v3931, 7
        %v3933 = vsub.s32 %v3930, %v3932
        %v3934 = vrot.slane %v3906, %v3933
        %v3935 = vcombine.high %v3913, %v3913
        %v3936 = vcombine.high %v3920, %v3920
        %v3937 = vcombine.high %v3927, %v3927
        %v3938 = vcombine.high %v3934, %v3934
        %v3939 = vcombine.high %v3187, %v3187
        %v3941 = vunpack.c.l.s4 1966171168
        %v3942 = vunpack.c.0.s8 %v3941
        %v3943 = vlaneseq
        %v3944 = vshrl.u32 %v3943, 7
        %v3945 = vsub.s32 %v3942, %v3944
        %v3946 = vrot.slane %v3187, %v3945
        %v3948 = vunpack.c.l.s4 1966171168
        %v3949 = vunpack.c.0.s8 %v3948
        %v3950 = vlaneseq
        %v3951 = vshrl.u32 %v3950, 7
        %v3952 = vsub.s32 %v3949, %v3951
        %v3953 = vrot.slane %v3939, %v3952
        %v3954 = vcombine.high %v3946, %v3946
        %v3955 = vcombine.high %v3953, %v3953
        %v3957 = vunpack.c.l.s4 1966171168
        %v3958 = vunpack.c.0.s8 %v3957
        %v3959 = vlaneseq
        %v3960 = vshrl.u32 %v3959, 7
        %v3961 = vsub.s32 %v3958, %v3960
        %v3962 = vrot.slane %v3946, %v3961
        %v3964 = vunpack.c.l.s4 1966171168
        %v3965 = vunpack.c.0.s8 %v3964
        %v3966 = vlaneseq
        %v3967 = vshrl.u32 %v3966, 7
        %v3968 = vsub.s32 %v3965, %v3967
        %v3969 = vrot.slane %v3953, %v3968
        %v3971 = vunpack.c.l.s4 1966171168
        %v3972 = vunpack.c.0.s8 %v3971
        %v3973 = vlaneseq
        %v3974 = vshrl.u32 %v3973, 7
        %v3975 = vsub.s32 %v3972, %v3974
        %v3976 = vrot.slane %v3954, %v3975
        %v3978 = vunpack.c.l.s4 1966171168
        %v3979 = vunpack.c.0.s8 %v3978
        %v3980 = vlaneseq
        %v3981 = vshrl.u32 %v3980, 7
        %v3982 = vsub.s32 %v3979, %v3981
        %v3983 = vrot.slane %v3955, %v3982
        %v3984 = vcombine.high %v3962, %v3962
        %v3985 = vcombine.high %v3969, %v3969
        %v3986 = vcombine.high %v3976, %v3976
        %v3987 = vcombine.high %v3983, %v3983
        %s3988 = scalar_lea.vmem %s6, 8
        %v3989 = vld [vmem:[%s3988] sm:$0xff]
        %v3990 = vlaneseq
        %v3991 = vshrl.u32 %v3990, 7
        %v3992 = vsub.s32 0, %v3991
        %v3993 = vrot.slane %v3227, %v3992
        %v3994 = vlaneseq
        %v3995 = vshrl.u32 %v3994, 7
        %v3996 = vsub.s32 0, %v3995
        %v3997 = vrot.slane %v3241, %v3996
        %v3998 = vlaneseq
        %v3999 = vshrl.u32 %v3998, 7
        %v4000 = vsub.s32 0, %v3999
        %v4001 = vrot.slane %v3249, %v4000
        %v4002 = vlaneseq
        %v4003 = vshrl.u32 %v4002, 7
        %v4004 = vsub.s32 0, %v4003
        %v4005 = vrot.slane %v3251, %v4004
        %v4006 = vlaneseq
        %v4007 = vshrl.u32 %v4006, 7
        %v4008 = vsub.s32 0, %v4007
        %v4009 = vrot.slane %v3234, %v4008
        %v4010 = vlaneseq
        %v4011 = vshrl.u32 %v4010, 7
        %v4012 = vsub.s32 0, %v4011
        %v4013 = vrot.slane %v3248, %v4012
        %v4014 = vlaneseq
        %v4015 = vshrl.u32 %v4014, 7
        %v4016 = vsub.s32 0, %v4015
        %v4017 = vrot.slane %v3250, %v4016
        %v4018 = vlaneseq
        %v4019 = vshrl.u32 %v4018, 7
        %v4020 = vsub.s32 0, %v4019
        %v4021 = vrot.slane %v3252, %v4020
        %v4022 = vlaneseq
        %v4023 = vshrl.u32 %v4022, 7
        %v4024 = vsub.s32 0, %v4023
        %v4025 = vrot.slane %v3276, %v4024
        %v4026 = vlaneseq
        %v4027 = vshrl.u32 %v4026, 7
        %v4028 = vsub.s32 0, %v4027
        %v4029 = vrot.slane %v3290, %v4028
        %v4030 = vlaneseq
        %v4031 = vshrl.u32 %v4030, 7
        %v4032 = vsub.s32 0, %v4031
        %v4033 = vrot.slane %v3298, %v4032
        %v4034 = vlaneseq
        %v4035 = vshrl.u32 %v4034, 7
        %v4036 = vsub.s32 0, %v4035
        %v4037 = vrot.slane %v3300, %v4036
        %v4038 = vlaneseq
        %v4039 = vshrl.u32 %v4038, 7
        %v4040 = vsub.s32 0, %v4039
        %v4041 = vrot.slane %v3283, %v4040
        %v4042 = vlaneseq
        %v4043 = vshrl.u32 %v4042, 7
        %v4044 = vsub.s32 0, %v4043
        %v4045 = vrot.slane %v3297, %v4044
        %v4046 = vlaneseq
        %v4047 = vshrl.u32 %v4046, 7
        %v4048 = vsub.s32 0, %v4047
        %v4049 = vrot.slane %v3299, %v4048
        %v4050 = vlaneseq
        %v4051 = vshrl.u32 %v4050, 7
        %v4052 = vsub.s32 0, %v4051
        %v4053 = vrot.slane %v3301, %v4052
        %v4054 = vlaneseq
        %v4055 = vshrl.u32 %v4054, 7
        %v4056 = vsub.s32 0, %v4055
        %v4057 = vrot.slane %v3325, %v4056
        %v4058 = vlaneseq
        %v4059 = vshrl.u32 %v4058, 7
        %v4060 = vsub.s32 0, %v4059
        %v4061 = vrot.slane %v3339, %v4060
        %v4062 = vlaneseq
        %v4063 = vshrl.u32 %v4062, 7
        %v4064 = vsub.s32 0, %v4063
        %v4065 = vrot.slane %v3347, %v4064
        %v4066 = vlaneseq
        %v4067 = vshrl.u32 %v4066, 7
        %v4068 = vsub.s32 0, %v4067
        %v4069 = vrot.slane %v3349, %v4068
        %v4070 = vlaneseq
        %v4071 = vshrl.u32 %v4070, 7
        %v4072 = vsub.s32 0, %v4071
        %v4073 = vrot.slane %v3332, %v4072
        %v4074 = vlaneseq
        %v4075 = vshrl.u32 %v4074, 7
        %v4076 = vsub.s32 0, %v4075
        %v4077 = vrot.slane %v3346, %v4076
        %v4078 = vlaneseq
        %v4079 = vshrl.u32 %v4078, 7
        %v4080 = vsub.s32 0, %v4079
        %v4081 = vrot.slane %v3348, %v4080
        %v4082 = vlaneseq
        %v4083 = vshrl.u32 %v4082, 7
        %v4084 = vsub.s32 0, %v4083
        %v4085 = vrot.slane %v3350, %v4084
        %v4086 = vlaneseq
        %v4087 = vshrl.u32 %v4086, 7
        %v4088 = vsub.s32 0, %v4087
        %v4089 = vrot.slane %v3374, %v4088
        %v4090 = vlaneseq
        %v4091 = vshrl.u32 %v4090, 7
        %v4092 = vsub.s32 0, %v4091
        %v4093 = vrot.slane %v3388, %v4092
        %v4094 = vlaneseq
        %v4095 = vshrl.u32 %v4094, 7
        %v4096 = vsub.s32 0, %v4095
        %v4097 = vrot.slane %v3396, %v4096
        %v4098 = vlaneseq
        %v4099 = vshrl.u32 %v4098, 7
        %v4100 = vsub.s32 0, %v4099
        %v4101 = vrot.slane %v3398, %v4100
        %v4102 = vlaneseq
        %v4103 = vshrl.u32 %v4102, 7
        %v4104 = vsub.s32 0, %v4103
        %v4105 = vrot.slane %v3381, %v4104
        %v4106 = vlaneseq
        %v4107 = vshrl.u32 %v4106, 7
        %v4108 = vsub.s32 0, %v4107
        %v4109 = vrot.slane %v3395, %v4108
        %v4110 = vlaneseq
        %v4111 = vshrl.u32 %v4110, 7
        %v4112 = vsub.s32 0, %v4111
        %v4113 = vrot.slane %v3397, %v4112
        %v4114 = vlaneseq
        %v4115 = vshrl.u32 %v4114, 7
        %v4116 = vsub.s32 0, %v4115
        %v4117 = vrot.slane %v3399, %v4116
        %v4118 = vlaneseq
        %v4119 = vshrl.u32 %v4118, 7
        %v4120 = vsub.s32 0, %v4119
        %v4121 = vrot.slane %v3423, %v4120
        %v4122 = vlaneseq
        %v4123 = vshrl.u32 %v4122, 7
        %v4124 = vsub.s32 0, %v4123
        %v4125 = vrot.slane %v3437, %v4124
        %v4126 = vlaneseq
        %v4127 = vshrl.u32 %v4126, 7
        %v4128 = vsub.s32 0, %v4127
        %v4129 = vrot.slane %v3445, %v4128
        %v4130 = vlaneseq
        %v4131 = vshrl.u32 %v4130, 7
        %v4132 = vsub.s32 0, %v4131
        %v4133 = vrot.slane %v3447, %v4132
        %v4134 = vlaneseq
        %v4135 = vshrl.u32 %v4134, 7
        %v4136 = vsub.s32 0, %v4135
        %v4137 = vrot.slane %v3430, %v4136
        %v4138 = vlaneseq
        %v4139 = vshrl.u32 %v4138, 7
        %v4140 = vsub.s32 0, %v4139
        %v4141 = vrot.slane %v3444, %v4140
        %v4142 = vlaneseq
        %v4143 = vshrl.u32 %v4142, 7
        %v4144 = vsub.s32 0, %v4143
        %v4145 = vrot.slane %v3446, %v4144
        %v4146 = vlaneseq
        %v4147 = vshrl.u32 %v4146, 7
        %v4148 = vsub.s32 0, %v4147
        %v4149 = vrot.slane %v3448, %v4148
        %v4150 = vlaneseq
        %v4151 = vshrl.u32 %v4150, 7
        %v4152 = vsub.s32 0, %v4151
        %v4153 = vrot.slane %v3472, %v4152
        %v4154 = vlaneseq
        %v4155 = vshrl.u32 %v4154, 7
        %v4156 = vsub.s32 0, %v4155
        %v4157 = vrot.slane %v3486, %v4156
        %v4158 = vlaneseq
        %v4159 = vshrl.u32 %v4158, 7
        %v4160 = vsub.s32 0, %v4159
        %v4161 = vrot.slane %v3494, %v4160
        %v4162 = vlaneseq
        %v4163 = vshrl.u32 %v4162, 7
        %v4164 = vsub.s32 0, %v4163
        %v4165 = vrot.slane %v3496, %v4164
        %v4166 = vlaneseq
        %v4167 = vshrl.u32 %v4166, 7
        %v4168 = vsub.s32 0, %v4167
        %v4169 = vrot.slane %v3479, %v4168
        %v4170 = vlaneseq
        %v4171 = vshrl.u32 %v4170, 7
        %v4172 = vsub.s32 0, %v4171
        %v4173 = vrot.slane %v3493, %v4172
        %v4174 = vlaneseq
        %v4175 = vshrl.u32 %v4174, 7
        %v4176 = vsub.s32 0, %v4175
        %v4177 = vrot.slane %v3495, %v4176
        %v4178 = vlaneseq
        %v4179 = vshrl.u32 %v4178, 7
        %v4180 = vsub.s32 0, %v4179
        %v4181 = vrot.slane %v3497, %v4180
        %v4182 = vlaneseq
        %v4183 = vshrl.u32 %v4182, 7
        %v4184 = vsub.s32 0, %v4183
        %v4185 = vrot.slane %v3521, %v4184
        %v4186 = vlaneseq
        %v4187 = vshrl.u32 %v4186, 7
        %v4188 = vsub.s32 0, %v4187
        %v4189 = vrot.slane %v3535, %v4188
        %v4190 = vlaneseq
        %v4191 = vshrl.u32 %v4190, 7
        %v4192 = vsub.s32 0, %v4191
        %v4193 = vrot.slane %v3543, %v4192
        %v4194 = vlaneseq
        %v4195 = vshrl.u32 %v4194, 7
        %v4196 = vsub.s32 0, %v4195
        %v4197 = vrot.slane %v3545, %v4196
        %v4198 = vlaneseq
        %v4199 = vshrl.u32 %v4198, 7
        %v4200 = vsub.s32 0, %v4199
        %v4201 = vrot.slane %v3528, %v4200
        %v4202 = vlaneseq
        %v4203 = vshrl.u32 %v4202, 7
        %v4204 = vsub.s32 0, %v4203
        %v4205 = vrot.slane %v3542, %v4204
        %v4206 = vlaneseq
        %v4207 = vshrl.u32 %v4206, 7
        %v4208 = vsub.s32 0, %v4207
        %v4209 = vrot.slane %v3544, %v4208
        %v4210 = vlaneseq
        %v4211 = vshrl.u32 %v4210, 7
        %v4212 = vsub.s32 0, %v4211
        %v4213 = vrot.slane %v3546, %v4212
        %v4214 = vlaneseq
        %v4215 = vshrl.u32 %v4214, 7
        %v4216 = vsub.s32 0, %v4215
        %v4217 = vrot.slane %v3570, %v4216
        %v4218 = vlaneseq
        %v4219 = vshrl.u32 %v4218, 7
        %v4220 = vsub.s32 0, %v4219
        %v4221 = vrot.slane %v3584, %v4220
        %v4222 = vlaneseq
        %v4223 = vshrl.u32 %v4222, 7
        %v4224 = vsub.s32 0, %v4223
        %v4225 = vrot.slane %v3592, %v4224
        %v4226 = vlaneseq
        %v4227 = vshrl.u32 %v4226, 7
        %v4228 = vsub.s32 0, %v4227
        %v4229 = vrot.slane %v3594, %v4228
        %v4230 = vlaneseq
        %v4231 = vshrl.u32 %v4230, 7
        %v4232 = vsub.s32 0, %v4231
        %v4233 = vrot.slane %v3577, %v4232
        %v4234 = vlaneseq
        %v4235 = vshrl.u32 %v4234, 7
        %v4236 = vsub.s32 0, %v4235
        %v4237 = vrot.slane %v3591, %v4236
        %v4238 = vlaneseq
        %v4239 = vshrl.u32 %v4238, 7
        %v4240 = vsub.s32 0, %v4239
        %v4241 = vrot.slane %v3593, %v4240
        %v4242 = vlaneseq
        %v4243 = vshrl.u32 %v4242, 7
        %v4244 = vsub.s32 0, %v4243
        %v4245 = vrot.slane %v3595, %v4244
        %v4246 = vlaneseq
        %v4247 = vshrl.u32 %v4246, 7
        %v4248 = vsub.s32 0, %v4247
        %v4249 = vrot.slane %v3619, %v4248
        %v4250 = vlaneseq
        %v4251 = vshrl.u32 %v4250, 7
        %v4252 = vsub.s32 0, %v4251
        %v4253 = vrot.slane %v3633, %v4252
        %v4254 = vlaneseq
        %v4255 = vshrl.u32 %v4254, 7
        %v4256 = vsub.s32 0, %v4255
        %v4257 = vrot.slane %v3641, %v4256
        %v4258 = vlaneseq
        %v4259 = vshrl.u32 %v4258, 7
        %v4260 = vsub.s32 0, %v4259
        %v4261 = vrot.slane %v3643, %v4260
        %v4262 = vlaneseq
        %v4263 = vshrl.u32 %v4262, 7
        %v4264 = vsub.s32 0, %v4263
        %v4265 = vrot.slane %v3626, %v4264
        %v4266 = vlaneseq
        %v4267 = vshrl.u32 %v4266, 7
        %v4268 = vsub.s32 0, %v4267
        %v4269 = vrot.slane %v3640, %v4268
        %v4270 = vlaneseq
        %v4271 = vshrl.u32 %v4270, 7
        %v4272 = vsub.s32 0, %v4271
        %v4273 = vrot.slane %v3642, %v4272
        %v4274 = vlaneseq
        %v4275 = vshrl.u32 %v4274, 7
        %v4276 = vsub.s32 0, %v4275
        %v4277 = vrot.slane %v3644, %v4276
        %v4278 = vlaneseq
        %v4279 = vshrl.u32 %v4278, 7
        %v4280 = vsub.s32 0, %v4279
        %v4281 = vrot.slane %v3668, %v4280
        %v4282 = vlaneseq
        %v4283 = vshrl.u32 %v4282, 7
        %v4284 = vsub.s32 0, %v4283
        %v4285 = vrot.slane %v3682, %v4284
        %v4286 = vlaneseq
        %v4287 = vshrl.u32 %v4286, 7
        %v4288 = vsub.s32 0, %v4287
        %v4289 = vrot.slane %v3690, %v4288
        %v4290 = vlaneseq
        %v4291 = vshrl.u32 %v4290, 7
        %v4292 = vsub.s32 0, %v4291
        %v4293 = vrot.slane %v3692, %v4292
        %v4294 = vlaneseq
        %v4295 = vshrl.u32 %v4294, 7
        %v4296 = vsub.s32 0, %v4295
        %v4297 = vrot.slane %v3675, %v4296
        %v4298 = vlaneseq
        %v4299 = vshrl.u32 %v4298, 7
        %v4300 = vsub.s32 0, %v4299
        %v4301 = vrot.slane %v3689, %v4300
        %v4302 = vlaneseq
        %v4303 = vshrl.u32 %v4302, 7
        %v4304 = vsub.s32 0, %v4303
        %v4305 = vrot.slane %v3691, %v4304
        %v4306 = vlaneseq
        %v4307 = vshrl.u32 %v4306, 7
        %v4308 = vsub.s32 0, %v4307
        %v4309 = vrot.slane %v3693, %v4308
        %v4310 = vlaneseq
        %v4311 = vshrl.u32 %v4310, 7
        %v4312 = vsub.s32 0, %v4311
        %v4313 = vrot.slane %v3717, %v4312
        %v4314 = vlaneseq
        %v4315 = vshrl.u32 %v4314, 7
        %v4316 = vsub.s32 0, %v4315
        %v4317 = vrot.slane %v3731, %v4316
        %v4318 = vlaneseq
        %v4319 = vshrl.u32 %v4318, 7
        %v4320 = vsub.s32 0, %v4319
        %v4321 = vrot.slane %v3739, %v4320
        %v4322 = vlaneseq
        %v4323 = vshrl.u32 %v4322, 7
        %v4324 = vsub.s32 0, %v4323
        %v4325 = vrot.slane %v3741, %v4324
        %v4326 = vlaneseq
        %v4327 = vshrl.u32 %v4326, 7
        %v4328 = vsub.s32 0, %v4327
        %v4329 = vrot.slane %v3724, %v4328
        %v4330 = vlaneseq
        %v4331 = vshrl.u32 %v4330, 7
        %v4332 = vsub.s32 0, %v4331
        %v4333 = vrot.slane %v3738, %v4332
        %v4334 = vlaneseq
        %v4335 = vshrl.u32 %v4334, 7
        %v4336 = vsub.s32 0, %v4335
        %v4337 = vrot.slane %v3740, %v4336
        %v4338 = vlaneseq
        %v4339 = vshrl.u32 %v4338, 7
        %v4340 = vsub.s32 0, %v4339
        %v4341 = vrot.slane %v3742, %v4340
        %v4342 = vlaneseq
        %v4343 = vshrl.u32 %v4342, 7
        %v4344 = vsub.s32 0, %v4343
        %v4345 = vrot.slane %v3766, %v4344
        %v4346 = vlaneseq
        %v4347 = vshrl.u32 %v4346, 7
        %v4348 = vsub.s32 0, %v4347
        %v4349 = vrot.slane %v3780, %v4348
        %v4350 = vlaneseq
        %v4351 = vshrl.u32 %v4350, 7
        %v4352 = vsub.s32 0, %v4351
        %v4353 = vrot.slane %v3788, %v4352
        %v4354 = vlaneseq
        %v4355 = vshrl.u32 %v4354, 7
        %v4356 = vsub.s32 0, %v4355
        %v4357 = vrot.slane %v3790, %v4356
        %v4358 = vlaneseq
        %v4359 = vshrl.u32 %v4358, 7
        %v4360 = vsub.s32 0, %v4359
        %v4361 = vrot.slane %v3773, %v4360
        %v4362 = vlaneseq
        %v4363 = vshrl.u32 %v4362, 7
        %v4364 = vsub.s32 0, %v4363
        %v4365 = vrot.slane %v3787, %v4364
        %v4366 = vlaneseq
        %v4367 = vshrl.u32 %v4366, 7
        %v4368 = vsub.s32 0, %v4367
        %v4369 = vrot.slane %v3789, %v4368
        %v4370 = vlaneseq
        %v4371 = vshrl.u32 %v4370, 7
        %v4372 = vsub.s32 0, %v4371
        %v4373 = vrot.slane %v3791, %v4372
        %v4374 = vlaneseq
        %v4375 = vshrl.u32 %v4374, 7
        %v4376 = vsub.s32 0, %v4375
        %v4377 = vrot.slane %v3815, %v4376
        %v4378 = vlaneseq
        %v4379 = vshrl.u32 %v4378, 7
        %v4380 = vsub.s32 0, %v4379
        %v4381 = vrot.slane %v3829, %v4380
        %v4382 = vlaneseq
        %v4383 = vshrl.u32 %v4382, 7
        %v4384 = vsub.s32 0, %v4383
        %v4385 = vrot.slane %v3837, %v4384
        %v4386 = vlaneseq
        %v4387 = vshrl.u32 %v4386, 7
        %v4388 = vsub.s32 0, %v4387
        %v4389 = vrot.slane %v3839, %v4388
        %v4390 = vlaneseq
        %v4391 = vshrl.u32 %v4390, 7
        %v4392 = vsub.s32 0, %v4391
        %v4393 = vrot.slane %v3822, %v4392
        %v4394 = vlaneseq
        %v4395 = vshrl.u32 %v4394, 7
        %v4396 = vsub.s32 0, %v4395
        %v4397 = vrot.slane %v3836, %v4396
        %v4398 = vlaneseq
        %v4399 = vshrl.u32 %v4398, 7
        %v4400 = vsub.s32 0, %v4399
        %v4401 = vrot.slane %v3838, %v4400
        %v4402 = vlaneseq
        %v4403 = vshrl.u32 %v4402, 7
        %v4404 = vsub.s32 0, %v4403
        %v4405 = vrot.slane %v3840, %v4404
        %v4406 = vlaneseq
        %v4407 = vshrl.u32 %v4406, 7
        %v4408 = vsub.s32 0, %v4407
        %v4409 = vrot.slane %v3864, %v4408
        %v4410 = vlaneseq
        %v4411 = vshrl.u32 %v4410, 7
        %v4412 = vsub.s32 0, %v4411
        %v4413 = vrot.slane %v3878, %v4412
        %v4414 = vlaneseq
        %v4415 = vshrl.u32 %v4414, 7
        %v4416 = vsub.s32 0, %v4415
        %v4417 = vrot.slane %v3886, %v4416
        %v4418 = vlaneseq
        %v4419 = vshrl.u32 %v4418, 7
        %v4420 = vsub.s32 0, %v4419
        %v4421 = vrot.slane %v3888, %v4420
        %v4422 = vlaneseq
        %v4423 = vshrl.u32 %v4422, 7
        %v4424 = vsub.s32 0, %v4423
        %v4425 = vrot.slane %v3871, %v4424
        %v4426 = vlaneseq
        %v4427 = vshrl.u32 %v4426, 7
        %v4428 = vsub.s32 0, %v4427
        %v4429 = vrot.slane %v3885, %v4428
        %v4430 = vlaneseq
        %v4431 = vshrl.u32 %v4430, 7
        %v4432 = vsub.s32 0, %v4431
        %v4433 = vrot.slane %v3887, %v4432
        %v4434 = vlaneseq
        %v4435 = vshrl.u32 %v4434, 7
        %v4436 = vsub.s32 0, %v4435
        %v4437 = vrot.slane %v3889, %v4436
        %v4438 = vlaneseq
        %v4439 = vshrl.u32 %v4438, 7
        %v4440 = vsub.s32 0, %v4439
        %v4441 = vrot.slane %v3913, %v4440
        %v4442 = vlaneseq
        %v4443 = vshrl.u32 %v4442, 7
        %v4444 = vsub.s32 0, %v4443
        %v4445 = vrot.slane %v3927, %v4444
        %v4446 = vlaneseq
        %v4447 = vshrl.u32 %v4446, 7
        %v4448 = vsub.s32 0, %v4447
        %v4449 = vrot.slane %v3935, %v4448
        %v4450 = vlaneseq
        %v4451 = vshrl.u32 %v4450, 7
        %v4452 = vsub.s32 0, %v4451
        %v4453 = vrot.slane %v3937, %v4452
        %v4454 = vlaneseq
        %v4455 = vshrl.u32 %v4454, 7
        %v4456 = vsub.s32 0, %v4455
        %v4457 = vrot.slane %v3920, %v4456
        %v4458 = vlaneseq
        %v4459 = vshrl.u32 %v4458, 7
        %v4460 = vsub.s32 0, %v4459
        %v4461 = vrot.slane %v3934, %v4460
        %v4462 = vlaneseq
        %v4463 = vshrl.u32 %v4462, 7
        %v4464 = vsub.s32 0, %v4463
        %v4465 = vrot.slane %v3936, %v4464
        %v4466 = vlaneseq
        %v4467 = vshrl.u32 %v4466, 7
        %v4468 = vsub.s32 0, %v4467
        %v4469 = vrot.slane %v3938, %v4468
        %v4470 = vlaneseq
        %v4471 = vshrl.u32 %v4470, 7
        %v4472 = vsub.s32 0, %v4471
        %v4473 = vrot.slane %v3962, %v4472
        %v4474 = vlaneseq
        %v4475 = vshrl.u32 %v4474, 7
        %v4476 = vsub.s32 0, %v4475
        %v4477 = vrot.slane %v3976, %v4476
        %v4478 = vlaneseq
        %v4479 = vshrl.u32 %v4478, 7
        %v4480 = vsub.s32 0, %v4479
        %v4481 = vrot.slane %v3984, %v4480
        %v4482 = vlaneseq
        %v4483 = vshrl.u32 %v4482, 7
        %v4484 = vsub.s32 0, %v4483
        %v4485 = vrot.slane %v3986, %v4484
        %v4486 = vlaneseq
        %v4487 = vshrl.u32 %v4486, 7
        %v4488 = vsub.s32 0, %v4487
        %v4489 = vrot.slane %v3969, %v4488
        %v4490 = vlaneseq
        %v4491 = vshrl.u32 %v4490, 7
        %v4492 = vsub.s32 0, %v4491
        %v4493 = vrot.slane %v3983, %v4492
        %v4494 = vlaneseq
        %v4495 = vshrl.u32 %v4494, 7
        %v4496 = vsub.s32 0, %v4495
        %v4497 = vrot.slane %v3985, %v4496
        %v4498 = vlaneseq
        %v4499 = vshrl.u32 %v4498, 7
        %v4500 = vsub.s32 0, %v4499
        %v4501 = vrot.slane %v3987, %v4500
        %v4630 = vmul.f32 %v3993, %v3989
        %v4631 = vmul.f32 %v3997, %v3989
        %v4632 = vmul.f32 %v4001, %v3989
        %v4633 = vmul.f32 %v4005, %v3989
        %v4634 = vmul.f32 %v4009, %v3989
        %v4635 = vmul.f32 %v4013, %v3989
        %v4636 = vmul.f32 %v4017, %v3989
        %v4637 = vmul.f32 %v4021, %v3989
        %v4638 = vmul.f32 %v4025, %v3989
        %v4639 = vmul.f32 %v4029, %v3989
        %v4640 = vmul.f32 %v4033, %v3989
        %v4641 = vmul.f32 %v4037, %v3989
        %v4642 = vmul.f32 %v4041, %v3989
        %v4643 = vmul.f32 %v4045, %v3989
        %v4644 = vmul.f32 %v4049, %v3989
        %v4645 = vmul.f32 %v4053, %v3989
        %v4646 = vmul.f32 %v4057, %v3989
        %v4647 = vmul.f32 %v4061, %v3989
        %v4648 = vmul.f32 %v4065, %v3989
        %v4649 = vmul.f32 %v4069, %v3989
        %v4650 = vmul.f32 %v4073, %v3989
        %v4651 = vmul.f32 %v4077, %v3989
        %v4652 = vmul.f32 %v4081, %v3989
        %v4653 = vmul.f32 %v4085, %v3989
        %v4654 = vmul.f32 %v4089, %v3989
        %v4655 = vmul.f32 %v4093, %v3989
        %v4656 = vmul.f32 %v4097, %v3989
        %v4657 = vmul.f32 %v4101, %v3989
        %v4658 = vmul.f32 %v4105, %v3989
        %v4659 = vmul.f32 %v4109, %v3989
        %v4660 = vmul.f32 %v4113, %v3989
        %v4661 = vmul.f32 %v4117, %v3989
        %v4662 = vmul.f32 %v4121, %v3989
        %v4663 = vmul.f32 %v4125, %v3989
        %v4664 = vmul.f32 %v4129, %v3989
        %v4665 = vmul.f32 %v4133, %v3989
        %v4666 = vmul.f32 %v4137, %v3989
        %v4667 = vmul.f32 %v4141, %v3989
        %v4668 = vmul.f32 %v4145, %v3989
        %v4669 = vmul.f32 %v4149, %v3989
        %v4670 = vmul.f32 %v4153, %v3989
        %v4671 = vmul.f32 %v4157, %v3989
        %v4672 = vmul.f32 %v4161, %v3989
        %v4673 = vmul.f32 %v4165, %v3989
        %v4674 = vmul.f32 %v4169, %v3989
        %v4675 = vmul.f32 %v4173, %v3989
        %v4676 = vmul.f32 %v4177, %v3989
        %v4677 = vmul.f32 %v4181, %v3989
        %v4678 = vmul.f32 %v4185, %v3989
        %v4679 = vmul.f32 %v4189, %v3989
        %v4680 = vmul.f32 %v4193, %v3989
        %v4681 = vmul.f32 %v4197, %v3989
        %v4682 = vmul.f32 %v4201, %v3989
        %v4683 = vmul.f32 %v4205, %v3989
        %v4684 = vmul.f32 %v4209, %v3989
        %v4685 = vmul.f32 %v4213, %v3989
        %v4686 = vmul.f32 %v4217, %v3989
        %v4687 = vmul.f32 %v4221, %v3989
        %v4688 = vmul.f32 %v4225, %v3989
        %v4689 = vmul.f32 %v4229, %v3989
        %v4690 = vmul.f32 %v4233, %v3989
        %v4691 = vmul.f32 %v4237, %v3989
        %v4692 = vmul.f32 %v4241, %v3989
        %v4693 = vmul.f32 %v4245, %v3989
        %v4694 = vmul.f32 %v4249, %v3989
        %v4695 = vmul.f32 %v4253, %v3989
        %v4696 = vmul.f32 %v4257, %v3989
        %v4697 = vmul.f32 %v4261, %v3989
        %v4698 = vmul.f32 %v4265, %v3989
        %v4699 = vmul.f32 %v4269, %v3989
        %v4700 = vmul.f32 %v4273, %v3989
        %v4701 = vmul.f32 %v4277, %v3989
        %v4702 = vmul.f32 %v4281, %v3989
        %v4703 = vmul.f32 %v4285, %v3989
        %v4704 = vmul.f32 %v4289, %v3989
        %v4705 = vmul.f32 %v4293, %v3989
        %v4706 = vmul.f32 %v4297, %v3989
        %v4707 = vmul.f32 %v4301, %v3989
        %v4708 = vmul.f32 %v4305, %v3989
        %v4709 = vmul.f32 %v4309, %v3989
        %v4710 = vmul.f32 %v4313, %v3989
        %v4711 = vmul.f32 %v4317, %v3989
        %v4712 = vmul.f32 %v4321, %v3989
        %v4713 = vmul.f32 %v4325, %v3989
        %v4714 = vmul.f32 %v4329, %v3989
        %v4715 = vmul.f32 %v4333, %v3989
        %v4716 = vmul.f32 %v4337, %v3989
        %v4717 = vmul.f32 %v4341, %v3989
        %v4718 = vmul.f32 %v4345, %v3989
        %v4719 = vmul.f32 %v4349, %v3989
        %v4720 = vmul.f32 %v4353, %v3989
        %v4721 = vmul.f32 %v4357, %v3989
        %v4722 = vmul.f32 %v4361, %v3989
        %v4723 = vmul.f32 %v4365, %v3989
        %v4724 = vmul.f32 %v4369, %v3989
        %v4725 = vmul.f32 %v4373, %v3989
        %v4726 = vmul.f32 %v4377, %v3989
        %v4727 = vmul.f32 %v4381, %v3989
        %v4728 = vmul.f32 %v4385, %v3989
        %v4729 = vmul.f32 %v4389, %v3989
        %v4730 = vmul.f32 %v4393, %v3989
        %v4731 = vmul.f32 %v4397, %v3989
        %v4732 = vmul.f32 %v4401, %v3989
        %v4733 = vmul.f32 %v4405, %v3989
        %v4734 = vmul.f32 %v4409, %v3989
        %v4735 = vmul.f32 %v4413, %v3989
        %v4736 = vmul.f32 %v4417, %v3989
        %v4737 = vmul.f32 %v4421, %v3989
        %v4738 = vmul.f32 %v4425, %v3989
        %v4739 = vmul.f32 %v4429, %v3989
        %v4740 = vmul.f32 %v4433, %v3989
        %v4741 = vmul.f32 %v4437, %v3989
        %v4742 = vmul.f32 %v4441, %v3989
        %v4743 = vmul.f32 %v4445, %v3989
        %v4744 = vmul.f32 %v4449, %v3989
        %v4745 = vmul.f32 %v4453, %v3989
        %v4746 = vmul.f32 %v4457, %v3989
        %v4747 = vmul.f32 %v4461, %v3989
        %v4748 = vmul.f32 %v4465, %v3989
        %v4749 = vmul.f32 %v4469, %v3989
        %v4750 = vmul.f32 %v4473, %v3989
        %v4751 = vmul.f32 %v4477, %v3989
        %v4752 = vmul.f32 %v4481, %v3989
        %v4753 = vmul.f32 %v4485, %v3989
        %v4754 = vmul.f32 %v4489, %v3989
        %v4755 = vmul.f32 %v4493, %v3989
        %v4756 = vmul.f32 %v4497, %v3989
        %v4757 = vmul.f32 %v4501, %v3989
        %v4758 = vadd.f32 %v2671, %v4630
        %v4759 = vadd.f32 %v2672, %v4631
        %v4760 = vadd.f32 %v2673, %v4632
        %v4761 = vadd.f32 %v2674, %v4633
        %v4762 = vadd.f32 %v2675, %v4634
        %v4763 = vadd.f32 %v2676, %v4635
        %v4764 = vadd.f32 %v2677, %v4636
        %v4765 = vadd.f32 %v2678, %v4637
        %v4766 = vadd.f32 %v2679, %v4638
        %v4767 = vadd.f32 %v2680, %v4639
        %v4768 = vadd.f32 %v2681, %v4640
        %v4769 = vadd.f32 %v2682, %v4641
        %v4770 = vadd.f32 %v2683, %v4642
        %v4771 = vadd.f32 %v2684, %v4643
        %v4772 = vadd.f32 %v2685, %v4644
        %v4773 = vadd.f32 %v2686, %v4645
        %v4774 = vadd.f32 %v2687, %v4646
        %v4775 = vadd.f32 %v2688, %v4647
        %v4776 = vadd.f32 %v2689, %v4648
        %v4777 = vadd.f32 %v2690, %v4649
        %v4778 = vadd.f32 %v2691, %v4650
        %v4779 = vadd.f32 %v2692, %v4651
        %v4780 = vadd.f32 %v2693, %v4652
        %v4781 = vadd.f32 %v2694, %v4653
        %v4782 = vadd.f32 %v2695, %v4654
        %v4783 = vadd.f32 %v2696, %v4655
        %v4784 = vadd.f32 %v2697, %v4656
        %v4785 = vadd.f32 %v2698, %v4657
        %v4786 = vadd.f32 %v2699, %v4658
        %v4787 = vadd.f32 %v2700, %v4659
        %v4788 = vadd.f32 %v2701, %v4660
        %v4789 = vadd.f32 %v2702, %v4661
        %v4790 = vadd.f32 %v2703, %v4662
        %v4791 = vadd.f32 %v2704, %v4663
        %v4792 = vadd.f32 %v2705, %v4664
        %v4793 = vadd.f32 %v2706, %v4665
        %v4794 = vadd.f32 %v2707, %v4666
        %v4795 = vadd.f32 %v2708, %v4667
        %v4796 = vadd.f32 %v2709, %v4668
        %v4797 = vadd.f32 %v2710, %v4669
        %v4798 = vadd.f32 %v2711, %v4670
        %v4799 = vadd.f32 %v2712, %v4671
        %v4800 = vadd.f32 %v2713, %v4672
        %v4801 = vadd.f32 %v2714, %v4673
        %v4802 = vadd.f32 %v2715, %v4674
        %v4803 = vadd.f32 %v2716, %v4675
        %v4804 = vadd.f32 %v2717, %v4676
        %v4805 = vadd.f32 %v2718, %v4677
        %v4806 = vadd.f32 %v2719, %v4678
        %v4807 = vadd.f32 %v2720, %v4679
        %v4808 = vadd.f32 %v2721, %v4680
        %v4809 = vadd.f32 %v2722, %v4681
        %v4810 = vadd.f32 %v2723, %v4682
        %v4811 = vadd.f32 %v2724, %v4683
        %v4812 = vadd.f32 %v2725, %v4684
        %v4813 = vadd.f32 %v2726, %v4685
        %v4814 = vadd.f32 %v2727, %v4686
        %v4815 = vadd.f32 %v2728, %v4687
        %v4816 = vadd.f32 %v2729, %v4688
        %v4817 = vadd.f32 %v2730, %v4689
        %v4818 = vadd.f32 %v2731, %v4690
        %v4819 = vadd.f32 %v2732, %v4691
        %v4820 = vadd.f32 %v2733, %v4692
        %v4821 = vadd.f32 %v2734, %v4693
        %v4822 = vadd.f32 %v2735, %v4694
        %v4823 = vadd.f32 %v2736, %v4695
        %v4824 = vadd.f32 %v2737, %v4696
        %v4825 = vadd.f32 %v2738, %v4697
        %v4826 = vadd.f32 %v2739, %v4698
        %v4827 = vadd.f32 %v2740, %v4699
        %v4828 = vadd.f32 %v2741, %v4700
        %v4829 = vadd.f32 %v2742, %v4701
        %v4830 = vadd.f32 %v2743, %v4702
        %v4831 = vadd.f32 %v2744, %v4703
        %v4832 = vadd.f32 %v2745, %v4704
        %v4833 = vadd.f32 %v2746, %v4705
        %v4834 = vadd.f32 %v2747, %v4706
        %v4835 = vadd.f32 %v2748, %v4707
        %v4836 = vadd.f32 %v2749, %v4708
        %v4837 = vadd.f32 %v2750, %v4709
        %v4838 = vadd.f32 %v2751, %v4710
        %v4839 = vadd.f32 %v2752, %v4711
        %v4840 = vadd.f32 %v2753, %v4712
        %v4841 = vadd.f32 %v2754, %v4713
        %v4842 = vadd.f32 %v2755, %v4714
        %v4843 = vadd.f32 %v2756, %v4715
        %v4844 = vadd.f32 %v2757, %v4716
        %v4845 = vadd.f32 %v2758, %v4717
        %v4846 = vadd.f32 %v2759, %v4718
        %v4847 = vadd.f32 %v2760, %v4719
        %v4848 = vadd.f32 %v2761, %v4720
        %v4849 = vadd.f32 %v2762, %v4721
        %v4850 = vadd.f32 %v2763, %v4722
        %v4851 = vadd.f32 %v2764, %v4723
        %v4852 = vadd.f32 %v2765, %v4724
        %v4853 = vadd.f32 %v2766, %v4725
        %v4854 = vadd.f32 %v2767, %v4726
        %v4855 = vadd.f32 %v2768, %v4727
        %v4856 = vadd.f32 %v2769, %v4728
        %v4857 = vadd.f32 %v2770, %v4729
        %v4858 = vadd.f32 %v2771, %v4730
        %v4859 = vadd.f32 %v2772, %v4731
        %v4860 = vadd.f32 %v2773, %v4732
        %v4861 = vadd.f32 %v2774, %v4733
        %v4862 = vadd.f32 %v2775, %v4734
        %v4863 = vadd.f32 %v2776, %v4735
        %v4864 = vadd.f32 %v2777, %v4736
        %v4865 = vadd.f32 %v2778, %v4737
        %v4866 = vadd.f32 %v2779, %v4738
        %v4867 = vadd.f32 %v2780, %v4739
        %v4868 = vadd.f32 %v2781, %v4740
        %v4869 = vadd.f32 %v2782, %v4741
        %v4870 = vadd.f32 %v2783, %v4742
        %v4871 = vadd.f32 %v2784, %v4743
        %v4872 = vadd.f32 %v2785, %v4744
        %v4873 = vadd.f32 %v2786, %v4745
        %v4874 = vadd.f32 %v2787, %v4746
        %v4875 = vadd.f32 %v2788, %v4747
        %v4876 = vadd.f32 %v2789, %v4748
        %v4877 = vadd.f32 %v2790, %v4749
        %v4878 = vadd.f32 %v2791, %v4750
        %v4879 = vadd.f32 %v2792, %v4751
        %v4880 = vadd.f32 %v2793, %v4752
        %v4881 = vadd.f32 %v2794, %v4753
        %v4882 = vadd.f32 %v2795, %v4754
        %v4883 = vadd.f32 %v2796, %v4755
        %v4884 = vadd.f32 %v2797, %v4756
        %v4885 = vadd.f32 %v2798, %v4757
        %4886 = vset.pattern.permute.xlu0 2
        %4887 = vperm.xlu0 %4886, %v663
        %v4888 = vpop.permute.xlu0 %4887
        %4890 = vset.pattern.permute.xlu0 2
        %4891 = vperm.xlu0 %4890, %v664
        %v4892 = vpop.permute.xlu0 %4891
        %4894 = vset.pattern.permute.xlu0 2
        %4895 = vperm.xlu0 %4894, %v665
        %v4896 = vpop.permute.xlu0 %4895
        %4898 = vset.pattern.permute.xlu0 2
        %4899 = vperm.xlu0 %4898, %v666
        %v4900 = vpop.permute.xlu0 %4899
        %4902 = vset.pattern.permute.xlu0 2
        %4903 = vperm.xlu0 %4902, %v667
        %v4904 = vpop.permute.xlu0 %4903
        %4906 = vset.pattern.permute.xlu0 2
        %4907 = vperm.xlu0 %4906, %v668
        %v4908 = vpop.permute.xlu0 %4907
        %4910 = vset.pattern.permute.xlu0 2
        %4911 = vperm.xlu0 %4910, %v669
        %v4912 = vpop.permute.xlu0 %4911
        %4914 = vset.pattern.permute.xlu0 2
        %4915 = vperm.xlu0 %4914, %v670
        %v4916 = vpop.permute.xlu0 %4915
        %4918 = vset.pattern.permute.xlu0 2
        %4919 = vperm.xlu0 %4918, %v671
        %v4920 = vpop.permute.xlu0 %4919
        %4922 = vset.pattern.permute.xlu0 2
        %4923 = vperm.xlu0 %4922, %v672
        %v4924 = vpop.permute.xlu0 %4923
        %4926 = vset.pattern.permute.xlu0 2
        %4927 = vperm.xlu0 %4926, %v673
        %v4928 = vpop.permute.xlu0 %4927
        %4930 = vset.pattern.permute.xlu0 2
        %4931 = vperm.xlu0 %4930, %v674
        %v4932 = vpop.permute.xlu0 %4931
        %4934 = vset.pattern.permute.xlu0 2
        %4935 = vperm.xlu0 %4934, %v675
        %v4936 = vpop.permute.xlu0 %4935
        %4938 = vset.pattern.permute.xlu0 2
        %4939 = vperm.xlu0 %4938, %v676
        %v4940 = vpop.permute.xlu0 %4939
        %4942 = vset.pattern.permute.xlu0 2
        %4943 = vperm.xlu0 %4942, %v677
        %v4944 = vpop.permute.xlu0 %4943
        %4946 = vset.pattern.permute.xlu0 2
        %4947 = vperm.xlu0 %4946, %v678
        %v4948 = vpop.permute.xlu0 %4947
        %v4950 = vmul.f32 %v4888, %v768
        %v4951 = vmul.f32 %v4892, %v768
        %v4952 = vmul.f32 %v4896, %v768
        %v4953 = vmul.f32 %v4900, %v768
        %v4954 = vmul.f32 %v4904, %v768
        %v4955 = vmul.f32 %v4908, %v768
        %v4956 = vmul.f32 %v4912, %v768
        %v4957 = vmul.f32 %v4916, %v768
        %v4958 = vmul.f32 %v4920, %v768
        %v4959 = vmul.f32 %v4924, %v768
        %v4960 = vmul.f32 %v4928, %v768
        %v4961 = vmul.f32 %v4932, %v768
        %v4962 = vmul.f32 %v4936, %v768
        %v4963 = vmul.f32 %v4940, %v768
        %v4964 = vmul.f32 %v4944, %v768
        %v4965 = vmul.f32 %v4948, %v768
        %v4966 = vlaneseq
        %v4967 = vshrl.u32 %v4966, 7
        %v4968 = vsub.s32 2, %v4967
        %v4969 = vrot.slane %v679, %v4968
        %v4970 = vadd.f32 %v4950, %v4969
        %v4971 = vadd.f32 %v4951, %v4969
        %v4972 = vadd.f32 %v4952, %v4969
        %v4973 = vadd.f32 %v4953, %v4969
        %v4974 = vadd.f32 %v4954, %v4969
        %v4975 = vadd.f32 %v4955, %v4969
        %v4976 = vadd.f32 %v4956, %v4969
        %v4977 = vadd.f32 %v4957, %v4969
        %v4978 = vadd.f32 %v4958, %v4969
        %v4979 = vadd.f32 %v4959, %v4969
        %v4980 = vadd.f32 %v4960, %v4969
        %v4981 = vadd.f32 %v4961, %v4969
        %v4982 = vadd.f32 %v4962, %v4969
        %v4983 = vadd.f32 %v4963, %v4969
        %v4984 = vadd.f32 %v4964, %v4969
        %v4985 = vadd.f32 %v4965, %v4969
        %vm4986 = vcmp.ge.f32.partialorder %v4970, 0.0
        %vm4987 = vcmp.ge.f32.partialorder %v4971, 0.0
        %vm4988 = vcmp.ge.f32.partialorder %v4972, 0.0
        %vm4989 = vcmp.ge.f32.partialorder %v4973, 0.0
        %vm4990 = vcmp.ge.f32.partialorder %v4974, 0.0
        %vm4991 = vcmp.ge.f32.partialorder %v4975, 0.0
        %vm4992 = vcmp.ge.f32.partialorder %v4976, 0.0
        %vm4993 = vcmp.ge.f32.partialorder %v4977, 0.0
        %vm4994 = vcmp.ge.f32.partialorder %v4978, 0.0
        %vm4995 = vcmp.ge.f32.partialorder %v4979, 0.0
        %vm4996 = vcmp.ge.f32.partialorder %v4980, 0.0
        %vm4997 = vcmp.ge.f32.partialorder %v4981, 0.0
        %vm4998 = vcmp.ge.f32.partialorder %v4982, 0.0
        %vm4999 = vcmp.ge.f32.partialorder %v4983, 0.0
        %vm5000 = vcmp.ge.f32.partialorder %v4984, 0.0
        %vm5001 = vcmp.ge.f32.partialorder %v4985, 0.0
        %v5002 = vmul.f32 %v4970, 0.2
        %v5003 = vmul.f32 %v4971, 0.2
        %v5004 = vmul.f32 %v4972, 0.2
        %v5005 = vmul.f32 %v4973, 0.2
        %v5006 = vmul.f32 %v4974, 0.2
        %v5007 = vmul.f32 %v4975, 0.2
        %v5008 = vmul.f32 %v4976, 0.2
        %v5009 = vmul.f32 %v4977, 0.2
        %v5010 = vmul.f32 %v4978, 0.2
        %v5011 = vmul.f32 %v4979, 0.2
        %v5012 = vmul.f32 %v4980, 0.2
        %v5013 = vmul.f32 %v4981, 0.2
        %v5014 = vmul.f32 %v4982, 0.2
        %v5015 = vmul.f32 %v4983, 0.2
        %v5016 = vmul.f32 %v4984, 0.2
        %v5017 = vmul.f32 %v4985, 0.2
        %v5018 = vsel %vm4986, %v4970, %v5002
        %v5019 = vsel %vm4987, %v4971, %v5003
        %v5020 = vsel %vm4988, %v4972, %v5004
        %v5021 = vsel %vm4989, %v4973, %v5005
        %v5022 = vsel %vm4990, %v4974, %v5006
        %v5023 = vsel %vm4991, %v4975, %v5007
        %v5024 = vsel %vm4992, %v4976, %v5008
        %v5025 = vsel %vm4993, %v4977, %v5009
        %v5026 = vsel %vm4994, %v4978, %v5010
        %v5027 = vsel %vm4995, %v4979, %v5011
        %v5028 = vsel %vm4996, %v4980, %v5012
        %v5029 = vsel %vm4997, %v4981, %v5013
        %v5030 = vsel %vm4998, %v4982, %v5014
        %v5031 = vsel %vm4999, %v4983, %v5015
        %v5032 = vsel %vm5000, %v4984, %v5016
        %v5033 = vsel %vm5001, %v4985, %v5017
        %v5035 = vsel %vm860, %v5018, 0
        %v5038 = vsel %vm860, %v5019, 0
        %v5041 = vsel %vm860, %v5020, 0
        %v5044 = vsel %vm860, %v5021, 0
        %v5047 = vsel %vm860, %v5022, 0
        %v5050 = vsel %vm860, %v5023, 0
        %v5053 = vsel %vm860, %v5024, 0
        %v5056 = vsel %vm860, %v5025, 0
        %v5059 = vsel %vm860, %v5026, 0
        %v5062 = vsel %vm860, %v5027, 0
        %v5065 = vsel %vm860, %v5028, 0
        %v5068 = vsel %vm860, %v5029, 0
        %v5071 = vsel %vm860, %v5030, 0
        %v5074 = vsel %vm860, %v5031, 0
        %v5077 = vsel %vm860, %v5032, 0
        %v5080 = vsel %vm860, %v5033, 0
        %5082 = vmatprep.subr.mxu0 0.0
        %5083 = vmatpush1.msra.mxu0 %v681
        %5084 = vmatprep.subr.mxu0 0.0
        %5085 = vmatpush1.msra.mxu0 0.0
        %5086 = vmatprep.subr.mxu0 0.0
        %5087 = vmatpush1.msra.mxu0 0.0
        %5088 = vmatprep.subr.mxu0 0.0
        %5089 = vmatpush1.msra.mxu0 0.0
        %5090 = vmatprep.subr.mxu0 0.0
        %5091 = vmatpush1.msra.mxu0 0.0
        %5092 = vmatprep.subr.mxu0 0.0
        %5093 = vmatpush1.msra.mxu0 0.0
        %5094 = vmatprep.subr.mxu0 0.0
        %5095 = vmatpush1.msra.mxu0 0.0
        %5096 = vmatprep.subr.mxu0 0.0
        %5097 = vmatpush1.msra.mxu0 0.0
        %5098 = vmatprep.subr.mxu0 0.0
        %5099 = vmatpush1.msra.mxu0 0.0
        %5100 = vmatprep.subr.mxu0 0.0
        %5101 = vmatpush1.msra.mxu0 0.0
        %5102 = vmatprep.subr.mxu0 0.0
        %5103 = vmatpush1.msra.mxu0 0.0
        %5104 = vmatprep.subr.mxu0 0.0
        %5105 = vmatpush1.msra.mxu0 0.0
        %5106 = vmatprep.subr.mxu0 0.0
        %5107 = vmatpush1.msra.mxu0 0.0
        %5108 = vmatprep.subr.mxu0 0.0
        %5109 = vmatpush1.msra.mxu0 0.0
        %5110 = vmatprep.subr.mxu0 0.0
        %5111 = vmatpush1.msra.mxu0 0.0
        %5112 = vmatprep.subr.mxu0 0.0
        %5113 = vmatpush1.msra.mxu0 0.0
        %5114 = vmatprep.subr.mxu0 0.0
        %5115 = vmatpush1.msra.mxu0 0.0
        %5116 = vmatprep.subr.mxu0 0.0
        %5117 = vmatpush1.msra.mxu0 0.0
        %5118 = vmatprep.subr.mxu0 0.0
        %5119 = vmatpush1.msra.mxu0 0.0
        %5120 = vmatprep.subr.mxu0 0.0
        %5121 = vmatpush1.msra.mxu0 0.0
        %5122 = vmatprep.subr.mxu0 0.0
        %5123 = vmatpush1.msra.mxu0 0.0
        %5124 = vmatprep.subr.mxu0 0.0
        %5125 = vmatpush1.msra.mxu0 0.0
        %5126 = vmatprep.subr.mxu0 0.0
        %5127 = vmatpush1.msra.mxu0 0.0
        %5128 = vmatprep.subr.mxu0 0.0
        %5129 = vmatpush1.msra.mxu0 0.0
        %5130 = vmatprep.subr.mxu0 0.0
        %5131 = vmatpush1.msra.mxu0 0.0
        %5132 = vmatprep.subr.mxu0 0.0
        %5133 = vmatpush1.msra.mxu0 0.0
        %5134 = vmatprep.subr.mxu0 0.0
        %5135 = vmatpush1.msra.mxu0 0.0
        %5136 = vmatprep.subr.mxu0 0.0
        %5137 = vmatpush1.msra.mxu0 0.0
        %5138 = vmatprep.subr.mxu0 0.0
        %5139 = vmatpush1.msra.mxu0 0.0
        %5140 = vmatprep.subr.mxu0 0.0
        %5141 = vmatpush1.msra.mxu0 0.0
        %5142 = vmatprep.subr.mxu0 0.0
        %5143 = vmatpush1.msra.mxu0 0.0
        %5144 = vmatprep.subr.mxu0 0.0
        %5145 = vmatpush1.msra.mxu0 0.0
        %5146 = vmatprep.mubr.f32.mxu0 0.0
        %5147 = vmatmul.mubr.f32.gmra.mrb[0].mxu0 %v5035
        %v5148 = vpop.f32.mrb[0].mxu0
        %v5149 = vadd.f32 %v858, %v5148
        %v5150 = vpop.f32.mrb[0].mxu0
        %5151 = vmatprep.mubr.f32.mxu0 0.0
        %5152 = vmatmul.mubr.f32.gmra.mrb[0].mxu0 %v5038
        %v5153 = vpop.f32.mrb[0].mxu0
        %v5154 = vadd.f32 %v858, %v5153
        %v5155 = vpop.f32.mrb[0].mxu0
        %5156 = vmatprep.mubr.f32.mxu0 0.0
        %5157 = vmatmul.mubr.f32.gmra.mrb[0].mxu0 %v5041
        %v5158 = vpop.f32.mrb[0].mxu0
        %v5159 = vadd.f32 %v858, %v5158
        %v5160 = vpop.f32.mrb[0].mxu0
        %5161 = vmatprep.mubr.f32.mxu0 0.0
        %5162 = vmatmul.mubr.f32.gmra.mrb[0].mxu0 %v5044
        %v5163 = vpop.f32.mrb[0].mxu0
        %v5164 = vadd.f32 %v858, %v5163
        %v5165 = vpop.f32.mrb[0].mxu0
        %5166 = vmatprep.mubr.f32.mxu0 0.0
        %5167 = vmatmul.mubr.f32.gmra.mrb[0].mxu0 %v5047
        %v5168 = vpop.f32.mrb[0].mxu0
        %v5169 = vadd.f32 %v858, %v5168
        %v5170 = vpop.f32.mrb[0].mxu0
        %5171 = vmatprep.mubr.f32.mxu0 0.0
        %5172 = vmatmul.mubr.f32.gmra.mrb[0].mxu0 %v5050
        %v5173 = vpop.f32.mrb[0].mxu0
        %v5174 = vadd.f32 %v858, %v5173
        %v5175 = vpop.f32.mrb[0].mxu0
        %5176 = vmatprep.mubr.f32.mxu0 0.0
        %5177 = vmatmul.mubr.f32.gmra.mrb[0].mxu0 %v5053
        %v5178 = vpop.f32.mrb[0].mxu0
        %v5179 = vadd.f32 %v858, %v5178
        %v5180 = vpop.f32.mrb[0].mxu0
        %5181 = vmatprep.mubr.f32.mxu0 0.0
        %5182 = vmatmul.mubr.f32.gmra.mrb[0].mxu0 %v5056
        %v5183 = vpop.f32.mrb[0].mxu0
        %v5184 = vadd.f32 %v858, %v5183
        %v5185 = vpop.f32.mrb[0].mxu0
        %5186 = vmatprep.mubr.f32.mxu0 0.0
        %5187 = vmatmul.mubr.f32.gmra.mrb[0].mxu0 %v5059
        %v5188 = vpop.f32.mrb[0].mxu0
        %v5189 = vadd.f32 %v858, %v5188
        %v5190 = vpop.f32.mrb[0].mxu0
        %5191 = vmatprep.mubr.f32.mxu0 0.0
        %5192 = vmatmul.mubr.f32.gmra.mrb[0].mxu0 %v5062
        %v5193 = vpop.f32.mrb[0].mxu0
        %v5194 = vadd.f32 %v858, %v5193
        %v5195 = vpop.f32.mrb[0].mxu0
        %5196 = vmatprep.mubr.f32.mxu0 0.0
        %5197 = vmatmul.mubr.f32.gmra.mrb[0].mxu0 %v5065
        %v5198 = vpop.f32.mrb[0].mxu0
        %v5199 = vadd.f32 %v858, %v5198
        %v5200 = vpop.f32.mrb[0].mxu0
        %5201 = vmatprep.mubr.f32.mxu0 0.0
        %5202 = vmatmul.mubr.f32.gmra.mrb[0].mxu0 %v5068
        %v5203 = vpop.f32.mrb[0].mxu0
        %v5204 = vadd.f32 %v858, %v5203
        %v5205 = vpop.f32.mrb[0].mxu0
        %5206 = vmatprep.mubr.f32.mxu0 0.0
        %5207 = vmatmul.mubr.f32.gmra.mrb[0].mxu0 %v5071
        %v5208 = vpop.f32.mrb[0].mxu0
        %v5209 = vadd.f32 %v858, %v5208
        %v5210 = vpop.f32.mrb[0].mxu0
        %5211 = vmatprep.mubr.f32.mxu0 0.0
        %5212 = vmatmul.mubr.f32.gmra.mrb[0].mxu0 %v5074
        %v5213 = vpop.f32.mrb[0].mxu0
        %v5214 = vadd.f32 %v858, %v5213
        %v5215 = vpop.f32.mrb[0].mxu0
        %5216 = vmatprep.mubr.f32.mxu0 0.0
        %5217 = vmatmul.mubr.f32.gmra.mrb[0].mxu0 %v5077
        %v5218 = vpop.f32.mrb[0].mxu0
        %v5219 = vadd.f32 %v858, %v5218
        %v5220 = vpop.f32.mrb[0].mxu0
        %5221 = vmatprep.mubr.f32.mxu0 0.0
        %5222 = vmatmul.mubr.f32.gmra.mrb[0].mxu0 %v5080
        %v5223 = vpop.f32.mrb[0].mxu0
        %v5224 = vadd.f32 %v858, %v5223
        %v5225 = vpop.f32.mrb[0].mxu0
        %5226 = vdwg.mxu0
        %vm5227 = vcmp.ge.f32.partialorder %v5149, 0.0
        %vm5228 = vcmp.ge.f32.partialorder %v5154, 0.0
        %vm5229 = vcmp.ge.f32.partialorder %v5159, 0.0
        %vm5230 = vcmp.ge.f32.partialorder %v5164, 0.0
        %vm5231 = vcmp.ge.f32.partialorder %v5169, 0.0
        %vm5232 = vcmp.ge.f32.partialorder %v5174, 0.0
        %vm5233 = vcmp.ge.f32.partialorder %v5179, 0.0
        %vm5234 = vcmp.ge.f32.partialorder %v5184, 0.0
        %vm5235 = vcmp.ge.f32.partialorder %v5189, 0.0
        %vm5236 = vcmp.ge.f32.partialorder %v5194, 0.0
        %vm5237 = vcmp.ge.f32.partialorder %v5199, 0.0
        %vm5238 = vcmp.ge.f32.partialorder %v5204, 0.0
        %vm5239 = vcmp.ge.f32.partialorder %v5209, 0.0
        %vm5240 = vcmp.ge.f32.partialorder %v5214, 0.0
        %vm5241 = vcmp.ge.f32.partialorder %v5219, 0.0
        %vm5242 = vcmp.ge.f32.partialorder %v5224, 0.0
        %v5243 = vmul.f32 %v5149, 0.2
        %v5244 = vmul.f32 %v5154, 0.2
        %v5245 = vmul.f32 %v5159, 0.2
        %v5246 = vmul.f32 %v5164, 0.2
        %v5247 = vmul.f32 %v5169, 0.2
        %v5248 = vmul.f32 %v5174, 0.2
        %v5249 = vmul.f32 %v5179, 0.2
        %v5250 = vmul.f32 %v5184, 0.2
        %v5251 = vmul.f32 %v5189, 0.2
        %v5252 = vmul.f32 %v5194, 0.2
        %v5253 = vmul.f32 %v5199, 0.2
        %v5254 = vmul.f32 %v5204, 0.2
        %v5255 = vmul.f32 %v5209, 0.2
        %v5256 = vmul.f32 %v5214, 0.2
        %v5257 = vmul.f32 %v5219, 0.2
        %v5258 = vmul.f32 %v5224, 0.2
        %v5259 = vsel %vm5227, %v5149, %v5243
        %v5260 = vsel %vm5228, %v5154, %v5244
        %v5261 = vsel %vm5229, %v5159, %v5245
        %v5262 = vsel %vm5230, %v5164, %v5246
        %v5263 = vsel %vm5231, %v5169, %v5247
        %v5264 = vsel %vm5232, %v5174, %v5248
        %v5265 = vsel %vm5233, %v5179, %v5249
        %v5266 = vsel %vm5234, %v5184, %v5250
        %v5267 = vsel %vm5235, %v5189, %v5251
        %v5268 = vsel %vm5236, %v5194, %v5252
        %v5269 = vsel %vm5237, %v5199, %v5253
        %v5270 = vsel %vm5238, %v5204, %v5254
        %v5271 = vsel %vm5239, %v5209, %v5255
        %v5272 = vsel %vm5240, %v5214, %v5256
        %v5273 = vsel %vm5241, %v5219, %v5257
        %v5274 = vsel %vm5242, %v5224, %v5258
        %v5291 = vcombine.high %v5259, %v5259
        %v5293 = vunpack.c.l.s4 1966171168
        %v5294 = vunpack.c.0.s8 %v5293
        %v5295 = vlaneseq
        %v5296 = vshrl.u32 %v5295, 7
        %v5297 = vsub.s32 %v5294, %v5296
        %v5298 = vrot.slane %v5259, %v5297
        %v5300 = vunpack.c.l.s4 1966171168
        %v5301 = vunpack.c.0.s8 %v5300
        %v5302 = vlaneseq
        %v5303 = vshrl.u32 %v5302, 7
        %v5304 = vsub.s32 %v5301, %v5303
        %v5305 = vrot.slane %v5291, %v5304
        %v5306 = vcombine.high %v5298, %v5298
        %v5307 = vcombine.high %v5305, %v5305
        %v5309 = vunpack.c.l.s4 1966171168
        %v5310 = vunpack.c.0.s8 %v5309
        %v5311 = vlaneseq
        %v5312 = vshrl.u32 %v5311, 7
        %v5313 = vsub.s32 %v5310, %v5312
        %v5314 = vrot.slane %v5298, %v5313
        %v5316 = vunpack.c.l.s4 1966171168
        %v5317 = vunpack.c.0.s8 %v5316
        %v5318 = vlaneseq
        %v5319 = vshrl.u32 %v5318, 7
        %v5320 = vsub.s32 %v5317, %v5319
        %v5321 = vrot.slane %v5305, %v5320
        %v5323 = vunpack.c.l.s4 1966171168
        %v5324 = vunpack.c.0.s8 %v5323
        %v5325 = vlaneseq
        %v5326 = vshrl.u32 %v5325, 7
        %v5327 = vsub.s32 %v5324, %v5326
        %v5328 = vrot.slane %v5306, %v5327
        %v5330 = vunpack.c.l.s4 1966171168
        %v5331 = vunpack.c.0.s8 %v5330
        %v5332 = vlaneseq
        %v5333 = vshrl.u32 %v5332, 7
        %v5334 = vsub.s32 %v5331, %v5333
        %v5335 = vrot.slane %v5307, %v5334
        %v5336 = vcombine.high %v5314, %v5314
        %v5337 = vcombine.high %v5321, %v5321
        %v5338 = vcombine.high %v5328, %v5328
        %v5339 = vcombine.high %v5335, %v5335
        %v5340 = vcombine.high %v5260, %v5260
        %v5342 = vunpack.c.l.s4 1966171168
        %v5343 = vunpack.c.0.s8 %v5342
        %v5344 = vlaneseq
        %v5345 = vshrl.u32 %v5344, 7
        %v5346 = vsub.s32 %v5343, %v5345
        %v5347 = vrot.slane %v5260, %v5346
        %v5349 = vunpack.c.l.s4 1966171168
        %v5350 = vunpack.c.0.s8 %v5349
        %v5351 = vlaneseq
        %v5352 = vshrl.u32 %v5351, 7
        %v5353 = vsub.s32 %v5350, %v5352
        %v5354 = vrot.slane %v5340, %v5353
        %v5355 = vcombine.high %v5347, %v5347
        %v5356 = vcombine.high %v5354, %v5354
        %v5358 = vunpack.c.l.s4 1966171168
        %v5359 = vunpack.c.0.s8 %v5358
        %v5360 = vlaneseq
        %v5361 = vshrl.u32 %v5360, 7
        %v5362 = vsub.s32 %v5359, %v5361
        %v5363 = vrot.slane %v5347, %v5362
        %v5365 = vunpack.c.l.s4 1966171168
        %v5366 = vunpack.c.0.s8 %v5365
        %v5367 = vlaneseq
        %v5368 = vshrl.u32 %v5367, 7
        %v5369 = vsub.s32 %v5366, %v5368
        %v5370 = vrot.slane %v5354, %v5369
        %v5372 = vunpack.c.l.s4 1966171168
        %v5373 = vunpack.c.0.s8 %v5372
        %v5374 = vlaneseq
        %v5375 = vshrl.u32 %v5374, 7
        %v5376 = vsub.s32 %v5373, %v5375
        %v5377 = vrot.slane %v5355, %v5376
        %v5379 = vunpack.c.l.s4 1966171168
        %v5380 = vunpack.c.0.s8 %v5379
        %v5381 = vlaneseq
        %v5382 = vshrl.u32 %v5381, 7
        %v5383 = vsub.s32 %v5380, %v5382
        %v5384 = vrot.slane %v5356, %v5383
        %v5385 = vcombine.high %v5363, %v5363
        %v5386 = vcombine.high %v5370, %v5370
        %v5387 = vcombine.high %v5377, %v5377
        %v5388 = vcombine.high %v5384, %v5384
        %v5389 = vcombine.high %v5261, %v5261
        %v5391 = vunpack.c.l.s4 1966171168
        %v5392 = vunpack.c.0.s8 %v5391
        %v5393 = vlaneseq
        %v5394 = vshrl.u32 %v5393, 7
        %v5395 = vsub.s32 %v5392, %v5394
        %v5396 = vrot.slane %v5261, %v5395
        %v5398 = vunpack.c.l.s4 1966171168
        %v5399 = vunpack.c.0.s8 %v5398
        %v5400 = vlaneseq
        %v5401 = vshrl.u32 %v5400, 7
        %v5402 = vsub.s32 %v5399, %v5401
        %v5403 = vrot.slane %v5389, %v5402
        %v5404 = vcombine.high %v5396, %v5396
        %v5405 = vcombine.high %v5403, %v5403
        %v5407 = vunpack.c.l.s4 1966171168
        %v5408 = vunpack.c.0.s8 %v5407
        %v5409 = vlaneseq
        %v5410 = vshrl.u32 %v5409, 7
        %v5411 = vsub.s32 %v5408, %v5410
        %v5412 = vrot.slane %v5396, %v5411
        %v5414 = vunpack.c.l.s4 1966171168
        %v5415 = vunpack.c.0.s8 %v5414
        %v5416 = vlaneseq
        %v5417 = vshrl.u32 %v5416, 7
        %v5418 = vsub.s32 %v5415, %v5417
        %v5419 = vrot.slane %v5403, %v5418
        %v5421 = vunpack.c.l.s4 1966171168
        %v5422 = vunpack.c.0.s8 %v5421
        %v5423 = vlaneseq
        %v5424 = vshrl.u32 %v5423, 7
        %v5425 = vsub.s32 %v5422, %v5424
        %v5426 = vrot.slane %v5404, %v5425
        %v5428 = vunpack.c.l.s4 1966171168
        %v5429 = vunpack.c.0.s8 %v5428
        %v5430 = vlaneseq
        %v5431 = vshrl.u32 %v5430, 7
        %v5432 = vsub.s32 %v5429, %v5431
        %v5433 = vrot.slane %v5405, %v5432
        %v5434 = vcombine.high %v5412, %v5412
        %v5435 = vcombine.high %v5419, %v5419
        %v5436 = vcombine.high %v5426, %v5426
        %v5437 = vcombine.high %v5433, %v5433
        %v5438 = vcombine.high %v5262, %v5262
        %v5440 = vunpack.c.l.s4 1966171168
        %v5441 = vunpack.c.0.s8 %v5440
        %v5442 = vlaneseq
        %v5443 = vshrl.u32 %v5442, 7
        %v5444 = vsub.s32 %v5441, %v5443
        %v5445 = vrot.slane %v5262, %v5444
        %v5447 = vunpack.c.l.s4 1966171168
        %v5448 = vunpack.c.0.s8 %v5447
        %v5449 = vlaneseq
        %v5450 = vshrl.u32 %v5449, 7
        %v5451 = vsub.s32 %v5448, %v5450
        %v5452 = vrot.slane %v5438, %v5451
        %v5453 = vcombine.high %v5445, %v5445
        %v5454 = vcombine.high %v5452, %v5452
        %v5456 = vunpack.c.l.s4 1966171168
        %v5457 = vunpack.c.0.s8 %v5456
        %v5458 = vlaneseq
        %v5459 = vshrl.u32 %v5458, 7
        %v5460 = vsub.s32 %v5457, %v5459
        %v5461 = vrot.slane %v5445, %v5460
        %v5463 = vunpack.c.l.s4 1966171168
        %v5464 = vunpack.c.0.s8 %v5463
        %v5465 = vlaneseq
        %v5466 = vshrl.u32 %v5465, 7
        %v5467 = vsub.s32 %v5464, %v5466
        %v5468 = vrot.slane %v5452, %v5467
        %v5470 = vunpack.c.l.s4 1966171168
        %v5471 = vunpack.c.0.s8 %v5470
        %v5472 = vlaneseq
        %v5473 = vshrl.u32 %v5472, 7
        %v5474 = vsub.s32 %v5471, %v5473
        %v5475 = vrot.slane %v5453, %v5474
        %v5477 = vunpack.c.l.s4 1966171168
        %v5478 = vunpack.c.0.s8 %v5477
        %v5479 = vlaneseq
        %v5480 = vshrl.u32 %v5479, 7
        %v5481 = vsub.s32 %v5478, %v5480
        %v5482 = vrot.slane %v5454, %v5481
        %v5483 = vcombine.high %v5461, %v5461
        %v5484 = vcombine.high %v5468, %v5468
        %v5485 = vcombine.high %v5475, %v5475
        %v5486 = vcombine.high %v5482, %v5482
        %v5487 = vcombine.high %v5263, %v5263
        %v5489 = vunpack.c.l.s4 1966171168
        %v5490 = vunpack.c.0.s8 %v5489
        %v5491 = vlaneseq
        %v5492 = vshrl.u32 %v5491, 7
        %v5493 = vsub.s32 %v5490, %v5492
        %v5494 = vrot.slane %v5263, %v5493
        %v5496 = vunpack.c.l.s4 1966171168
        %v5497 = vunpack.c.0.s8 %v5496
        %v5498 = vlaneseq
        %v5499 = vshrl.u32 %v5498, 7
        %v5500 = vsub.s32 %v5497, %v5499
        %v5501 = vrot.slane %v5487, %v5500
        %v5502 = vcombine.high %v5494, %v5494
        %v5503 = vcombine.high %v5501, %v5501
        %v5505 = vunpack.c.l.s4 1966171168
        %v5506 = vunpack.c.0.s8 %v5505
        %v5507 = vlaneseq
        %v5508 = vshrl.u32 %v5507, 7
        %v5509 = vsub.s32 %v5506, %v5508
        %v5510 = vrot.slane %v5494, %v5509
        %v5512 = vunpack.c.l.s4 1966171168
        %v5513 = vunpack.c.0.s8 %v5512
        %v5514 = vlaneseq
        %v5515 = vshrl.u32 %v5514, 7
        %v5516 = vsub.s32 %v5513, %v5515
        %v5517 = vrot.slane %v5501, %v5516
        %v5519 = vunpack.c.l.s4 1966171168
        %v5520 = vunpack.c.0.s8 %v5519
        %v5521 = vlaneseq
        %v5522 = vshrl.u32 %v5521, 7
        %v5523 = vsub.s32 %v5520, %v5522
        %v5524 = vrot.slane %v5502, %v5523
        %v5526 = vunpack.c.l.s4 1966171168
        %v5527 = vunpack.c.0.s8 %v5526
        %v5528 = vlaneseq
        %v5529 = vshrl.u32 %v5528, 7
        %v5530 = vsub.s32 %v5527, %v5529
        %v5531 = vrot.slane %v5503, %v5530
        %v5532 = vcombine.high %v5510, %v5510
        %v5533 = vcombine.high %v5517, %v5517
        %v5534 = vcombine.high %v5524, %v5524
        %v5535 = vcombine.high %v5531, %v5531
        %v5536 = vcombine.high %v5264, %v5264
        %v5538 = vunpack.c.l.s4 1966171168
        %v5539 = vunpack.c.0.s8 %v5538
        %v5540 = vlaneseq
        %v5541 = vshrl.u32 %v5540, 7
        %v5542 = vsub.s32 %v5539, %v5541
        %v5543 = vrot.slane %v5264, %v5542
        %v5545 = vunpack.c.l.s4 1966171168
        %v5546 = vunpack.c.0.s8 %v5545
        %v5547 = vlaneseq
        %v5548 = vshrl.u32 %v5547, 7
        %v5549 = vsub.s32 %v5546, %v5548
        %v5550 = vrot.slane %v5536, %v5549
        %v5551 = vcombine.high %v5543, %v5543
        %v5552 = vcombine.high %v5550, %v5550
        %v5554 = vunpack.c.l.s4 1966171168
        %v5555 = vunpack.c.0.s8 %v5554
        %v5556 = vlaneseq
        %v5557 = vshrl.u32 %v5556, 7
        %v5558 = vsub.s32 %v5555, %v5557
        %v5559 = vrot.slane %v5543, %v5558
        %v5561 = vunpack.c.l.s4 1966171168
        %v5562 = vunpack.c.0.s8 %v5561
        %v5563 = vlaneseq
        %v5564 = vshrl.u32 %v5563, 7
        %v5565 = vsub.s32 %v5562, %v5564
        %v5566 = vrot.slane %v5550, %v5565
        %v5568 = vunpack.c.l.s4 1966171168
        %v5569 = vunpack.c.0.s8 %v5568
        %v5570 = vlaneseq
        %v5571 = vshrl.u32 %v5570, 7
        %v5572 = vsub.s32 %v5569, %v5571
        %v5573 = vrot.slane %v5551, %v5572
        %v5575 = vunpack.c.l.s4 1966171168
        %v5576 = vunpack.c.0.s8 %v5575
        %v5577 = vlaneseq
        %v5578 = vshrl.u32 %v5577, 7
        %v5579 = vsub.s32 %v5576, %v5578
        %v5580 = vrot.slane %v5552, %v5579
        %v5581 = vcombine.high %v5559, %v5559
        %v5582 = vcombine.high %v5566, %v5566
        %v5583 = vcombine.high %v5573, %v5573
        %v5584 = vcombine.high %v5580, %v5580
        %v5585 = vcombine.high %v5265, %v5265
        %v5587 = vunpack.c.l.s4 1966171168
        %v5588 = vunpack.c.0.s8 %v5587
        %v5589 = vlaneseq
        %v5590 = vshrl.u32 %v5589, 7
        %v5591 = vsub.s32 %v5588, %v5590
        %v5592 = vrot.slane %v5265, %v5591
        %v5594 = vunpack.c.l.s4 1966171168
        %v5595 = vunpack.c.0.s8 %v5594
        %v5596 = vlaneseq
        %v5597 = vshrl.u32 %v5596, 7
        %v5598 = vsub.s32 %v5595, %v5597
        %v5599 = vrot.slane %v5585, %v5598
        %v5600 = vcombine.high %v5592, %v5592
        %v5601 = vcombine.high %v5599, %v5599
        %v5603 = vunpack.c.l.s4 1966171168
        %v5604 = vunpack.c.0.s8 %v5603
        %v5605 = vlaneseq
        %v5606 = vshrl.u32 %v5605, 7
        %v5607 = vsub.s32 %v5604, %v5606
        %v5608 = vrot.slane %v5592, %v5607
        %v5610 = vunpack.c.l.s4 1966171168
        %v5611 = vunpack.c.0.s8 %v5610
        %v5612 = vlaneseq
        %v5613 = vshrl.u32 %v5612, 7
        %v5614 = vsub.s32 %v5611, %v5613
        %v5615 = vrot.slane %v5599, %v5614
        %v5617 = vunpack.c.l.s4 1966171168
        %v5618 = vunpack.c.0.s8 %v5617
        %v5619 = vlaneseq
        %v5620 = vshrl.u32 %v5619, 7
        %v5621 = vsub.s32 %v5618, %v5620
        %v5622 = vrot.slane %v5600, %v5621
        %v5624 = vunpack.c.l.s4 1966171168
        %v5625 = vunpack.c.0.s8 %v5624
        %v5626 = vlaneseq
        %v5627 = vshrl.u32 %v5626, 7
        %v5628 = vsub.s32 %v5625, %v5627
        %v5629 = vrot.slane %v5601, %v5628
        %v5630 = vcombine.high %v5608, %v5608
        %v5631 = vcombine.high %v5615, %v5615
        %v5632 = vcombine.high %v5622, %v5622
        %v5633 = vcombine.high %v5629, %v5629
        %v5634 = vcombine.high %v5266, %v5266
        %v5636 = vunpack.c.l.s4 1966171168
        %v5637 = vunpack.c.0.s8 %v5636
        %v5638 = vlaneseq
        %v5639 = vshrl.u32 %v5638, 7
        %v5640 = vsub.s32 %v5637, %v5639
        %v5641 = vrot.slane %v5266, %v5640
        %v5643 = vunpack.c.l.s4 1966171168
        %v5644 = vunpack.c.0.s8 %v5643
        %v5645 = vlaneseq
        %v5646 = vshrl.u32 %v5645, 7
        %v5647 = vsub.s32 %v5644, %v5646
        %v5648 = vrot.slane %v5634, %v5647
        %v5649 = vcombine.high %v5641, %v5641
        %v5650 = vcombine.high %v5648, %v5648
        %v5652 = vunpack.c.l.s4 1966171168
        %v5653 = vunpack.c.0.s8 %v5652
        %v5654 = vlaneseq
        %v5655 = vshrl.u32 %v5654, 7
        %v5656 = vsub.s32 %v5653, %v5655
        %v5657 = vrot.slane %v5641, %v5656
        %v5659 = vunpack.c.l.s4 1966171168
        %v5660 = vunpack.c.0.s8 %v5659
        %v5661 = vlaneseq
        %v5662 = vshrl.u32 %v5661, 7
        %v5663 = vsub.s32 %v5660, %v5662
        %v5664 = vrot.slane %v5648, %v5663
        %v5666 = vunpack.c.l.s4 1966171168
        %v5667 = vunpack.c.0.s8 %v5666
        %v5668 = vlaneseq
        %v5669 = vshrl.u32 %v5668, 7
        %v5670 = vsub.s32 %v5667, %v5669
        %v5671 = vrot.slane %v5649, %v5670
        %v5673 = vunpack.c.l.s4 1966171168
        %v5674 = vunpack.c.0.s8 %v5673
        %v5675 = vlaneseq
        %v5676 = vshrl.u32 %v5675, 7
        %v5677 = vsub.s32 %v5674, %v5676
        %v5678 = vrot.slane %v5650, %v5677
        %v5679 = vcombine.high %v5657, %v5657
        %v5680 = vcombine.high %v5664, %v5664
        %v5681 = vcombine.high %v5671, %v5671
        %v5682 = vcombine.high %v5678, %v5678
        %v5683 = vcombine.high %v5267, %v5267
        %v5685 = vunpack.c.l.s4 1966171168
        %v5686 = vunpack.c.0.s8 %v5685
        %v5687 = vlaneseq
        %v5688 = vshrl.u32 %v5687, 7
        %v5689 = vsub.s32 %v5686, %v5688
        %v5690 = vrot.slane %v5267, %v5689
        %v5692 = vunpack.c.l.s4 1966171168
        %v5693 = vunpack.c.0.s8 %v5692
        %v5694 = vlaneseq
        %v5695 = vshrl.u32 %v5694, 7
        %v5696 = vsub.s32 %v5693, %v5695
        %v5697 = vrot.slane %v5683, %v5696
        %v5698 = vcombine.high %v5690, %v5690
        %v5699 = vcombine.high %v5697, %v5697
        %v5701 = vunpack.c.l.s4 1966171168
        %v5702 = vunpack.c.0.s8 %v5701
        %v5703 = vlaneseq
        %v5704 = vshrl.u32 %v5703, 7
        %v5705 = vsub.s32 %v5702, %v5704
        %v5706 = vrot.slane %v5690, %v5705
        %v5708 = vunpack.c.l.s4 1966171168
        %v5709 = vunpack.c.0.s8 %v5708
        %v5710 = vlaneseq
        %v5711 = vshrl.u32 %v5710, 7
        %v5712 = vsub.s32 %v5709, %v5711
        %v5713 = vrot.slane %v5697, %v5712
        %v5715 = vunpack.c.l.s4 1966171168
        %v5716 = vunpack.c.0.s8 %v5715
        %v5717 = vlaneseq
        %v5718 = vshrl.u32 %v5717, 7
        %v5719 = vsub.s32 %v5716, %v5718
        %v5720 = vrot.slane %v5698, %v5719
        %v5722 = vunpack.c.l.s4 1966171168
        %v5723 = vunpack.c.0.s8 %v5722
        %v5724 = vlaneseq
        %v5725 = vshrl.u32 %v5724, 7
        %v5726 = vsub.s32 %v5723, %v5725
        %v5727 = vrot.slane %v5699, %v5726
        %v5728 = vcombine.high %v5706, %v5706
        %v5729 = vcombine.high %v5713, %v5713
        %v5730 = vcombine.high %v5720, %v5720
        %v5731 = vcombine.high %v5727, %v5727
        %v5732 = vcombine.high %v5268, %v5268
        %v5734 = vunpack.c.l.s4 1966171168
        %v5735 = vunpack.c.0.s8 %v5734
        %v5736 = vlaneseq
        %v5737 = vshrl.u32 %v5736, 7
        %v5738 = vsub.s32 %v5735, %v5737
        %v5739 = vrot.slane %v5268, %v5738
        %v5741 = vunpack.c.l.s4 1966171168
        %v5742 = vunpack.c.0.s8 %v5741
        %v5743 = vlaneseq
        %v5744 = vshrl.u32 %v5743, 7
        %v5745 = vsub.s32 %v5742, %v5744
        %v5746 = vrot.slane %v5732, %v5745
        %v5747 = vcombine.high %v5739, %v5739
        %v5748 = vcombine.high %v5746, %v5746
        %v5750 = vunpack.c.l.s4 1966171168
        %v5751 = vunpack.c.0.s8 %v5750
        %v5752 = vlaneseq
        %v5753 = vshrl.u32 %v5752, 7
        %v5754 = vsub.s32 %v5751, %v5753
        %v5755 = vrot.slane %v5739, %v5754
        %v5757 = vunpack.c.l.s4 1966171168
        %v5758 = vunpack.c.0.s8 %v5757
        %v5759 = vlaneseq
        %v5760 = vshrl.u32 %v5759, 7
        %v5761 = vsub.s32 %v5758, %v5760
        %v5762 = vrot.slane %v5746, %v5761
        %v5764 = vunpack.c.l.s4 1966171168
        %v5765 = vunpack.c.0.s8 %v5764
        %v5766 = vlaneseq
        %v5767 = vshrl.u32 %v5766, 7
        %v5768 = vsub.s32 %v5765, %v5767
        %v5769 = vrot.slane %v5747, %v5768
        %v5771 = vunpack.c.l.s4 1966171168
        %v5772 = vunpack.c.0.s8 %v5771
        %v5773 = vlaneseq
        %v5774 = vshrl.u32 %v5773, 7
        %v5775 = vsub.s32 %v5772, %v5774
        %v5776 = vrot.slane %v5748, %v5775
        %v5777 = vcombine.high %v5755, %v5755
        %v5778 = vcombine.high %v5762, %v5762
        %v5779 = vcombine.high %v5769, %v5769
        %v5780 = vcombine.high %v5776, %v5776
        %v5781 = vcombine.high %v5269, %v5269
        %v5783 = vunpack.c.l.s4 1966171168
        %v5784 = vunpack.c.0.s8 %v5783
        %v5785 = vlaneseq
        %v5786 = vshrl.u32 %v5785, 7
        %v5787 = vsub.s32 %v5784, %v5786
        %v5788 = vrot.slane %v5269, %v5787
        %v5790 = vunpack.c.l.s4 1966171168
        %v5791 = vunpack.c.0.s8 %v5790
        %v5792 = vlaneseq
        %v5793 = vshrl.u32 %v5792, 7
        %v5794 = vsub.s32 %v5791, %v5793
        %v5795 = vrot.slane %v5781, %v5794
        %v5796 = vcombine.high %v5788, %v5788
        %v5797 = vcombine.high %v5795, %v5795
        %v5799 = vunpack.c.l.s4 1966171168
        %v5800 = vunpack.c.0.s8 %v5799
        %v5801 = vlaneseq
        %v5802 = vshrl.u32 %v5801, 7
        %v5803 = vsub.s32 %v5800, %v5802
        %v5804 = vrot.slane %v5788, %v5803
        %v5806 = vunpack.c.l.s4 1966171168
        %v5807 = vunpack.c.0.s8 %v5806
        %v5808 = vlaneseq
        %v5809 = vshrl.u32 %v5808, 7
        %v5810 = vsub.s32 %v5807, %v5809
        %v5811 = vrot.slane %v5795, %v5810
        %v5813 = vunpack.c.l.s4 1966171168
        %v5814 = vunpack.c.0.s8 %v5813
        %v5815 = vlaneseq
        %v5816 = vshrl.u32 %v5815, 7
        %v5817 = vsub.s32 %v5814, %v5816
        %v5818 = vrot.slane %v5796, %v5817
        %v5820 = vunpack.c.l.s4 1966171168
        %v5821 = vunpack.c.0.s8 %v5820
        %v5822 = vlaneseq
        %v5823 = vshrl.u32 %v5822, 7
        %v5824 = vsub.s32 %v5821, %v5823
        %v5825 = vrot.slane %v5797, %v5824
        %v5826 = vcombine.high %v5804, %v5804
        %v5827 = vcombine.high %v5811, %v5811
        %v5828 = vcombine.high %v5818, %v5818
        %v5829 = vcombine.high %v5825, %v5825
        %v5830 = vcombine.high %v5270, %v5270
        %v5832 = vunpack.c.l.s4 1966171168
        %v5833 = vunpack.c.0.s8 %v5832
        %v5834 = vlaneseq
        %v5835 = vshrl.u32 %v5834, 7
        %v5836 = vsub.s32 %v5833, %v5835
        %v5837 = vrot.slane %v5270, %v5836
        %v5839 = vunpack.c.l.s4 1966171168
        %v5840 = vunpack.c.0.s8 %v5839
        %v5841 = vlaneseq
        %v5842 = vshrl.u32 %v5841, 7
        %v5843 = vsub.s32 %v5840, %v5842
        %v5844 = vrot.slane %v5830, %v5843
        %v5845 = vcombine.high %v5837, %v5837
        %v5846 = vcombine.high %v5844, %v5844
        %v5848 = vunpack.c.l.s4 1966171168
        %v5849 = vunpack.c.0.s8 %v5848
        %v5850 = vlaneseq
        %v5851 = vshrl.u32 %v5850, 7
        %v5852 = vsub.s32 %v5849, %v5851
        %v5853 = vrot.slane %v5837, %v5852
        %v5855 = vunpack.c.l.s4 1966171168
        %v5856 = vunpack.c.0.s8 %v5855
        %v5857 = vlaneseq
        %v5858 = vshrl.u32 %v5857, 7
        %v5859 = vsub.s32 %v5856, %v5858
        %v5860 = vrot.slane %v5844, %v5859
        %v5862 = vunpack.c.l.s4 1966171168
        %v5863 = vunpack.c.0.s8 %v5862
        %v5864 = vlaneseq
        %v5865 = vshrl.u32 %v5864, 7
        %v5866 = vsub.s32 %v5863, %v5865
        %v5867 = vrot.slane %v5845, %v5866
        %v5869 = vunpack.c.l.s4 1966171168
        %v5870 = vunpack.c.0.s8 %v5869
        %v5871 = vlaneseq
        %v5872 = vshrl.u32 %v5871, 7
        %v5873 = vsub.s32 %v5870, %v5872
        %v5874 = vrot.slane %v5846, %v5873
        %v5875 = vcombine.high %v5853, %v5853
        %v5876 = vcombine.high %v5860, %v5860
        %v5877 = vcombine.high %v5867, %v5867
        %v5878 = vcombine.high %v5874, %v5874
        %v5879 = vcombine.high %v5271, %v5271
        %v5881 = vunpack.c.l.s4 1966171168
        %v5882 = vunpack.c.0.s8 %v5881
        %v5883 = vlaneseq
        %v5884 = vshrl.u32 %v5883, 7
        %v5885 = vsub.s32 %v5882, %v5884
        %v5886 = vrot.slane %v5271, %v5885
        %v5888 = vunpack.c.l.s4 1966171168
        %v5889 = vunpack.c.0.s8 %v5888
        %v5890 = vlaneseq
        %v5891 = vshrl.u32 %v5890, 7
        %v5892 = vsub.s32 %v5889, %v5891
        %v5893 = vrot.slane %v5879, %v5892
        %v5894 = vcombine.high %v5886, %v5886
        %v5895 = vcombine.high %v5893, %v5893
        %v5897 = vunpack.c.l.s4 1966171168
        %v5898 = vunpack.c.0.s8 %v5897
        %v5899 = vlaneseq
        %v5900 = vshrl.u32 %v5899, 7
        %v5901 = vsub.s32 %v5898, %v5900
        %v5902 = vrot.slane %v5886, %v5901
        %v5904 = vunpack.c.l.s4 1966171168
        %v5905 = vunpack.c.0.s8 %v5904
        %v5906 = vlaneseq
        %v5907 = vshrl.u32 %v5906, 7
        %v5908 = vsub.s32 %v5905, %v5907
        %v5909 = vrot.slane %v5893, %v5908
        %v5911 = vunpack.c.l.s4 1966171168
        %v5912 = vunpack.c.0.s8 %v5911
        %v5913 = vlaneseq
        %v5914 = vshrl.u32 %v5913, 7
        %v5915 = vsub.s32 %v5912, %v5914
        %v5916 = vrot.slane %v5894, %v5915
        %v5918 = vunpack.c.l.s4 1966171168
        %v5919 = vunpack.c.0.s8 %v5918
        %v5920 = vlaneseq
        %v5921 = vshrl.u32 %v5920, 7
        %v5922 = vsub.s32 %v5919, %v5921
        %v5923 = vrot.slane %v5895, %v5922
        %v5924 = vcombine.high %v5902, %v5902
        %v5925 = vcombine.high %v5909, %v5909
        %v5926 = vcombine.high %v5916, %v5916
        %v5927 = vcombine.high %v5923, %v5923
        %v5928 = vcombine.high %v5272, %v5272
        %v5930 = vunpack.c.l.s4 1966171168
        %v5931 = vunpack.c.0.s8 %v5930
        %v5932 = vlaneseq
        %v5933 = vshrl.u32 %v5932, 7
        %v5934 = vsub.s32 %v5931, %v5933
        %v5935 = vrot.slane %v5272, %v5934
        %v5937 = vunpack.c.l.s4 1966171168
        %v5938 = vunpack.c.0.s8 %v5937
        %v5939 = vlaneseq
        %v5940 = vshrl.u32 %v5939, 7
        %v5941 = vsub.s32 %v5938, %v5940
        %v5942 = vrot.slane %v5928, %v5941
        %v5943 = vcombine.high %v5935, %v5935
        %v5944 = vcombine.high %v5942, %v5942
        %v5946 = vunpack.c.l.s4 1966171168
        %v5947 = vunpack.c.0.s8 %v5946
        %v5948 = vlaneseq
        %v5949 = vshrl.u32 %v5948, 7
        %v5950 = vsub.s32 %v5947, %v5949
        %v5951 = vrot.slane %v5935, %v5950
        %v5953 = vunpack.c.l.s4 1966171168
        %v5954 = vunpack.c.0.s8 %v5953
        %v5955 = vlaneseq
        %v5956 = vshrl.u32 %v5955, 7
        %v5957 = vsub.s32 %v5954, %v5956
        %v5958 = vrot.slane %v5942, %v5957
        %v5960 = vunpack.c.l.s4 1966171168
        %v5961 = vunpack.c.0.s8 %v5960
        %v5962 = vlaneseq
        %v5963 = vshrl.u32 %v5962, 7
        %v5964 = vsub.s32 %v5961, %v5963
        %v5965 = vrot.slane %v5943, %v5964
        %v5967 = vunpack.c.l.s4 1966171168
        %v5968 = vunpack.c.0.s8 %v5967
        %v5969 = vlaneseq
        %v5970 = vshrl.u32 %v5969, 7
        %v5971 = vsub.s32 %v5968, %v5970
        %v5972 = vrot.slane %v5944, %v5971
        %v5973 = vcombine.high %v5951, %v5951
        %v5974 = vcombine.high %v5958, %v5958
        %v5975 = vcombine.high %v5965, %v5965
        %v5976 = vcombine.high %v5972, %v5972
        %v5977 = vcombine.high %v5273, %v5273
        %v5979 = vunpack.c.l.s4 1966171168
        %v5980 = vunpack.c.0.s8 %v5979
        %v5981 = vlaneseq
        %v5982 = vshrl.u32 %v5981, 7
        %v5983 = vsub.s32 %v5980, %v5982
        %v5984 = vrot.slane %v5273, %v5983
        %v5986 = vunpack.c.l.s4 1966171168
        %v5987 = vunpack.c.0.s8 %v5986
        %v5988 = vlaneseq
        %v5989 = vshrl.u32 %v5988, 7
        %v5990 = vsub.s32 %v5987, %v5989
        %v5991 = vrot.slane %v5977, %v5990
        %v5992 = vcombine.high %v5984, %v5984
        %v5993 = vcombine.high %v5991, %v5991
        %v5995 = vunpack.c.l.s4 1966171168
        %v5996 = vunpack.c.0.s8 %v5995
        %v5997 = vlaneseq
        %v5998 = vshrl.u32 %v5997, 7
        %v5999 = vsub.s32 %v5996, %v5998
        %v6000 = vrot.slane %v5984, %v5999
        %v6002 = vunpack.c.l.s4 1966171168
        %v6003 = vunpack.c.0.s8 %v6002
        %v6004 = vlaneseq
        %v6005 = vshrl.u32 %v6004, 7
        %v6006 = vsub.s32 %v6003, %v6005
        %v6007 = vrot.slane %v5991, %v6006
        %v6009 = vunpack.c.l.s4 1966171168
        %v6010 = vunpack.c.0.s8 %v6009
        %v6011 = vlaneseq
        %v6012 = vshrl.u32 %v6011, 7
        %v6013 = vsub.s32 %v6010, %v6012
        %v6014 = vrot.slane %v5992, %v6013
        %v6016 = vunpack.c.l.s4 1966171168
        %v6017 = vunpack.c.0.s8 %v6016
        %v6018 = vlaneseq
        %v6019 = vshrl.u32 %v6018, 7
        %v6020 = vsub.s32 %v6017, %v6019
        %v6021 = vrot.slane %v5993, %v6020
        %v6022 = vcombine.high %v6000, %v6000
        %v6023 = vcombine.high %v6007, %v6007
        %v6024 = vcombine.high %v6014, %v6014
        %v6025 = vcombine.high %v6021, %v6021
        %v6026 = vcombine.high %v5274, %v5274
        %v6028 = vunpack.c.l.s4 1966171168
        %v6029 = vunpack.c.0.s8 %v6028
        %v6030 = vlaneseq
        %v6031 = vshrl.u32 %v6030, 7
        %v6032 = vsub.s32 %v6029, %v6031
        %v6033 = vrot.slane %v5274, %v6032
        %v6035 = vunpack.c.l.s4 1966171168
        %v6036 = vunpack.c.0.s8 %v6035
        %v6037 = vlaneseq
        %v6038 = vshrl.u32 %v6037, 7
        %v6039 = vsub.s32 %v6036, %v6038
        %v6040 = vrot.slane %v6026, %v6039
        %v6041 = vcombine.high %v6033, %v6033
        %v6042 = vcombine.high %v6040, %v6040
        %v6044 = vunpack.c.l.s4 1966171168
        %v6045 = vunpack.c.0.s8 %v6044
        %v6046 = vlaneseq
        %v6047 = vshrl.u32 %v6046, 7
        %v6048 = vsub.s32 %v6045, %v6047
        %v6049 = vrot.slane %v6033, %v6048
        %v6051 = vunpack.c.l.s4 1966171168
        %v6052 = vunpack.c.0.s8 %v6051
        %v6053 = vlaneseq
        %v6054 = vshrl.u32 %v6053, 7
        %v6055 = vsub.s32 %v6052, %v6054
        %v6056 = vrot.slane %v6040, %v6055
        %v6058 = vunpack.c.l.s4 1966171168
        %v6059 = vunpack.c.0.s8 %v6058
        %v6060 = vlaneseq
        %v6061 = vshrl.u32 %v6060, 7
        %v6062 = vsub.s32 %v6059, %v6061
        %v6063 = vrot.slane %v6041, %v6062
        %v6065 = vunpack.c.l.s4 1966171168
        %v6066 = vunpack.c.0.s8 %v6065
        %v6067 = vlaneseq
        %v6068 = vshrl.u32 %v6067, 7
        %v6069 = vsub.s32 %v6066, %v6068
        %v6070 = vrot.slane %v6042, %v6069
        %v6071 = vcombine.high %v6049, %v6049
        %v6072 = vcombine.high %v6056, %v6056
        %v6073 = vcombine.high %v6063, %v6063
        %v6074 = vcombine.high %v6070, %v6070
        %s6075 = scalar_lea.vmem %s6, 16
        %v6076 = vld [vmem:[%s6075] sm:$0xff]
        %v6077 = vlaneseq
        %v6078 = vshrl.u32 %v6077, 7
        %v6079 = vsub.s32 0, %v6078
        %v6080 = vrot.slane %v5314, %v6079
        %v6081 = vlaneseq
        %v6082 = vshrl.u32 %v6081, 7
        %v6083 = vsub.s32 0, %v6082
        %v6084 = vrot.slane %v5328, %v6083
        %v6085 = vlaneseq
        %v6086 = vshrl.u32 %v6085, 7
        %v6087 = vsub.s32 0, %v6086
        %v6088 = vrot.slane %v5336, %v6087
        %v6089 = vlaneseq
        %v6090 = vshrl.u32 %v6089, 7
        %v6091 = vsub.s32 0, %v6090
        %v6092 = vrot.slane %v5338, %v6091
        %v6093 = vlaneseq
        %v6094 = vshrl.u32 %v6093, 7
        %v6095 = vsub.s32 0, %v6094
        %v6096 = vrot.slane %v5321, %v6095
        %v6097 = vlaneseq
        %v6098 = vshrl.u32 %v6097, 7
        %v6099 = vsub.s32 0, %v6098
        %v6100 = vrot.slane %v5335, %v6099
        %v6101 = vlaneseq
        %v6102 = vshrl.u32 %v6101, 7
        %v6103 = vsub.s32 0, %v6102
        %v6104 = vrot.slane %v5337, %v6103
        %v6105 = vlaneseq
        %v6106 = vshrl.u32 %v6105, 7
        %v6107 = vsub.s32 0, %v6106
        %v6108 = vrot.slane %v5339, %v6107
        %v6109 = vlaneseq
        %v6110 = vshrl.u32 %v6109, 7
        %v6111 = vsub.s32 0, %v6110
        %v6112 = vrot.slane %v5363, %v6111
        %v6113 = vlaneseq
        %v6114 = vshrl.u32 %v6113, 7
        %v6115 = vsub.s32 0, %v6114
        %v6116 = vrot.slane %v5377, %v6115
        %v6117 = vlaneseq
        %v6118 = vshrl.u32 %v6117, 7
        %v6119 = vsub.s32 0, %v6118
        %v6120 = vrot.slane %v5385, %v6119
        %v6121 = vlaneseq
        %v6122 = vshrl.u32 %v6121, 7
        %v6123 = vsub.s32 0, %v6122
        %v6124 = vrot.slane %v5387, %v6123
        %v6125 = vlaneseq
        %v6126 = vshrl.u32 %v6125, 7
        %v6127 = vsub.s32 0, %v6126
        %v6128 = vrot.slane %v5370, %v6127
        %v6129 = vlaneseq
        %v6130 = vshrl.u32 %v6129, 7
        %v6131 = vsub.s32 0, %v6130
        %v6132 = vrot.slane %v5384, %v6131
        %v6133 = vlaneseq
        %v6134 = vshrl.u32 %v6133, 7
        %v6135 = vsub.s32 0, %v6134
        %v6136 = vrot.slane %v5386, %v6135
        %v6137 = vlaneseq
        %v6138 = vshrl.u32 %v6137, 7
        %v6139 = vsub.s32 0, %v6138
        %v6140 = vrot.slane %v5388, %v6139
        %v6141 = vlaneseq
        %v6142 = vshrl.u32 %v6141, 7
        %v6143 = vsub.s32 0, %v6142
        %v6144 = vrot.slane %v5412, %v6143
        %v6145 = vlaneseq
        %v6146 = vshrl.u32 %v6145, 7
        %v6147 = vsub.s32 0, %v6146
        %v6148 = vrot.slane %v5426, %v6147
        %v6149 = vlaneseq
        %v6150 = vshrl.u32 %v6149, 7
        %v6151 = vsub.s32 0, %v6150
        %v6152 = vrot.slane %v5434, %v6151
        %v6153 = vlaneseq
        %v6154 = vshrl.u32 %v6153, 7
        %v6155 = vsub.s32 0, %v6154
        %v6156 = vrot.slane %v5436, %v6155
        %v6157 = vlaneseq
        %v6158 = vshrl.u32 %v6157, 7
        %v6159 = vsub.s32 0, %v6158
        %v6160 = vrot.slane %v5419, %v6159
        %v6161 = vlaneseq
        %v6162 = vshrl.u32 %v6161, 7
        %v6163 = vsub.s32 0, %v6162
        %v6164 = vrot.slane %v5433, %v6163
        %v6165 = vlaneseq
        %v6166 = vshrl.u32 %v6165, 7
        %v6167 = vsub.s32 0, %v6166
        %v6168 = vrot.slane %v5435, %v6167
        %v6169 = vlaneseq
        %v6170 = vshrl.u32 %v6169, 7
        %v6171 = vsub.s32 0, %v6170
        %v6172 = vrot.slane %v5437, %v6171
        %v6173 = vlaneseq
        %v6174 = vshrl.u32 %v6173, 7
        %v6175 = vsub.s32 0, %v6174
        %v6176 = vrot.slane %v5461, %v6175
        %v6177 = vlaneseq
        %v6178 = vshrl.u32 %v6177, 7
        %v6179 = vsub.s32 0, %v6178
        %v6180 = vrot.slane %v5475, %v6179
        %v6181 = vlaneseq
        %v6182 = vshrl.u32 %v6181, 7
        %v6183 = vsub.s32 0, %v6182
        %v6184 = vrot.slane %v5483, %v6183
        %v6185 = vlaneseq
        %v6186 = vshrl.u32 %v6185, 7
        %v6187 = vsub.s32 0, %v6186
        %v6188 = vrot.slane %v5485, %v6187
        %v6189 = vlaneseq
        %v6190 = vshrl.u32 %v6189, 7
        %v6191 = vsub.s32 0, %v6190
        %v6192 = vrot.slane %v5468, %v6191
        %v6193 = vlaneseq
        %v6194 = vshrl.u32 %v6193, 7
        %v6195 = vsub.s32 0, %v6194
        %v6196 = vrot.slane %v5482, %v6195
        %v6197 = vlaneseq
        %v6198 = vshrl.u32 %v6197, 7
        %v6199 = vsub.s32 0, %v6198
        %v6200 = vrot.slane %v5484, %v6199
        %v6201 = vlaneseq
        %v6202 = vshrl.u32 %v6201, 7
        %v6203 = vsub.s32 0, %v6202
        %v6204 = vrot.slane %v5486, %v6203
        %v6205 = vlaneseq
        %v6206 = vshrl.u32 %v6205, 7
        %v6207 = vsub.s32 0, %v6206
        %v6208 = vrot.slane %v5510, %v6207
        %v6209 = vlaneseq
        %v6210 = vshrl.u32 %v6209, 7
        %v6211 = vsub.s32 0, %v6210
        %v6212 = vrot.slane %v5524, %v6211
        %v6213 = vlaneseq
        %v6214 = vshrl.u32 %v6213, 7
        %v6215 = vsub.s32 0, %v6214
        %v6216 = vrot.slane %v5532, %v6215
        %v6217 = vlaneseq
        %v6218 = vshrl.u32 %v6217, 7
        %v6219 = vsub.s32 0, %v6218
        %v6220 = vrot.slane %v5534, %v6219
        %v6221 = vlaneseq
        %v6222 = vshrl.u32 %v6221, 7
        %v6223 = vsub.s32 0, %v6222
        %v6224 = vrot.slane %v5517, %v6223
        %v6225 = vlaneseq
        %v6226 = vshrl.u32 %v6225, 7
        %v6227 = vsub.s32 0, %v6226
        %v6228 = vrot.slane %v5531, %v6227
        %v6229 = vlaneseq
        %v6230 = vshrl.u32 %v6229, 7
        %v6231 = vsub.s32 0, %v6230
        %v6232 = vrot.slane %v5533, %v6231
        %v6233 = vlaneseq
        %v6234 = vshrl.u32 %v6233, 7
        %v6235 = vsub.s32 0, %v6234
        %v6236 = vrot.slane %v5535, %v6235
        %v6237 = vlaneseq
        %v6238 = vshrl.u32 %v6237, 7
        %v6239 = vsub.s32 0, %v6238
        %v6240 = vrot.slane %v5559, %v6239
        %v6241 = vlaneseq
        %v6242 = vshrl.u32 %v6241, 7
        %v6243 = vsub.s32 0, %v6242
        %v6244 = vrot.slane %v5573, %v6243
        %v6245 = vlaneseq
        %v6246 = vshrl.u32 %v6245, 7
        %v6247 = vsub.s32 0, %v6246
        %v6248 = vrot.slane %v5581, %v6247
        %v6249 = vlaneseq
        %v6250 = vshrl.u32 %v6249, 7
        %v6251 = vsub.s32 0, %v6250
        %v6252 = vrot.slane %v5583, %v6251
        %v6253 = vlaneseq
        %v6254 = vshrl.u32 %v6253, 7
        %v6255 = vsub.s32 0, %v6254
        %v6256 = vrot.slane %v5566, %v6255
        %v6257 = vlaneseq
        %v6258 = vshrl.u32 %v6257, 7
        %v6259 = vsub.s32 0, %v6258
        %v6260 = vrot.slane %v5580, %v6259
        %v6261 = vlaneseq
        %v6262 = vshrl.u32 %v6261, 7
        %v6263 = vsub.s32 0, %v6262
        %v6264 = vrot.slane %v5582, %v6263
        %v6265 = vlaneseq
        %v6266 = vshrl.u32 %v6265, 7
        %v6267 = vsub.s32 0, %v6266
        %v6268 = vrot.slane %v5584, %v6267
        %v6269 = vlaneseq
        %v6270 = vshrl.u32 %v6269, 7
        %v6271 = vsub.s32 0, %v6270
        %v6272 = vrot.slane %v5608, %v6271
        %v6273 = vlaneseq
        %v6274 = vshrl.u32 %v6273, 7
        %v6275 = vsub.s32 0, %v6274
        %v6276 = vrot.slane %v5622, %v6275
        %v6277 = vlaneseq
        %v6278 = vshrl.u32 %v6277, 7
        %v6279 = vsub.s32 0, %v6278
        %v6280 = vrot.slane %v5630, %v6279
        %v6281 = vlaneseq
        %v6282 = vshrl.u32 %v6281, 7
        %v6283 = vsub.s32 0, %v6282
        %v6284 = vrot.slane %v5632, %v6283
        %v6285 = vlaneseq
        %v6286 = vshrl.u32 %v6285, 7
        %v6287 = vsub.s32 0, %v6286
        %v6288 = vrot.slane %v5615, %v6287
        %v6289 = vlaneseq
        %v6290 = vshrl.u32 %v6289, 7
        %v6291 = vsub.s32 0, %v6290
        %v6292 = vrot.slane %v5629, %v6291
        %v6293 = vlaneseq
        %v6294 = vshrl.u32 %v6293, 7
        %v6295 = vsub.s32 0, %v6294
        %v6296 = vrot.slane %v5631, %v6295
        %v6297 = vlaneseq
        %v6298 = vshrl.u32 %v6297, 7
        %v6299 = vsub.s32 0, %v6298
        %v6300 = vrot.slane %v5633, %v6299
        %v6301 = vlaneseq
        %v6302 = vshrl.u32 %v6301, 7
        %v6303 = vsub.s32 0, %v6302
        %v6304 = vrot.slane %v5657, %v6303
        %v6305 = vlaneseq
        %v6306 = vshrl.u32 %v6305, 7
        %v6307 = vsub.s32 0, %v6306
        %v6308 = vrot.slane %v5671, %v6307
        %v6309 = vlaneseq
        %v6310 = vshrl.u32 %v6309, 7
        %v6311 = vsub.s32 0, %v6310
        %v6312 = vrot.slane %v5679, %v6311
        %v6313 = vlaneseq
        %v6314 = vshrl.u32 %v6313, 7
        %v6315 = vsub.s32 0, %v6314
        %v6316 = vrot.slane %v5681, %v6315
        %v6317 = vlaneseq
        %v6318 = vshrl.u32 %v6317, 7
        %v6319 = vsub.s32 0, %v6318
        %v6320 = vrot.slane %v5664, %v6319
        %v6321 = vlaneseq
        %v6322 = vshrl.u32 %v6321, 7
        %v6323 = vsub.s32 0, %v6322
        %v6324 = vrot.slane %v5678, %v6323
        %v6325 = vlaneseq
        %v6326 = vshrl.u32 %v6325, 7
        %v6327 = vsub.s32 0, %v6326
        %v6328 = vrot.slane %v5680, %v6327
        %v6329 = vlaneseq
        %v6330 = vshrl.u32 %v6329, 7
        %v6331 = vsub.s32 0, %v6330
        %v6332 = vrot.slane %v5682, %v6331
        %v6333 = vlaneseq
        %v6334 = vshrl.u32 %v6333, 7
        %v6335 = vsub.s32 0, %v6334
        %v6336 = vrot.slane %v5706, %v6335
        %v6337 = vlaneseq
        %v6338 = vshrl.u32 %v6337, 7
        %v6339 = vsub.s32 0, %v6338
        %v6340 = vrot.slane %v5720, %v6339
        %v6341 = vlaneseq
        %v6342 = vshrl.u32 %v6341, 7
        %v6343 = vsub.s32 0, %v6342
        %v6344 = vrot.slane %v5728, %v6343
        %v6345 = vlaneseq
        %v6346 = vshrl.u32 %v6345, 7
        %v6347 = vsub.s32 0, %v6346
        %v6348 = vrot.slane %v5730, %v6347
        %v6349 = vlaneseq
        %v6350 = vshrl.u32 %v6349, 7
        %v6351 = vsub.s32 0, %v6350
        %v6352 = vrot.slane %v5713, %v6351
        %v6353 = vlaneseq
        %v6354 = vshrl.u32 %v6353, 7
        %v6355 = vsub.s32 0, %v6354
        %v6356 = vrot.slane %v5727, %v6355
        %v6357 = vlaneseq
        %v6358 = vshrl.u32 %v6357, 7
        %v6359 = vsub.s32 0, %v6358
        %v6360 = vrot.slane %v5729, %v6359
        %v6361 = vlaneseq
        %v6362 = vshrl.u32 %v6361, 7
        %v6363 = vsub.s32 0, %v6362
        %v6364 = vrot.slane %v5731, %v6363
        %v6365 = vlaneseq
        %v6366 = vshrl.u32 %v6365, 7
        %v6367 = vsub.s32 0, %v6366
        %v6368 = vrot.slane %v5755, %v6367
        %v6369 = vlaneseq
        %v6370 = vshrl.u32 %v6369, 7
        %v6371 = vsub.s32 0, %v6370
        %v6372 = vrot.slane %v5769, %v6371
        %v6373 = vlaneseq
        %v6374 = vshrl.u32 %v6373, 7
        %v6375 = vsub.s32 0, %v6374
        %v6376 = vrot.slane %v5777, %v6375
        %v6377 = vlaneseq
        %v6378 = vshrl.u32 %v6377, 7
        %v6379 = vsub.s32 0, %v6378
        %v6380 = vrot.slane %v5779, %v6379
        %v6381 = vlaneseq
        %v6382 = vshrl.u32 %v6381, 7
        %v6383 = vsub.s32 0, %v6382
        %v6384 = vrot.slane %v5762, %v6383
        %v6385 = vlaneseq
        %v6386 = vshrl.u32 %v6385, 7
        %v6387 = vsub.s32 0, %v6386
        %v6388 = vrot.slane %v5776, %v6387
        %v6389 = vlaneseq
        %v6390 = vshrl.u32 %v6389, 7
        %v6391 = vsub.s32 0, %v6390
        %v6392 = vrot.slane %v5778, %v6391
        %v6393 = vlaneseq
        %v6394 = vshrl.u32 %v6393, 7
        %v6395 = vsub.s32 0, %v6394
        %v6396 = vrot.slane %v5780, %v6395
        %v6397 = vlaneseq
        %v6398 = vshrl.u32 %v6397, 7
        %v6399 = vsub.s32 0, %v6398
        %v6400 = vrot.slane %v5804, %v6399
        %v6401 = vlaneseq
        %v6402 = vshrl.u32 %v6401, 7
        %v6403 = vsub.s32 0, %v6402
        %v6404 = vrot.slane %v5818, %v6403
        %v6405 = vlaneseq
        %v6406 = vshrl.u32 %v6405, 7
        %v6407 = vsub.s32 0, %v6406
        %v6408 = vrot.slane %v5826, %v6407
        %v6409 = vlaneseq
        %v6410 = vshrl.u32 %v6409, 7
        %v6411 = vsub.s32 0, %v6410
        %v6412 = vrot.slane %v5828, %v6411
        %v6413 = vlaneseq
        %v6414 = vshrl.u32 %v6413, 7
        %v6415 = vsub.s32 0, %v6414
        %v6416 = vrot.slane %v5811, %v6415
        %v6417 = vlaneseq
        %v6418 = vshrl.u32 %v6417, 7
        %v6419 = vsub.s32 0, %v6418
        %v6420 = vrot.slane %v5825, %v6419
        %v6421 = vlaneseq
        %v6422 = vshrl.u32 %v6421, 7
        %v6423 = vsub.s32 0, %v6422
        %v6424 = vrot.slane %v5827, %v6423
        %v6425 = vlaneseq
        %v6426 = vshrl.u32 %v6425, 7
        %v6427 = vsub.s32 0, %v6426
        %v6428 = vrot.slane %v5829, %v6427
        %v6429 = vlaneseq
        %v6430 = vshrl.u32 %v6429, 7
        %v6431 = vsub.s32 0, %v6430
        %v6432 = vrot.slane %v5853, %v6431
        %v6433 = vlaneseq
        %v6434 = vshrl.u32 %v6433, 7
        %v6435 = vsub.s32 0, %v6434
        %v6436 = vrot.slane %v5867, %v6435
        %v6437 = vlaneseq
        %v6438 = vshrl.u32 %v6437, 7
        %v6439 = vsub.s32 0, %v6438
        %v6440 = vrot.slane %v5875, %v6439
        %v6441 = vlaneseq
        %v6442 = vshrl.u32 %v6441, 7
        %v6443 = vsub.s32 0, %v6442
        %v6444 = vrot.slane %v5877, %v6443
        %v6445 = vlaneseq
        %v6446 = vshrl.u32 %v6445, 7
        %v6447 = vsub.s32 0, %v6446
        %v6448 = vrot.slane %v5860, %v6447
        %v6449 = vlaneseq
        %v6450 = vshrl.u32 %v6449, 7
        %v6451 = vsub.s32 0, %v6450
        %v6452 = vrot.slane %v5874, %v6451
        %v6453 = vlaneseq
        %v6454 = vshrl.u32 %v6453, 7
        %v6455 = vsub.s32 0, %v6454
        %v6456 = vrot.slane %v5876, %v6455
        %v6457 = vlaneseq
        %v6458 = vshrl.u32 %v6457, 7
        %v6459 = vsub.s32 0, %v6458
        %v6460 = vrot.slane %v5878, %v6459
        %v6461 = vlaneseq
        %v6462 = vshrl.u32 %v6461, 7
        %v6463 = vsub.s32 0, %v6462
        %v6464 = vrot.slane %v5902, %v6463
        %v6465 = vlaneseq
        %v6466 = vshrl.u32 %v6465, 7
        %v6467 = vsub.s32 0, %v6466
        %v6468 = vrot.slane %v5916, %v6467
        %v6469 = vlaneseq
        %v6470 = vshrl.u32 %v6469, 7
        %v6471 = vsub.s32 0, %v6470
        %v6472 = vrot.slane %v5924, %v6471
        %v6473 = vlaneseq
        %v6474 = vshrl.u32 %v6473, 7
        %v6475 = vsub.s32 0, %v6474
        %v6476 = vrot.slane %v5926, %v6475
        %v6477 = vlaneseq
        %v6478 = vshrl.u32 %v6477, 7
        %v6479 = vsub.s32 0, %v6478
        %v6480 = vrot.slane %v5909, %v6479
        %v6481 = vlaneseq
        %v6482 = vshrl.u32 %v6481, 7
        %v6483 = vsub.s32 0, %v6482
        %v6484 = vrot.slane %v5923, %v6483
        %v6485 = vlaneseq
        %v6486 = vshrl.u32 %v6485, 7
        %v6487 = vsub.s32 0, %v6486
        %v6488 = vrot.slane %v5925, %v6487
        %v6489 = vlaneseq
        %v6490 = vshrl.u32 %v6489, 7
        %v6491 = vsub.s32 0, %v6490
        %v6492 = vrot.slane %v5927, %v6491
        %v6493 = vlaneseq
        %v6494 = vshrl.u32 %v6493, 7
        %v6495 = vsub.s32 0, %v6494
        %v6496 = vrot.slane %v5951, %v6495
        %v6497 = vlaneseq
        %v6498 = vshrl.u32 %v6497, 7
        %v6499 = vsub.s32 0, %v6498
        %v6500 = vrot.slane %v5965, %v6499
        %v6501 = vlaneseq
        %v6502 = vshrl.u32 %v6501, 7
        %v6503 = vsub.s32 0, %v6502
        %v6504 = vrot.slane %v5973, %v6503
        %v6505 = vlaneseq
        %v6506 = vshrl.u32 %v6505, 7
        %v6507 = vsub.s32 0, %v6506
        %v6508 = vrot.slane %v5975, %v6507
        %v6509 = vlaneseq
        %v6510 = vshrl.u32 %v6509, 7
        %v6511 = vsub.s32 0, %v6510
        %v6512 = vrot.slane %v5958, %v6511
        %v6513 = vlaneseq
        %v6514 = vshrl.u32 %v6513, 7
        %v6515 = vsub.s32 0, %v6514
        %v6516 = vrot.slane %v5972, %v6515
        %v6517 = vlaneseq
        %v6518 = vshrl.u32 %v6517, 7
        %v6519 = vsub.s32 0, %v6518
        %v6520 = vrot.slane %v5974, %v6519
        %v6521 = vlaneseq
        %v6522 = vshrl.u32 %v6521, 7
        %v6523 = vsub.s32 0, %v6522
        %v6524 = vrot.slane %v5976, %v6523
        %v6525 = vlaneseq
        %v6526 = vshrl.u32 %v6525, 7
        %v6527 = vsub.s32 0, %v6526
        %v6528 = vrot.slane %v6000, %v6527
        %v6529 = vlaneseq
        %v6530 = vshrl.u32 %v6529, 7
        %v6531 = vsub.s32 0, %v6530
        %v6532 = vrot.slane %v6014, %v6531
        %v6533 = vlaneseq
        %v6534 = vshrl.u32 %v6533, 7
        %v6535 = vsub.s32 0, %v6534
        %v6536 = vrot.slane %v6022, %v6535
        %v6537 = vlaneseq
        %v6538 = vshrl.u32 %v6537, 7
        %v6539 = vsub.s32 0, %v6538
        %v6540 = vrot.slane %v6024, %v6539
        %v6541 = vlaneseq
        %v6542 = vshrl.u32 %v6541, 7
        %v6543 = vsub.s32 0, %v6542
        %v6544 = vrot.slane %v6007, %v6543
        %v6545 = vlaneseq
        %v6546 = vshrl.u32 %v6545, 7
        %v6547 = vsub.s32 0, %v6546
        %v6548 = vrot.slane %v6021, %v6547
        %v6549 = vlaneseq
        %v6550 = vshrl.u32 %v6549, 7
        %v6551 = vsub.s32 0, %v6550
        %v6552 = vrot.slane %v6023, %v6551
        %v6553 = vlaneseq
        %v6554 = vshrl.u32 %v6553, 7
        %v6555 = vsub.s32 0, %v6554
        %v6556 = vrot.slane %v6025, %v6555
        %v6557 = vlaneseq
        %v6558 = vshrl.u32 %v6557, 7
        %v6559 = vsub.s32 0, %v6558
        %v6560 = vrot.slane %v6049, %v6559
        %v6561 = vlaneseq
        %v6562 = vshrl.u32 %v6561, 7
        %v6563 = vsub.s32 0, %v6562
        %v6564 = vrot.slane %v6063, %v6563
        %v6565 = vlaneseq
        %v6566 = vshrl.u32 %v6565, 7
        %v6567 = vsub.s32 0, %v6566
        %v6568 = vrot.slane %v6071, %v6567
        %v6569 = vlaneseq
        %v6570 = vshrl.u32 %v6569, 7
        %v6571 = vsub.s32 0, %v6570
        %v6572 = vrot.slane %v6073, %v6571
        %v6573 = vlaneseq
        %v6574 = vshrl.u32 %v6573, 7
        %v6575 = vsub.s32 0, %v6574
        %v6576 = vrot.slane %v6056, %v6575
        %v6577 = vlaneseq
        %v6578 = vshrl.u32 %v6577, 7
        %v6579 = vsub.s32 0, %v6578
        %v6580 = vrot.slane %v6070, %v6579
        %v6581 = vlaneseq
        %v6582 = vshrl.u32 %v6581, 7
        %v6583 = vsub.s32 0, %v6582
        %v6584 = vrot.slane %v6072, %v6583
        %v6585 = vlaneseq
        %v6586 = vshrl.u32 %v6585, 7
        %v6587 = vsub.s32 0, %v6586
        %v6588 = vrot.slane %v6074, %v6587
        %v6717 = vmul.f32 %v6080, %v6076
        %v6718 = vmul.f32 %v6084, %v6076
        %v6719 = vmul.f32 %v6088, %v6076
        %v6720 = vmul.f32 %v6092, %v6076
        %v6721 = vmul.f32 %v6096, %v6076
        %v6722 = vmul.f32 %v6100, %v6076
        %v6723 = vmul.f32 %v6104, %v6076
        %v6724 = vmul.f32 %v6108, %v6076
        %v6725 = vmul.f32 %v6112, %v6076
        %v6726 = vmul.f32 %v6116, %v6076
        %v6727 = vmul.f32 %v6120, %v6076
        %v6728 = vmul.f32 %v6124, %v6076
        %v6729 = vmul.f32 %v6128, %v6076
        %v6730 = vmul.f32 %v6132, %v6076
        %v6731 = vmul.f32 %v6136, %v6076
        %v6732 = vmul.f32 %v6140, %v6076
        %v6733 = vmul.f32 %v6144, %v6076
        %v6734 = vmul.f32 %v6148, %v6076
        %v6735 = vmul.f32 %v6152, %v6076
        %v6736 = vmul.f32 %v6156, %v6076
        %v6737 = vmul.f32 %v6160, %v6076
        %v6738 = vmul.f32 %v6164, %v6076
        %v6739 = vmul.f32 %v6168, %v6076
        %v6740 = vmul.f32 %v6172, %v6076
        %v6741 = vmul.f32 %v6176, %v6076
        %v6742 = vmul.f32 %v6180, %v6076
        %v6743 = vmul.f32 %v6184, %v6076
        %v6744 = vmul.f32 %v6188, %v6076
        %v6745 = vmul.f32 %v6192, %v6076
        %v6746 = vmul.f32 %v6196, %v6076
        %v6747 = vmul.f32 %v6200, %v6076
        %v6748 = vmul.f32 %v6204, %v6076
        %v6749 = vmul.f32 %v6208, %v6076
        %v6750 = vmul.f32 %v6212, %v6076
        %v6751 = vmul.f32 %v6216, %v6076
        %v6752 = vmul.f32 %v6220, %v6076
        %v6753 = vmul.f32 %v6224, %v6076
        %v6754 = vmul.f32 %v6228, %v6076
        %v6755 = vmul.f32 %v6232, %v6076
        %v6756 = vmul.f32 %v6236, %v6076
        %v6757 = vmul.f32 %v6240, %v6076
        %v6758 = vmul.f32 %v6244, %v6076
        %v6759 = vmul.f32 %v6248, %v6076
        %v6760 = vmul.f32 %v6252, %v6076
        %v6761 = vmul.f32 %v6256, %v6076
        %v6762 = vmul.f32 %v6260, %v6076
        %v6763 = vmul.f32 %v6264, %v6076
        %v6764 = vmul.f32 %v6268, %v6076
        %v6765 = vmul.f32 %v6272, %v6076
        %v6766 = vmul.f32 %v6276, %v6076
        %v6767 = vmul.f32 %v6280, %v6076
        %v6768 = vmul.f32 %v6284, %v6076
        %v6769 = vmul.f32 %v6288, %v6076
        %v6770 = vmul.f32 %v6292, %v6076
        %v6771 = vmul.f32 %v6296, %v6076
        %v6772 = vmul.f32 %v6300, %v6076
        %v6773 = vmul.f32 %v6304, %v6076
        %v6774 = vmul.f32 %v6308, %v6076
        %v6775 = vmul.f32 %v6312, %v6076
        %v6776 = vmul.f32 %v6316, %v6076
        %v6777 = vmul.f32 %v6320, %v6076
        %v6778 = vmul.f32 %v6324, %v6076
        %v6779 = vmul.f32 %v6328, %v6076
        %v6780 = vmul.f32 %v6332, %v6076
        %v6781 = vmul.f32 %v6336, %v6076
        %v6782 = vmul.f32 %v6340, %v6076
        %v6783 = vmul.f32 %v6344, %v6076
        %v6784 = vmul.f32 %v6348, %v6076
        %v6785 = vmul.f32 %v6352, %v6076
        %v6786 = vmul.f32 %v6356, %v6076
        %v6787 = vmul.f32 %v6360, %v6076
        %v6788 = vmul.f32 %v6364, %v6076
        %v6789 = vmul.f32 %v6368, %v6076
        %v6790 = vmul.f32 %v6372, %v6076
        %v6791 = vmul.f32 %v6376, %v6076
        %v6792 = vmul.f32 %v6380, %v6076
        %v6793 = vmul.f32 %v6384, %v6076
        %v6794 = vmul.f32 %v6388, %v6076
        %v6795 = vmul.f32 %v6392, %v6076
        %v6796 = vmul.f32 %v6396, %v6076
        %v6797 = vmul.f32 %v6400, %v6076
        %v6798 = vmul.f32 %v6404, %v6076
        %v6799 = vmul.f32 %v6408, %v6076
        %v6800 = vmul.f32 %v6412, %v6076
        %v6801 = vmul.f32 %v6416, %v6076
        %v6802 = vmul.f32 %v6420, %v6076
        %v6803 = vmul.f32 %v6424, %v6076
        %v6804 = vmul.f32 %v6428, %v6076
        %v6805 = vmul.f32 %v6432, %v6076
        %v6806 = vmul.f32 %v6436, %v6076
        %v6807 = vmul.f32 %v6440, %v6076
        %v6808 = vmul.f32 %v6444, %v6076
        %v6809 = vmul.f32 %v6448, %v6076
        %v6810 = vmul.f32 %v6452, %v6076
        %v6811 = vmul.f32 %v6456, %v6076
        %v6812 = vmul.f32 %v6460, %v6076
        %v6813 = vmul.f32 %v6464, %v6076
        %v6814 = vmul.f32 %v6468, %v6076
        %v6815 = vmul.f32 %v6472, %v6076
        %v6816 = vmul.f32 %v6476, %v6076
        %v6817 = vmul.f32 %v6480, %v6076
        %v6818 = vmul.f32 %v6484, %v6076
        %v6819 = vmul.f32 %v6488, %v6076
        %v6820 = vmul.f32 %v6492, %v6076
        %v6821 = vmul.f32 %v6496, %v6076
        %v6822 = vmul.f32 %v6500, %v6076
        %v6823 = vmul.f32 %v6504, %v6076
        %v6824 = vmul.f32 %v6508, %v6076
        %v6825 = vmul.f32 %v6512, %v6076
        %v6826 = vmul.f32 %v6516, %v6076
        %v6827 = vmul.f32 %v6520, %v6076
        %v6828 = vmul.f32 %v6524, %v6076
        %v6829 = vmul.f32 %v6528, %v6076
        %v6830 = vmul.f32 %v6532, %v6076
        %v6831 = vmul.f32 %v6536, %v6076
        %v6832 = vmul.f32 %v6540, %v6076
        %v6833 = vmul.f32 %v6544, %v6076
        %v6834 = vmul.f32 %v6548, %v6076
        %v6835 = vmul.f32 %v6552, %v6076
        %v6836 = vmul.f32 %v6556, %v6076
        %v6837 = vmul.f32 %v6560, %v6076
        %v6838 = vmul.f32 %v6564, %v6076
        %v6839 = vmul.f32 %v6568, %v6076
        %v6840 = vmul.f32 %v6572, %v6076
        %v6841 = vmul.f32 %v6576, %v6076
        %v6842 = vmul.f32 %v6580, %v6076
        %v6843 = vmul.f32 %v6584, %v6076
        %v6844 = vmul.f32 %v6588, %v6076
        %v6845 = vadd.f32 %v4758, %v6717
        %v6846 = vadd.f32 %v4759, %v6718
        %v6847 = vadd.f32 %v4760, %v6719
        %v6848 = vadd.f32 %v4761, %v6720
        %v6849 = vadd.f32 %v4762, %v6721
        %v6850 = vadd.f32 %v4763, %v6722
        %v6851 = vadd.f32 %v4764, %v6723
        %v6852 = vadd.f32 %v4765, %v6724
        %v6853 = vadd.f32 %v4766, %v6725
        %v6854 = vadd.f32 %v4767, %v6726
        %v6855 = vadd.f32 %v4768, %v6727
        %v6856 = vadd.f32 %v4769, %v6728
        %v6857 = vadd.f32 %v4770, %v6729
        %v6858 = vadd.f32 %v4771, %v6730
        %v6859 = vadd.f32 %v4772, %v6731
        %v6860 = vadd.f32 %v4773, %v6732
        %v6861 = vadd.f32 %v4774, %v6733
        %v6862 = vadd.f32 %v4775, %v6734
        %v6863 = vadd.f32 %v4776, %v6735
        %v6864 = vadd.f32 %v4777, %v6736
        %v6865 = vadd.f32 %v4778, %v6737
        %v6866 = vadd.f32 %v4779, %v6738
        %v6867 = vadd.f32 %v4780, %v6739
        %v6868 = vadd.f32 %v4781, %v6740
        %v6869 = vadd.f32 %v4782, %v6741
        %v6870 = vadd.f32 %v4783, %v6742
        %v6871 = vadd.f32 %v4784, %v6743
        %v6872 = vadd.f32 %v4785, %v6744
        %v6873 = vadd.f32 %v4786, %v6745
        %v6874 = vadd.f32 %v4787, %v6746
        %v6875 = vadd.f32 %v4788, %v6747
        %v6876 = vadd.f32 %v4789, %v6748
        %v6877 = vadd.f32 %v4790, %v6749
        %v6878 = vadd.f32 %v4791, %v6750
        %v6879 = vadd.f32 %v4792, %v6751
        %v6880 = vadd.f32 %v4793, %v6752
        %v6881 = vadd.f32 %v4794, %v6753
        %v6882 = vadd.f32 %v4795, %v6754
        %v6883 = vadd.f32 %v4796, %v6755
        %v6884 = vadd.f32 %v4797, %v6756
        %v6885 = vadd.f32 %v4798, %v6757
        %v6886 = vadd.f32 %v4799, %v6758
        %v6887 = vadd.f32 %v4800, %v6759
        %v6888 = vadd.f32 %v4801, %v6760
        %v6889 = vadd.f32 %v4802, %v6761
        %v6890 = vadd.f32 %v4803, %v6762
        %v6891 = vadd.f32 %v4804, %v6763
        %v6892 = vadd.f32 %v4805, %v6764
        %v6893 = vadd.f32 %v4806, %v6765
        %v6894 = vadd.f32 %v4807, %v6766
        %v6895 = vadd.f32 %v4808, %v6767
        %v6896 = vadd.f32 %v4809, %v6768
        %v6897 = vadd.f32 %v4810, %v6769
        %v6898 = vadd.f32 %v4811, %v6770
        %v6899 = vadd.f32 %v4812, %v6771
        %v6900 = vadd.f32 %v4813, %v6772
        %v6901 = vadd.f32 %v4814, %v6773
        %v6902 = vadd.f32 %v4815, %v6774
        %v6903 = vadd.f32 %v4816, %v6775
        %v6904 = vadd.f32 %v4817, %v6776
        %v6905 = vadd.f32 %v4818, %v6777
        %v6906 = vadd.f32 %v4819, %v6778
        %v6907 = vadd.f32 %v4820, %v6779
        %v6908 = vadd.f32 %v4821, %v6780
        %v6909 = vadd.f32 %v4822, %v6781
        %v6910 = vadd.f32 %v4823, %v6782
        %v6911 = vadd.f32 %v4824, %v6783
        %v6912 = vadd.f32 %v4825, %v6784
        %v6913 = vadd.f32 %v4826, %v6785
        %v6914 = vadd.f32 %v4827, %v6786
        %v6915 = vadd.f32 %v4828, %v6787
        %v6916 = vadd.f32 %v4829, %v6788
        %v6917 = vadd.f32 %v4830, %v6789
        %v6918 = vadd.f32 %v4831, %v6790
        %v6919 = vadd.f32 %v4832, %v6791
        %v6920 = vadd.f32 %v4833, %v6792
        %v6921 = vadd.f32 %v4834, %v6793
        %v6922 = vadd.f32 %v4835, %v6794
        %v6923 = vadd.f32 %v4836, %v6795
        %v6924 = vadd.f32 %v4837, %v6796
        %v6925 = vadd.f32 %v4838, %v6797
        %v6926 = vadd.f32 %v4839, %v6798
        %v6927 = vadd.f32 %v4840, %v6799
        %v6928 = vadd.f32 %v4841, %v6800
        %v6929 = vadd.f32 %v4842, %v6801
        %v6930 = vadd.f32 %v4843, %v6802
        %v6931 = vadd.f32 %v4844, %v6803
        %v6932 = vadd.f32 %v4845, %v6804
        %v6933 = vadd.f32 %v4846, %v6805
        %v6934 = vadd.f32 %v4847, %v6806
        %v6935 = vadd.f32 %v4848, %v6807
        %v6936 = vadd.f32 %v4849, %v6808
        %v6937 = vadd.f32 %v4850, %v6809
        %v6938 = vadd.f32 %v4851, %v6810
        %v6939 = vadd.f32 %v4852, %v6811
        %v6940 = vadd.f32 %v4853, %v6812
        %v6941 = vadd.f32 %v4854, %v6813
        %v6942 = vadd.f32 %v4855, %v6814
        %v6943 = vadd.f32 %v4856, %v6815
        %v6944 = vadd.f32 %v4857, %v6816
        %v6945 = vadd.f32 %v4858, %v6817
        %v6946 = vadd.f32 %v4859, %v6818
        %v6947 = vadd.f32 %v4860, %v6819
        %v6948 = vadd.f32 %v4861, %v6820
        %v6949 = vadd.f32 %v4862, %v6821
        %v6950 = vadd.f32 %v4863, %v6822
        %v6951 = vadd.f32 %v4864, %v6823
        %v6952 = vadd.f32 %v4865, %v6824
        %v6953 = vadd.f32 %v4866, %v6825
        %v6954 = vadd.f32 %v4867, %v6826
        %v6955 = vadd.f32 %v4868, %v6827
        %v6956 = vadd.f32 %v4869, %v6828
        %v6957 = vadd.f32 %v4870, %v6829
        %v6958 = vadd.f32 %v4871, %v6830
        %v6959 = vadd.f32 %v4872, %v6831
        %v6960 = vadd.f32 %v4873, %v6832
        %v6961 = vadd.f32 %v4874, %v6833
        %v6962 = vadd.f32 %v4875, %v6834
        %v6963 = vadd.f32 %v4876, %v6835
        %v6964 = vadd.f32 %v4877, %v6836
        %v6965 = vadd.f32 %v4878, %v6837
        %v6966 = vadd.f32 %v4879, %v6838
        %v6967 = vadd.f32 %v4880, %v6839
        %v6968 = vadd.f32 %v4881, %v6840
        %v6969 = vadd.f32 %v4882, %v6841
        %v6970 = vadd.f32 %v4883, %v6842
        %v6971 = vadd.f32 %v4884, %v6843
        %v6972 = vadd.f32 %v4885, %v6844
        %6973 = vset.pattern.permute.xlu0 3
        %6974 = vperm.xlu0 %6973, %v663
        %v6975 = vpop.permute.xlu0 %6974
        %6977 = vset.pattern.permute.xlu0 3
        %6978 = vperm.xlu0 %6977, %v664
        %v6979 = vpop.permute.xlu0 %6978
        %6981 = vset.pattern.permute.xlu0 3
        %6982 = vperm.xlu0 %6981, %v665
        %v6983 = vpop.permute.xlu0 %6982
        %6985 = vset.pattern.permute.xlu0 3
        %6986 = vperm.xlu0 %6985, %v666
        %v6987 = vpop.permute.xlu0 %6986
        %6989 = vset.pattern.permute.xlu0 3
        %6990 = vperm.xlu0 %6989, %v667
        %v6991 = vpop.permute.xlu0 %6990
        %6993 = vset.pattern.permute.xlu0 3
        %6994 = vperm.xlu0 %6993, %v668
        %v6995 = vpop.permute.xlu0 %6994
        %6997 = vset.pattern.permute.xlu0 3
        %6998 = vperm.xlu0 %6997, %v669
        %v6999 = vpop.permute.xlu0 %6998
        %7001 = vset.pattern.permute.xlu0 3
        %7002 = vperm.xlu0 %7001, %v670
        %v7003 = vpop.permute.xlu0 %7002
        %7005 = vset.pattern.permute.xlu0 3
        %7006 = vperm.xlu0 %7005, %v671
        %v7007 = vpop.permute.xlu0 %7006
        %7009 = vset.pattern.permute.xlu0 3
        %7010 = vperm.xlu0 %7009, %v672
        %v7011 = vpop.permute.xlu0 %7010
        %7013 = vset.pattern.permute.xlu0 3
        %7014 = vperm.xlu0 %7013, %v673
        %v7015 = vpop.permute.xlu0 %7014
        %7017 = vset.pattern.permute.xlu0 3
        %7018 = vperm.xlu0 %7017, %v674
        %v7019 = vpop.permute.xlu0 %7018
        %7021 = vset.pattern.permute.xlu0 3
        %7022 = vperm.xlu0 %7021, %v675
        %v7023 = vpop.permute.xlu0 %7022
        %7025 = vset.pattern.permute.xlu0 3
        %7026 = vperm.xlu0 %7025, %v676
        %v7027 = vpop.permute.xlu0 %7026
        %7029 = vset.pattern.permute.xlu0 3
        %7030 = vperm.xlu0 %7029, %v677
        %v7031 = vpop.permute.xlu0 %7030
        %7033 = vset.pattern.permute.xlu0 3
        %7034 = vperm.xlu0 %7033, %v678
        %v7035 = vpop.permute.xlu0 %7034
        %v7037 = vmul.f32 %v6975, %v768
        %v7038 = vmul.f32 %v6979, %v768
        %v7039 = vmul.f32 %v6983, %v768
        %v7040 = vmul.f32 %v6987, %v768
        %v7041 = vmul.f32 %v6991, %v768
        %v7042 = vmul.f32 %v6995, %v768
        %v7043 = vmul.f32 %v6999, %v768
        %v7044 = vmul.f32 %v7003, %v768
        %v7045 = vmul.f32 %v7007, %v768
        %v7046 = vmul.f32 %v7011, %v768
        %v7047 = vmul.f32 %v7015, %v768
        %v7048 = vmul.f32 %v7019, %v768
        %v7049 = vmul.f32 %v7023, %v768
        %v7050 = vmul.f32 %v7027, %v768
        %v7051 = vmul.f32 %v7031, %v768
        %v7052 = vmul.f32 %v7035, %v768
        %v7053 = vlaneseq
        %v7054 = vshrl.u32 %v7053, 7
        %v7055 = vsub.s32 3, %v7054
        %v7056 = vrot.slane %v679, %v7055
        %v7057 = vadd.f32 %v7037, %v7056
        %v7058 = vadd.f32 %v7038, %v7056
        %v7059 = vadd.f32 %v7039, %v7056
        %v7060 = vadd.f32 %v7040, %v7056
        %v7061 = vadd.f32 %v7041, %v7056
        %v7062 = vadd.f32 %v7042, %v7056
        %v7063 = vadd.f32 %v7043, %v7056
        %v7064 = vadd.f32 %v7044, %v7056
        %v7065 = vadd.f32 %v7045, %v7056
        %v7066 = vadd.f32 %v7046, %v7056
        %v7067 = vadd.f32 %v7047, %v7056
        %v7068 = vadd.f32 %v7048, %v7056
        %v7069 = vadd.f32 %v7049, %v7056
        %v7070 = vadd.f32 %v7050, %v7056
        %v7071 = vadd.f32 %v7051, %v7056
        %v7072 = vadd.f32 %v7052, %v7056
        %vm7073 = vcmp.ge.f32.partialorder %v7057, 0.0
        %vm7074 = vcmp.ge.f32.partialorder %v7058, 0.0
        %vm7075 = vcmp.ge.f32.partialorder %v7059, 0.0
        %vm7076 = vcmp.ge.f32.partialorder %v7060, 0.0
        %vm7077 = vcmp.ge.f32.partialorder %v7061, 0.0
        %vm7078 = vcmp.ge.f32.partialorder %v7062, 0.0
        %vm7079 = vcmp.ge.f32.partialorder %v7063, 0.0
        %vm7080 = vcmp.ge.f32.partialorder %v7064, 0.0
        %vm7081 = vcmp.ge.f32.partialorder %v7065, 0.0
        %vm7082 = vcmp.ge.f32.partialorder %v7066, 0.0
        %vm7083 = vcmp.ge.f32.partialorder %v7067, 0.0
        %vm7084 = vcmp.ge.f32.partialorder %v7068, 0.0
        %vm7085 = vcmp.ge.f32.partialorder %v7069, 0.0
        %vm7086 = vcmp.ge.f32.partialorder %v7070, 0.0
        %vm7087 = vcmp.ge.f32.partialorder %v7071, 0.0
        %vm7088 = vcmp.ge.f32.partialorder %v7072, 0.0
        %v7089 = vmul.f32 %v7057, 0.2
        %v7090 = vmul.f32 %v7058, 0.2
        %v7091 = vmul.f32 %v7059, 0.2
        %v7092 = vmul.f32 %v7060, 0.2
        %v7093 = vmul.f32 %v7061, 0.2
        %v7094 = vmul.f32 %v7062, 0.2
        %v7095 = vmul.f32 %v7063, 0.2
        %v7096 = vmul.f32 %v7064, 0.2
        %v7097 = vmul.f32 %v7065, 0.2
        %v7098 = vmul.f32 %v7066, 0.2
        %v7099 = vmul.f32 %v7067, 0.2
        %v7100 = vmul.f32 %v7068, 0.2
        %v7101 = vmul.f32 %v7069, 0.2
        %v7102 = vmul.f32 %v7070, 0.2
        %v7103 = vmul.f32 %v7071, 0.2
        %v7104 = vmul.f32 %v7072, 0.2
        %v7105 = vsel %vm7073, %v7057, %v7089
        %v7106 = vsel %vm7074, %v7058, %v7090
        %v7107 = vsel %vm7075, %v7059, %v7091
        %v7108 = vsel %vm7076, %v7060, %v7092
        %v7109 = vsel %vm7077, %v7061, %v7093
        %v7110 = vsel %vm7078, %v7062, %v7094
        %v7111 = vsel %vm7079, %v7063, %v7095
        %v7112 = vsel %vm7080, %v7064, %v7096
        %v7113 = vsel %vm7081, %v7065, %v7097
        %v7114 = vsel %vm7082, %v7066, %v7098
        %v7115 = vsel %vm7083, %v7067, %v7099
        %v7116 = vsel %vm7084, %v7068, %v7100
        %v7117 = vsel %vm7085, %v7069, %v7101
        %v7118 = vsel %vm7086, %v7070, %v7102
        %v7119 = vsel %vm7087, %v7071, %v7103
        %v7120 = vsel %vm7088, %v7072, %v7104
        %v7122 = vsel %vm860, %v7105, 0
        %v7125 = vsel %vm860, %v7106, 0
        %v7128 = vsel %vm860, %v7107, 0
        %v7131 = vsel %vm860, %v7108, 0
        %v7134 = vsel %vm860, %v7109, 0
        %v7137 = vsel %vm860, %v7110, 0
        %v7140 = vsel %vm860, %v7111, 0
        %v7143 = vsel %vm860, %v7112, 0
        %v7146 = vsel %vm860, %v7113, 0
        %v7149 = vsel %vm860, %v7114, 0
        %v7152 = vsel %vm860, %v7115, 0
        %v7155 = vsel %vm860, %v7116, 0
        %v7158 = vsel %vm860, %v7117, 0
        %v7161 = vsel %vm860, %v7118, 0
        %v7164 = vsel %vm860, %v7119, 0
        %v7167 = vsel %vm860, %v7120, 0
        %7169 = vmatprep.subr.mxu0 0.0
        %7170 = vmatpush1.msra.mxu0 %v681
        %7171 = vmatprep.subr.mxu0 0.0
        %7172 = vmatpush1.msra.mxu0 0.0
        %7173 = vmatprep.subr.mxu0 0.0
        %7174 = vmatpush1.msra.mxu0 0.0
        %7175 = vmatprep.subr.mxu0 0.0
        %7176 = vmatpush1.msra.mxu0 0.0
        %7177 = vmatprep.subr.mxu0 0.0
        %7178 = vmatpush1.msra.mxu0 0.0
        %7179 = vmatprep.subr.mxu0 0.0
        %7180 = vmatpush1.msra.mxu0 0.0
        %7181 = vmatprep.subr.mxu0 0.0
        %7182 = vmatpush1.msra.mxu0 0.0
        %7183 = vmatprep.subr.mxu0 0.0
        %7184 = vmatpush1.msra.mxu0 0.0
        %7185 = vmatprep.subr.mxu0 0.0
        %7186 = vmatpush1.msra.mxu0 0.0
        %7187 = vmatprep.subr.mxu0 0.0
        %7188 = vmatpush1.msra.mxu0 0.0
        %7189 = vmatprep.subr.mxu0 0.0
        %7190 = vmatpush1.msra.mxu0 0.0
        %7191 = vmatprep.subr.mxu0 0.0
        %7192 = vmatpush1.msra.mxu0 0.0
        %7193 = vmatprep.subr.mxu0 0.0
        %7194 = vmatpush1.msra.mxu0 0.0
        %7195 = vmatprep.subr.mxu0 0.0
        %7196 = vmatpush1.msra.mxu0 0.0
        %7197 = vmatprep.subr.mxu0 0.0
        %7198 = vmatpush1.msra.mxu0 0.0
        %7199 = vmatprep.subr.mxu0 0.0
        %7200 = vmatpush1.msra.mxu0 0.0
        %7201 = vmatprep.subr.mxu0 0.0
        %7202 = vmatpush1.msra.mxu0 0.0
        %7203 = vmatprep.subr.mxu0 0.0
        %7204 = vmatpush1.msra.mxu0 0.0
        %7205 = vmatprep.subr.mxu0 0.0
        %7206 = vmatpush1.msra.mxu0 0.0
        %7207 = vmatprep.subr.mxu0 0.0
        %7208 = vmatpush1.msra.mxu0 0.0
        %7209 = vmatprep.subr.mxu0 0.0
        %7210 = vmatpush1.msra.mxu0 0.0
        %7211 = vmatprep.subr.mxu0 0.0
        %7212 = vmatpush1.msra.mxu0 0.0
        %7213 = vmatprep.subr.mxu0 0.0
        %7214 = vmatpush1.msra.mxu0 0.0
        %7215 = vmatprep.subr.mxu0 0.0
        %7216 = vmatpush1.msra.mxu0 0.0
        %7217 = vmatprep.subr.mxu0 0.0
        %7218 = vmatpush1.msra.mxu0 0.0
        %7219 = vmatprep.subr.mxu0 0.0
        %7220 = vmatpush1.msra.mxu0 0.0
        %7221 = vmatprep.subr.mxu0 0.0
        %7222 = vmatpush1.msra.mxu0 0.0
        %7223 = vmatprep.subr.mxu0 0.0
        %7224 = vmatpush1.msra.mxu0 0.0
        %7225 = vmatprep.subr.mxu0 0.0
        %7226 = vmatpush1.msra.mxu0 0.0
        %7227 = vmatprep.subr.mxu0 0.0
        %7228 = vmatpush1.msra.mxu0 0.0
        %7229 = vmatprep.subr.mxu0 0.0
        %7230 = vmatpush1.msra.mxu0 0.0
        %7231 = vmatprep.subr.mxu0 0.0
        %7232 = vmatpush1.msra.mxu0 0.0
        %7233 = vmatprep.mubr.f32.mxu0 0.0
        %7234 = vmatmul.mubr.f32.gmra.mrb[0].mxu0 %v7122
        %v7235 = vpop.f32.mrb[0].mxu0
        %v7236 = vadd.f32 %v858, %v7235
        %v7237 = vpop.f32.mrb[0].mxu0
        %7238 = vmatprep.mubr.f32.mxu0 0.0
        %7239 = vmatmul.mubr.f32.gmra.mrb[0].mxu0 %v7125
        %v7240 = vpop.f32.mrb[0].mxu0
        %v7241 = vadd.f32 %v858, %v7240
        %v7242 = vpop.f32.mrb[0].mxu0
        %7243 = vmatprep.mubr.f32.mxu0 0.0
        %7244 = vmatmul.mubr.f32.gmra.mrb[0].mxu0 %v7128
        %v7245 = vpop.f32.mrb[0].mxu0
        %v7246 = vadd.f32 %v858, %v7245
        %v7247 = vpop.f32.mrb[0].mxu0
        %7248 = vmatprep.mubr.f32.mxu0 0.0
        %7249 = vmatmul.mubr.f32.gmra.mrb[0].mxu0 %v7131
        %v7250 = vpop.f32.mrb[0].mxu0
        %v7251 = vadd.f32 %v858, %v7250
        %v7252 = vpop.f32.mrb[0].mxu0
        %7253 = vmatprep.mubr.f32.mxu0 0.0
        %7254 = vmatmul.mubr.f32.gmra.mrb[0].mxu0 %v7134
        %v7255 = vpop.f32.mrb[0].mxu0
        %v7256 = vadd.f32 %v858, %v7255
        %v7257 = vpop.f32.mrb[0].mxu0
        %7258 = vmatprep.mubr.f32.mxu0 0.0
        %7259 = vmatmul.mubr.f32.gmra.mrb[0].mxu0 %v7137
        %v7260 = vpop.f32.mrb[0].mxu0
        %v7261 = vadd.f32 %v858, %v7260
        %v7262 = vpop.f32.mrb[0].mxu0
        %7263 = vmatprep.mubr.f32.mxu0 0.0
        %7264 = vmatmul.mubr.f32.gmra.mrb[0].mxu0 %v7140
        %v7265 = vpop.f32.mrb[0].mxu0
        %v7266 = vadd.f32 %v858, %v7265
        %v7267 = vpop.f32.mrb[0].mxu0
        %7268 = vmatprep.mubr.f32.mxu0 0.0
        %7269 = vmatmul.mubr.f32.gmra.mrb[0].mxu0 %v7143
        %v7270 = vpop.f32.mrb[0].mxu0
        %v7271 = vadd.f32 %v858, %v7270
        %v7272 = vpop.f32.mrb[0].mxu0
        %7273 = vmatprep.mubr.f32.mxu0 0.0
        %7274 = vmatmul.mubr.f32.gmra.mrb[0].mxu0 %v7146
        %v7275 = vpop.f32.mrb[0].mxu0
        %v7276 = vadd.f32 %v858, %v7275
        %v7277 = vpop.f32.mrb[0].mxu0
        %7278 = vmatprep.mubr.f32.mxu0 0.0
        %7279 = vmatmul.mubr.f32.gmra.mrb[0].mxu0 %v7149
        %v7280 = vpop.f32.mrb[0].mxu0
        %v7281 = vadd.f32 %v858, %v7280
        %v7282 = vpop.f32.mrb[0].mxu0
        %7283 = vmatprep.mubr.f32.mxu0 0.0
        %7284 = vmatmul.mubr.f32.gmra.mrb[0].mxu0 %v7152
        %v7285 = vpop.f32.mrb[0].mxu0
        %v7286 = vadd.f32 %v858, %v7285
        %v7287 = vpop.f32.mrb[0].mxu0
        %7288 = vmatprep.mubr.f32.mxu0 0.0
        %7289 = vmatmul.mubr.f32.gmra.mrb[0].mxu0 %v7155
        %v7290 = vpop.f32.mrb[0].mxu0
        %v7291 = vadd.f32 %v858, %v7290
        %v7292 = vpop.f32.mrb[0].mxu0
        %7293 = vmatprep.mubr.f32.mxu0 0.0
        %7294 = vmatmul.mubr.f32.gmra.mrb[0].mxu0 %v7158
        %v7295 = vpop.f32.mrb[0].mxu0
        %v7296 = vadd.f32 %v858, %v7295
        %v7297 = vpop.f32.mrb[0].mxu0
        %7298 = vmatprep.mubr.f32.mxu0 0.0
        %7299 = vmatmul.mubr.f32.gmra.mrb[0].mxu0 %v7161
        %v7300 = vpop.f32.mrb[0].mxu0
        %v7301 = vadd.f32 %v858, %v7300
        %v7302 = vpop.f32.mrb[0].mxu0
        %7303 = vmatprep.mubr.f32.mxu0 0.0
        %7304 = vmatmul.mubr.f32.gmra.mrb[0].mxu0 %v7164
        %v7305 = vpop.f32.mrb[0].mxu0
        %v7306 = vadd.f32 %v858, %v7305
        %v7307 = vpop.f32.mrb[0].mxu0
        %7308 = vmatprep.mubr.f32.mxu0 0.0
        %7309 = vmatmul.mubr.f32.gmra.mrb[0].mxu0 %v7167
        %v7310 = vpop.f32.mrb[0].mxu0
        %v7311 = vadd.f32 %v858, %v7310
        %v7312 = vpop.f32.mrb[0].mxu0
        %7313 = vdwg.mxu0
        %vm7314 = vcmp.ge.f32.partialorder %v7236, 0.0
        %vm7315 = vcmp.ge.f32.partialorder %v7241, 0.0
        %vm7316 = vcmp.ge.f32.partialorder %v7246, 0.0
        %vm7317 = vcmp.ge.f32.partialorder %v7251, 0.0
        %vm7318 = vcmp.ge.f32.partialorder %v7256, 0.0
        %vm7319 = vcmp.ge.f32.partialorder %v7261, 0.0
        %vm7320 = vcmp.ge.f32.partialorder %v7266, 0.0
        %vm7321 = vcmp.ge.f32.partialorder %v7271, 0.0
        %vm7322 = vcmp.ge.f32.partialorder %v7276, 0.0
        %vm7323 = vcmp.ge.f32.partialorder %v7281, 0.0
        %vm7324 = vcmp.ge.f32.partialorder %v7286, 0.0
        %vm7325 = vcmp.ge.f32.partialorder %v7291, 0.0
        %vm7326 = vcmp.ge.f32.partialorder %v7296, 0.0
        %vm7327 = vcmp.ge.f32.partialorder %v7301, 0.0
        %vm7328 = vcmp.ge.f32.partialorder %v7306, 0.0
        %vm7329 = vcmp.ge.f32.partialorder %v7311, 0.0
        %v7330 = vmul.f32 %v7236, 0.2
        %v7331 = vmul.f32 %v7241, 0.2
        %v7332 = vmul.f32 %v7246, 0.2
        %v7333 = vmul.f32 %v7251, 0.2
        %v7334 = vmul.f32 %v7256, 0.2
        %v7335 = vmul.f32 %v7261, 0.2
        %v7336 = vmul.f32 %v7266, 0.2
        %v7337 = vmul.f32 %v7271, 0.2
        %v7338 = vmul.f32 %v7276, 0.2
        %v7339 = vmul.f32 %v7281, 0.2
        %v7340 = vmul.f32 %v7286, 0.2
        %v7341 = vmul.f32 %v7291, 0.2
        %v7342 = vmul.f32 %v7296, 0.2
        %v7343 = vmul.f32 %v7301, 0.2
        %v7344 = vmul.f32 %v7306, 0.2
        %v7345 = vmul.f32 %v7311, 0.2
        %v7346 = vsel %vm7314, %v7236, %v7330
        %v7347 = vsel %vm7315, %v7241, %v7331
        %v7348 = vsel %vm7316, %v7246, %v7332
        %v7349 = vsel %vm7317, %v7251, %v7333
        %v7350 = vsel %vm7318, %v7256, %v7334
        %v7351 = vsel %vm7319, %v7261, %v7335
        %v7352 = vsel %vm7320, %v7266, %v7336
        %v7353 = vsel %vm7321, %v7271, %v7337
        %v7354 = vsel %vm7322, %v7276, %v7338
        %v7355 = vsel %vm7323, %v7281, %v7339
        %v7356 = vsel %vm7324, %v7286, %v7340
        %v7357 = vsel %vm7325, %v7291, %v7341
        %v7358 = vsel %vm7326, %v7296, %v7342
        %v7359 = vsel %vm7327, %v7301, %v7343
        %v7360 = vsel %vm7328, %v7306, %v7344
        %v7361 = vsel %vm7329, %v7311, %v7345
        %v7378 = vcombine.high %v7346, %v7346
        %v7380 = vunpack.c.l.s4 1966171168
        %v7381 = vunpack.c.0.s8 %v7380
        %v7382 = vlaneseq
        %v7383 = vshrl.u32 %v7382, 7
        %v7384 = vsub.s32 %v7381, %v7383
        %v7385 = vrot.slane %v7346, %v7384
        %v7387 = vunpack.c.l.s4 1966171168
        %v7388 = vunpack.c.0.s8 %v7387
        %v7389 = vlaneseq
        %v7390 = vshrl.u32 %v7389, 7
        %v7391 = vsub.s32 %v7388, %v7390
        %v7392 = vrot.slane %v7378, %v7391
        %v7393 = vcombine.high %v7385, %v7385
        %v7394 = vcombine.high %v7392, %v7392
        %v7396 = vunpack.c.l.s4 1966171168
        %v7397 = vunpack.c.0.s8 %v7396
        %v7398 = vlaneseq
        %v7399 = vshrl.u32 %v7398, 7
        %v7400 = vsub.s32 %v7397, %v7399
        %v7401 = vrot.slane %v7385, %v7400
        %v7403 = vunpack.c.l.s4 1966171168
        %v7404 = vunpack.c.0.s8 %v7403
        %v7405 = vlaneseq
        %v7406 = vshrl.u32 %v7405, 7
        %v7407 = vsub.s32 %v7404, %v7406
        %v7408 = vrot.slane %v7392, %v7407
        %v7410 = vunpack.c.l.s4 1966171168
        %v7411 = vunpack.c.0.s8 %v7410
        %v7412 = vlaneseq
        %v7413 = vshrl.u32 %v7412, 7
        %v7414 = vsub.s32 %v7411, %v7413
        %v7415 = vrot.slane %v7393, %v7414
        %v7417 = vunpack.c.l.s4 1966171168
        %v7418 = vunpack.c.0.s8 %v7417
        %v7419 = vlaneseq
        %v7420 = vshrl.u32 %v7419, 7
        %v7421 = vsub.s32 %v7418, %v7420
        %v7422 = vrot.slane %v7394, %v7421
        %v7423 = vcombine.high %v7401, %v7401
        %v7424 = vcombine.high %v7408, %v7408
        %v7425 = vcombine.high %v7415, %v7415
        %v7426 = vcombine.high %v7422, %v7422
        %v7427 = vcombine.high %v7347, %v7347
        %v7429 = vunpack.c.l.s4 1966171168
        %v7430 = vunpack.c.0.s8 %v7429
        %v7431 = vlaneseq
        %v7432 = vshrl.u32 %v7431, 7
        %v7433 = vsub.s32 %v7430, %v7432
        %v7434 = vrot.slane %v7347, %v7433
        %v7436 = vunpack.c.l.s4 1966171168
        %v7437 = vunpack.c.0.s8 %v7436
        %v7438 = vlaneseq
        %v7439 = vshrl.u32 %v7438, 7
        %v7440 = vsub.s32 %v7437, %v7439
        %v7441 = vrot.slane %v7427, %v7440
        %v7442 = vcombine.high %v7434, %v7434
        %v7443 = vcombine.high %v7441, %v7441
        %v7445 = vunpack.c.l.s4 1966171168
        %v7446 = vunpack.c.0.s8 %v7445
        %v7447 = vlaneseq
        %v7448 = vshrl.u32 %v7447, 7
        %v7449 = vsub.s32 %v7446, %v7448
        %v7450 = vrot.slane %v7434, %v7449
        %v7452 = vunpack.c.l.s4 1966171168
        %v7453 = vunpack.c.0.s8 %v7452
        %v7454 = vlaneseq
        %v7455 = vshrl.u32 %v7454, 7
        %v7456 = vsub.s32 %v7453, %v7455
        %v7457 = vrot.slane %v7441, %v7456
        %v7459 = vunpack.c.l.s4 1966171168
        %v7460 = vunpack.c.0.s8 %v7459
        %v7461 = vlaneseq
        %v7462 = vshrl.u32 %v7461, 7
        %v7463 = vsub.s32 %v7460, %v7462
        %v7464 = vrot.slane %v7442, %v7463
        %v7466 = vunpack.c.l.s4 1966171168
        %v7467 = vunpack.c.0.s8 %v7466
        %v7468 = vlaneseq
        %v7469 = vshrl.u32 %v7468, 7
        %v7470 = vsub.s32 %v7467, %v7469
        %v7471 = vrot.slane %v7443, %v7470
        %v7472 = vcombine.high %v7450, %v7450
        %v7473 = vcombine.high %v7457, %v7457
        %v7474 = vcombine.high %v7464, %v7464
        %v7475 = vcombine.high %v7471, %v7471
        %v7476 = vcombine.high %v7348, %v7348
        %v7478 = vunpack.c.l.s4 1966171168
        %v7479 = vunpack.c.0.s8 %v7478
        %v7480 = vlaneseq
        %v7481 = vshrl.u32 %v7480, 7
        %v7482 = vsub.s32 %v7479, %v7481
        %v7483 = vrot.slane %v7348, %v7482
        %v7485 = vunpack.c.l.s4 1966171168
        %v7486 = vunpack.c.0.s8 %v7485
        %v7487 = vlaneseq
        %v7488 = vshrl.u32 %v7487, 7
        %v7489 = vsub.s32 %v7486, %v7488
        %v7490 = vrot.slane %v7476, %v7489
        %v7491 = vcombine.high %v7483, %v7483
        %v7492 = vcombine.high %v7490, %v7490
        %v7494 = vunpack.c.l.s4 1966171168
        %v7495 = vunpack.c.0.s8 %v7494
        %v7496 = vlaneseq
        %v7497 = vshrl.u32 %v7496, 7
        %v7498 = vsub.s32 %v7495, %v7497
        %v7499 = vrot.slane %v7483, %v7498
        %v7501 = vunpack.c.l.s4 1966171168
        %v7502 = vunpack.c.0.s8 %v7501
        %v7503 = vlaneseq
        %v7504 = vshrl.u32 %v7503, 7
        %v7505 = vsub.s32 %v7502, %v7504
        %v7506 = vrot.slane %v7490, %v7505
        %v7508 = vunpack.c.l.s4 1966171168
        %v7509 = vunpack.c.0.s8 %v7508
        %v7510 = vlaneseq
        %v7511 = vshrl.u32 %v7510, 7
        %v7512 = vsub.s32 %v7509, %v7511
        %v7513 = vrot.slane %v7491, %v7512
        %v7515 = vunpack.c.l.s4 1966171168
        %v7516 = vunpack.c.0.s8 %v7515
        %v7517 = vlaneseq
        %v7518 = vshrl.u32 %v7517, 7
        %v7519 = vsub.s32 %v7516, %v7518
        %v7520 = vrot.slane %v7492, %v7519
        %v7521 = vcombine.high %v7499, %v7499
        %v7522 = vcombine.high %v7506, %v7506
        %v7523 = vcombine.high %v7513, %v7513
        %v7524 = vcombine.high %v7520, %v7520
        %v7525 = vcombine.high %v7349, %v7349
        %v7527 = vunpack.c.l.s4 1966171168
        %v7528 = vunpack.c.0.s8 %v7527
        %v7529 = vlaneseq
        %v7530 = vshrl.u32 %v7529, 7
        %v7531 = vsub.s32 %v7528, %v7530
        %v7532 = vrot.slane %v7349, %v7531
        %v7534 = vunpack.c.l.s4 1966171168
        %v7535 = vunpack.c.0.s8 %v7534
        %v7536 = vlaneseq
        %v7537 = vshrl.u32 %v7536, 7
        %v7538 = vsub.s32 %v7535, %v7537
        %v7539 = vrot.slane %v7525, %v7538
        %v7540 = vcombine.high %v7532, %v7532
        %v7541 = vcombine.high %v7539, %v7539
        %v7543 = vunpack.c.l.s4 1966171168
        %v7544 = vunpack.c.0.s8 %v7543
        %v7545 = vlaneseq
        %v7546 = vshrl.u32 %v7545, 7
        %v7547 = vsub.s32 %v7544, %v7546
        %v7548 = vrot.slane %v7532, %v7547
        %v7550 = vunpack.c.l.s4 1966171168
        %v7551 = vunpack.c.0.s8 %v7550
        %v7552 = vlaneseq
        %v7553 = vshrl.u32 %v7552, 7
        %v7554 = vsub.s32 %v7551, %v7553
        %v7555 = vrot.slane %v7539, %v7554
        %v7557 = vunpack.c.l.s4 1966171168
        %v7558 = vunpack.c.0.s8 %v7557
        %v7559 = vlaneseq
        %v7560 = vshrl.u32 %v7559, 7
        %v7561 = vsub.s32 %v7558, %v7560
        %v7562 = vrot.slane %v7540, %v7561
        %v7564 = vunpack.c.l.s4 1966171168
        %v7565 = vunpack.c.0.s8 %v7564
        %v7566 = vlaneseq
        %v7567 = vshrl.u32 %v7566, 7
        %v7568 = vsub.s32 %v7565, %v7567
        %v7569 = vrot.slane %v7541, %v7568
        %v7570 = vcombine.high %v7548, %v7548
        %v7571 = vcombine.high %v7555, %v7555
        %v7572 = vcombine.high %v7562, %v7562
        %v7573 = vcombine.high %v7569, %v7569
        %v7574 = vcombine.high %v7350, %v7350
        %v7576 = vunpack.c.l.s4 1966171168
        %v7577 = vunpack.c.0.s8 %v7576
        %v7578 = vlaneseq
        %v7579 = vshrl.u32 %v7578, 7
        %v7580 = vsub.s32 %v7577, %v7579
        %v7581 = vrot.slane %v7350, %v7580
        %v7583 = vunpack.c.l.s4 1966171168
        %v7584 = vunpack.c.0.s8 %v7583
        %v7585 = vlaneseq
        %v7586 = vshrl.u32 %v7585, 7
        %v7587 = vsub.s32 %v7584, %v7586
        %v7588 = vrot.slane %v7574, %v7587
        %v7589 = vcombine.high %v7581, %v7581
        %v7590 = vcombine.high %v7588, %v7588
        %v7592 = vunpack.c.l.s4 1966171168
        %v7593 = vunpack.c.0.s8 %v7592
        %v7594 = vlaneseq
        %v7595 = vshrl.u32 %v7594, 7
        %v7596 = vsub.s32 %v7593, %v7595
        %v7597 = vrot.slane %v7581, %v7596
        %v7599 = vunpack.c.l.s4 1966171168
        %v7600 = vunpack.c.0.s8 %v7599
        %v7601 = vlaneseq
        %v7602 = vshrl.u32 %v7601, 7
        %v7603 = vsub.s32 %v7600, %v7602
        %v7604 = vrot.slane %v7588, %v7603
        %v7606 = vunpack.c.l.s4 1966171168
        %v7607 = vunpack.c.0.s8 %v7606
        %v7608 = vlaneseq
        %v7609 = vshrl.u32 %v7608, 7
        %v7610 = vsub.s32 %v7607, %v7609
        %v7611 = vrot.slane %v7589, %v7610
        %v7613 = vunpack.c.l.s4 1966171168
        %v7614 = vunpack.c.0.s8 %v7613
        %v7615 = vlaneseq
        %v7616 = vshrl.u32 %v7615, 7
        %v7617 = vsub.s32 %v7614, %v7616
        %v7618 = vrot.slane %v7590, %v7617
        %v7619 = vcombine.high %v7597, %v7597
        %v7620 = vcombine.high %v7604, %v7604
        %v7621 = vcombine.high %v7611, %v7611
        %v7622 = vcombine.high %v7618, %v7618
        %v7623 = vcombine.high %v7351, %v7351
        %v7625 = vunpack.c.l.s4 1966171168
        %v7626 = vunpack.c.0.s8 %v7625
        %v7627 = vlaneseq
        %v7628 = vshrl.u32 %v7627, 7
        %v7629 = vsub.s32 %v7626, %v7628
        %v7630 = vrot.slane %v7351, %v7629
        %v7632 = vunpack.c.l.s4 1966171168
        %v7633 = vunpack.c.0.s8 %v7632
        %v7634 = vlaneseq
        %v7635 = vshrl.u32 %v7634, 7
        %v7636 = vsub.s32 %v7633, %v7635
        %v7637 = vrot.slane %v7623, %v7636
        %v7638 = vcombine.high %v7630, %v7630
        %v7639 = vcombine.high %v7637, %v7637
        %v7641 = vunpack.c.l.s4 1966171168
        %v7642 = vunpack.c.0.s8 %v7641
        %v7643 = vlaneseq
        %v7644 = vshrl.u32 %v7643, 7
        %v7645 = vsub.s32 %v7642, %v7644
        %v7646 = vrot.slane %v7630, %v7645
        %v7648 = vunpack.c.l.s4 1966171168
        %v7649 = vunpack.c.0.s8 %v7648
        %v7650 = vlaneseq
        %v7651 = vshrl.u32 %v7650, 7
        %v7652 = vsub.s32 %v7649, %v7651
        %v7653 = vrot.slane %v7637, %v7652
        %v7655 = vunpack.c.l.s4 1966171168
        %v7656 = vunpack.c.0.s8 %v7655
        %v7657 = vlaneseq
        %v7658 = vshrl.u32 %v7657, 7
        %v7659 = vsub.s32 %v7656, %v7658
        %v7660 = vrot.slane %v7638, %v7659
        %v7662 = vunpack.c.l.s4 1966171168
        %v7663 = vunpack.c.0.s8 %v7662
        %v7664 = vlaneseq
        %v7665 = vshrl.u32 %v7664, 7
        %v7666 = vsub.s32 %v7663, %v7665
        %v7667 = vrot.slane %v7639, %v7666
        %v7668 = vcombine.high %v7646, %v7646
        %v7669 = vcombine.high %v7653, %v7653
        %v7670 = vcombine.high %v7660, %v7660
        %v7671 = vcombine.high %v7667, %v7667
        %v7672 = vcombine.high %v7352, %v7352
        %v7674 = vunpack.c.l.s4 1966171168
        %v7675 = vunpack.c.0.s8 %v7674
        %v7676 = vlaneseq
        %v7677 = vshrl.u32 %v7676, 7
        %v7678 = vsub.s32 %v7675, %v7677
        %v7679 = vrot.slane %v7352, %v7678
        %v7681 = vunpack.c.l.s4 1966171168
        %v7682 = vunpack.c.0.s8 %v7681
        %v7683 = vlaneseq
        %v7684 = vshrl.u32 %v7683, 7
        %v7685 = vsub.s32 %v7682, %v7684
        %v7686 = vrot.slane %v7672, %v7685
        %v7687 = vcombine.high %v7679, %v7679
        %v7688 = vcombine.high %v7686, %v7686
        %v7690 = vunpack.c.l.s4 1966171168
        %v7691 = vunpack.c.0.s8 %v7690
        %v7692 = vlaneseq
        %v7693 = vshrl.u32 %v7692, 7
        %v7694 = vsub.s32 %v7691, %v7693
        %v7695 = vrot.slane %v7679, %v7694
        %v7697 = vunpack.c.l.s4 1966171168
        %v7698 = vunpack.c.0.s8 %v7697
        %v7699 = vlaneseq
        %v7700 = vshrl.u32 %v7699, 7
        %v7701 = vsub.s32 %v7698, %v7700
        %v7702 = vrot.slane %v7686, %v7701
        %v7704 = vunpack.c.l.s4 1966171168
        %v7705 = vunpack.c.0.s8 %v7704
        %v7706 = vlaneseq
        %v7707 = vshrl.u32 %v7706, 7
        %v7708 = vsub.s32 %v7705, %v7707
        %v7709 = vrot.slane %v7687, %v7708
        %v7711 = vunpack.c.l.s4 1966171168
        %v7712 = vunpack.c.0.s8 %v7711
        %v7713 = vlaneseq
        %v7714 = vshrl.u32 %v7713, 7
        %v7715 = vsub.s32 %v7712, %v7714
        %v7716 = vrot.slane %v7688, %v7715
        %v7717 = vcombine.high %v7695, %v7695
        %v7718 = vcombine.high %v7702, %v7702
        %v7719 = vcombine.high %v7709, %v7709
        %v7720 = vcombine.high %v7716, %v7716
        %v7721 = vcombine.high %v7353, %v7353
        %v7723 = vunpack.c.l.s4 1966171168
        %v7724 = vunpack.c.0.s8 %v7723
        %v7725 = vlaneseq
        %v7726 = vshrl.u32 %v7725, 7
        %v7727 = vsub.s32 %v7724, %v7726
        %v7728 = vrot.slane %v7353, %v7727
        %v7730 = vunpack.c.l.s4 1966171168
        %v7731 = vunpack.c.0.s8 %v7730
        %v7732 = vlaneseq
        %v7733 = vshrl.u32 %v7732, 7
        %v7734 = vsub.s32 %v7731, %v7733
        %v7735 = vrot.slane %v7721, %v7734
        %v7736 = vcombine.high %v7728, %v7728
        %v7737 = vcombine.high %v7735, %v7735
        %v7739 = vunpack.c.l.s4 1966171168
        %v7740 = vunpack.c.0.s8 %v7739
        %v7741 = vlaneseq
        %v7742 = vshrl.u32 %v7741, 7
        %v7743 = vsub.s32 %v7740, %v7742
        %v7744 = vrot.slane %v7728, %v7743
        %v7746 = vunpack.c.l.s4 1966171168
        %v7747 = vunpack.c.0.s8 %v7746
        %v7748 = vlaneseq
        %v7749 = vshrl.u32 %v7748, 7
        %v7750 = vsub.s32 %v7747, %v7749
        %v7751 = vrot.slane %v7735, %v7750
        %v7753 = vunpack.c.l.s4 1966171168
        %v7754 = vunpack.c.0.s8 %v7753
        %v7755 = vlaneseq
        %v7756 = vshrl.u32 %v7755, 7
        %v7757 = vsub.s32 %v7754, %v7756
        %v7758 = vrot.slane %v7736, %v7757
        %v7760 = vunpack.c.l.s4 1966171168
        %v7761 = vunpack.c.0.s8 %v7760
        %v7762 = vlaneseq
        %v7763 = vshrl.u32 %v7762, 7
        %v7764 = vsub.s32 %v7761, %v7763
        %v7765 = vrot.slane %v7737, %v7764
        %v7766 = vcombine.high %v7744, %v7744
        %v7767 = vcombine.high %v7751, %v7751
        %v7768 = vcombine.high %v7758, %v7758
        %v7769 = vcombine.high %v7765, %v7765
        %v7770 = vcombine.high %v7354, %v7354
        %v7772 = vunpack.c.l.s4 1966171168
        %v7773 = vunpack.c.0.s8 %v7772
        %v7774 = vlaneseq
        %v7775 = vshrl.u32 %v7774, 7
        %v7776 = vsub.s32 %v7773, %v7775
        %v7777 = vrot.slane %v7354, %v7776
        %v7779 = vunpack.c.l.s4 1966171168
        %v7780 = vunpack.c.0.s8 %v7779
        %v7781 = vlaneseq
        %v7782 = vshrl.u32 %v7781, 7
        %v7783 = vsub.s32 %v7780, %v7782
        %v7784 = vrot.slane %v7770, %v7783
        %v7785 = vcombine.high %v7777, %v7777
        %v7786 = vcombine.high %v7784, %v7784
        %v7788 = vunpack.c.l.s4 1966171168
        %v7789 = vunpack.c.0.s8 %v7788
        %v7790 = vlaneseq
        %v7791 = vshrl.u32 %v7790, 7
        %v7792 = vsub.s32 %v7789, %v7791
        %v7793 = vrot.slane %v7777, %v7792
        %v7795 = vunpack.c.l.s4 1966171168
        %v7796 = vunpack.c.0.s8 %v7795
        %v7797 = vlaneseq
        %v7798 = vshrl.u32 %v7797, 7
        %v7799 = vsub.s32 %v7796, %v7798
        %v7800 = vrot.slane %v7784, %v7799
        %v7802 = vunpack.c.l.s4 1966171168
        %v7803 = vunpack.c.0.s8 %v7802
        %v7804 = vlaneseq
        %v7805 = vshrl.u32 %v7804, 7
        %v7806 = vsub.s32 %v7803, %v7805
        %v7807 = vrot.slane %v7785, %v7806
        %v7809 = vunpack.c.l.s4 1966171168
        %v7810 = vunpack.c.0.s8 %v7809
        %v7811 = vlaneseq
        %v7812 = vshrl.u32 %v7811, 7
        %v7813 = vsub.s32 %v7810, %v7812
        %v7814 = vrot.slane %v7786, %v7813
        %v7815 = vcombine.high %v7793, %v7793
        %v7816 = vcombine.high %v7800, %v7800
        %v7817 = vcombine.high %v7807, %v7807
        %v7818 = vcombine.high %v7814, %v7814
        %v7819 = vcombine.high %v7355, %v7355
        %v7821 = vunpack.c.l.s4 1966171168
        %v7822 = vunpack.c.0.s8 %v7821
        %v7823 = vlaneseq
        %v7824 = vshrl.u32 %v7823, 7
        %v7825 = vsub.s32 %v7822, %v7824
        %v7826 = vrot.slane %v7355, %v7825
        %v7828 = vunpack.c.l.s4 1966171168
        %v7829 = vunpack.c.0.s8 %v7828
        %v7830 = vlaneseq
        %v7831 = vshrl.u32 %v7830, 7
        %v7832 = vsub.s32 %v7829, %v7831
        %v7833 = vrot.slane %v7819, %v7832
        %v7834 = vcombine.high %v7826, %v7826
        %v7835 = vcombine.high %v7833, %v7833
        %v7837 = vunpack.c.l.s4 1966171168
        %v7838 = vunpack.c.0.s8 %v7837
        %v7839 = vlaneseq
        %v7840 = vshrl.u32 %v7839, 7
        %v7841 = vsub.s32 %v7838, %v7840
        %v7842 = vrot.slane %v7826, %v7841
        %v7844 = vunpack.c.l.s4 1966171168
        %v7845 = vunpack.c.0.s8 %v7844
        %v7846 = vlaneseq
        %v7847 = vshrl.u32 %v7846, 7
        %v7848 = vsub.s32 %v7845, %v7847
        %v7849 = vrot.slane %v7833, %v7848
        %v7851 = vunpack.c.l.s4 1966171168
        %v7852 = vunpack.c.0.s8 %v7851
        %v7853 = vlaneseq
        %v7854 = vshrl.u32 %v7853, 7
        %v7855 = vsub.s32 %v7852, %v7854
        %v7856 = vrot.slane %v7834, %v7855
        %v7858 = vunpack.c.l.s4 1966171168
        %v7859 = vunpack.c.0.s8 %v7858
        %v7860 = vlaneseq
        %v7861 = vshrl.u32 %v7860, 7
        %v7862 = vsub.s32 %v7859, %v7861
        %v7863 = vrot.slane %v7835, %v7862
        %v7864 = vcombine.high %v7842, %v7842
        %v7865 = vcombine.high %v7849, %v7849
        %v7866 = vcombine.high %v7856, %v7856
        %v7867 = vcombine.high %v7863, %v7863
        %v7868 = vcombine.high %v7356, %v7356
        %v7870 = vunpack.c.l.s4 1966171168
        %v7871 = vunpack.c.0.s8 %v7870
        %v7872 = vlaneseq
        %v7873 = vshrl.u32 %v7872, 7
        %v7874 = vsub.s32 %v7871, %v7873
        %v7875 = vrot.slane %v7356, %v7874
        %v7877 = vunpack.c.l.s4 1966171168
        %v7878 = vunpack.c.0.s8 %v7877
        %v7879 = vlaneseq
        %v7880 = vshrl.u32 %v7879, 7
        %v7881 = vsub.s32 %v7878, %v7880
        %v7882 = vrot.slane %v7868, %v7881
        %v7883 = vcombine.high %v7875, %v7875
        %v7884 = vcombine.high %v7882, %v7882
        %v7886 = vunpack.c.l.s4 1966171168
        %v7887 = vunpack.c.0.s8 %v7886
        %v7888 = vlaneseq
        %v7889 = vshrl.u32 %v7888, 7
        %v7890 = vsub.s32 %v7887, %v7889
        %v7891 = vrot.slane %v7875, %v7890
        %v7893 = vunpack.c.l.s4 1966171168
        %v7894 = vunpack.c.0.s8 %v7893
        %v7895 = vlaneseq
        %v7896 = vshrl.u32 %v7895, 7
        %v7897 = vsub.s32 %v7894, %v7896
        %v7898 = vrot.slane %v7882, %v7897
        %v7900 = vunpack.c.l.s4 1966171168
        %v7901 = vunpack.c.0.s8 %v7900
        %v7902 = vlaneseq
        %v7903 = vshrl.u32 %v7902, 7
        %v7904 = vsub.s32 %v7901, %v7903
        %v7905 = vrot.slane %v7883, %v7904
        %v7907 = vunpack.c.l.s4 1966171168
        %v7908 = vunpack.c.0.s8 %v7907
        %v7909 = vlaneseq
        %v7910 = vshrl.u32 %v7909, 7
        %v7911 = vsub.s32 %v7908, %v7910
        %v7912 = vrot.slane %v7884, %v7911
        %v7913 = vcombine.high %v7891, %v7891
        %v7914 = vcombine.high %v7898, %v7898
        %v7915 = vcombine.high %v7905, %v7905
        %v7916 = vcombine.high %v7912, %v7912
        %v7917 = vcombine.high %v7357, %v7357
        %v7919 = vunpack.c.l.s4 1966171168
        %v7920 = vunpack.c.0.s8 %v7919
        %v7921 = vlaneseq
        %v7922 = vshrl.u32 %v7921, 7
        %v7923 = vsub.s32 %v7920, %v7922
        %v7924 = vrot.slane %v7357, %v7923
        %v7926 = vunpack.c.l.s4 1966171168
        %v7927 = vunpack.c.0.s8 %v7926
        %v7928 = vlaneseq
        %v7929 = vshrl.u32 %v7928, 7
        %v7930 = vsub.s32 %v7927, %v7929
        %v7931 = vrot.slane %v7917, %v7930
        %v7932 = vcombine.high %v7924, %v7924
        %v7933 = vcombine.high %v7931, %v7931
        %v7935 = vunpack.c.l.s4 1966171168
        %v7936 = vunpack.c.0.s8 %v7935
        %v7937 = vlaneseq
        %v7938 = vshrl.u32 %v7937, 7
        %v7939 = vsub.s32 %v7936, %v7938
        %v7940 = vrot.slane %v7924, %v7939
        %v7942 = vunpack.c.l.s4 1966171168
        %v7943 = vunpack.c.0.s8 %v7942
        %v7944 = vlaneseq
        %v7945 = vshrl.u32 %v7944, 7
        %v7946 = vsub.s32 %v7943, %v7945
        %v7947 = vrot.slane %v7931, %v7946
        %v7949 = vunpack.c.l.s4 1966171168
        %v7950 = vunpack.c.0.s8 %v7949
        %v7951 = vlaneseq
        %v7952 = vshrl.u32 %v7951, 7
        %v7953 = vsub.s32 %v7950, %v7952
        %v7954 = vrot.slane %v7932, %v7953
        %v7956 = vunpack.c.l.s4 1966171168
        %v7957 = vunpack.c.0.s8 %v7956
        %v7958 = vlaneseq
        %v7959 = vshrl.u32 %v7958, 7
        %v7960 = vsub.s32 %v7957, %v7959
        %v7961 = vrot.slane %v7933, %v7960
        %v7962 = vcombine.high %v7940, %v7940
        %v7963 = vcombine.high %v7947, %v7947
        %v7964 = vcombine.high %v7954, %v7954
        %v7965 = vcombine.high %v7961, %v7961
        %v7966 = vcombine.high %v7358, %v7358
        %v7968 = vunpack.c.l.s4 1966171168
        %v7969 = vunpack.c.0.s8 %v7968
        %v7970 = vlaneseq
        %v7971 = vshrl.u32 %v7970, 7
        %v7972 = vsub.s32 %v7969, %v7971
        %v7973 = vrot.slane %v7358, %v7972
        %v7975 = vunpack.c.l.s4 1966171168
        %v7976 = vunpack.c.0.s8 %v7975
        %v7977 = vlaneseq
        %v7978 = vshrl.u32 %v7977, 7
        %v7979 = vsub.s32 %v7976, %v7978
        %v7980 = vrot.slane %v7966, %v7979
        %v7981 = vcombine.high %v7973, %v7973
        %v7982 = vcombine.high %v7980, %v7980
        %v7984 = vunpack.c.l.s4 1966171168
        %v7985 = vunpack.c.0.s8 %v7984
        %v7986 = vlaneseq
        %v7987 = vshrl.u32 %v7986, 7
        %v7988 = vsub.s32 %v7985, %v7987
        %v7989 = vrot.slane %v7973, %v7988
        %v7991 = vunpack.c.l.s4 1966171168
        %v7992 = vunpack.c.0.s8 %v7991
        %v7993 = vlaneseq
        %v7994 = vshrl.u32 %v7993, 7
        %v7995 = vsub.s32 %v7992, %v7994
        %v7996 = vrot.slane %v7980, %v7995
        %v7998 = vunpack.c.l.s4 1966171168
        %v7999 = vunpack.c.0.s8 %v7998
        %v8000 = vlaneseq
        %v8001 = vshrl.u32 %v8000, 7
        %v8002 = vsub.s32 %v7999, %v8001
        %v8003 = vrot.slane %v7981, %v8002
        %v8005 = vunpack.c.l.s4 1966171168
        %v8006 = vunpack.c.0.s8 %v8005
        %v8007 = vlaneseq
        %v8008 = vshrl.u32 %v8007, 7
        %v8009 = vsub.s32 %v8006, %v8008
        %v8010 = vrot.slane %v7982, %v8009
        %v8011 = vcombine.high %v7989, %v7989
        %v8012 = vcombine.high %v7996, %v7996
        %v8013 = vcombine.high %v8003, %v8003
        %v8014 = vcombine.high %v8010, %v8010
        %v8015 = vcombine.high %v7359, %v7359
        %v8017 = vunpack.c.l.s4 1966171168
        %v8018 = vunpack.c.0.s8 %v8017
        %v8019 = vlaneseq
        %v8020 = vshrl.u32 %v8019, 7
        %v8021 = vsub.s32 %v8018, %v8020
        %v8022 = vrot.slane %v7359, %v8021
        %v8024 = vunpack.c.l.s4 1966171168
        %v8025 = vunpack.c.0.s8 %v8024
        %v8026 = vlaneseq
        %v8027 = vshrl.u32 %v8026, 7
        %v8028 = vsub.s32 %v8025, %v8027
        %v8029 = vrot.slane %v8015, %v8028
        %v8030 = vcombine.high %v8022, %v8022
        %v8031 = vcombine.high %v8029, %v8029
        %v8033 = vunpack.c.l.s4 1966171168
        %v8034 = vunpack.c.0.s8 %v8033
        %v8035 = vlaneseq
        %v8036 = vshrl.u32 %v8035, 7
        %v8037 = vsub.s32 %v8034, %v8036
        %v8038 = vrot.slane %v8022, %v8037
        %v8040 = vunpack.c.l.s4 1966171168
        %v8041 = vunpack.c.0.s8 %v8040
        %v8042 = vlaneseq
        %v8043 = vshrl.u32 %v8042, 7
        %v8044 = vsub.s32 %v8041, %v8043
        %v8045 = vrot.slane %v8029, %v8044
        %v8047 = vunpack.c.l.s4 1966171168
        %v8048 = vunpack.c.0.s8 %v8047
        %v8049 = vlaneseq
        %v8050 = vshrl.u32 %v8049, 7
        %v8051 = vsub.s32 %v8048, %v8050
        %v8052 = vrot.slane %v8030, %v8051
        %v8054 = vunpack.c.l.s4 1966171168
        %v8055 = vunpack.c.0.s8 %v8054
        %v8056 = vlaneseq
        %v8057 = vshrl.u32 %v8056, 7
        %v8058 = vsub.s32 %v8055, %v8057
        %v8059 = vrot.slane %v8031, %v8058
        %v8060 = vcombine.high %v8038, %v8038
        %v8061 = vcombine.high %v8045, %v8045
        %v8062 = vcombine.high %v8052, %v8052
        %v8063 = vcombine.high %v8059, %v8059
        %v8064 = vcombine.high %v7360, %v7360
        %v8066 = vunpack.c.l.s4 1966171168
        %v8067 = vunpack.c.0.s8 %v8066
        %v8068 = vlaneseq
        %v8069 = vshrl.u32 %v8068, 7
        %v8070 = vsub.s32 %v8067, %v8069
        %v8071 = vrot.slane %v7360, %v8070
        %v8073 = vunpack.c.l.s4 1966171168
        %v8074 = vunpack.c.0.s8 %v8073
        %v8075 = vlaneseq
        %v8076 = vshrl.u32 %v8075, 7
        %v8077 = vsub.s32 %v8074, %v8076
        %v8078 = vrot.slane %v8064, %v8077
        %v8079 = vcombine.high %v8071, %v8071
        %v8080 = vcombine.high %v8078, %v8078
        %v8082 = vunpack.c.l.s4 1966171168
        %v8083 = vunpack.c.0.s8 %v8082
        %v8084 = vlaneseq
        %v8085 = vshrl.u32 %v8084, 7
        %v8086 = vsub.s32 %v8083, %v8085
        %v8087 = vrot.slane %v8071, %v8086
        %v8089 = vunpack.c.l.s4 1966171168
        %v8090 = vunpack.c.0.s8 %v8089
        %v8091 = vlaneseq
        %v8092 = vshrl.u32 %v8091, 7
        %v8093 = vsub.s32 %v8090, %v8092
        %v8094 = vrot.slane %v8078, %v8093
        %v8096 = vunpack.c.l.s4 1966171168
        %v8097 = vunpack.c.0.s8 %v8096
        %v8098 = vlaneseq
        %v8099 = vshrl.u32 %v8098, 7
        %v8100 = vsub.s32 %v8097, %v8099
        %v8101 = vrot.slane %v8079, %v8100
        %v8103 = vunpack.c.l.s4 1966171168
        %v8104 = vunpack.c.0.s8 %v8103
        %v8105 = vlaneseq
        %v8106 = vshrl.u32 %v8105, 7
        %v8107 = vsub.s32 %v8104, %v8106
        %v8108 = vrot.slane %v8080, %v8107
        %v8109 = vcombine.high %v8087, %v8087
        %v8110 = vcombine.high %v8094, %v8094
        %v8111 = vcombine.high %v8101, %v8101
        %v8112 = vcombine.high %v8108, %v8108
        %v8113 = vcombine.high %v7361, %v7361
        %v8115 = vunpack.c.l.s4 1966171168
        %v8116 = vunpack.c.0.s8 %v8115
        %v8117 = vlaneseq
        %v8118 = vshrl.u32 %v8117, 7
        %v8119 = vsub.s32 %v8116, %v8118
        %v8120 = vrot.slane %v7361, %v8119
        %v8122 = vunpack.c.l.s4 1966171168
        %v8123 = vunpack.c.0.s8 %v8122
        %v8124 = vlaneseq
        %v8125 = vshrl.u32 %v8124, 7
        %v8126 = vsub.s32 %v8123, %v8125
        %v8127 = vrot.slane %v8113, %v8126
        %v8128 = vcombine.high %v8120, %v8120
        %v8129 = vcombine.high %v8127, %v8127
        %v8131 = vunpack.c.l.s4 1966171168
        %v8132 = vunpack.c.0.s8 %v8131
        %v8133 = vlaneseq
        %v8134 = vshrl.u32 %v8133, 7
        %v8135 = vsub.s32 %v8132, %v8134
        %v8136 = vrot.slane %v8120, %v8135
        %v8138 = vunpack.c.l.s4 1966171168
        %v8139 = vunpack.c.0.s8 %v8138
        %v8140 = vlaneseq
        %v8141 = vshrl.u32 %v8140, 7
        %v8142 = vsub.s32 %v8139, %v8141
        %v8143 = vrot.slane %v8127, %v8142
        %v8145 = vunpack.c.l.s4 1966171168
        %v8146 = vunpack.c.0.s8 %v8145
        %v8147 = vlaneseq
        %v8148 = vshrl.u32 %v8147, 7
        %v8149 = vsub.s32 %v8146, %v8148
        %v8150 = vrot.slane %v8128, %v8149
        %v8152 = vunpack.c.l.s4 1966171168
        %v8153 = vunpack.c.0.s8 %v8152
        %v8154 = vlaneseq
        %v8155 = vshrl.u32 %v8154, 7
        %v8156 = vsub.s32 %v8153, %v8155
        %v8157 = vrot.slane %v8129, %v8156
        %v8158 = vcombine.high %v8136, %v8136
        %v8159 = vcombine.high %v8143, %v8143
        %v8160 = vcombine.high %v8150, %v8150
        %v8161 = vcombine.high %v8157, %v8157
        %s8162 = scalar_lea.vmem %s6, 24
        %v8163 = vld [vmem:[%s8162] sm:$0xff]
        %v8164 = vlaneseq
        %v8165 = vshrl.u32 %v8164, 7
        %v8166 = vsub.s32 0, %v8165
        %v8167 = vrot.slane %v7401, %v8166
        %v8168 = vlaneseq
        %v8169 = vshrl.u32 %v8168, 7
        %v8170 = vsub.s32 0, %v8169
        %v8171 = vrot.slane %v7415, %v8170
        %v8172 = vlaneseq
        %v8173 = vshrl.u32 %v8172, 7
        %v8174 = vsub.s32 0, %v8173
        %v8175 = vrot.slane %v7423, %v8174
        %v8176 = vlaneseq
        %v8177 = vshrl.u32 %v8176, 7
        %v8178 = vsub.s32 0, %v8177
        %v8179 = vrot.slane %v7425, %v8178
        %v8180 = vlaneseq
        %v8181 = vshrl.u32 %v8180, 7
        %v8182 = vsub.s32 0, %v8181
        %v8183 = vrot.slane %v7408, %v8182
        %v8184 = vlaneseq
        %v8185 = vshrl.u32 %v8184, 7
        %v8186 = vsub.s32 0, %v8185
        %v8187 = vrot.slane %v7422, %v8186
        %v8188 = vlaneseq
        %v8189 = vshrl.u32 %v8188, 7
        %v8190 = vsub.s32 0, %v8189
        %v8191 = vrot.slane %v7424, %v8190
        %v8192 = vlaneseq
        %v8193 = vshrl.u32 %v8192, 7
        %v8194 = vsub.s32 0, %v8193
        %v8195 = vrot.slane %v7426, %v8194
        %v8196 = vlaneseq
        %v8197 = vshrl.u32 %v8196, 7
        %v8198 = vsub.s32 0, %v8197
        %v8199 = vrot.slane %v7450, %v8198
        %v8200 = vlaneseq
        %v8201 = vshrl.u32 %v8200, 7
        %v8202 = vsub.s32 0, %v8201
        %v8203 = vrot.slane %v7464, %v8202
        %v8204 = vlaneseq
        %v8205 = vshrl.u32 %v8204, 7
        %v8206 = vsub.s32 0, %v8205
        %v8207 = vrot.slane %v7472, %v8206
        %v8208 = vlaneseq
        %v8209 = vshrl.u32 %v8208, 7
        %v8210 = vsub.s32 0, %v8209
        %v8211 = vrot.slane %v7474, %v8210
        %v8212 = vlaneseq
        %v8213 = vshrl.u32 %v8212, 7
        %v8214 = vsub.s32 0, %v8213
        %v8215 = vrot.slane %v7457, %v8214
        %v8216 = vlaneseq
        %v8217 = vshrl.u32 %v8216, 7
        %v8218 = vsub.s32 0, %v8217
        %v8219 = vrot.slane %v7471, %v8218
        %v8220 = vlaneseq
        %v8221 = vshrl.u32 %v8220, 7
        %v8222 = vsub.s32 0, %v8221
        %v8223 = vrot.slane %v7473, %v8222
        %v8224 = vlaneseq
        %v8225 = vshrl.u32 %v8224, 7
        %v8226 = vsub.s32 0, %v8225
        %v8227 = vrot.slane %v7475, %v8226
        %v8228 = vlaneseq
        %v8229 = vshrl.u32 %v8228, 7
        %v8230 = vsub.s32 0, %v8229
        %v8231 = vrot.slane %v7499, %v8230
        %v8232 = vlaneseq
        %v8233 = vshrl.u32 %v8232, 7
        %v8234 = vsub.s32 0, %v8233
        %v8235 = vrot.slane %v7513, %v8234
        %v8236 = vlaneseq
        %v8237 = vshrl.u32 %v8236, 7
        %v8238 = vsub.s32 0, %v8237
        %v8239 = vrot.slane %v7521, %v8238
        %v8240 = vlaneseq
        %v8241 = vshrl.u32 %v8240, 7
        %v8242 = vsub.s32 0, %v8241
        %v8243 = vrot.slane %v7523, %v8242
        %v8244 = vlaneseq
        %v8245 = vshrl.u32 %v8244, 7
        %v8246 = vsub.s32 0, %v8245
        %v8247 = vrot.slane %v7506, %v8246
        %v8248 = vlaneseq
        %v8249 = vshrl.u32 %v8248, 7
        %v8250 = vsub.s32 0, %v8249
        %v8251 = vrot.slane %v7520, %v8250
        %v8252 = vlaneseq
        %v8253 = vshrl.u32 %v8252, 7
        %v8254 = vsub.s32 0, %v8253
        %v8255 = vrot.slane %v7522, %v8254
        %v8256 = vlaneseq
        %v8257 = vshrl.u32 %v8256, 7
        %v8258 = vsub.s32 0, %v8257
        %v8259 = vrot.slane %v7524, %v8258
        %v8260 = vlaneseq
        %v8261 = vshrl.u32 %v8260, 7
        %v8262 = vsub.s32 0, %v8261
        %v8263 = vrot.slane %v7548, %v8262
        %v8264 = vlaneseq
        %v8265 = vshrl.u32 %v8264, 7
        %v8266 = vsub.s32 0, %v8265
        %v8267 = vrot.slane %v7562, %v8266
        %v8268 = vlaneseq
        %v8269 = vshrl.u32 %v8268, 7
        %v8270 = vsub.s32 0, %v8269
        %v8271 = vrot.slane %v7570, %v8270
        %v8272 = vlaneseq
        %v8273 = vshrl.u32 %v8272, 7
        %v8274 = vsub.s32 0, %v8273
        %v8275 = vrot.slane %v7572, %v8274
        %v8276 = vlaneseq
        %v8277 = vshrl.u32 %v8276, 7
        %v8278 = vsub.s32 0, %v8277
        %v8279 = vrot.slane %v7555, %v8278
        %v8280 = vlaneseq
        %v8281 = vshrl.u32 %v8280, 7
        %v8282 = vsub.s32 0, %v8281
        %v8283 = vrot.slane %v7569, %v8282
        %v8284 = vlaneseq
        %v8285 = vshrl.u32 %v8284, 7
        %v8286 = vsub.s32 0, %v8285
        %v8287 = vrot.slane %v7571, %v8286
        %v8288 = vlaneseq
        %v8289 = vshrl.u32 %v8288, 7
        %v8290 = vsub.s32 0, %v8289
        %v8291 = vrot.slane %v7573, %v8290
        %v8292 = vlaneseq
        %v8293 = vshrl.u32 %v8292, 7
        %v8294 = vsub.s32 0, %v8293
        %v8295 = vrot.slane %v7597, %v8294
        %v8296 = vlaneseq
        %v8297 = vshrl.u32 %v8296, 7
        %v8298 = vsub.s32 0, %v8297
        %v8299 = vrot.slane %v7611, %v8298
        %v8300 = vlaneseq
        %v8301 = vshrl.u32 %v8300, 7
        %v8302 = vsub.s32 0, %v8301
        %v8303 = vrot.slane %v7619, %v8302
        %v8304 = vlaneseq
        %v8305 = vshrl.u32 %v8304, 7
        %v8306 = vsub.s32 0, %v8305
        %v8307 = vrot.slane %v7621, %v8306
        %v8308 = vlaneseq
        %v8309 = vshrl.u32 %v8308, 7
        %v8310 = vsub.s32 0, %v8309
        %v8311 = vrot.slane %v7604, %v8310
        %v8312 = vlaneseq
        %v8313 = vshrl.u32 %v8312, 7
        %v8314 = vsub.s32 0, %v8313
        %v8315 = vrot.slane %v7618, %v8314
        %v8316 = vlaneseq
        %v8317 = vshrl.u32 %v8316, 7
        %v8318 = vsub.s32 0, %v8317
        %v8319 = vrot.slane %v7620, %v8318
        %v8320 = vlaneseq
        %v8321 = vshrl.u32 %v8320, 7
        %v8322 = vsub.s32 0, %v8321
        %v8323 = vrot.slane %v7622, %v8322
        %v8324 = vlaneseq
        %v8325 = vshrl.u32 %v8324, 7
        %v8326 = vsub.s32 0, %v8325
        %v8327 = vrot.slane %v7646, %v8326
        %v8328 = vlaneseq
        %v8329 = vshrl.u32 %v8328, 7
        %v8330 = vsub.s32 0, %v8329
        %v8331 = vrot.slane %v7660, %v8330
        %v8332 = vlaneseq
        %v8333 = vshrl.u32 %v8332, 7
        %v8334 = vsub.s32 0, %v8333
        %v8335 = vrot.slane %v7668, %v8334
        %v8336 = vlaneseq
        %v8337 = vshrl.u32 %v8336, 7
        %v8338 = vsub.s32 0, %v8337
        %v8339 = vrot.slane %v7670, %v8338
        %v8340 = vlaneseq
        %v8341 = vshrl.u32 %v8340, 7
        %v8342 = vsub.s32 0, %v8341
        %v8343 = vrot.slane %v7653, %v8342
        %v8344 = vlaneseq
        %v8345 = vshrl.u32 %v8344, 7
        %v8346 = vsub.s32 0, %v8345
        %v8347 = vrot.slane %v7667, %v8346
        %v8348 = vlaneseq
        %v8349 = vshrl.u32 %v8348, 7
        %v8350 = vsub.s32 0, %v8349
        %v8351 = vrot.slane %v7669, %v8350
        %v8352 = vlaneseq
        %v8353 = vshrl.u32 %v8352, 7
        %v8354 = vsub.s32 0, %v8353
        %v8355 = vrot.slane %v7671, %v8354
        %v8356 = vlaneseq
        %v8357 = vshrl.u32 %v8356, 7
        %v8358 = vsub.s32 0, %v8357
        %v8359 = vrot.slane %v7695, %v8358
        %v8360 = vlaneseq
        %v8361 = vshrl.u32 %v8360, 7
        %v8362 = vsub.s32 0, %v8361
        %v8363 = vrot.slane %v7709, %v8362
        %v8364 = vlaneseq
        %v8365 = vshrl.u32 %v8364, 7
        %v8366 = vsub.s32 0, %v8365
        %v8367 = vrot.slane %v7717, %v8366
        %v8368 = vlaneseq
        %v8369 = vshrl.u32 %v8368, 7
        %v8370 = vsub.s32 0, %v8369
        %v8371 = vrot.slane %v7719, %v8370
        %v8372 = vlaneseq
        %v8373 = vshrl.u32 %v8372, 7
        %v8374 = vsub.s32 0, %v8373
        %v8375 = vrot.slane %v7702, %v8374
        %v8376 = vlaneseq
        %v8377 = vshrl.u32 %v8376, 7
        %v8378 = vsub.s32 0, %v8377
        %v8379 = vrot.slane %v7716, %v8378
        %v8380 = vlaneseq
        %v8381 = vshrl.u32 %v8380, 7
        %v8382 = vsub.s32 0, %v8381
        %v8383 = vrot.slane %v7718, %v8382
        %v8384 = vlaneseq
        %v8385 = vshrl.u32 %v8384, 7
        %v8386 = vsub.s32 0, %v8385
        %v8387 = vrot.slane %v7720, %v8386
        %v8388 = vlaneseq
        %v8389 = vshrl.u32 %v8388, 7
        %v8390 = vsub.s32 0, %v8389
        %v8391 = vrot.slane %v7744, %v8390
        %v8392 = vlaneseq
        %v8393 = vshrl.u32 %v8392, 7
        %v8394 = vsub.s32 0, %v8393
        %v8395 = vrot.slane %v7758, %v8394
        %v8396 = vlaneseq
        %v8397 = vshrl.u32 %v8396, 7
        %v8398 = vsub.s32 0, %v8397
        %v8399 = vrot.slane %v7766, %v8398
        %v8400 = vlaneseq
        %v8401 = vshrl.u32 %v8400, 7
        %v8402 = vsub.s32 0, %v8401
        %v8403 = vrot.slane %v7768, %v8402
        %v8404 = vlaneseq
        %v8405 = vshrl.u32 %v8404, 7
        %v8406 = vsub.s32 0, %v8405
        %v8407 = vrot.slane %v7751, %v8406
        %v8408 = vlaneseq
        %v8409 = vshrl.u32 %v8408, 7
        %v8410 = vsub.s32 0, %v8409
        %v8411 = vrot.slane %v7765, %v8410
        %v8412 = vlaneseq
        %v8413 = vshrl.u32 %v8412, 7
        %v8414 = vsub.s32 0, %v8413
        %v8415 = vrot.slane %v7767, %v8414
        %v8416 = vlaneseq
        %v8417 = vshrl.u32 %v8416, 7
        %v8418 = vsub.s32 0, %v8417
        %v8419 = vrot.slane %v7769, %v8418
        %v8420 = vlaneseq
        %v8421 = vshrl.u32 %v8420, 7
        %v8422 = vsub.s32 0, %v8421
        %v8423 = vrot.slane %v7793, %v8422
        %v8424 = vlaneseq
        %v8425 = vshrl.u32 %v8424, 7
        %v8426 = vsub.s32 0, %v8425
        %v8427 = vrot.slane %v7807, %v8426
        %v8428 = vlaneseq
        %v8429 = vshrl.u32 %v8428, 7
        %v8430 = vsub.s32 0, %v8429
        %v8431 = vrot.slane %v7815, %v8430
        %v8432 = vlaneseq
        %v8433 = vshrl.u32 %v8432, 7
        %v8434 = vsub.s32 0, %v8433
        %v8435 = vrot.slane %v7817, %v8434
        %v8436 = vlaneseq
        %v8437 = vshrl.u32 %v8436, 7
        %v8438 = vsub.s32 0, %v8437
        %v8439 = vrot.slane %v7800, %v8438
        %v8440 = vlaneseq
        %v8441 = vshrl.u32 %v8440, 7
        %v8442 = vsub.s32 0, %v8441
        %v8443 = vrot.slane %v7814, %v8442
        %v8444 = vlaneseq
        %v8445 = vshrl.u32 %v8444, 7
        %v8446 = vsub.s32 0, %v8445
        %v8447 = vrot.slane %v7816, %v8446
        %v8448 = vlaneseq
        %v8449 = vshrl.u32 %v8448, 7
        %v8450 = vsub.s32 0, %v8449
        %v8451 = vrot.slane %v7818, %v8450
        %v8452 = vlaneseq
        %v8453 = vshrl.u32 %v8452, 7
        %v8454 = vsub.s32 0, %v8453
        %v8455 = vrot.slane %v7842, %v8454
        %v8456 = vlaneseq
        %v8457 = vshrl.u32 %v8456, 7
        %v8458 = vsub.s32 0, %v8457
        %v8459 = vrot.slane %v7856, %v8458
        %v8460 = vlaneseq
        %v8461 = vshrl.u32 %v8460, 7
        %v8462 = vsub.s32 0, %v8461
        %v8463 = vrot.slane %v7864, %v8462
        %v8464 = vlaneseq
        %v8465 = vshrl.u32 %v8464, 7
        %v8466 = vsub.s32 0, %v8465
        %v8467 = vrot.slane %v7866, %v8466
        %v8468 = vlaneseq
        %v8469 = vshrl.u32 %v8468, 7
        %v8470 = vsub.s32 0, %v8469
        %v8471 = vrot.slane %v7849, %v8470
        %v8472 = vlaneseq
        %v8473 = vshrl.u32 %v8472, 7
        %v8474 = vsub.s32 0, %v8473
        %v8475 = vrot.slane %v7863, %v8474
        %v8476 = vlaneseq
        %v8477 = vshrl.u32 %v8476, 7
        %v8478 = vsub.s32 0, %v8477
        %v8479 = vrot.slane %v7865, %v8478
        %v8480 = vlaneseq
        %v8481 = vshrl.u32 %v8480, 7
        %v8482 = vsub.s32 0, %v8481
        %v8483 = vrot.slane %v7867, %v8482
        %v8484 = vlaneseq
        %v8485 = vshrl.u32 %v8484, 7
        %v8486 = vsub.s32 0, %v8485
        %v8487 = vrot.slane %v7891, %v8486
        %v8488 = vlaneseq
        %v8489 = vshrl.u32 %v8488, 7
        %v8490 = vsub.s32 0, %v8489
        %v8491 = vrot.slane %v7905, %v8490
        %v8492 = vlaneseq
        %v8493 = vshrl.u32 %v8492, 7
        %v8494 = vsub.s32 0, %v8493
        %v8495 = vrot.slane %v7913, %v8494
        %v8496 = vlaneseq
        %v8497 = vshrl.u32 %v8496, 7
        %v8498 = vsub.s32 0, %v8497
        %v8499 = vrot.slane %v7915, %v8498
        %v8500 = vlaneseq
        %v8501 = vshrl.u32 %v8500, 7
        %v8502 = vsub.s32 0, %v8501
        %v8503 = vrot.slane %v7898, %v8502
        %v8504 = vlaneseq
        %v8505 = vshrl.u32 %v8504, 7
        %v8506 = vsub.s32 0, %v8505
        %v8507 = vrot.slane %v7912, %v8506
        %v8508 = vlaneseq
        %v8509 = vshrl.u32 %v8508, 7
        %v8510 = vsub.s32 0, %v8509
        %v8511 = vrot.slane %v7914, %v8510
        %v8512 = vlaneseq
        %v8513 = vshrl.u32 %v8512, 7
        %v8514 = vsub.s32 0, %v8513
        %v8515 = vrot.slane %v7916, %v8514
        %v8516 = vlaneseq
        %v8517 = vshrl.u32 %v8516, 7
        %v8518 = vsub.s32 0, %v8517
        %v8519 = vrot.slane %v7940, %v8518
        %v8520 = vlaneseq
        %v8521 = vshrl.u32 %v8520, 7
        %v8522 = vsub.s32 0, %v8521
        %v8523 = vrot.slane %v7954, %v8522
        %v8524 = vlaneseq
        %v8525 = vshrl.u32 %v8524, 7
        %v8526 = vsub.s32 0, %v8525
        %v8527 = vrot.slane %v7962, %v8526
        %v8528 = vlaneseq
        %v8529 = vshrl.u32 %v8528, 7
        %v8530 = vsub.s32 0, %v8529
        %v8531 = vrot.slane %v7964, %v8530
        %v8532 = vlaneseq
        %v8533 = vshrl.u32 %v8532, 7
        %v8534 = vsub.s32 0, %v8533
        %v8535 = vrot.slane %v7947, %v8534
        %v8536 = vlaneseq
        %v8537 = vshrl.u32 %v8536, 7
        %v8538 = vsub.s32 0, %v8537
        %v8539 = vrot.slane %v7961, %v8538
        %v8540 = vlaneseq
        %v8541 = vshrl.u32 %v8540, 7
        %v8542 = vsub.s32 0, %v8541
        %v8543 = vrot.slane %v7963, %v8542
        %v8544 = vlaneseq
        %v8545 = vshrl.u32 %v8544, 7
        %v8546 = vsub.s32 0, %v8545
        %v8547 = vrot.slane %v7965, %v8546
        %v8548 = vlaneseq
        %v8549 = vshrl.u32 %v8548, 7
        %v8550 = vsub.s32 0, %v8549
        %v8551 = vrot.slane %v7989, %v8550
        %v8552 = vlaneseq
        %v8553 = vshrl.u32 %v8552, 7
        %v8554 = vsub.s32 0, %v8553
        %v8555 = vrot.slane %v8003, %v8554
        %v8556 = vlaneseq
        %v8557 = vshrl.u32 %v8556, 7
        %v8558 = vsub.s32 0, %v8557
        %v8559 = vrot.slane %v8011, %v8558
        %v8560 = vlaneseq
        %v8561 = vshrl.u32 %v8560, 7
        %v8562 = vsub.s32 0, %v8561
        %v8563 = vrot.slane %v8013, %v8562
        %v8564 = vlaneseq
        %v8565 = vshrl.u32 %v8564, 7
        %v8566 = vsub.s32 0, %v8565
        %v8567 = vrot.slane %v7996, %v8566
        %v8568 = vlaneseq
        %v8569 = vshrl.u32 %v8568, 7
        %v8570 = vsub.s32 0, %v8569
        %v8571 = vrot.slane %v8010, %v8570
        %v8572 = vlaneseq
        %v8573 = vshrl.u32 %v8572, 7
        %v8574 = vsub.s32 0, %v8573
        %v8575 = vrot.slane %v8012, %v8574
        %v8576 = vlaneseq
        %v8577 = vshrl.u32 %v8576, 7
        %v8578 = vsub.s32 0, %v8577
        %v8579 = vrot.slane %v8014, %v8578
        %v8580 = vlaneseq
        %v8581 = vshrl.u32 %v8580, 7
        %v8582 = vsub.s32 0, %v8581
        %v8583 = vrot.slane %v8038, %v8582
        %v8584 = vlaneseq
        %v8585 = vshrl.u32 %v8584, 7
        %v8586 = vsub.s32 0, %v8585
        %v8587 = vrot.slane %v8052, %v8586
        %v8588 = vlaneseq
        %v8589 = vshrl.u32 %v8588, 7
        %v8590 = vsub.s32 0, %v8589
        %v8591 = vrot.slane %v8060, %v8590
        %v8592 = vlaneseq
        %v8593 = vshrl.u32 %v8592, 7
        %v8594 = vsub.s32 0, %v8593
        %v8595 = vrot.slane %v8062, %v8594
        %v8596 = vlaneseq
        %v8597 = vshrl.u32 %v8596, 7
        %v8598 = vsub.s32 0, %v8597
        %v8599 = vrot.slane %v8045, %v8598
        %v8600 = vlaneseq
        %v8601 = vshrl.u32 %v8600, 7
        %v8602 = vsub.s32 0, %v8601
        %v8603 = vrot.slane %v8059, %v8602
        %v8604 = vlaneseq
        %v8605 = vshrl.u32 %v8604, 7
        %v8606 = vsub.s32 0, %v8605
        %v8607 = vrot.slane %v8061, %v8606
        %v8608 = vlaneseq
        %v8609 = vshrl.u32 %v8608, 7
        %v8610 = vsub.s32 0, %v8609
        %v8611 = vrot.slane %v8063, %v8610
        %v8612 = vlaneseq
        %v8613 = vshrl.u32 %v8612, 7
        %v8614 = vsub.s32 0, %v8613
        %v8615 = vrot.slane %v8087, %v8614
        %v8616 = vlaneseq
        %v8617 = vshrl.u32 %v8616, 7
        %v8618 = vsub.s32 0, %v8617
        %v8619 = vrot.slane %v8101, %v8618
        %v8620 = vlaneseq
        %v8621 = vshrl.u32 %v8620, 7
        %v8622 = vsub.s32 0, %v8621
        %v8623 = vrot.slane %v8109, %v8622
        %v8624 = vlaneseq
        %v8625 = vshrl.u32 %v8624, 7
        %v8626 = vsub.s32 0, %v8625
        %v8627 = vrot.slane %v8111, %v8626
        %v8628 = vlaneseq
        %v8629 = vshrl.u32 %v8628, 7
        %v8630 = vsub.s32 0, %v8629
        %v8631 = vrot.slane %v8094, %v8630
        %v8632 = vlaneseq
        %v8633 = vshrl.u32 %v8632, 7
        %v8634 = vsub.s32 0, %v8633
        %v8635 = vrot.slane %v8108, %v8634
        %v8636 = vlaneseq
        %v8637 = vshrl.u32 %v8636, 7
        %v8638 = vsub.s32 0, %v8637
        %v8639 = vrot.slane %v8110, %v8638
        %v8640 = vlaneseq
        %v8641 = vshrl.u32 %v8640, 7
        %v8642 = vsub.s32 0, %v8641
        %v8643 = vrot.slane %v8112, %v8642
        %v8644 = vlaneseq
        %v8645 = vshrl.u32 %v8644, 7
        %v8646 = vsub.s32 0, %v8645
        %v8647 = vrot.slane %v8136, %v8646
        %v8648 = vlaneseq
        %v8649 = vshrl.u32 %v8648, 7
        %v8650 = vsub.s32 0, %v8649
        %v8651 = vrot.slane %v8150, %v8650
        %v8652 = vlaneseq
        %v8653 = vshrl.u32 %v8652, 7
        %v8654 = vsub.s32 0, %v8653
        %v8655 = vrot.slane %v8158, %v8654
        %v8656 = vlaneseq
        %v8657 = vshrl.u32 %v8656, 7
        %v8658 = vsub.s32 0, %v8657
        %v8659 = vrot.slane %v8160, %v8658
        %v8660 = vlaneseq
        %v8661 = vshrl.u32 %v8660, 7
        %v8662 = vsub.s32 0, %v8661
        %v8663 = vrot.slane %v8143, %v8662
        %v8664 = vlaneseq
        %v8665 = vshrl.u32 %v8664, 7
        %v8666 = vsub.s32 0, %v8665
        %v8667 = vrot.slane %v8157, %v8666
        %v8668 = vlaneseq
        %v8669 = vshrl.u32 %v8668, 7
        %v8670 = vsub.s32 0, %v8669
        %v8671 = vrot.slane %v8159, %v8670
        %v8672 = vlaneseq
        %v8673 = vshrl.u32 %v8672, 7
        %v8674 = vsub.s32 0, %v8673
        %v8675 = vrot.slane %v8161, %v8674
        %v8804 = vmul.f32 %v8167, %v8163
        %v8805 = vmul.f32 %v8171, %v8163
        %v8806 = vmul.f32 %v8175, %v8163
        %v8807 = vmul.f32 %v8179, %v8163
        %v8808 = vmul.f32 %v8183, %v8163
        %v8809 = vmul.f32 %v8187, %v8163
        %v8810 = vmul.f32 %v8191, %v8163
        %v8811 = vmul.f32 %v8195, %v8163
        %v8812 = vmul.f32 %v8199, %v8163
        %v8813 = vmul.f32 %v8203, %v8163
        %v8814 = vmul.f32 %v8207, %v8163
        %v8815 = vmul.f32 %v8211, %v8163
        %v8816 = vmul.f32 %v8215, %v8163
        %v8817 = vmul.f32 %v8219, %v8163
        %v8818 = vmul.f32 %v8223, %v8163
        %v8819 = vmul.f32 %v8227, %v8163
        %v8820 = vmul.f32 %v8231, %v8163
        %v8821 = vmul.f32 %v8235, %v8163
        %v8822 = vmul.f32 %v8239, %v8163
        %v8823 = vmul.f32 %v8243, %v8163
        %v8824 = vmul.f32 %v8247, %v8163
        %v8825 = vmul.f32 %v8251, %v8163
        %v8826 = vmul.f32 %v8255, %v8163
        %v8827 = vmul.f32 %v8259, %v8163
        %v8828 = vmul.f32 %v8263, %v8163
        %v8829 = vmul.f32 %v8267, %v8163
        %v8830 = vmul.f32 %v8271, %v8163
        %v8831 = vmul.f32 %v8275, %v8163
        %v8832 = vmul.f32 %v8279, %v8163
        %v8833 = vmul.f32 %v8283, %v8163
        %v8834 = vmul.f32 %v8287, %v8163
        %v8835 = vmul.f32 %v8291, %v8163
        %v8836 = vmul.f32 %v8295, %v8163
        %v8837 = vmul.f32 %v8299, %v8163
        %v8838 = vmul.f32 %v8303, %v8163
        %v8839 = vmul.f32 %v8307, %v8163
        %v8840 = vmul.f32 %v8311, %v8163
        %v8841 = vmul.f32 %v8315, %v8163
        %v8842 = vmul.f32 %v8319, %v8163
        %v8843 = vmul.f32 %v8323, %v8163
        %v8844 = vmul.f32 %v8327, %v8163
        %v8845 = vmul.f32 %v8331, %v8163
        %v8846 = vmul.f32 %v8335, %v8163
        %v8847 = vmul.f32 %v8339, %v8163
        %v8848 = vmul.f32 %v8343, %v8163
        %v8849 = vmul.f32 %v8347, %v8163
        %v8850 = vmul.f32 %v8351, %v8163
        %v8851 = vmul.f32 %v8355, %v8163
        %v8852 = vmul.f32 %v8359, %v8163
        %v8853 = vmul.f32 %v8363, %v8163
        %v8854 = vmul.f32 %v8367, %v8163
        %v8855 = vmul.f32 %v8371, %v8163
        %v8856 = vmul.f32 %v8375, %v8163
        %v8857 = vmul.f32 %v8379, %v8163
        %v8858 = vmul.f32 %v8383, %v8163
        %v8859 = vmul.f32 %v8387, %v8163
        %v8860 = vmul.f32 %v8391, %v8163
        %v8861 = vmul.f32 %v8395, %v8163
        %v8862 = vmul.f32 %v8399, %v8163
        %v8863 = vmul.f32 %v8403, %v8163
        %v8864 = vmul.f32 %v8407, %v8163
        %v8865 = vmul.f32 %v8411, %v8163
        %v8866 = vmul.f32 %v8415, %v8163
        %v8867 = vmul.f32 %v8419, %v8163
        %v8868 = vmul.f32 %v8423, %v8163
        %v8869 = vmul.f32 %v8427, %v8163
        %v8870 = vmul.f32 %v8431, %v8163
        %v8871 = vmul.f32 %v8435, %v8163
        %v8872 = vmul.f32 %v8439, %v8163
        %v8873 = vmul.f32 %v8443, %v8163
        %v8874 = vmul.f32 %v8447, %v8163
        %v8875 = vmul.f32 %v8451, %v8163
        %v8876 = vmul.f32 %v8455, %v8163
        %v8877 = vmul.f32 %v8459, %v8163
        %v8878 = vmul.f32 %v8463, %v8163
        %v8879 = vmul.f32 %v8467, %v8163
        %v8880 = vmul.f32 %v8471, %v8163
        %v8881 = vmul.f32 %v8475, %v8163
        %v8882 = vmul.f32 %v8479, %v8163
        %v8883 = vmul.f32 %v8483, %v8163
        %v8884 = vmul.f32 %v8487, %v8163
        %v8885 = vmul.f32 %v8491, %v8163
        %v8886 = vmul.f32 %v8495, %v8163
        %v8887 = vmul.f32 %v8499, %v8163
        %v8888 = vmul.f32 %v8503, %v8163
        %v8889 = vmul.f32 %v8507, %v8163
        %v8890 = vmul.f32 %v8511, %v8163
        %v8891 = vmul.f32 %v8515, %v8163
        %v8892 = vmul.f32 %v8519, %v8163
        %v8893 = vmul.f32 %v8523, %v8163
        %v8894 = vmul.f32 %v8527, %v8163
        %v8895 = vmul.f32 %v8531, %v8163
        %v8896 = vmul.f32 %v8535, %v8163
        %v8897 = vmul.f32 %v8539, %v8163
        %v8898 = vmul.f32 %v8543, %v8163
        %v8899 = vmul.f32 %v8547, %v8163
        %v8900 = vmul.f32 %v8551, %v8163
        %v8901 = vmul.f32 %v8555, %v8163
        %v8902 = vmul.f32 %v8559, %v8163
        %v8903 = vmul.f32 %v8563, %v8163
        %v8904 = vmul.f32 %v8567, %v8163
        %v8905 = vmul.f32 %v8571, %v8163
        %v8906 = vmul.f32 %v8575, %v8163
        %v8907 = vmul.f32 %v8579, %v8163
        %v8908 = vmul.f32 %v8583, %v8163
        %v8909 = vmul.f32 %v8587, %v8163
        %v8910 = vmul.f32 %v8591, %v8163
        %v8911 = vmul.f32 %v8595, %v8163
        %v8912 = vmul.f32 %v8599, %v8163
        %v8913 = vmul.f32 %v8603, %v8163
        %v8914 = vmul.f32 %v8607, %v8163
        %v8915 = vmul.f32 %v8611, %v8163
        %v8916 = vmul.f32 %v8615, %v8163
        %v8917 = vmul.f32 %v8619, %v8163
        %v8918 = vmul.f32 %v8623, %v8163
        %v8919 = vmul.f32 %v8627, %v8163
        %v8920 = vmul.f32 %v8631, %v8163
        %v8921 = vmul.f32 %v8635, %v8163
        %v8922 = vmul.f32 %v8639, %v8163
        %v8923 = vmul.f32 %v8643, %v8163
        %v8924 = vmul.f32 %v8647, %v8163
        %v8925 = vmul.f32 %v8651, %v8163
        %v8926 = vmul.f32 %v8655, %v8163
        %v8927 = vmul.f32 %v8659, %v8163
        %v8928 = vmul.f32 %v8663, %v8163
        %v8929 = vmul.f32 %v8667, %v8163
        %v8930 = vmul.f32 %v8671, %v8163
        %v8931 = vmul.f32 %v8675, %v8163
        %v8932 = vadd.f32 %v6845, %v8804
        %v8933 = vadd.f32 %v6846, %v8805
        %v8934 = vadd.f32 %v6847, %v8806
        %v8935 = vadd.f32 %v6848, %v8807
        %v8936 = vadd.f32 %v6849, %v8808
        %v8937 = vadd.f32 %v6850, %v8809
        %v8938 = vadd.f32 %v6851, %v8810
        %v8939 = vadd.f32 %v6852, %v8811
        %v8940 = vadd.f32 %v6853, %v8812
        %v8941 = vadd.f32 %v6854, %v8813
        %v8942 = vadd.f32 %v6855, %v8814
        %v8943 = vadd.f32 %v6856, %v8815
        %v8944 = vadd.f32 %v6857, %v8816
        %v8945 = vadd.f32 %v6858, %v8817
        %v8946 = vadd.f32 %v6859, %v8818
        %v8947 = vadd.f32 %v6860, %v8819
        %v8948 = vadd.f32 %v6861, %v8820
        %v8949 = vadd.f32 %v6862, %v8821
        %v8950 = vadd.f32 %v6863, %v8822
        %v8951 = vadd.f32 %v6864, %v8823
        %v8952 = vadd.f32 %v6865, %v8824
        %v8953 = vadd.f32 %v6866, %v8825
        %v8954 = vadd.f32 %v6867, %v8826
        %v8955 = vadd.f32 %v6868, %v8827
        %v8956 = vadd.f32 %v6869, %v8828
        %v8957 = vadd.f32 %v6870, %v8829
        %v8958 = vadd.f32 %v6871, %v8830
        %v8959 = vadd.f32 %v6872, %v8831
        %v8960 = vadd.f32 %v6873, %v8832
        %v8961 = vadd.f32 %v6874, %v8833
        %v8962 = vadd.f32 %v6875, %v8834
        %v8963 = vadd.f32 %v6876, %v8835
        %v8964 = vadd.f32 %v6877, %v8836
        %v8965 = vadd.f32 %v6878, %v8837
        %v8966 = vadd.f32 %v6879, %v8838
        %v8967 = vadd.f32 %v6880, %v8839
        %v8968 = vadd.f32 %v6881, %v8840
        %v8969 = vadd.f32 %v6882, %v8841
        %v8970 = vadd.f32 %v6883, %v8842
        %v8971 = vadd.f32 %v6884, %v8843
        %v8972 = vadd.f32 %v6885, %v8844
        %v8973 = vadd.f32 %v6886, %v8845
        %v8974 = vadd.f32 %v6887, %v8846
        %v8975 = vadd.f32 %v6888, %v8847
        %v8976 = vadd.f32 %v6889, %v8848
        %v8977 = vadd.f32 %v6890, %v8849
        %v8978 = vadd.f32 %v6891, %v8850
        %v8979 = vadd.f32 %v6892, %v8851
        %v8980 = vadd.f32 %v6893, %v8852
        %v8981 = vadd.f32 %v6894, %v8853
        %v8982 = vadd.f32 %v6895, %v8854
        %v8983 = vadd.f32 %v6896, %v8855
        %v8984 = vadd.f32 %v6897, %v8856
        %v8985 = vadd.f32 %v6898, %v8857
        %v8986 = vadd.f32 %v6899, %v8858
        %v8987 = vadd.f32 %v6900, %v8859
        %v8988 = vadd.f32 %v6901, %v8860
        %v8989 = vadd.f32 %v6902, %v8861
        %v8990 = vadd.f32 %v6903, %v8862
        %v8991 = vadd.f32 %v6904, %v8863
        %v8992 = vadd.f32 %v6905, %v8864
        %v8993 = vadd.f32 %v6906, %v8865
        %v8994 = vadd.f32 %v6907, %v8866
        %v8995 = vadd.f32 %v6908, %v8867
        %v8996 = vadd.f32 %v6909, %v8868
        %v8997 = vadd.f32 %v6910, %v8869
        %v8998 = vadd.f32 %v6911, %v8870
        %v8999 = vadd.f32 %v6912, %v8871
        %v9000 = vadd.f32 %v6913, %v8872
        %v9001 = vadd.f32 %v6914, %v8873
        %v9002 = vadd.f32 %v6915, %v8874
        %v9003 = vadd.f32 %v6916, %v8875
        %v9004 = vadd.f32 %v6917, %v8876
        %v9005 = vadd.f32 %v6918, %v8877
        %v9006 = vadd.f32 %v6919, %v8878
        %v9007 = vadd.f32 %v6920, %v8879
        %v9008 = vadd.f32 %v6921, %v8880
        %v9009 = vadd.f32 %v6922, %v8881
        %v9010 = vadd.f32 %v6923, %v8882
        %v9011 = vadd.f32 %v6924, %v8883
        %v9012 = vadd.f32 %v6925, %v8884
        %v9013 = vadd.f32 %v6926, %v8885
        %v9014 = vadd.f32 %v6927, %v8886
        %v9015 = vadd.f32 %v6928, %v8887
        %v9016 = vadd.f32 %v6929, %v8888
        %v9017 = vadd.f32 %v6930, %v8889
        %v9018 = vadd.f32 %v6931, %v8890
        %v9019 = vadd.f32 %v6932, %v8891
        %v9020 = vadd.f32 %v6933, %v8892
        %v9021 = vadd.f32 %v6934, %v8893
        %v9022 = vadd.f32 %v6935, %v8894
        %v9023 = vadd.f32 %v6936, %v8895
        %v9024 = vadd.f32 %v6937, %v8896
        %v9025 = vadd.f32 %v6938, %v8897
        %v9026 = vadd.f32 %v6939, %v8898
        %v9027 = vadd.f32 %v6940, %v8899
        %v9028 = vadd.f32 %v6941, %v8900
        %v9029 = vadd.f32 %v6942, %v8901
        %v9030 = vadd.f32 %v6943, %v8902
        %v9031 = vadd.f32 %v6944, %v8903
        %v9032 = vadd.f32 %v6945, %v8904
        %v9033 = vadd.f32 %v6946, %v8905
        %v9034 = vadd.f32 %v6947, %v8906
        %v9035 = vadd.f32 %v6948, %v8907
        %v9036 = vadd.f32 %v6949, %v8908
        %v9037 = vadd.f32 %v6950, %v8909
        %v9038 = vadd.f32 %v6951, %v8910
        %v9039 = vadd.f32 %v6952, %v8911
        %v9040 = vadd.f32 %v6953, %v8912
        %v9041 = vadd.f32 %v6954, %v8913
        %v9042 = vadd.f32 %v6955, %v8914
        %v9043 = vadd.f32 %v6956, %v8915
        %v9044 = vadd.f32 %v6957, %v8916
        %v9045 = vadd.f32 %v6958, %v8917
        %v9046 = vadd.f32 %v6959, %v8918
        %v9047 = vadd.f32 %v6960, %v8919
        %v9048 = vadd.f32 %v6961, %v8920
        %v9049 = vadd.f32 %v6962, %v8921
        %v9050 = vadd.f32 %v6963, %v8922
        %v9051 = vadd.f32 %v6964, %v8923
        %v9052 = vadd.f32 %v6965, %v8924
        %v9053 = vadd.f32 %v6966, %v8925
        %v9054 = vadd.f32 %v6967, %v8926
        %v9055 = vadd.f32 %v6968, %v8927
        %v9056 = vadd.f32 %v6969, %v8928
        %v9057 = vadd.f32 %v6970, %v8929
        %v9058 = vadd.f32 %v6971, %v8930
        %v9059 = vadd.f32 %v6972, %v8931
        %vm9060 = vcmp.ge.f32.partialorder %v8932, 0.0
        %vm9061 = vcmp.ge.f32.partialorder %v8933, 0.0
        %vm9062 = vcmp.ge.f32.partialorder %v8934, 0.0
        %vm9063 = vcmp.ge.f32.partialorder %v8935, 0.0
        %vm9064 = vcmp.ge.f32.partialorder %v8936, 0.0
        %vm9065 = vcmp.ge.f32.partialorder %v8937, 0.0
        %vm9066 = vcmp.ge.f32.partialorder %v8938, 0.0
        %vm9067 = vcmp.ge.f32.partialorder %v8939, 0.0
        %vm9068 = vcmp.ge.f32.partialorder %v8940, 0.0
        %vm9069 = vcmp.ge.f32.partialorder %v8941, 0.0
        %vm9070 = vcmp.ge.f32.partialorder %v8942, 0.0
        %vm9071 = vcmp.ge.f32.partialorder %v8943, 0.0
        %vm9072 = vcmp.ge.f32.partialorder %v8944, 0.0
        %vm9073 = vcmp.ge.f32.partialorder %v8945, 0.0
        %vm9074 = vcmp.ge.f32.partialorder %v8946, 0.0
        %vm9075 = vcmp.ge.f32.partialorder %v8947, 0.0
        %vm9076 = vcmp.ge.f32.partialorder %v8948, 0.0
        %vm9077 = vcmp.ge.f32.partialorder %v8949, 0.0
        %vm9078 = vcmp.ge.f32.partialorder %v8950, 0.0
        %vm9079 = vcmp.ge.f32.partialorder %v8951, 0.0
        %vm9080 = vcmp.ge.f32.partialorder %v8952, 0.0
        %vm9081 = vcmp.ge.f32.partialorder %v8953, 0.0
        %vm9082 = vcmp.ge.f32.partialorder %v8954, 0.0
        %vm9083 = vcmp.ge.f32.partialorder %v8955, 0.0
        %vm9084 = vcmp.ge.f32.partialorder %v8956, 0.0
        %vm9085 = vcmp.ge.f32.partialorder %v8957, 0.0
        %vm9086 = vcmp.ge.f32.partialorder %v8958, 0.0
        %vm9087 = vcmp.ge.f32.partialorder %v8959, 0.0
        %vm9088 = vcmp.ge.f32.partialorder %v8960, 0.0
        %vm9089 = vcmp.ge.f32.partialorder %v8961, 0.0
        %vm9090 = vcmp.ge.f32.partialorder %v8962, 0.0
        %vm9091 = vcmp.ge.f32.partialorder %v8963, 0.0
        %vm9092 = vcmp.ge.f32.partialorder %v8964, 0.0
        %vm9093 = vcmp.ge.f32.partialorder %v8965, 0.0
        %vm9094 = vcmp.ge.f32.partialorder %v8966, 0.0
        %vm9095 = vcmp.ge.f32.partialorder %v8967, 0.0
        %vm9096 = vcmp.ge.f32.partialorder %v8968, 0.0
        %vm9097 = vcmp.ge.f32.partialorder %v8969, 0.0
        %vm9098 = vcmp.ge.f32.partialorder %v8970, 0.0
        %vm9099 = vcmp.ge.f32.partialorder %v8971, 0.0
        %vm9100 = vcmp.ge.f32.partialorder %v8972, 0.0
        %vm9101 = vcmp.ge.f32.partialorder %v8973, 0.0
        %vm9102 = vcmp.ge.f32.partialorder %v8974, 0.0
        %vm9103 = vcmp.ge.f32.partialorder %v8975, 0.0
        %vm9104 = vcmp.ge.f32.partialorder %v8976, 0.0
        %vm9105 = vcmp.ge.f32.partialorder %v8977, 0.0
        %vm9106 = vcmp.ge.f32.partialorder %v8978, 0.0
        %vm9107 = vcmp.ge.f32.partialorder %v8979, 0.0
        %vm9108 = vcmp.ge.f32.partialorder %v8980, 0.0
        %vm9109 = vcmp.ge.f32.partialorder %v8981, 0.0
        %vm9110 = vcmp.ge.f32.partialorder %v8982, 0.0
        %vm9111 = vcmp.ge.f32.partialorder %v8983, 0.0
        %vm9112 = vcmp.ge.f32.partialorder %v8984, 0.0
        %vm9113 = vcmp.ge.f32.partialorder %v8985, 0.0
        %vm9114 = vcmp.ge.f32.partialorder %v8986, 0.0
        %vm9115 = vcmp.ge.f32.partialorder %v8987, 0.0
        %vm9116 = vcmp.ge.f32.partialorder %v8988, 0.0
        %vm9117 = vcmp.ge.f32.partialorder %v8989, 0.0
        %vm9118 = vcmp.ge.f32.partialorder %v8990, 0.0
        %vm9119 = vcmp.ge.f32.partialorder %v8991, 0.0
        %vm9120 = vcmp.ge.f32.partialorder %v8992, 0.0
        %vm9121 = vcmp.ge.f32.partialorder %v8993, 0.0
        %vm9122 = vcmp.ge.f32.partialorder %v8994, 0.0
        %vm9123 = vcmp.ge.f32.partialorder %v8995, 0.0
        %vm9124 = vcmp.ge.f32.partialorder %v8996, 0.0
        %vm9125 = vcmp.ge.f32.partialorder %v8997, 0.0
        %vm9126 = vcmp.ge.f32.partialorder %v8998, 0.0
        %vm9127 = vcmp.ge.f32.partialorder %v8999, 0.0
        %vm9128 = vcmp.ge.f32.partialorder %v9000, 0.0
        %vm9129 = vcmp.ge.f32.partialorder %v9001, 0.0
        %vm9130 = vcmp.ge.f32.partialorder %v9002, 0.0
        %vm9131 = vcmp.ge.f32.partialorder %v9003, 0.0
        %vm9132 = vcmp.ge.f32.partialorder %v9004, 0.0
        %vm9133 = vcmp.ge.f32.partialorder %v9005, 0.0
        %vm9134 = vcmp.ge.f32.partialorder %v9006, 0.0
        %vm9135 = vcmp.ge.f32.partialorder %v9007, 0.0
        %vm9136 = vcmp.ge.f32.partialorder %v9008, 0.0
        %vm9137 = vcmp.ge.f32.partialorder %v9009, 0.0
        %vm9138 = vcmp.ge.f32.partialorder %v9010, 0.0
        %vm9139 = vcmp.ge.f32.partialorder %v9011, 0.0
        %vm9140 = vcmp.ge.f32.partialorder %v9012, 0.0
        %vm9141 = vcmp.ge.f32.partialorder %v9013, 0.0
        %vm9142 = vcmp.ge.f32.partialorder %v9014, 0.0
        %vm9143 = vcmp.ge.f32.partialorder %v9015, 0.0
        %vm9144 = vcmp.ge.f32.partialorder %v9016, 0.0
        %vm9145 = vcmp.ge.f32.partialorder %v9017, 0.0
        %vm9146 = vcmp.ge.f32.partialorder %v9018, 0.0
        %vm9147 = vcmp.ge.f32.partialorder %v9019, 0.0
        %vm9148 = vcmp.ge.f32.partialorder %v9020, 0.0
        %vm9149 = vcmp.ge.f32.partialorder %v9021, 0.0
        %vm9150 = vcmp.ge.f32.partialorder %v9022, 0.0
        %vm9151 = vcmp.ge.f32.partialorder %v9023, 0.0
        %vm9152 = vcmp.ge.f32.partialorder %v9024, 0.0
        %vm9153 = vcmp.ge.f32.partialorder %v9025, 0.0
        %vm9154 = vcmp.ge.f32.partialorder %v9026, 0.0
        %vm9155 = vcmp.ge.f32.partialorder %v9027, 0.0
        %vm9156 = vcmp.ge.f32.partialorder %v9028, 0.0
        %vm9157 = vcmp.ge.f32.partialorder %v9029, 0.0
        %vm9158 = vcmp.ge.f32.partialorder %v9030, 0.0
        %vm9159 = vcmp.ge.f32.partialorder %v9031, 0.0
        %vm9160 = vcmp.ge.f32.partialorder %v9032, 0.0
        %vm9161 = vcmp.ge.f32.partialorder %v9033, 0.0
        %vm9162 = vcmp.ge.f32.partialorder %v9034, 0.0
        %vm9163 = vcmp.ge.f32.partialorder %v9035, 0.0
        %vm9164 = vcmp.ge.f32.partialorder %v9036, 0.0
        %vm9165 = vcmp.ge.f32.partialorder %v9037, 0.0
        %vm9166 = vcmp.ge.f32.partialorder %v9038, 0.0
        %vm9167 = vcmp.ge.f32.partialorder %v9039, 0.0
        %vm9168 = vcmp.ge.f32.partialorder %v9040, 0.0
        %vm9169 = vcmp.ge.f32.partialorder %v9041, 0.0
        %vm9170 = vcmp.ge.f32.partialorder %v9042, 0.0
        %vm9171 = vcmp.ge.f32.partialorder %v9043, 0.0
        %vm9172 = vcmp.ge.f32.partialorder %v9044, 0.0
        %vm9173 = vcmp.ge.f32.partialorder %v9045, 0.0
        %vm9174 = vcmp.ge.f32.partialorder %v9046, 0.0
        %vm9175 = vcmp.ge.f32.partialorder %v9047, 0.0
        %vm9176 = vcmp.ge.f32.partialorder %v9048, 0.0
        %vm9177 = vcmp.ge.f32.partialorder %v9049, 0.0
        %vm9178 = vcmp.ge.f32.partialorder %v9050, 0.0
        %vm9179 = vcmp.ge.f32.partialorder %v9051, 0.0
        %vm9180 = vcmp.ge.f32.partialorder %v9052, 0.0
        %vm9181 = vcmp.ge.f32.partialorder %v9053, 0.0
        %vm9182 = vcmp.ge.f32.partialorder %v9054, 0.0
        %vm9183 = vcmp.ge.f32.partialorder %v9055, 0.0
        %vm9184 = vcmp.ge.f32.partialorder %v9056, 0.0
        %vm9185 = vcmp.ge.f32.partialorder %v9057, 0.0
        %vm9186 = vcmp.ge.f32.partialorder %v9058, 0.0
        %vm9187 = vcmp.ge.f32.partialorder %v9059, 0.0
        %v9188 = vmul.f32 %v8932, 0.2
        %v9189 = vmul.f32 %v8933, 0.2
        %v9190 = vmul.f32 %v8934, 0.2
        %v9191 = vmul.f32 %v8935, 0.2
        %v9192 = vmul.f32 %v8936, 0.2
        %v9193 = vmul.f32 %v8937, 0.2
        %v9194 = vmul.f32 %v8938, 0.2
        %v9195 = vmul.f32 %v8939, 0.2
        %v9196 = vmul.f32 %v8940, 0.2
        %v9197 = vmul.f32 %v8941, 0.2
        %v9198 = vmul.f32 %v8942, 0.2
        %v9199 = vmul.f32 %v8943, 0.2
        %v9200 = vmul.f32 %v8944, 0.2
        %v9201 = vmul.f32 %v8945, 0.2
        %v9202 = vmul.f32 %v8946, 0.2
        %v9203 = vmul.f32 %v8947, 0.2
        %v9204 = vmul.f32 %v8948, 0.2
        %v9205 = vmul.f32 %v8949, 0.2
        %v9206 = vmul.f32 %v8950, 0.2
        %v9207 = vmul.f32 %v8951, 0.2
        %v9208 = vmul.f32 %v8952, 0.2
        %v9209 = vmul.f32 %v8953, 0.2
        %v9210 = vmul.f32 %v8954, 0.2
        %v9211 = vmul.f32 %v8955, 0.2
        %v9212 = vmul.f32 %v8956, 0.2
        %v9213 = vmul.f32 %v8957, 0.2
        %v9214 = vmul.f32 %v8958, 0.2
        %v9215 = vmul.f32 %v8959, 0.2
        %v9216 = vmul.f32 %v8960, 0.2
        %v9217 = vmul.f32 %v8961, 0.2
        %v9218 = vmul.f32 %v8962, 0.2
        %v9219 = vmul.f32 %v8963, 0.2
        %v9220 = vmul.f32 %v8964, 0.2
        %v9221 = vmul.f32 %v8965, 0.2
        %v9222 = vmul.f32 %v8966, 0.2
        %v9223 = vmul.f32 %v8967, 0.2
        %v9224 = vmul.f32 %v8968, 0.2
        %v9225 = vmul.f32 %v8969, 0.2
        %v9226 = vmul.f32 %v8970, 0.2
        %v9227 = vmul.f32 %v8971, 0.2
        %v9228 = vmul.f32 %v8972, 0.2
        %v9229 = vmul.f32 %v8973, 0.2
        %v9230 = vmul.f32 %v8974, 0.2
        %v9231 = vmul.f32 %v8975, 0.2
        %v9232 = vmul.f32 %v8976, 0.2
        %v9233 = vmul.f32 %v8977, 0.2
        %v9234 = vmul.f32 %v8978, 0.2
        %v9235 = vmul.f32 %v8979, 0.2
        %v9236 = vmul.f32 %v8980, 0.2
        %v9237 = vmul.f32 %v8981, 0.2
        %v9238 = vmul.f32 %v8982, 0.2
        %v9239 = vmul.f32 %v8983, 0.2
        %v9240 = vmul.f32 %v8984, 0.2
        %v9241 = vmul.f32 %v8985, 0.2
        %v9242 = vmul.f32 %v8986, 0.2
        %v9243 = vmul.f32 %v8987, 0.2
        %v9244 = vmul.f32 %v8988, 0.2
        %v9245 = vmul.f32 %v8989, 0.2
        %v9246 = vmul.f32 %v8990, 0.2
        %v9247 = vmul.f32 %v8991, 0.2
        %v9248 = vmul.f32 %v8992, 0.2
        %v9249 = vmul.f32 %v8993, 0.2
        %v9250 = vmul.f32 %v8994, 0.2
        %v9251 = vmul.f32 %v8995, 0.2
        %v9252 = vmul.f32 %v8996, 0.2
        %v9253 = vmul.f32 %v8997, 0.2
        %v9254 = vmul.f32 %v8998, 0.2
        %v9255 = vmul.f32 %v8999, 0.2
        %v9256 = vmul.f32 %v9000, 0.2
        %v9257 = vmul.f32 %v9001, 0.2
        %v9258 = vmul.f32 %v9002, 0.2
        %v9259 = vmul.f32 %v9003, 0.2
        %v9260 = vmul.f32 %v9004, 0.2
        %v9261 = vmul.f32 %v9005, 0.2
        %v9262 = vmul.f32 %v9006, 0.2
        %v9263 = vmul.f32 %v9007, 0.2
        %v9264 = vmul.f32 %v9008, 0.2
        %v9265 = vmul.f32 %v9009, 0.2
        %v9266 = vmul.f32 %v9010, 0.2
        %v9267 = vmul.f32 %v9011, 0.2
        %v9268 = vmul.f32 %v9012, 0.2
        %v9269 = vmul.f32 %v9013, 0.2
        %v9270 = vmul.f32 %v9014, 0.2
        %v9271 = vmul.f32 %v9015, 0.2
        %v9272 = vmul.f32 %v9016, 0.2
        %v9273 = vmul.f32 %v9017, 0.2
        %v9274 = vmul.f32 %v9018, 0.2
        %v9275 = vmul.f32 %v9019, 0.2
        %v9276 = vmul.f32 %v9020, 0.2
        %v9277 = vmul.f32 %v9021, 0.2
        %v9278 = vmul.f32 %v9022, 0.2
        %v9279 = vmul.f32 %v9023, 0.2
        %v9280 = vmul.f32 %v9024, 0.2
        %v9281 = vmul.f32 %v9025, 0.2
        %v9282 = vmul.f32 %v9026, 0.2
        %v9283 = vmul.f32 %v9027, 0.2
        %v9284 = vmul.f32 %v9028, 0.2
        %v9285 = vmul.f32 %v9029, 0.2
        %v9286 = vmul.f32 %v9030, 0.2
        %v9287 = vmul.f32 %v9031, 0.2
        %v9288 = vmul.f32 %v9032, 0.2
        %v9289 = vmul.f32 %v9033, 0.2
        %v9290 = vmul.f32 %v9034, 0.2
        %v9291 = vmul.f32 %v9035, 0.2
        %v9292 = vmul.f32 %v9036, 0.2
        %v9293 = vmul.f32 %v9037, 0.2
        %v9294 = vmul.f32 %v9038, 0.2
        %v9295 = vmul.f32 %v9039, 0.2
        %v9296 = vmul.f32 %v9040, 0.2
        %v9297 = vmul.f32 %v9041, 0.2
        %v9298 = vmul.f32 %v9042, 0.2
        %v9299 = vmul.f32 %v9043, 0.2
        %v9300 = vmul.f32 %v9044, 0.2
        %v9301 = vmul.f32 %v9045, 0.2
        %v9302 = vmul.f32 %v9046, 0.2
        %v9303 = vmul.f32 %v9047, 0.2
        %v9304 = vmul.f32 %v9048, 0.2
        %v9305 = vmul.f32 %v9049, 0.2
        %v9306 = vmul.f32 %v9050, 0.2
        %v9307 = vmul.f32 %v9051, 0.2
        %v9308 = vmul.f32 %v9052, 0.2
        %v9309 = vmul.f32 %v9053, 0.2
        %v9310 = vmul.f32 %v9054, 0.2
        %v9311 = vmul.f32 %v9055, 0.2
        %v9312 = vmul.f32 %v9056, 0.2
        %v9313 = vmul.f32 %v9057, 0.2
        %v9314 = vmul.f32 %v9058, 0.2
        %v9315 = vmul.f32 %v9059, 0.2
        %v9316 = vsel %vm9060, %v8932, %v9188
        %v9317 = vsel %vm9061, %v8933, %v9189
        %v9318 = vsel %vm9062, %v8934, %v9190
        %v9319 = vsel %vm9063, %v8935, %v9191
        %v9320 = vsel %vm9064, %v8936, %v9192
        %v9321 = vsel %vm9065, %v8937, %v9193
        %v9322 = vsel %vm9066, %v8938, %v9194
        %v9323 = vsel %vm9067, %v8939, %v9195
        %v9324 = vsel %vm9068, %v8940, %v9196
        %v9325 = vsel %vm9069, %v8941, %v9197
        %v9326 = vsel %vm9070, %v8942, %v9198
        %v9327 = vsel %vm9071, %v8943, %v9199
        %v9328 = vsel %vm9072, %v8944, %v9200
        %v9329 = vsel %vm9073, %v8945, %v9201
        %v9330 = vsel %vm9074, %v8946, %v9202
        %v9331 = vsel %vm9075, %v8947, %v9203
        %v9332 = vsel %vm9076, %v8948, %v9204
        %v9333 = vsel %vm9077, %v8949, %v9205
        %v9334 = vsel %vm9078, %v8950, %v9206
        %v9335 = vsel %vm9079, %v8951, %v9207
        %v9336 = vsel %vm9080, %v8952, %v9208
        %v9337 = vsel %vm9081, %v8953, %v9209
        %v9338 = vsel %vm9082, %v8954, %v9210
        %v9339 = vsel %vm9083, %v8955, %v9211
        %v9340 = vsel %vm9084, %v8956, %v9212
        %v9341 = vsel %vm9085, %v8957, %v9213
        %v9342 = vsel %vm9086, %v8958, %v9214
        %v9343 = vsel %vm9087, %v8959, %v9215
        %v9344 = vsel %vm9088, %v8960, %v9216
        %v9345 = vsel %vm9089, %v8961, %v9217
        %v9346 = vsel %vm9090, %v8962, %v9218
        %v9347 = vsel %vm9091, %v8963, %v9219
        %v9348 = vsel %vm9092, %v8964, %v9220
        %v9349 = vsel %vm9093, %v8965, %v9221
        %v9350 = vsel %vm9094, %v8966, %v9222
        %v9351 = vsel %vm9095, %v8967, %v9223
        %v9352 = vsel %vm9096, %v8968, %v9224
        %v9353 = vsel %vm9097, %v8969, %v9225
        %v9354 = vsel %vm9098, %v8970, %v9226
        %v9355 = vsel %vm9099, %v8971, %v9227
        %v9356 = vsel %vm9100, %v8972, %v9228
        %v9357 = vsel %vm9101, %v8973, %v9229
        %v9358 = vsel %vm9102, %v8974, %v9230
        %v9359 = vsel %vm9103, %v8975, %v9231
        %v9360 = vsel %vm9104, %v8976, %v9232
        %v9361 = vsel %vm9105, %v8977, %v9233
        %v9362 = vsel %vm9106, %v8978, %v9234
        %v9363 = vsel %vm9107, %v8979, %v9235
        %v9364 = vsel %vm9108, %v8980, %v9236
        %v9365 = vsel %vm9109, %v8981, %v9237
        %v9366 = vsel %vm9110, %v8982, %v9238
        %v9367 = vsel %vm9111, %v8983, %v9239
        %v9368 = vsel %vm9112, %v8984, %v9240
        %v9369 = vsel %vm9113, %v8985, %v9241
        %v9370 = vsel %vm9114, %v8986, %v9242
        %v9371 = vsel %vm9115, %v8987, %v9243
        %v9372 = vsel %vm9116, %v8988, %v9244
        %v9373 = vsel %vm9117, %v8989, %v9245
        %v9374 = vsel %vm9118, %v8990, %v9246
        %v9375 = vsel %vm9119, %v8991, %v9247
        %v9376 = vsel %vm9120, %v8992, %v9248
        %v9377 = vsel %vm9121, %v8993, %v9249
        %v9378 = vsel %vm9122, %v8994, %v9250
        %v9379 = vsel %vm9123, %v8995, %v9251
        %v9380 = vsel %vm9124, %v8996, %v9252
        %v9381 = vsel %vm9125, %v8997, %v9253
        %v9382 = vsel %vm9126, %v8998, %v9254
        %v9383 = vsel %vm9127, %v8999, %v9255
        %v9384 = vsel %vm9128, %v9000, %v9256
        %v9385 = vsel %vm9129, %v9001, %v9257
        %v9386 = vsel %vm9130, %v9002, %v9258
        %v9387 = vsel %vm9131, %v9003, %v9259
        %v9388 = vsel %vm9132, %v9004, %v9260
        %v9389 = vsel %vm9133, %v9005, %v9261
        %v9390 = vsel %vm9134, %v9006, %v9262
        %v9391 = vsel %vm9135, %v9007, %v9263
        %v9392 = vsel %vm9136, %v9008, %v9264
        %v9393 = vsel %vm9137, %v9009, %v9265
        %v9394 = vsel %vm9138, %v9010, %v9266
        %v9395 = vsel %vm9139, %v9011, %v9267
        %v9396 = vsel %vm9140, %v9012, %v9268
        %v9397 = vsel %vm9141, %v9013, %v9269
        %v9398 = vsel %vm9142, %v9014, %v9270
        %v9399 = vsel %vm9143, %v9015, %v9271
        %v9400 = vsel %vm9144, %v9016, %v9272
        %v9401 = vsel %vm9145, %v9017, %v9273
        %v9402 = vsel %vm9146, %v9018, %v9274
        %v9403 = vsel %vm9147, %v9019, %v9275
        %v9404 = vsel %vm9148, %v9020, %v9276
        %v9405 = vsel %vm9149, %v9021, %v9277
        %v9406 = vsel %vm9150, %v9022, %v9278
        %v9407 = vsel %vm9151, %v9023, %v9279
        %v9408 = vsel %vm9152, %v9024, %v9280
        %v9409 = vsel %vm9153, %v9025, %v9281
        %v9410 = vsel %vm9154, %v9026, %v9282
        %v9411 = vsel %vm9155, %v9027, %v9283
        %v9412 = vsel %vm9156, %v9028, %v9284
        %v9413 = vsel %vm9157, %v9029, %v9285
        %v9414 = vsel %vm9158, %v9030, %v9286
        %v9415 = vsel %vm9159, %v9031, %v9287
        %v9416 = vsel %vm9160, %v9032, %v9288
        %v9417 = vsel %vm9161, %v9033, %v9289
        %v9418 = vsel %vm9162, %v9034, %v9290
        %v9419 = vsel %vm9163, %v9035, %v9291
        %v9420 = vsel %vm9164, %v9036, %v9292
        %v9421 = vsel %vm9165, %v9037, %v9293
        %v9422 = vsel %vm9166, %v9038, %v9294
        %v9423 = vsel %vm9167, %v9039, %v9295
        %v9424 = vsel %vm9168, %v9040, %v9296
        %v9425 = vsel %vm9169, %v9041, %v9297
        %v9426 = vsel %vm9170, %v9042, %v9298
        %v9427 = vsel %vm9171, %v9043, %v9299
        %v9428 = vsel %vm9172, %v9044, %v9300
        %v9429 = vsel %vm9173, %v9045, %v9301
        %v9430 = vsel %vm9174, %v9046, %v9302
        %v9431 = vsel %vm9175, %v9047, %v9303
        %v9432 = vsel %vm9176, %v9048, %v9304
        %v9433 = vsel %vm9177, %v9049, %v9305
        %v9434 = vsel %vm9178, %v9050, %v9306
        %v9435 = vsel %vm9179, %v9051, %v9307
        %v9436 = vsel %vm9180, %v9052, %v9308
        %v9437 = vsel %vm9181, %v9053, %v9309
        %v9438 = vsel %vm9182, %v9054, %v9310
        %v9439 = vsel %vm9183, %v9055, %v9311
        %v9440 = vsel %vm9184, %v9056, %v9312
        %v9441 = vsel %vm9185, %v9057, %v9313
        %v9442 = vsel %vm9186, %v9058, %v9314
        %v9443 = vsel %vm9187, %v9059, %v9315
        %v9444 = vld [vmem:[%s8] sm:$0xff]
        %v9445 = vmul.f32 %v9316, %v9444
        %v9446 = vmul.f32 %v9317, %v9444
        %v9447 = vmul.f32 %v9318, %v9444
        %v9448 = vmul.f32 %v9319, %v9444
        %v9449 = vmul.f32 %v9320, %v9444
        %v9450 = vmul.f32 %v9321, %v9444
        %v9451 = vmul.f32 %v9322, %v9444
        %v9452 = vmul.f32 %v9323, %v9444
        %v9453 = vmul.f32 %v9324, %v9444
        %v9454 = vmul.f32 %v9325, %v9444
        %v9455 = vmul.f32 %v9326, %v9444
        %v9456 = vmul.f32 %v9327, %v9444
        %v9457 = vmul.f32 %v9328, %v9444
        %v9458 = vmul.f32 %v9329, %v9444
        %v9459 = vmul.f32 %v9330, %v9444
        %v9460 = vmul.f32 %v9331, %v9444
        %v9461 = vmul.f32 %v9332, %v9444
        %v9462 = vmul.f32 %v9333, %v9444
        %v9463 = vmul.f32 %v9334, %v9444
        %v9464 = vmul.f32 %v9335, %v9444
        %v9465 = vmul.f32 %v9336, %v9444
        %v9466 = vmul.f32 %v9337, %v9444
        %v9467 = vmul.f32 %v9338, %v9444
        %v9468 = vmul.f32 %v9339, %v9444
        %v9469 = vmul.f32 %v9340, %v9444
        %v9470 = vmul.f32 %v9341, %v9444
        %v9471 = vmul.f32 %v9342, %v9444
        %v9472 = vmul.f32 %v9343, %v9444
        %v9473 = vmul.f32 %v9344, %v9444
        %v9474 = vmul.f32 %v9345, %v9444
        %v9475 = vmul.f32 %v9346, %v9444
        %v9476 = vmul.f32 %v9347, %v9444
        %v9477 = vmul.f32 %v9348, %v9444
        %v9478 = vmul.f32 %v9349, %v9444
        %v9479 = vmul.f32 %v9350, %v9444
        %v9480 = vmul.f32 %v9351, %v9444
        %v9481 = vmul.f32 %v9352, %v9444
        %v9482 = vmul.f32 %v9353, %v9444
        %v9483 = vmul.f32 %v9354, %v9444
        %v9484 = vmul.f32 %v9355, %v9444
        %v9485 = vmul.f32 %v9356, %v9444
        %v9486 = vmul.f32 %v9357, %v9444
        %v9487 = vmul.f32 %v9358, %v9444
        %v9488 = vmul.f32 %v9359, %v9444
        %v9489 = vmul.f32 %v9360, %v9444
        %v9490 = vmul.f32 %v9361, %v9444
        %v9491 = vmul.f32 %v9362, %v9444
        %v9492 = vmul.f32 %v9363, %v9444
        %v9493 = vmul.f32 %v9364, %v9444
        %v9494 = vmul.f32 %v9365, %v9444
        %v9495 = vmul.f32 %v9366, %v9444
        %v9496 = vmul.f32 %v9367, %v9444
        %v9497 = vmul.f32 %v9368, %v9444
        %v9498 = vmul.f32 %v9369, %v9444
        %v9499 = vmul.f32 %v9370, %v9444
        %v9500 = vmul.f32 %v9371, %v9444
        %v9501 = vmul.f32 %v9372, %v9444
        %v9502 = vmul.f32 %v9373, %v9444
        %v9503 = vmul.f32 %v9374, %v9444
        %v9504 = vmul.f32 %v9375, %v9444
        %v9505 = vmul.f32 %v9376, %v9444
        %v9506 = vmul.f32 %v9377, %v9444
        %v9507 = vmul.f32 %v9378, %v9444
        %v9508 = vmul.f32 %v9379, %v9444
        %v9509 = vmul.f32 %v9380, %v9444
        %v9510 = vmul.f32 %v9381, %v9444
        %v9511 = vmul.f32 %v9382, %v9444
        %v9512 = vmul.f32 %v9383, %v9444
        %v9513 = vmul.f32 %v9384, %v9444
        %v9514 = vmul.f32 %v9385, %v9444
        %v9515 = vmul.f32 %v9386, %v9444
        %v9516 = vmul.f32 %v9387, %v9444
        %v9517 = vmul.f32 %v9388, %v9444
        %v9518 = vmul.f32 %v9389, %v9444
        %v9519 = vmul.f32 %v9390, %v9444
        %v9520 = vmul.f32 %v9391, %v9444
        %v9521 = vmul.f32 %v9392, %v9444
        %v9522 = vmul.f32 %v9393, %v9444
        %v9523 = vmul.f32 %v9394, %v9444
        %v9524 = vmul.f32 %v9395, %v9444
        %v9525 = vmul.f32 %v9396, %v9444
        %v9526 = vmul.f32 %v9397, %v9444
        %v9527 = vmul.f32 %v9398, %v9444
        %v9528 = vmul.f32 %v9399, %v9444
        %v9529 = vmul.f32 %v9400, %v9444
        %v9530 = vmul.f32 %v9401, %v9444
        %v9531 = vmul.f32 %v9402, %v9444
        %v9532 = vmul.f32 %v9403, %v9444
        %v9533 = vmul.f32 %v9404, %v9444
        %v9534 = vmul.f32 %v9405, %v9444
        %v9535 = vmul.f32 %v9406, %v9444
        %v9536 = vmul.f32 %v9407, %v9444
        %v9537 = vmul.f32 %v9408, %v9444
        %v9538 = vmul.f32 %v9409, %v9444
        %v9539 = vmul.f32 %v9410, %v9444
        %v9540 = vmul.f32 %v9411, %v9444
        %v9541 = vmul.f32 %v9412, %v9444
        %v9542 = vmul.f32 %v9413, %v9444
        %v9543 = vmul.f32 %v9414, %v9444
        %v9544 = vmul.f32 %v9415, %v9444
        %v9545 = vmul.f32 %v9416, %v9444
        %v9546 = vmul.f32 %v9417, %v9444
        %v9547 = vmul.f32 %v9418, %v9444
        %v9548 = vmul.f32 %v9419, %v9444
        %v9549 = vmul.f32 %v9420, %v9444
        %v9550 = vmul.f32 %v9421, %v9444
        %v9551 = vmul.f32 %v9422, %v9444
        %v9552 = vmul.f32 %v9423, %v9444
        %v9553 = vmul.f32 %v9424, %v9444
        %v9554 = vmul.f32 %v9425, %v9444
        %v9555 = vmul.f32 %v9426, %v9444
        %v9556 = vmul.f32 %v9427, %v9444
        %v9557 = vmul.f32 %v9428, %v9444
        %v9558 = vmul.f32 %v9429, %v9444
        %v9559 = vmul.f32 %v9430, %v9444
        %v9560 = vmul.f32 %v9431, %v9444
        %v9561 = vmul.f32 %v9432, %v9444
        %v9562 = vmul.f32 %v9433, %v9444
        %v9563 = vmul.f32 %v9434, %v9444
        %v9564 = vmul.f32 %v9435, %v9444
        %v9565 = vmul.f32 %v9436, %v9444
        %v9566 = vmul.f32 %v9437, %v9444
        %v9567 = vmul.f32 %v9438, %v9444
        %v9568 = vmul.f32 %v9439, %v9444
        %v9569 = vmul.f32 %v9440, %v9444
        %v9570 = vmul.f32 %v9441, %v9444
        %v9571 = vmul.f32 %v9442, %v9444
        %v9572 = vmul.f32 %v9443, %v9444
        %v9573 = vsel %vm860, %v9445, 0.0
        %v9574 = vrot.slane %v9573, 4
        %v9575 = vadd.f32 %v9573, %v9574
        %v9576 = vrot.slane %v9575, 2
        %v9577 = vadd.f32 %v9575, %v9576
        %v9578 = vrot.slane %v9577, 1
        %v9579 = vadd.f32 %v9577, %v9578
        %v9580 = vsel %vm860, %v9446, 0.0
        %v9581 = vrot.slane %v9580, 4
        %v9582 = vadd.f32 %v9580, %v9581
        %v9583 = vrot.slane %v9582, 2
        %v9584 = vadd.f32 %v9582, %v9583
        %v9585 = vrot.slane %v9584, 1
        %v9586 = vadd.f32 %v9584, %v9585
        %v9587 = vsel %vm860, %v9447, 0.0
        %v9588 = vrot.slane %v9587, 4
        %v9589 = vadd.f32 %v9587, %v9588
        %v9590 = vrot.slane %v9589, 2
        %v9591 = vadd.f32 %v9589, %v9590
        %v9592 = vrot.slane %v9591, 1
        %v9593 = vadd.f32 %v9591, %v9592
        %v9594 = vsel %vm860, %v9448, 0.0
        %v9595 = vrot.slane %v9594, 4
        %v9596 = vadd.f32 %v9594, %v9595
        %v9597 = vrot.slane %v9596, 2
        %v9598 = vadd.f32 %v9596, %v9597
        %v9599 = vrot.slane %v9598, 1
        %v9600 = vadd.f32 %v9598, %v9599
        %v9601 = vsel %vm860, %v9449, 0.0
        %v9602 = vrot.slane %v9601, 4
        %v9603 = vadd.f32 %v9601, %v9602
        %v9604 = vrot.slane %v9603, 2
        %v9605 = vadd.f32 %v9603, %v9604
        %v9606 = vrot.slane %v9605, 1
        %v9607 = vadd.f32 %v9605, %v9606
        %v9608 = vsel %vm860, %v9450, 0.0
        %v9609 = vrot.slane %v9608, 4
        %v9610 = vadd.f32 %v9608, %v9609
        %v9611 = vrot.slane %v9610, 2
        %v9612 = vadd.f32 %v9610, %v9611
        %v9613 = vrot.slane %v9612, 1
        %v9614 = vadd.f32 %v9612, %v9613
        %v9615 = vsel %vm860, %v9451, 0.0
        %v9616 = vrot.slane %v9615, 4
        %v9617 = vadd.f32 %v9615, %v9616
        %v9618 = vrot.slane %v9617, 2
        %v9619 = vadd.f32 %v9617, %v9618
        %v9620 = vrot.slane %v9619, 1
        %v9621 = vadd.f32 %v9619, %v9620
        %v9622 = vsel %vm860, %v9452, 0.0
        %v9623 = vrot.slane %v9622, 4
        %v9624 = vadd.f32 %v9622, %v9623
        %v9625 = vrot.slane %v9624, 2
        %v9626 = vadd.f32 %v9624, %v9625
        %v9627 = vrot.slane %v9626, 1
        %v9628 = vadd.f32 %v9626, %v9627
        %v9629 = vsel %vm860, %v9453, 0.0
        %v9630 = vrot.slane %v9629, 4
        %v9631 = vadd.f32 %v9629, %v9630
        %v9632 = vrot.slane %v9631, 2
        %v9633 = vadd.f32 %v9631, %v9632
        %v9634 = vrot.slane %v9633, 1
        %v9635 = vadd.f32 %v9633, %v9634
        %v9636 = vsel %vm860, %v9454, 0.0
        %v9637 = vrot.slane %v9636, 4
        %v9638 = vadd.f32 %v9636, %v9637
        %v9639 = vrot.slane %v9638, 2
        %v9640 = vadd.f32 %v9638, %v9639
        %v9641 = vrot.slane %v9640, 1
        %v9642 = vadd.f32 %v9640, %v9641
        %v9643 = vsel %vm860, %v9455, 0.0
        %v9644 = vrot.slane %v9643, 4
        %v9645 = vadd.f32 %v9643, %v9644
        %v9646 = vrot.slane %v9645, 2
        %v9647 = vadd.f32 %v9645, %v9646
        %v9648 = vrot.slane %v9647, 1
        %v9649 = vadd.f32 %v9647, %v9648
        %v9650 = vsel %vm860, %v9456, 0.0
        %v9651 = vrot.slane %v9650, 4
        %v9652 = vadd.f32 %v9650, %v9651
        %v9653 = vrot.slane %v9652, 2
        %v9654 = vadd.f32 %v9652, %v9653
        %v9655 = vrot.slane %v9654, 1
        %v9656 = vadd.f32 %v9654, %v9655
        %v9657 = vsel %vm860, %v9457, 0.0
        %v9658 = vrot.slane %v9657, 4
        %v9659 = vadd.f32 %v9657, %v9658
        %v9660 = vrot.slane %v9659, 2
        %v9661 = vadd.f32 %v9659, %v9660
        %v9662 = vrot.slane %v9661, 1
        %v9663 = vadd.f32 %v9661, %v9662
        %v9664 = vsel %vm860, %v9458, 0.0
        %v9665 = vrot.slane %v9664, 4
        %v9666 = vadd.f32 %v9664, %v9665
        %v9667 = vrot.slane %v9666, 2
        %v9668 = vadd.f32 %v9666, %v9667
        %v9669 = vrot.slane %v9668, 1
        %v9670 = vadd.f32 %v9668, %v9669
        %v9671 = vsel %vm860, %v9459, 0.0
        %v9672 = vrot.slane %v9671, 4
        %v9673 = vadd.f32 %v9671, %v9672
        %v9674 = vrot.slane %v9673, 2
        %v9675 = vadd.f32 %v9673, %v9674
        %v9676 = vrot.slane %v9675, 1
        %v9677 = vadd.f32 %v9675, %v9676
        %v9678 = vsel %vm860, %v9460, 0.0
        %v9679 = vrot.slane %v9678, 4
        %v9680 = vadd.f32 %v9678, %v9679
        %v9681 = vrot.slane %v9680, 2
        %v9682 = vadd.f32 %v9680, %v9681
        %v9683 = vrot.slane %v9682, 1
        %v9684 = vadd.f32 %v9682, %v9683
        %v9685 = vsel %vm860, %v9461, 0.0
        %v9686 = vrot.slane %v9685, 4
        %v9687 = vadd.f32 %v9685, %v9686
        %v9688 = vrot.slane %v9687, 2
        %v9689 = vadd.f32 %v9687, %v9688
        %v9690 = vrot.slane %v9689, 1
        %v9691 = vadd.f32 %v9689, %v9690
        %v9692 = vsel %vm860, %v9462, 0.0
        %v9693 = vrot.slane %v9692, 4
        %v9694 = vadd.f32 %v9692, %v9693
        %v9695 = vrot.slane %v9694, 2
        %v9696 = vadd.f32 %v9694, %v9695
        %v9697 = vrot.slane %v9696, 1
        %v9698 = vadd.f32 %v9696, %v9697
        %v9699 = vsel %vm860, %v9463, 0.0
        %v9700 = vrot.slane %v9699, 4
        %v9701 = vadd.f32 %v9699, %v9700
        %v9702 = vrot.slane %v9701, 2
        %v9703 = vadd.f32 %v9701, %v9702
        %v9704 = vrot.slane %v9703, 1
        %v9705 = vadd.f32 %v9703, %v9704
        %v9706 = vsel %vm860, %v9464, 0.0
        %v9707 = vrot.slane %v9706, 4
        %v9708 = vadd.f32 %v9706, %v9707
        %v9709 = vrot.slane %v9708, 2
        %v9710 = vadd.f32 %v9708, %v9709
        %v9711 = vrot.slane %v9710, 1
        %v9712 = vadd.f32 %v9710, %v9711
        %v9713 = vsel %vm860, %v9465, 0.0
        %v9714 = vrot.slane %v9713, 4
        %v9715 = vadd.f32 %v9713, %v9714
        %v9716 = vrot.slane %v9715, 2
        %v9717 = vadd.f32 %v9715, %v9716
        %v9718 = vrot.slane %v9717, 1
        %v9719 = vadd.f32 %v9717, %v9718
        %v9720 = vsel %vm860, %v9466, 0.0
        %v9721 = vrot.slane %v9720, 4
        %v9722 = vadd.f32 %v9720, %v9721
        %v9723 = vrot.slane %v9722, 2
        %v9724 = vadd.f32 %v9722, %v9723
        %v9725 = vrot.slane %v9724, 1
        %v9726 = vadd.f32 %v9724, %v9725
        %v9727 = vsel %vm860, %v9467, 0.0
        %v9728 = vrot.slane %v9727, 4
        %v9729 = vadd.f32 %v9727, %v9728
        %v9730 = vrot.slane %v9729, 2
        %v9731 = vadd.f32 %v9729, %v9730
        %v9732 = vrot.slane %v9731, 1
        %v9733 = vadd.f32 %v9731, %v9732
        %v9734 = vsel %vm860, %v9468, 0.0
        %v9735 = vrot.slane %v9734, 4
        %v9736 = vadd.f32 %v9734, %v9735
        %v9737 = vrot.slane %v9736, 2
        %v9738 = vadd.f32 %v9736, %v9737
        %v9739 = vrot.slane %v9738, 1
        %v9740 = vadd.f32 %v9738, %v9739
        %v9741 = vsel %vm860, %v9469, 0.0
        %v9742 = vrot.slane %v9741, 4
        %v9743 = vadd.f32 %v9741, %v9742
        %v9744 = vrot.slane %v9743, 2
        %v9745 = vadd.f32 %v9743, %v9744
        %v9746 = vrot.slane %v9745, 1
        %v9747 = vadd.f32 %v9745, %v9746
        %v9748 = vsel %vm860, %v9470, 0.0
        %v9749 = vrot.slane %v9748, 4
        %v9750 = vadd.f32 %v9748, %v9749
        %v9751 = vrot.slane %v9750, 2
        %v9752 = vadd.f32 %v9750, %v9751
        %v9753 = vrot.slane %v9752, 1
        %v9754 = vadd.f32 %v9752, %v9753
        %v9755 = vsel %vm860, %v9471, 0.0
        %v9756 = vrot.slane %v9755, 4
        %v9757 = vadd.f32 %v9755, %v9756
        %v9758 = vrot.slane %v9757, 2
        %v9759 = vadd.f32 %v9757, %v9758
        %v9760 = vrot.slane %v9759, 1
        %v9761 = vadd.f32 %v9759, %v9760
        %v9762 = vsel %vm860, %v9472, 0.0
        %v9763 = vrot.slane %v9762, 4
        %v9764 = vadd.f32 %v9762, %v9763
        %v9765 = vrot.slane %v9764, 2
        %v9766 = vadd.f32 %v9764, %v9765
        %v9767 = vrot.slane %v9766, 1
        %v9768 = vadd.f32 %v9766, %v9767
        %v9769 = vsel %vm860, %v9473, 0.0
        %v9770 = vrot.slane %v9769, 4
        %v9771 = vadd.f32 %v9769, %v9770
        %v9772 = vrot.slane %v9771, 2
        %v9773 = vadd.f32 %v9771, %v9772
        %v9774 = vrot.slane %v9773, 1
        %v9775 = vadd.f32 %v9773, %v9774
        %v9776 = vsel %vm860, %v9474, 0.0
        %v9777 = vrot.slane %v9776, 4
        %v9778 = vadd.f32 %v9776, %v9777
        %v9779 = vrot.slane %v9778, 2
        %v9780 = vadd.f32 %v9778, %v9779
        %v9781 = vrot.slane %v9780, 1
        %v9782 = vadd.f32 %v9780, %v9781
        %v9783 = vsel %vm860, %v9475, 0.0
        %v9784 = vrot.slane %v9783, 4
        %v9785 = vadd.f32 %v9783, %v9784
        %v9786 = vrot.slane %v9785, 2
        %v9787 = vadd.f32 %v9785, %v9786
        %v9788 = vrot.slane %v9787, 1
        %v9789 = vadd.f32 %v9787, %v9788
        %v9790 = vsel %vm860, %v9476, 0.0
        %v9791 = vrot.slane %v9790, 4
        %v9792 = vadd.f32 %v9790, %v9791
        %v9793 = vrot.slane %v9792, 2
        %v9794 = vadd.f32 %v9792, %v9793
        %v9795 = vrot.slane %v9794, 1
        %v9796 = vadd.f32 %v9794, %v9795
        %v9797 = vsel %vm860, %v9477, 0.0
        %v9798 = vrot.slane %v9797, 4
        %v9799 = vadd.f32 %v9797, %v9798
        %v9800 = vrot.slane %v9799, 2
        %v9801 = vadd.f32 %v9799, %v9800
        %v9802 = vrot.slane %v9801, 1
        %v9803 = vadd.f32 %v9801, %v9802
        %v9804 = vsel %vm860, %v9478, 0.0
        %v9805 = vrot.slane %v9804, 4
        %v9806 = vadd.f32 %v9804, %v9805
        %v9807 = vrot.slane %v9806, 2
        %v9808 = vadd.f32 %v9806, %v9807
        %v9809 = vrot.slane %v9808, 1
        %v9810 = vadd.f32 %v9808, %v9809
        %v9811 = vsel %vm860, %v9479, 0.0
        %v9812 = vrot.slane %v9811, 4
        %v9813 = vadd.f32 %v9811, %v9812
        %v9814 = vrot.slane %v9813, 2
        %v9815 = vadd.f32 %v9813, %v9814
        %v9816 = vrot.slane %v9815, 1
        %v9817 = vadd.f32 %v9815, %v9816
        %v9818 = vsel %vm860, %v9480, 0.0
        %v9819 = vrot.slane %v9818, 4
        %v9820 = vadd.f32 %v9818, %v9819
        %v9821 = vrot.slane %v9820, 2
        %v9822 = vadd.f32 %v9820, %v9821
        %v9823 = vrot.slane %v9822, 1
        %v9824 = vadd.f32 %v9822, %v9823
        %v9825 = vsel %vm860, %v9481, 0.0
        %v9826 = vrot.slane %v9825, 4
        %v9827 = vadd.f32 %v9825, %v9826
        %v9828 = vrot.slane %v9827, 2
        %v9829 = vadd.f32 %v9827, %v9828
        %v9830 = vrot.slane %v9829, 1
        %v9831 = vadd.f32 %v9829, %v9830
        %v9832 = vsel %vm860, %v9482, 0.0
        %v9833 = vrot.slane %v9832, 4
        %v9834 = vadd.f32 %v9832, %v9833
        %v9835 = vrot.slane %v9834, 2
        %v9836 = vadd.f32 %v9834, %v9835
        %v9837 = vrot.slane %v9836, 1
        %v9838 = vadd.f32 %v9836, %v9837
        %v9839 = vsel %vm860, %v9483, 0.0
        %v9840 = vrot.slane %v9839, 4
        %v9841 = vadd.f32 %v9839, %v9840
        %v9842 = vrot.slane %v9841, 2
        %v9843 = vadd.f32 %v9841, %v9842
        %v9844 = vrot.slane %v9843, 1
        %v9845 = vadd.f32 %v9843, %v9844
        %v9846 = vsel %vm860, %v9484, 0.0
        %v9847 = vrot.slane %v9846, 4
        %v9848 = vadd.f32 %v9846, %v9847
        %v9849 = vrot.slane %v9848, 2
        %v9850 = vadd.f32 %v9848, %v9849
        %v9851 = vrot.slane %v9850, 1
        %v9852 = vadd.f32 %v9850, %v9851
        %v9853 = vsel %vm860, %v9485, 0.0
        %v9854 = vrot.slane %v9853, 4
        %v9855 = vadd.f32 %v9853, %v9854
        %v9856 = vrot.slane %v9855, 2
        %v9857 = vadd.f32 %v9855, %v9856
        %v9858 = vrot.slane %v9857, 1
        %v9859 = vadd.f32 %v9857, %v9858
        %v9860 = vsel %vm860, %v9486, 0.0
        %v9861 = vrot.slane %v9860, 4
        %v9862 = vadd.f32 %v9860, %v9861
        %v9863 = vrot.slane %v9862, 2
        %v9864 = vadd.f32 %v9862, %v9863
        %v9865 = vrot.slane %v9864, 1
        %v9866 = vadd.f32 %v9864, %v9865
        %v9867 = vsel %vm860, %v9487, 0.0
        %v9868 = vrot.slane %v9867, 4
        %v9869 = vadd.f32 %v9867, %v9868
        %v9870 = vrot.slane %v9869, 2
        %v9871 = vadd.f32 %v9869, %v9870
        %v9872 = vrot.slane %v9871, 1
        %v9873 = vadd.f32 %v9871, %v9872
        %v9874 = vsel %vm860, %v9488, 0.0
        %v9875 = vrot.slane %v9874, 4
        %v9876 = vadd.f32 %v9874, %v9875
        %v9877 = vrot.slane %v9876, 2
        %v9878 = vadd.f32 %v9876, %v9877
        %v9879 = vrot.slane %v9878, 1
        %v9880 = vadd.f32 %v9878, %v9879
        %v9881 = vsel %vm860, %v9489, 0.0
        %v9882 = vrot.slane %v9881, 4
        %v9883 = vadd.f32 %v9881, %v9882
        %v9884 = vrot.slane %v9883, 2
        %v9885 = vadd.f32 %v9883, %v9884
        %v9886 = vrot.slane %v9885, 1
        %v9887 = vadd.f32 %v9885, %v9886
        %v9888 = vsel %vm860, %v9490, 0.0
        %v9889 = vrot.slane %v9888, 4
        %v9890 = vadd.f32 %v9888, %v9889
        %v9891 = vrot.slane %v9890, 2
        %v9892 = vadd.f32 %v9890, %v9891
        %v9893 = vrot.slane %v9892, 1
        %v9894 = vadd.f32 %v9892, %v9893
        %v9895 = vsel %vm860, %v9491, 0.0
        %v9896 = vrot.slane %v9895, 4
        %v9897 = vadd.f32 %v9895, %v9896
        %v9898 = vrot.slane %v9897, 2
        %v9899 = vadd.f32 %v9897, %v9898
        %v9900 = vrot.slane %v9899, 1
        %v9901 = vadd.f32 %v9899, %v9900
        %v9902 = vsel %vm860, %v9492, 0.0
        %v9903 = vrot.slane %v9902, 4
        %v9904 = vadd.f32 %v9902, %v9903
        %v9905 = vrot.slane %v9904, 2
        %v9906 = vadd.f32 %v9904, %v9905
        %v9907 = vrot.slane %v9906, 1
        %v9908 = vadd.f32 %v9906, %v9907
        %v9909 = vsel %vm860, %v9493, 0.0
        %v9910 = vrot.slane %v9909, 4
        %v9911 = vadd.f32 %v9909, %v9910
        %v9912 = vrot.slane %v9911, 2
        %v9913 = vadd.f32 %v9911, %v9912
        %v9914 = vrot.slane %v9913, 1
        %v9915 = vadd.f32 %v9913, %v9914
        %v9916 = vsel %vm860, %v9494, 0.0
        %v9917 = vrot.slane %v9916, 4
        %v9918 = vadd.f32 %v9916, %v9917
        %v9919 = vrot.slane %v9918, 2
        %v9920 = vadd.f32 %v9918, %v9919
        %v9921 = vrot.slane %v9920, 1
        %v9922 = vadd.f32 %v9920, %v9921
        %v9923 = vsel %vm860, %v9495, 0.0
        %v9924 = vrot.slane %v9923, 4
        %v9925 = vadd.f32 %v9923, %v9924
        %v9926 = vrot.slane %v9925, 2
        %v9927 = vadd.f32 %v9925, %v9926
        %v9928 = vrot.slane %v9927, 1
        %v9929 = vadd.f32 %v9927, %v9928
        %v9930 = vsel %vm860, %v9496, 0.0
        %v9931 = vrot.slane %v9930, 4
        %v9932 = vadd.f32 %v9930, %v9931
        %v9933 = vrot.slane %v9932, 2
        %v9934 = vadd.f32 %v9932, %v9933
        %v9935 = vrot.slane %v9934, 1
        %v9936 = vadd.f32 %v9934, %v9935
        %v9937 = vsel %vm860, %v9497, 0.0
        %v9938 = vrot.slane %v9937, 4
        %v9939 = vadd.f32 %v9937, %v9938
        %v9940 = vrot.slane %v9939, 2
        %v9941 = vadd.f32 %v9939, %v9940
        %v9942 = vrot.slane %v9941, 1
        %v9943 = vadd.f32 %v9941, %v9942
        %v9944 = vsel %vm860, %v9498, 0.0
        %v9945 = vrot.slane %v9944, 4
        %v9946 = vadd.f32 %v9944, %v9945
        %v9947 = vrot.slane %v9946, 2
        %v9948 = vadd.f32 %v9946, %v9947
        %v9949 = vrot.slane %v9948, 1
        %v9950 = vadd.f32 %v9948, %v9949
        %v9951 = vsel %vm860, %v9499, 0.0
        %v9952 = vrot.slane %v9951, 4
        %v9953 = vadd.f32 %v9951, %v9952
        %v9954 = vrot.slane %v9953, 2
        %v9955 = vadd.f32 %v9953, %v9954
        %v9956 = vrot.slane %v9955, 1
        %v9957 = vadd.f32 %v9955, %v9956
        %v9958 = vsel %vm860, %v9500, 0.0
        %v9959 = vrot.slane %v9958, 4
        %v9960 = vadd.f32 %v9958, %v9959
        %v9961 = vrot.slane %v9960, 2
        %v9962 = vadd.f32 %v9960, %v9961
        %v9963 = vrot.slane %v9962, 1
        %v9964 = vadd.f32 %v9962, %v9963
        %v9965 = vsel %vm860, %v9501, 0.0
        %v9966 = vrot.slane %v9965, 4
        %v9967 = vadd.f32 %v9965, %v9966
        %v9968 = vrot.slane %v9967, 2
        %v9969 = vadd.f32 %v9967, %v9968
        %v9970 = vrot.slane %v9969, 1
        %v9971 = vadd.f32 %v9969, %v9970
        %v9972 = vsel %vm860, %v9502, 0.0
        %v9973 = vrot.slane %v9972, 4
        %v9974 = vadd.f32 %v9972, %v9973
        %v9975 = vrot.slane %v9974, 2
        %v9976 = vadd.f32 %v9974, %v9975
        %v9977 = vrot.slane %v9976, 1
        %v9978 = vadd.f32 %v9976, %v9977
        %v9979 = vsel %vm860, %v9503, 0.0
        %v9980 = vrot.slane %v9979, 4
        %v9981 = vadd.f32 %v9979, %v9980
        %v9982 = vrot.slane %v9981, 2
        %v9983 = vadd.f32 %v9981, %v9982
        %v9984 = vrot.slane %v9983, 1
        %v9985 = vadd.f32 %v9983, %v9984
        %v9986 = vsel %vm860, %v9504, 0.0
        %v9987 = vrot.slane %v9986, 4
        %v9988 = vadd.f32 %v9986, %v9987
        %v9989 = vrot.slane %v9988, 2
        %v9990 = vadd.f32 %v9988, %v9989
        %v9991 = vrot.slane %v9990, 1
        %v9992 = vadd.f32 %v9990, %v9991
        %v9993 = vsel %vm860, %v9505, 0.0
        %v9994 = vrot.slane %v9993, 4
        %v9995 = vadd.f32 %v9993, %v9994
        %v9996 = vrot.slane %v9995, 2
        %v9997 = vadd.f32 %v9995, %v9996
        %v9998 = vrot.slane %v9997, 1
        %v9999 = vadd.f32 %v9997, %v9998
        %v10000 = vsel %vm860, %v9506, 0.0
        %v10001 = vrot.slane %v10000, 4
        %v10002 = vadd.f32 %v10000, %v10001
        %v10003 = vrot.slane %v10002, 2
        %v10004 = vadd.f32 %v10002, %v10003
        %v10005 = vrot.slane %v10004, 1
        %v10006 = vadd.f32 %v10004, %v10005
        %v10007 = vsel %vm860, %v9507, 0.0
        %v10008 = vrot.slane %v10007, 4
        %v10009 = vadd.f32 %v10007, %v10008
        %v10010 = vrot.slane %v10009, 2
        %v10011 = vadd.f32 %v10009, %v10010
        %v10012 = vrot.slane %v10011, 1
        %v10013 = vadd.f32 %v10011, %v10012
        %v10014 = vsel %vm860, %v9508, 0.0
        %v10015 = vrot.slane %v10014, 4
        %v10016 = vadd.f32 %v10014, %v10015
        %v10017 = vrot.slane %v10016, 2
        %v10018 = vadd.f32 %v10016, %v10017
        %v10019 = vrot.slane %v10018, 1
        %v10020 = vadd.f32 %v10018, %v10019
        %v10021 = vsel %vm860, %v9509, 0.0
        %v10022 = vrot.slane %v10021, 4
        %v10023 = vadd.f32 %v10021, %v10022
        %v10024 = vrot.slane %v10023, 2
        %v10025 = vadd.f32 %v10023, %v10024
        %v10026 = vrot.slane %v10025, 1
        %v10027 = vadd.f32 %v10025, %v10026
        %v10028 = vsel %vm860, %v9510, 0.0
        %v10029 = vrot.slane %v10028, 4
        %v10030 = vadd.f32 %v10028, %v10029
        %v10031 = vrot.slane %v10030, 2
        %v10032 = vadd.f32 %v10030, %v10031
        %v10033 = vrot.slane %v10032, 1
        %v10034 = vadd.f32 %v10032, %v10033
        %v10035 = vsel %vm860, %v9511, 0.0
        %v10036 = vrot.slane %v10035, 4
        %v10037 = vadd.f32 %v10035, %v10036
        %v10038 = vrot.slane %v10037, 2
        %v10039 = vadd.f32 %v10037, %v10038
        %v10040 = vrot.slane %v10039, 1
        %v10041 = vadd.f32 %v10039, %v10040
        %v10042 = vsel %vm860, %v9512, 0.0
        %v10043 = vrot.slane %v10042, 4
        %v10044 = vadd.f32 %v10042, %v10043
        %v10045 = vrot.slane %v10044, 2
        %v10046 = vadd.f32 %v10044, %v10045
        %v10047 = vrot.slane %v10046, 1
        %v10048 = vadd.f32 %v10046, %v10047
        %v10049 = vsel %vm860, %v9513, 0.0
        %v10050 = vrot.slane %v10049, 4
        %v10051 = vadd.f32 %v10049, %v10050
        %v10052 = vrot.slane %v10051, 2
        %v10053 = vadd.f32 %v10051, %v10052
        %v10054 = vrot.slane %v10053, 1
        %v10055 = vadd.f32 %v10053, %v10054
        %v10056 = vsel %vm860, %v9514, 0.0
        %v10057 = vrot.slane %v10056, 4
        %v10058 = vadd.f32 %v10056, %v10057
        %v10059 = vrot.slane %v10058, 2
        %v10060 = vadd.f32 %v10058, %v10059
        %v10061 = vrot.slane %v10060, 1
        %v10062 = vadd.f32 %v10060, %v10061
        %v10063 = vsel %vm860, %v9515, 0.0
        %v10064 = vrot.slane %v10063, 4
        %v10065 = vadd.f32 %v10063, %v10064
        %v10066 = vrot.slane %v10065, 2
        %v10067 = vadd.f32 %v10065, %v10066
        %v10068 = vrot.slane %v10067, 1
        %v10069 = vadd.f32 %v10067, %v10068
        %v10070 = vsel %vm860, %v9516, 0.0
        %v10071 = vrot.slane %v10070, 4
        %v10072 = vadd.f32 %v10070, %v10071
        %v10073 = vrot.slane %v10072, 2
        %v10074 = vadd.f32 %v10072, %v10073
        %v10075 = vrot.slane %v10074, 1
        %v10076 = vadd.f32 %v10074, %v10075
        %v10077 = vsel %vm860, %v9517, 0.0
        %v10078 = vrot.slane %v10077, 4
        %v10079 = vadd.f32 %v10077, %v10078
        %v10080 = vrot.slane %v10079, 2
        %v10081 = vadd.f32 %v10079, %v10080
        %v10082 = vrot.slane %v10081, 1
        %v10083 = vadd.f32 %v10081, %v10082
        %v10084 = vsel %vm860, %v9518, 0.0
        %v10085 = vrot.slane %v10084, 4
        %v10086 = vadd.f32 %v10084, %v10085
        %v10087 = vrot.slane %v10086, 2
        %v10088 = vadd.f32 %v10086, %v10087
        %v10089 = vrot.slane %v10088, 1
        %v10090 = vadd.f32 %v10088, %v10089
        %v10091 = vsel %vm860, %v9519, 0.0
        %v10092 = vrot.slane %v10091, 4
        %v10093 = vadd.f32 %v10091, %v10092
        %v10094 = vrot.slane %v10093, 2
        %v10095 = vadd.f32 %v10093, %v10094
        %v10096 = vrot.slane %v10095, 1
        %v10097 = vadd.f32 %v10095, %v10096
        %v10098 = vsel %vm860, %v9520, 0.0
        %v10099 = vrot.slane %v10098, 4
        %v10100 = vadd.f32 %v10098, %v10099
        %v10101 = vrot.slane %v10100, 2
        %v10102 = vadd.f32 %v10100, %v10101
        %v10103 = vrot.slane %v10102, 1
        %v10104 = vadd.f32 %v10102, %v10103
        %v10105 = vsel %vm860, %v9521, 0.0
        %v10106 = vrot.slane %v10105, 4
        %v10107 = vadd.f32 %v10105, %v10106
        %v10108 = vrot.slane %v10107, 2
        %v10109 = vadd.f32 %v10107, %v10108
        %v10110 = vrot.slane %v10109, 1
        %v10111 = vadd.f32 %v10109, %v10110
        %v10112 = vsel %vm860, %v9522, 0.0
        %v10113 = vrot.slane %v10112, 4
        %v10114 = vadd.f32 %v10112, %v10113
        %v10115 = vrot.slane %v10114, 2
        %v10116 = vadd.f32 %v10114, %v10115
        %v10117 = vrot.slane %v10116, 1
        %v10118 = vadd.f32 %v10116, %v10117
        %v10119 = vsel %vm860, %v9523, 0.0
        %v10120 = vrot.slane %v10119, 4
        %v10121 = vadd.f32 %v10119, %v10120
        %v10122 = vrot.slane %v10121, 2
        %v10123 = vadd.f32 %v10121, %v10122
        %v10124 = vrot.slane %v10123, 1
        %v10125 = vadd.f32 %v10123, %v10124
        %v10126 = vsel %vm860, %v9524, 0.0
        %v10127 = vrot.slane %v10126, 4
        %v10128 = vadd.f32 %v10126, %v10127
        %v10129 = vrot.slane %v10128, 2
        %v10130 = vadd.f32 %v10128, %v10129
        %v10131 = vrot.slane %v10130, 1
        %v10132 = vadd.f32 %v10130, %v10131
        %v10133 = vsel %vm860, %v9525, 0.0
        %v10134 = vrot.slane %v10133, 4
        %v10135 = vadd.f32 %v10133, %v10134
        %v10136 = vrot.slane %v10135, 2
        %v10137 = vadd.f32 %v10135, %v10136
        %v10138 = vrot.slane %v10137, 1
        %v10139 = vadd.f32 %v10137, %v10138
        %v10140 = vsel %vm860, %v9526, 0.0
        %v10141 = vrot.slane %v10140, 4
        %v10142 = vadd.f32 %v10140, %v10141
        %v10143 = vrot.slane %v10142, 2
        %v10144 = vadd.f32 %v10142, %v10143
        %v10145 = vrot.slane %v10144, 1
        %v10146 = vadd.f32 %v10144, %v10145
        %v10147 = vsel %vm860, %v9527, 0.0
        %v10148 = vrot.slane %v10147, 4
        %v10149 = vadd.f32 %v10147, %v10148
        %v10150 = vrot.slane %v10149, 2
        %v10151 = vadd.f32 %v10149, %v10150
        %v10152 = vrot.slane %v10151, 1
        %v10153 = vadd.f32 %v10151, %v10152
        %v10154 = vsel %vm860, %v9528, 0.0
        %v10155 = vrot.slane %v10154, 4
        %v10156 = vadd.f32 %v10154, %v10155
        %v10157 = vrot.slane %v10156, 2
        %v10158 = vadd.f32 %v10156, %v10157
        %v10159 = vrot.slane %v10158, 1
        %v10160 = vadd.f32 %v10158, %v10159
        %v10161 = vsel %vm860, %v9529, 0.0
        %v10162 = vrot.slane %v10161, 4
        %v10163 = vadd.f32 %v10161, %v10162
        %v10164 = vrot.slane %v10163, 2
        %v10165 = vadd.f32 %v10163, %v10164
        %v10166 = vrot.slane %v10165, 1
        %v10167 = vadd.f32 %v10165, %v10166
        %v10168 = vsel %vm860, %v9530, 0.0
        %v10169 = vrot.slane %v10168, 4
        %v10170 = vadd.f32 %v10168, %v10169
        %v10171 = vrot.slane %v10170, 2
        %v10172 = vadd.f32 %v10170, %v10171
        %v10173 = vrot.slane %v10172, 1
        %v10174 = vadd.f32 %v10172, %v10173
        %v10175 = vsel %vm860, %v9531, 0.0
        %v10176 = vrot.slane %v10175, 4
        %v10177 = vadd.f32 %v10175, %v10176
        %v10178 = vrot.slane %v10177, 2
        %v10179 = vadd.f32 %v10177, %v10178
        %v10180 = vrot.slane %v10179, 1
        %v10181 = vadd.f32 %v10179, %v10180
        %v10182 = vsel %vm860, %v9532, 0.0
        %v10183 = vrot.slane %v10182, 4
        %v10184 = vadd.f32 %v10182, %v10183
        %v10185 = vrot.slane %v10184, 2
        %v10186 = vadd.f32 %v10184, %v10185
        %v10187 = vrot.slane %v10186, 1
        %v10188 = vadd.f32 %v10186, %v10187
        %v10189 = vsel %vm860, %v9533, 0.0
        %v10190 = vrot.slane %v10189, 4
        %v10191 = vadd.f32 %v10189, %v10190
        %v10192 = vrot.slane %v10191, 2
        %v10193 = vadd.f32 %v10191, %v10192
        %v10194 = vrot.slane %v10193, 1
        %v10195 = vadd.f32 %v10193, %v10194
        %v10196 = vsel %vm860, %v9534, 0.0
        %v10197 = vrot.slane %v10196, 4
        %v10198 = vadd.f32 %v10196, %v10197
        %v10199 = vrot.slane %v10198, 2
        %v10200 = vadd.f32 %v10198, %v10199
        %v10201 = vrot.slane %v10200, 1
        %v10202 = vadd.f32 %v10200, %v10201
        %v10203 = vsel %vm860, %v9535, 0.0
        %v10204 = vrot.slane %v10203, 4
        %v10205 = vadd.f32 %v10203, %v10204
        %v10206 = vrot.slane %v10205, 2
        %v10207 = vadd.f32 %v10205, %v10206
        %v10208 = vrot.slane %v10207, 1
        %v10209 = vadd.f32 %v10207, %v10208
        %v10210 = vsel %vm860, %v9536, 0.0
        %v10211 = vrot.slane %v10210, 4
        %v10212 = vadd.f32 %v10210, %v10211
        %v10213 = vrot.slane %v10212, 2
        %v10214 = vadd.f32 %v10212, %v10213
        %v10215 = vrot.slane %v10214, 1
        %v10216 = vadd.f32 %v10214, %v10215
        %v10217 = vsel %vm860, %v9537, 0.0
        %v10218 = vrot.slane %v10217, 4
        %v10219 = vadd.f32 %v10217, %v10218
        %v10220 = vrot.slane %v10219, 2
        %v10221 = vadd.f32 %v10219, %v10220
        %v10222 = vrot.slane %v10221, 1
        %v10223 = vadd.f32 %v10221, %v10222
        %v10224 = vsel %vm860, %v9538, 0.0
        %v10225 = vrot.slane %v10224, 4
        %v10226 = vadd.f32 %v10224, %v10225
        %v10227 = vrot.slane %v10226, 2
        %v10228 = vadd.f32 %v10226, %v10227
        %v10229 = vrot.slane %v10228, 1
        %v10230 = vadd.f32 %v10228, %v10229
        %v10231 = vsel %vm860, %v9539, 0.0
        %v10232 = vrot.slane %v10231, 4
        %v10233 = vadd.f32 %v10231, %v10232
        %v10234 = vrot.slane %v10233, 2
        %v10235 = vadd.f32 %v10233, %v10234
        %v10236 = vrot.slane %v10235, 1
        %v10237 = vadd.f32 %v10235, %v10236
        %v10238 = vsel %vm860, %v9540, 0.0
        %v10239 = vrot.slane %v10238, 4
        %v10240 = vadd.f32 %v10238, %v10239
        %v10241 = vrot.slane %v10240, 2
        %v10242 = vadd.f32 %v10240, %v10241
        %v10243 = vrot.slane %v10242, 1
        %v10244 = vadd.f32 %v10242, %v10243
        %v10245 = vsel %vm860, %v9541, 0.0
        %v10246 = vrot.slane %v10245, 4
        %v10247 = vadd.f32 %v10245, %v10246
        %v10248 = vrot.slane %v10247, 2
        %v10249 = vadd.f32 %v10247, %v10248
        %v10250 = vrot.slane %v10249, 1
        %v10251 = vadd.f32 %v10249, %v10250
        %v10252 = vsel %vm860, %v9542, 0.0
        %v10253 = vrot.slane %v10252, 4
        %v10254 = vadd.f32 %v10252, %v10253
        %v10255 = vrot.slane %v10254, 2
        %v10256 = vadd.f32 %v10254, %v10255
        %v10257 = vrot.slane %v10256, 1
        %v10258 = vadd.f32 %v10256, %v10257
        %v10259 = vsel %vm860, %v9543, 0.0
        %v10260 = vrot.slane %v10259, 4
        %v10261 = vadd.f32 %v10259, %v10260
        %v10262 = vrot.slane %v10261, 2
        %v10263 = vadd.f32 %v10261, %v10262
        %v10264 = vrot.slane %v10263, 1
        %v10265 = vadd.f32 %v10263, %v10264
        %v10266 = vsel %vm860, %v9544, 0.0
        %v10267 = vrot.slane %v10266, 4
        %v10268 = vadd.f32 %v10266, %v10267
        %v10269 = vrot.slane %v10268, 2
        %v10270 = vadd.f32 %v10268, %v10269
        %v10271 = vrot.slane %v10270, 1
        %v10272 = vadd.f32 %v10270, %v10271
        %v10273 = vsel %vm860, %v9545, 0.0
        %v10274 = vrot.slane %v10273, 4
        %v10275 = vadd.f32 %v10273, %v10274
        %v10276 = vrot.slane %v10275, 2
        %v10277 = vadd.f32 %v10275, %v10276
        %v10278 = vrot.slane %v10277, 1
        %v10279 = vadd.f32 %v10277, %v10278
        %v10280 = vsel %vm860, %v9546, 0.0
        %v10281 = vrot.slane %v10280, 4
        %v10282 = vadd.f32 %v10280, %v10281
        %v10283 = vrot.slane %v10282, 2
        %v10284 = vadd.f32 %v10282, %v10283
        %v10285 = vrot.slane %v10284, 1
        %v10286 = vadd.f32 %v10284, %v10285
        %v10287 = vsel %vm860, %v9547, 0.0
        %v10288 = vrot.slane %v10287, 4
        %v10289 = vadd.f32 %v10287, %v10288
        %v10290 = vrot.slane %v10289, 2
        %v10291 = vadd.f32 %v10289, %v10290
        %v10292 = vrot.slane %v10291, 1
        %v10293 = vadd.f32 %v10291, %v10292
        %v10294 = vsel %vm860, %v9548, 0.0
        %v10295 = vrot.slane %v10294, 4
        %v10296 = vadd.f32 %v10294, %v10295
        %v10297 = vrot.slane %v10296, 2
        %v10298 = vadd.f32 %v10296, %v10297
        %v10299 = vrot.slane %v10298, 1
        %v10300 = vadd.f32 %v10298, %v10299
        %v10301 = vsel %vm860, %v9549, 0.0
        %v10302 = vrot.slane %v10301, 4
        %v10303 = vadd.f32 %v10301, %v10302
        %v10304 = vrot.slane %v10303, 2
        %v10305 = vadd.f32 %v10303, %v10304
        %v10306 = vrot.slane %v10305, 1
        %v10307 = vadd.f32 %v10305, %v10306
        %v10308 = vsel %vm860, %v9550, 0.0
        %v10309 = vrot.slane %v10308, 4
        %v10310 = vadd.f32 %v10308, %v10309
        %v10311 = vrot.slane %v10310, 2
        %v10312 = vadd.f32 %v10310, %v10311
        %v10313 = vrot.slane %v10312, 1
        %v10314 = vadd.f32 %v10312, %v10313
        %v10315 = vsel %vm860, %v9551, 0.0
        %v10316 = vrot.slane %v10315, 4
        %v10317 = vadd.f32 %v10315, %v10316
        %v10318 = vrot.slane %v10317, 2
        %v10319 = vadd.f32 %v10317, %v10318
        %v10320 = vrot.slane %v10319, 1
        %v10321 = vadd.f32 %v10319, %v10320
        %v10322 = vsel %vm860, %v9552, 0.0
        %v10323 = vrot.slane %v10322, 4
        %v10324 = vadd.f32 %v10322, %v10323
        %v10325 = vrot.slane %v10324, 2
        %v10326 = vadd.f32 %v10324, %v10325
        %v10327 = vrot.slane %v10326, 1
        %v10328 = vadd.f32 %v10326, %v10327
        %v10329 = vsel %vm860, %v9553, 0.0
        %v10330 = vrot.slane %v10329, 4
        %v10331 = vadd.f32 %v10329, %v10330
        %v10332 = vrot.slane %v10331, 2
        %v10333 = vadd.f32 %v10331, %v10332
        %v10334 = vrot.slane %v10333, 1
        %v10335 = vadd.f32 %v10333, %v10334
        %v10336 = vsel %vm860, %v9554, 0.0
        %v10337 = vrot.slane %v10336, 4
        %v10338 = vadd.f32 %v10336, %v10337
        %v10339 = vrot.slane %v10338, 2
        %v10340 = vadd.f32 %v10338, %v10339
        %v10341 = vrot.slane %v10340, 1
        %v10342 = vadd.f32 %v10340, %v10341
        %v10343 = vsel %vm860, %v9555, 0.0
        %v10344 = vrot.slane %v10343, 4
        %v10345 = vadd.f32 %v10343, %v10344
        %v10346 = vrot.slane %v10345, 2
        %v10347 = vadd.f32 %v10345, %v10346
        %v10348 = vrot.slane %v10347, 1
        %v10349 = vadd.f32 %v10347, %v10348
        %v10350 = vsel %vm860, %v9556, 0.0
        %v10351 = vrot.slane %v10350, 4
        %v10352 = vadd.f32 %v10350, %v10351
        %v10353 = vrot.slane %v10352, 2
        %v10354 = vadd.f32 %v10352, %v10353
        %v10355 = vrot.slane %v10354, 1
        %v10356 = vadd.f32 %v10354, %v10355
        %v10357 = vsel %vm860, %v9557, 0.0
        %v10358 = vrot.slane %v10357, 4
        %v10359 = vadd.f32 %v10357, %v10358
        %v10360 = vrot.slane %v10359, 2
        %v10361 = vadd.f32 %v10359, %v10360
        %v10362 = vrot.slane %v10361, 1
        %v10363 = vadd.f32 %v10361, %v10362
        %v10364 = vsel %vm860, %v9558, 0.0
        %v10365 = vrot.slane %v10364, 4
        %v10366 = vadd.f32 %v10364, %v10365
        %v10367 = vrot.slane %v10366, 2
        %v10368 = vadd.f32 %v10366, %v10367
        %v10369 = vrot.slane %v10368, 1
        %v10370 = vadd.f32 %v10368, %v10369
        %v10371 = vsel %vm860, %v9559, 0.0
        %v10372 = vrot.slane %v10371, 4
        %v10373 = vadd.f32 %v10371, %v10372
        %v10374 = vrot.slane %v10373, 2
        %v10375 = vadd.f32 %v10373, %v10374
        %v10376 = vrot.slane %v10375, 1
        %v10377 = vadd.f32 %v10375, %v10376
        %v10378 = vsel %vm860, %v9560, 0.0
        %v10379 = vrot.slane %v10378, 4
        %v10380 = vadd.f32 %v10378, %v10379
        %v10381 = vrot.slane %v10380, 2
        %v10382 = vadd.f32 %v10380, %v10381
        %v10383 = vrot.slane %v10382, 1
        %v10384 = vadd.f32 %v10382, %v10383
        %v10385 = vsel %vm860, %v9561, 0.0
        %v10386 = vrot.slane %v10385, 4
        %v10387 = vadd.f32 %v10385, %v10386
        %v10388 = vrot.slane %v10387, 2
        %v10389 = vadd.f32 %v10387, %v10388
        %v10390 = vrot.slane %v10389, 1
        %v10391 = vadd.f32 %v10389, %v10390
        %v10392 = vsel %vm860, %v9562, 0.0
        %v10393 = vrot.slane %v10392, 4
        %v10394 = vadd.f32 %v10392, %v10393
        %v10395 = vrot.slane %v10394, 2
        %v10396 = vadd.f32 %v10394, %v10395
        %v10397 = vrot.slane %v10396, 1
        %v10398 = vadd.f32 %v10396, %v10397
        %v10399 = vsel %vm860, %v9563, 0.0
        %v10400 = vrot.slane %v10399, 4
        %v10401 = vadd.f32 %v10399, %v10400
        %v10402 = vrot.slane %v10401, 2
        %v10403 = vadd.f32 %v10401, %v10402
        %v10404 = vrot.slane %v10403, 1
        %v10405 = vadd.f32 %v10403, %v10404
        %v10406 = vsel %vm860, %v9564, 0.0
        %v10407 = vrot.slane %v10406, 4
        %v10408 = vadd.f32 %v10406, %v10407
        %v10409 = vrot.slane %v10408, 2
        %v10410 = vadd.f32 %v10408, %v10409
        %v10411 = vrot.slane %v10410, 1
        %v10412 = vadd.f32 %v10410, %v10411
        %v10413 = vsel %vm860, %v9565, 0.0
        %v10414 = vrot.slane %v10413, 4
        %v10415 = vadd.f32 %v10413, %v10414
        %v10416 = vrot.slane %v10415, 2
        %v10417 = vadd.f32 %v10415, %v10416
        %v10418 = vrot.slane %v10417, 1
        %v10419 = vadd.f32 %v10417, %v10418
        %v10420 = vsel %vm860, %v9566, 0.0
        %v10421 = vrot.slane %v10420, 4
        %v10422 = vadd.f32 %v10420, %v10421
        %v10423 = vrot.slane %v10422, 2
        %v10424 = vadd.f32 %v10422, %v10423
        %v10425 = vrot.slane %v10424, 1
        %v10426 = vadd.f32 %v10424, %v10425
        %v10427 = vsel %vm860, %v9567, 0.0
        %v10428 = vrot.slane %v10427, 4
        %v10429 = vadd.f32 %v10427, %v10428
        %v10430 = vrot.slane %v10429, 2
        %v10431 = vadd.f32 %v10429, %v10430
        %v10432 = vrot.slane %v10431, 1
        %v10433 = vadd.f32 %v10431, %v10432
        %v10434 = vsel %vm860, %v9568, 0.0
        %v10435 = vrot.slane %v10434, 4
        %v10436 = vadd.f32 %v10434, %v10435
        %v10437 = vrot.slane %v10436, 2
        %v10438 = vadd.f32 %v10436, %v10437
        %v10439 = vrot.slane %v10438, 1
        %v10440 = vadd.f32 %v10438, %v10439
        %v10441 = vsel %vm860, %v9569, 0.0
        %v10442 = vrot.slane %v10441, 4
        %v10443 = vadd.f32 %v10441, %v10442
        %v10444 = vrot.slane %v10443, 2
        %v10445 = vadd.f32 %v10443, %v10444
        %v10446 = vrot.slane %v10445, 1
        %v10447 = vadd.f32 %v10445, %v10446
        %v10448 = vsel %vm860, %v9570, 0.0
        %v10449 = vrot.slane %v10448, 4
        %v10450 = vadd.f32 %v10448, %v10449
        %v10451 = vrot.slane %v10450, 2
        %v10452 = vadd.f32 %v10450, %v10451
        %v10453 = vrot.slane %v10452, 1
        %v10454 = vadd.f32 %v10452, %v10453
        %v10455 = vsel %vm860, %v9571, 0.0
        %v10456 = vrot.slane %v10455, 4
        %v10457 = vadd.f32 %v10455, %v10456
        %v10458 = vrot.slane %v10457, 2
        %v10459 = vadd.f32 %v10457, %v10458
        %v10460 = vrot.slane %v10459, 1
        %v10461 = vadd.f32 %v10459, %v10460
        %v10462 = vsel %vm860, %v9572, 0.0
        %v10463 = vrot.slane %v10462, 4
        %v10464 = vadd.f32 %v10462, %v10463
        %v10465 = vrot.slane %v10464, 2
        %v10466 = vadd.f32 %v10464, %v10465
        %v10467 = vrot.slane %v10466, 1
        %v10468 = vadd.f32 %v10466, %v10467
        %v10469 = vld [vmem:[%s9] sm:$0x1]
        %v10471 = vlaneseq
        %v10472 = vshrl.u32 %v10471, 7
        %v10473 = vsub.s32 0, %v10472
        %v10474 = vrot.slane %v10469, %v10473
        %v10476 = vadd.f32 %v9579, %v10474
        %v10477 = vadd.f32 %v9586, %v10474
        %v10478 = vadd.f32 %v9593, %v10474
        %v10479 = vadd.f32 %v9600, %v10474
        %v10480 = vadd.f32 %v9607, %v10474
        %v10481 = vadd.f32 %v9614, %v10474
        %v10482 = vadd.f32 %v9621, %v10474
        %v10483 = vadd.f32 %v9628, %v10474
        %v10484 = vadd.f32 %v9635, %v10474
        %v10485 = vadd.f32 %v9642, %v10474
        %v10486 = vadd.f32 %v9649, %v10474
        %v10487 = vadd.f32 %v9656, %v10474
        %v10488 = vadd.f32 %v9663, %v10474
        %v10489 = vadd.f32 %v9670, %v10474
        %v10490 = vadd.f32 %v9677, %v10474
        %v10491 = vadd.f32 %v9684, %v10474
        %v10492 = vadd.f32 %v9691, %v10474
        %v10493 = vadd.f32 %v9698, %v10474
        %v10494 = vadd.f32 %v9705, %v10474
        %v10495 = vadd.f32 %v9712, %v10474
        %v10496 = vadd.f32 %v9719, %v10474
        %v10497 = vadd.f32 %v9726, %v10474
        %v10498 = vadd.f32 %v9733, %v10474
        %v10499 = vadd.f32 %v9740, %v10474
        %v10500 = vadd.f32 %v9747, %v10474
        %v10501 = vadd.f32 %v9754, %v10474
        %v10502 = vadd.f32 %v9761, %v10474
        %v10503 = vadd.f32 %v9768, %v10474
        %v10504 = vadd.f32 %v9775, %v10474
        %v10505 = vadd.f32 %v9782, %v10474
        %v10506 = vadd.f32 %v9789, %v10474
        %v10507 = vadd.f32 %v9796, %v10474
        %v10508 = vadd.f32 %v9803, %v10474
        %v10509 = vadd.f32 %v9810, %v10474
        %v10510 = vadd.f32 %v9817, %v10474
        %v10511 = vadd.f32 %v9824, %v10474
        %v10512 = vadd.f32 %v9831, %v10474
        %v10513 = vadd.f32 %v9838, %v10474
        %v10514 = vadd.f32 %v9845, %v10474
        %v10515 = vadd.f32 %v9852, %v10474
        %v10516 = vadd.f32 %v9859, %v10474
        %v10517 = vadd.f32 %v9866, %v10474
        %v10518 = vadd.f32 %v9873, %v10474
        %v10519 = vadd.f32 %v9880, %v10474
        %v10520 = vadd.f32 %v9887, %v10474
        %v10521 = vadd.f32 %v9894, %v10474
        %v10522 = vadd.f32 %v9901, %v10474
        %v10523 = vadd.f32 %v9908, %v10474
        %v10524 = vadd.f32 %v9915, %v10474
        %v10525 = vadd.f32 %v9922, %v10474
        %v10526 = vadd.f32 %v9929, %v10474
        %v10527 = vadd.f32 %v9936, %v10474
        %v10528 = vadd.f32 %v9943, %v10474
        %v10529 = vadd.f32 %v9950, %v10474
        %v10530 = vadd.f32 %v9957, %v10474
        %v10531 = vadd.f32 %v9964, %v10474
        %v10532 = vadd.f32 %v9971, %v10474
        %v10533 = vadd.f32 %v9978, %v10474
        %v10534 = vadd.f32 %v9985, %v10474
        %v10535 = vadd.f32 %v9992, %v10474
        %v10536 = vadd.f32 %v9999, %v10474
        %v10537 = vadd.f32 %v10006, %v10474
        %v10538 = vadd.f32 %v10013, %v10474
        %v10539 = vadd.f32 %v10020, %v10474
        %v10540 = vadd.f32 %v10027, %v10474
        %v10541 = vadd.f32 %v10034, %v10474
        %v10542 = vadd.f32 %v10041, %v10474
        %v10543 = vadd.f32 %v10048, %v10474
        %v10544 = vadd.f32 %v10055, %v10474
        %v10545 = vadd.f32 %v10062, %v10474
        %v10546 = vadd.f32 %v10069, %v10474
        %v10547 = vadd.f32 %v10076, %v10474
        %v10548 = vadd.f32 %v10083, %v10474
        %v10549 = vadd.f32 %v10090, %v10474
        %v10550 = vadd.f32 %v10097, %v10474
        %v10551 = vadd.f32 %v10104, %v10474
        %v10552 = vadd.f32 %v10111, %v10474
        %v10553 = vadd.f32 %v10118, %v10474
        %v10554 = vadd.f32 %v10125, %v10474
        %v10555 = vadd.f32 %v10132, %v10474
        %v10556 = vadd.f32 %v10139, %v10474
        %v10557 = vadd.f32 %v10146, %v10474
        %v10558 = vadd.f32 %v10153, %v10474
        %v10559 = vadd.f32 %v10160, %v10474
        %v10560 = vadd.f32 %v10167, %v10474
        %v10561 = vadd.f32 %v10174, %v10474
        %v10562 = vadd.f32 %v10181, %v10474
        %v10563 = vadd.f32 %v10188, %v10474
        %v10564 = vadd.f32 %v10195, %v10474
        %v10565 = vadd.f32 %v10202, %v10474
        %v10566 = vadd.f32 %v10209, %v10474
        %v10567 = vadd.f32 %v10216, %v10474
        %v10568 = vadd.f32 %v10223, %v10474
        %v10569 = vadd.f32 %v10230, %v10474
        %v10570 = vadd.f32 %v10237, %v10474
        %v10571 = vadd.f32 %v10244, %v10474
        %v10572 = vadd.f32 %v10251, %v10474
        %v10573 = vadd.f32 %v10258, %v10474
        %v10574 = vadd.f32 %v10265, %v10474
        %v10575 = vadd.f32 %v10272, %v10474
        %v10576 = vadd.f32 %v10279, %v10474
        %v10577 = vadd.f32 %v10286, %v10474
        %v10578 = vadd.f32 %v10293, %v10474
        %v10579 = vadd.f32 %v10300, %v10474
        %v10580 = vadd.f32 %v10307, %v10474
        %v10581 = vadd.f32 %v10314, %v10474
        %v10582 = vadd.f32 %v10321, %v10474
        %v10583 = vadd.f32 %v10328, %v10474
        %v10584 = vadd.f32 %v10335, %v10474
        %v10585 = vadd.f32 %v10342, %v10474
        %v10586 = vadd.f32 %v10349, %v10474
        %v10587 = vadd.f32 %v10356, %v10474
        %v10588 = vadd.f32 %v10363, %v10474
        %v10589 = vadd.f32 %v10370, %v10474
        %v10590 = vadd.f32 %v10377, %v10474
        %v10591 = vadd.f32 %v10384, %v10474
        %v10592 = vadd.f32 %v10391, %v10474
        %v10593 = vadd.f32 %v10398, %v10474
        %v10594 = vadd.f32 %v10405, %v10474
        %v10595 = vadd.f32 %v10412, %v10474
        %v10596 = vadd.f32 %v10419, %v10474
        %v10597 = vadd.f32 %v10426, %v10474
        %v10598 = vadd.f32 %v10433, %v10474
        %v10599 = vadd.f32 %v10440, %v10474
        %v10600 = vadd.f32 %v10447, %v10474
        %v10601 = vadd.f32 %v10454, %v10474
        %v10602 = vadd.f32 %v10461, %v10474
        %v10603 = vadd.f32 %v10468, %v10474
        %vm10604 = vcmp.ge.f32.partialorder %v10476, 0.0
        %vm10605 = vcmp.ge.f32.partialorder %v10477, 0.0
        %vm10606 = vcmp.ge.f32.partialorder %v10478, 0.0
        %vm10607 = vcmp.ge.f32.partialorder %v10479, 0.0
        %vm10608 = vcmp.ge.f32.partialorder %v10480, 0.0
        %vm10609 = vcmp.ge.f32.partialorder %v10481, 0.0
        %vm10610 = vcmp.ge.f32.partialorder %v10482, 0.0
        %vm10611 = vcmp.ge.f32.partialorder %v10483, 0.0
        %vm10612 = vcmp.ge.f32.partialorder %v10484, 0.0
        %vm10613 = vcmp.ge.f32.partialorder %v10485, 0.0
        %vm10614 = vcmp.ge.f32.partialorder %v10486, 0.0
        %vm10615 = vcmp.ge.f32.partialorder %v10487, 0.0
        %vm10616 = vcmp.ge.f32.partialorder %v10488, 0.0
        %vm10617 = vcmp.ge.f32.partialorder %v10489, 0.0
        %vm10618 = vcmp.ge.f32.partialorder %v10490, 0.0
        %vm10619 = vcmp.ge.f32.partialorder %v10491, 0.0
        %vm10620 = vcmp.ge.f32.partialorder %v10492, 0.0
        %vm10621 = vcmp.ge.f32.partialorder %v10493, 0.0
        %vm10622 = vcmp.ge.f32.partialorder %v10494, 0.0
        %vm10623 = vcmp.ge.f32.partialorder %v10495, 0.0
        %vm10624 = vcmp.ge.f32.partialorder %v10496, 0.0
        %vm10625 = vcmp.ge.f32.partialorder %v10497, 0.0
        %vm10626 = vcmp.ge.f32.partialorder %v10498, 0.0
        %vm10627 = vcmp.ge.f32.partialorder %v10499, 0.0
        %vm10628 = vcmp.ge.f32.partialorder %v10500, 0.0
        %vm10629 = vcmp.ge.f32.partialorder %v10501, 0.0
        %vm10630 = vcmp.ge.f32.partialorder %v10502, 0.0
        %vm10631 = vcmp.ge.f32.partialorder %v10503, 0.0
        %vm10632 = vcmp.ge.f32.partialorder %v10504, 0.0
        %vm10633 = vcmp.ge.f32.partialorder %v10505, 0.0
        %vm10634 = vcmp.ge.f32.partialorder %v10506, 0.0
        %vm10635 = vcmp.ge.f32.partialorder %v10507, 0.0
        %vm10636 = vcmp.ge.f32.partialorder %v10508, 0.0
        %vm10637 = vcmp.ge.f32.partialorder %v10509, 0.0
        %vm10638 = vcmp.ge.f32.partialorder %v10510, 0.0
        %vm10639 = vcmp.ge.f32.partialorder %v10511, 0.0
        %vm10640 = vcmp.ge.f32.partialorder %v10512, 0.0
        %vm10641 = vcmp.ge.f32.partialorder %v10513, 0.0
        %vm10642 = vcmp.ge.f32.partialorder %v10514, 0.0
        %vm10643 = vcmp.ge.f32.partialorder %v10515, 0.0
        %vm10644 = vcmp.ge.f32.partialorder %v10516, 0.0
        %vm10645 = vcmp.ge.f32.partialorder %v10517, 0.0
        %vm10646 = vcmp.ge.f32.partialorder %v10518, 0.0
        %vm10647 = vcmp.ge.f32.partialorder %v10519, 0.0
        %vm10648 = vcmp.ge.f32.partialorder %v10520, 0.0
        %vm10649 = vcmp.ge.f32.partialorder %v10521, 0.0
        %vm10650 = vcmp.ge.f32.partialorder %v10522, 0.0
        %vm10651 = vcmp.ge.f32.partialorder %v10523, 0.0
        %vm10652 = vcmp.ge.f32.partialorder %v10524, 0.0
        %vm10653 = vcmp.ge.f32.partialorder %v10525, 0.0
        %vm10654 = vcmp.ge.f32.partialorder %v10526, 0.0
        %vm10655 = vcmp.ge.f32.partialorder %v10527, 0.0
        %vm10656 = vcmp.ge.f32.partialorder %v10528, 0.0
        %vm10657 = vcmp.ge.f32.partialorder %v10529, 0.0
        %vm10658 = vcmp.ge.f32.partialorder %v10530, 0.0
        %vm10659 = vcmp.ge.f32.partialorder %v10531, 0.0
        %vm10660 = vcmp.ge.f32.partialorder %v10532, 0.0
        %vm10661 = vcmp.ge.f32.partialorder %v10533, 0.0
        %vm10662 = vcmp.ge.f32.partialorder %v10534, 0.0
        %vm10663 = vcmp.ge.f32.partialorder %v10535, 0.0
        %vm10664 = vcmp.ge.f32.partialorder %v10536, 0.0
        %vm10665 = vcmp.ge.f32.partialorder %v10537, 0.0
        %vm10666 = vcmp.ge.f32.partialorder %v10538, 0.0
        %vm10667 = vcmp.ge.f32.partialorder %v10539, 0.0
        %vm10668 = vcmp.ge.f32.partialorder %v10540, 0.0
        %vm10669 = vcmp.ge.f32.partialorder %v10541, 0.0
        %vm10670 = vcmp.ge.f32.partialorder %v10542, 0.0
        %vm10671 = vcmp.ge.f32.partialorder %v10543, 0.0
        %vm10672 = vcmp.ge.f32.partialorder %v10544, 0.0
        %vm10673 = vcmp.ge.f32.partialorder %v10545, 0.0
        %vm10674 = vcmp.ge.f32.partialorder %v10546, 0.0
        %vm10675 = vcmp.ge.f32.partialorder %v10547, 0.0
        %vm10676 = vcmp.ge.f32.partialorder %v10548, 0.0
        %vm10677 = vcmp.ge.f32.partialorder %v10549, 0.0
        %vm10678 = vcmp.ge.f32.partialorder %v10550, 0.0
        %vm10679 = vcmp.ge.f32.partialorder %v10551, 0.0
        %vm10680 = vcmp.ge.f32.partialorder %v10552, 0.0
        %vm10681 = vcmp.ge.f32.partialorder %v10553, 0.0
        %vm10682 = vcmp.ge.f32.partialorder %v10554, 0.0
        %vm10683 = vcmp.ge.f32.partialorder %v10555, 0.0
        %vm10684 = vcmp.ge.f32.partialorder %v10556, 0.0
        %vm10685 = vcmp.ge.f32.partialorder %v10557, 0.0
        %vm10686 = vcmp.ge.f32.partialorder %v10558, 0.0
        %vm10687 = vcmp.ge.f32.partialorder %v10559, 0.0
        %vm10688 = vcmp.ge.f32.partialorder %v10560, 0.0
        %vm10689 = vcmp.ge.f32.partialorder %v10561, 0.0
        %vm10690 = vcmp.ge.f32.partialorder %v10562, 0.0
        %vm10691 = vcmp.ge.f32.partialorder %v10563, 0.0
        %vm10692 = vcmp.ge.f32.partialorder %v10564, 0.0
        %vm10693 = vcmp.ge.f32.partialorder %v10565, 0.0
        %vm10694 = vcmp.ge.f32.partialorder %v10566, 0.0
        %vm10695 = vcmp.ge.f32.partialorder %v10567, 0.0
        %vm10696 = vcmp.ge.f32.partialorder %v10568, 0.0
        %vm10697 = vcmp.ge.f32.partialorder %v10569, 0.0
        %vm10698 = vcmp.ge.f32.partialorder %v10570, 0.0
        %vm10699 = vcmp.ge.f32.partialorder %v10571, 0.0
        %vm10700 = vcmp.ge.f32.partialorder %v10572, 0.0
        %vm10701 = vcmp.ge.f32.partialorder %v10573, 0.0
        %vm10702 = vcmp.ge.f32.partialorder %v10574, 0.0
        %vm10703 = vcmp.ge.f32.partialorder %v10575, 0.0
        %vm10704 = vcmp.ge.f32.partialorder %v10576, 0.0
        %vm10705 = vcmp.ge.f32.partialorder %v10577, 0.0
        %vm10706 = vcmp.ge.f32.partialorder %v10578, 0.0
        %vm10707 = vcmp.ge.f32.partialorder %v10579, 0.0
        %vm10708 = vcmp.ge.f32.partialorder %v10580, 0.0
        %vm10709 = vcmp.ge.f32.partialorder %v10581, 0.0
        %vm10710 = vcmp.ge.f32.partialorder %v10582, 0.0
        %vm10711 = vcmp.ge.f32.partialorder %v10583, 0.0
        %vm10712 = vcmp.ge.f32.partialorder %v10584, 0.0
        %vm10713 = vcmp.ge.f32.partialorder %v10585, 0.0
        %vm10714 = vcmp.ge.f32.partialorder %v10586, 0.0
        %vm10715 = vcmp.ge.f32.partialorder %v10587, 0.0
        %vm10716 = vcmp.ge.f32.partialorder %v10588, 0.0
        %vm10717 = vcmp.ge.f32.partialorder %v10589, 0.0
        %vm10718 = vcmp.ge.f32.partialorder %v10590, 0.0
        %vm10719 = vcmp.ge.f32.partialorder %v10591, 0.0
        %vm10720 = vcmp.ge.f32.partialorder %v10592, 0.0
        %vm10721 = vcmp.ge.f32.partialorder %v10593, 0.0
        %vm10722 = vcmp.ge.f32.partialorder %v10594, 0.0
        %vm10723 = vcmp.ge.f32.partialorder %v10595, 0.0
        %vm10724 = vcmp.ge.f32.partialorder %v10596, 0.0
        %vm10725 = vcmp.ge.f32.partialorder %v10597, 0.0
        %vm10726 = vcmp.ge.f32.partialorder %v10598, 0.0
        %vm10727 = vcmp.ge.f32.partialorder %v10599, 0.0
        %vm10728 = vcmp.ge.f32.partialorder %v10600, 0.0
        %vm10729 = vcmp.ge.f32.partialorder %v10601, 0.0
        %vm10730 = vcmp.ge.f32.partialorder %v10602, 0.0
        %vm10731 = vcmp.ge.f32.partialorder %v10603, 0.0
        %v10732 = vmul.f32 %v10476, 0.2
        %v10733 = vmul.f32 %v10477, 0.2
        %v10734 = vmul.f32 %v10478, 0.2
        %v10735 = vmul.f32 %v10479, 0.2
        %v10736 = vmul.f32 %v10480, 0.2
        %v10737 = vmul.f32 %v10481, 0.2
        %v10738 = vmul.f32 %v10482, 0.2
        %v10739 = vmul.f32 %v10483, 0.2
        %v10740 = vmul.f32 %v10484, 0.2
        %v10741 = vmul.f32 %v10485, 0.2
        %v10742 = vmul.f32 %v10486, 0.2
        %v10743 = vmul.f32 %v10487, 0.2
        %v10744 = vmul.f32 %v10488, 0.2
        %v10745 = vmul.f32 %v10489, 0.2
        %v10746 = vmul.f32 %v10490, 0.2
        %v10747 = vmul.f32 %v10491, 0.2
        %v10748 = vmul.f32 %v10492, 0.2
        %v10749 = vmul.f32 %v10493, 0.2
        %v10750 = vmul.f32 %v10494, 0.2
        %v10751 = vmul.f32 %v10495, 0.2
        %v10752 = vmul.f32 %v10496, 0.2
        %v10753 = vmul.f32 %v10497, 0.2
        %v10754 = vmul.f32 %v10498, 0.2
        %v10755 = vmul.f32 %v10499, 0.2
        %v10756 = vmul.f32 %v10500, 0.2
        %v10757 = vmul.f32 %v10501, 0.2
        %v10758 = vmul.f32 %v10502, 0.2
        %v10759 = vmul.f32 %v10503, 0.2
        %v10760 = vmul.f32 %v10504, 0.2
        %v10761 = vmul.f32 %v10505, 0.2
        %v10762 = vmul.f32 %v10506, 0.2
        %v10763 = vmul.f32 %v10507, 0.2
        %v10764 = vmul.f32 %v10508, 0.2
        %v10765 = vmul.f32 %v10509, 0.2
        %v10766 = vmul.f32 %v10510, 0.2
        %v10767 = vmul.f32 %v10511, 0.2
        %v10768 = vmul.f32 %v10512, 0.2
        %v10769 = vmul.f32 %v10513, 0.2
        %v10770 = vmul.f32 %v10514, 0.2
        %v10771 = vmul.f32 %v10515, 0.2
        %v10772 = vmul.f32 %v10516, 0.2
        %v10773 = vmul.f32 %v10517, 0.2
        %v10774 = vmul.f32 %v10518, 0.2
        %v10775 = vmul.f32 %v10519, 0.2
        %v10776 = vmul.f32 %v10520, 0.2
        %v10777 = vmul.f32 %v10521, 0.2
        %v10778 = vmul.f32 %v10522, 0.2
        %v10779 = vmul.f32 %v10523, 0.2
        %v10780 = vmul.f32 %v10524, 0.2
        %v10781 = vmul.f32 %v10525, 0.2
        %v10782 = vmul.f32 %v10526, 0.2
        %v10783 = vmul.f32 %v10527, 0.2
        %v10784 = vmul.f32 %v10528, 0.2
        %v10785 = vmul.f32 %v10529, 0.2
        %v10786 = vmul.f32 %v10530, 0.2
        %v10787 = vmul.f32 %v10531, 0.2
        %v10788 = vmul.f32 %v10532, 0.2
        %v10789 = vmul.f32 %v10533, 0.2
        %v10790 = vmul.f32 %v10534, 0.2
        %v10791 = vmul.f32 %v10535, 0.2
        %v10792 = vmul.f32 %v10536, 0.2
        %v10793 = vmul.f32 %v10537, 0.2
        %v10794 = vmul.f32 %v10538, 0.2
        %v10795 = vmul.f32 %v10539, 0.2
        %v10796 = vmul.f32 %v10540, 0.2
        %v10797 = vmul.f32 %v10541, 0.2
        %v10798 = vmul.f32 %v10542, 0.2
        %v10799 = vmul.f32 %v10543, 0.2
        %v10800 = vmul.f32 %v10544, 0.2
        %v10801 = vmul.f32 %v10545, 0.2
        %v10802 = vmul.f32 %v10546, 0.2
        %v10803 = vmul.f32 %v10547, 0.2
        %v10804 = vmul.f32 %v10548, 0.2
        %v10805 = vmul.f32 %v10549, 0.2
        %v10806 = vmul.f32 %v10550, 0.2
        %v10807 = vmul.f32 %v10551, 0.2
        %v10808 = vmul.f32 %v10552, 0.2
        %v10809 = vmul.f32 %v10553, 0.2
        %v10810 = vmul.f32 %v10554, 0.2
        %v10811 = vmul.f32 %v10555, 0.2
        %v10812 = vmul.f32 %v10556, 0.2
        %v10813 = vmul.f32 %v10557, 0.2
        %v10814 = vmul.f32 %v10558, 0.2
        %v10815 = vmul.f32 %v10559, 0.2
        %v10816 = vmul.f32 %v10560, 0.2
        %v10817 = vmul.f32 %v10561, 0.2
        %v10818 = vmul.f32 %v10562, 0.2
        %v10819 = vmul.f32 %v10563, 0.2
        %v10820 = vmul.f32 %v10564, 0.2
        %v10821 = vmul.f32 %v10565, 0.2
        %v10822 = vmul.f32 %v10566, 0.2
        %v10823 = vmul.f32 %v10567, 0.2
        %v10824 = vmul.f32 %v10568, 0.2
        %v10825 = vmul.f32 %v10569, 0.2
        %v10826 = vmul.f32 %v10570, 0.2
        %v10827 = vmul.f32 %v10571, 0.2
        %v10828 = vmul.f32 %v10572, 0.2
        %v10829 = vmul.f32 %v10573, 0.2
        %v10830 = vmul.f32 %v10574, 0.2
        %v10831 = vmul.f32 %v10575, 0.2
        %v10832 = vmul.f32 %v10576, 0.2
        %v10833 = vmul.f32 %v10577, 0.2
        %v10834 = vmul.f32 %v10578, 0.2
        %v10835 = vmul.f32 %v10579, 0.2
        %v10836 = vmul.f32 %v10580, 0.2
        %v10837 = vmul.f32 %v10581, 0.2
        %v10838 = vmul.f32 %v10582, 0.2
        %v10839 = vmul.f32 %v10583, 0.2
        %v10840 = vmul.f32 %v10584, 0.2
        %v10841 = vmul.f32 %v10585, 0.2
        %v10842 = vmul.f32 %v10586, 0.2
        %v10843 = vmul.f32 %v10587, 0.2
        %v10844 = vmul.f32 %v10588, 0.2
        %v10845 = vmul.f32 %v10589, 0.2
        %v10846 = vmul.f32 %v10590, 0.2
        %v10847 = vmul.f32 %v10591, 0.2
        %v10848 = vmul.f32 %v10592, 0.2
        %v10849 = vmul.f32 %v10593, 0.2
        %v10850 = vmul.f32 %v10594, 0.2
        %v10851 = vmul.f32 %v10595, 0.2
        %v10852 = vmul.f32 %v10596, 0.2
        %v10853 = vmul.f32 %v10597, 0.2
        %v10854 = vmul.f32 %v10598, 0.2
        %v10855 = vmul.f32 %v10599, 0.2
        %v10856 = vmul.f32 %v10600, 0.2
        %v10857 = vmul.f32 %v10601, 0.2
        %v10858 = vmul.f32 %v10602, 0.2
        %v10859 = vmul.f32 %v10603, 0.2
        %v10860 = vsel %vm10604, %v10476, %v10732
        %v10861 = vsel %vm10605, %v10477, %v10733
        %v10862 = vsel %vm10606, %v10478, %v10734
        %v10863 = vsel %vm10607, %v10479, %v10735
        %v10864 = vsel %vm10608, %v10480, %v10736
        %v10865 = vsel %vm10609, %v10481, %v10737
        %v10866 = vsel %vm10610, %v10482, %v10738
        %v10867 = vsel %vm10611, %v10483, %v10739
        %v10868 = vsel %vm10612, %v10484, %v10740
        %v10869 = vsel %vm10613, %v10485, %v10741
        %v10870 = vsel %vm10614, %v10486, %v10742
        %v10871 = vsel %vm10615, %v10487, %v10743
        %v10872 = vsel %vm10616, %v10488, %v10744
        %v10873 = vsel %vm10617, %v10489, %v10745
        %v10874 = vsel %vm10618, %v10490, %v10746
        %v10875 = vsel %vm10619, %v10491, %v10747
        %v10876 = vsel %vm10620, %v10492, %v10748
        %v10877 = vsel %vm10621, %v10493, %v10749
        %v10878 = vsel %vm10622, %v10494, %v10750
        %v10879 = vsel %vm10623, %v10495, %v10751
        %v10880 = vsel %vm10624, %v10496, %v10752
        %v10881 = vsel %vm10625, %v10497, %v10753
        %v10882 = vsel %vm10626, %v10498, %v10754
        %v10883 = vsel %vm10627, %v10499, %v10755
        %v10884 = vsel %vm10628, %v10500, %v10756
        %v10885 = vsel %vm10629, %v10501, %v10757
        %v10886 = vsel %vm10630, %v10502, %v10758
        %v10887 = vsel %vm10631, %v10503, %v10759
        %v10888 = vsel %vm10632, %v10504, %v10760
        %v10889 = vsel %vm10633, %v10505, %v10761
        %v10890 = vsel %vm10634, %v10506, %v10762
        %v10891 = vsel %vm10635, %v10507, %v10763
        %v10892 = vsel %vm10636, %v10508, %v10764
        %v10893 = vsel %vm10637, %v10509, %v10765
        %v10894 = vsel %vm10638, %v10510, %v10766
        %v10895 = vsel %vm10639, %v10511, %v10767
        %v10896 = vsel %vm10640, %v10512, %v10768
        %v10897 = vsel %vm10641, %v10513, %v10769
        %v10898 = vsel %vm10642, %v10514, %v10770
        %v10899 = vsel %vm10643, %v10515, %v10771
        %v10900 = vsel %vm10644, %v10516, %v10772
        %v10901 = vsel %vm10645, %v10517, %v10773
        %v10902 = vsel %vm10646, %v10518, %v10774
        %v10903 = vsel %vm10647, %v10519, %v10775
        %v10904 = vsel %vm10648, %v10520, %v10776
        %v10905 = vsel %vm10649, %v10521, %v10777
        %v10906 = vsel %vm10650, %v10522, %v10778
        %v10907 = vsel %vm10651, %v10523, %v10779
        %v10908 = vsel %vm10652, %v10524, %v10780
        %v10909 = vsel %vm10653, %v10525, %v10781
        %v10910 = vsel %vm10654, %v10526, %v10782
        %v10911 = vsel %vm10655, %v10527, %v10783
        %v10912 = vsel %vm10656, %v10528, %v10784
        %v10913 = vsel %vm10657, %v10529, %v10785
        %v10914 = vsel %vm10658, %v10530, %v10786
        %v10915 = vsel %vm10659, %v10531, %v10787
        %v10916 = vsel %vm10660, %v10532, %v10788
        %v10917 = vsel %vm10661, %v10533, %v10789
        %v10918 = vsel %vm10662, %v10534, %v10790
        %v10919 = vsel %vm10663, %v10535, %v10791
        %v10920 = vsel %vm10664, %v10536, %v10792
        %v10921 = vsel %vm10665, %v10537, %v10793
        %v10922 = vsel %vm10666, %v10538, %v10794
        %v10923 = vsel %vm10667, %v10539, %v10795
        %v10924 = vsel %vm10668, %v10540, %v10796
        %v10925 = vsel %vm10669, %v10541, %v10797
        %v10926 = vsel %vm10670, %v10542, %v10798
        %v10927 = vsel %vm10671, %v10543, %v10799
        %v10928 = vsel %vm10672, %v10544, %v10800
        %v10929 = vsel %vm10673, %v10545, %v10801
        %v10930 = vsel %vm10674, %v10546, %v10802
        %v10931 = vsel %vm10675, %v10547, %v10803
        %v10932 = vsel %vm10676, %v10548, %v10804
        %v10933 = vsel %vm10677, %v10549, %v10805
        %v10934 = vsel %vm10678, %v10550, %v10806
        %v10935 = vsel %vm10679, %v10551, %v10807
        %v10936 = vsel %vm10680, %v10552, %v10808
        %v10937 = vsel %vm10681, %v10553, %v10809
        %v10938 = vsel %vm10682, %v10554, %v10810
        %v10939 = vsel %vm10683, %v10555, %v10811
        %v10940 = vsel %vm10684, %v10556, %v10812
        %v10941 = vsel %vm10685, %v10557, %v10813
        %v10942 = vsel %vm10686, %v10558, %v10814
        %v10943 = vsel %vm10687, %v10559, %v10815
        %v10944 = vsel %vm10688, %v10560, %v10816
        %v10945 = vsel %vm10689, %v10561, %v10817
        %v10946 = vsel %vm10690, %v10562, %v10818
        %v10947 = vsel %vm10691, %v10563, %v10819
        %v10948 = vsel %vm10692, %v10564, %v10820
        %v10949 = vsel %vm10693, %v10565, %v10821
        %v10950 = vsel %vm10694, %v10566, %v10822
        %v10951 = vsel %vm10695, %v10567, %v10823
        %v10952 = vsel %vm10696, %v10568, %v10824
        %v10953 = vsel %vm10697, %v10569, %v10825
        %v10954 = vsel %vm10698, %v10570, %v10826
        %v10955 = vsel %vm10699, %v10571, %v10827
        %v10956 = vsel %vm10700, %v10572, %v10828
        %v10957 = vsel %vm10701, %v10573, %v10829
        %v10958 = vsel %vm10702, %v10574, %v10830
        %v10959 = vsel %vm10703, %v10575, %v10831
        %v10960 = vsel %vm10704, %v10576, %v10832
        %v10961 = vsel %vm10705, %v10577, %v10833
        %v10962 = vsel %vm10706, %v10578, %v10834
        %v10963 = vsel %vm10707, %v10579, %v10835
        %v10964 = vsel %vm10708, %v10580, %v10836
        %v10965 = vsel %vm10709, %v10581, %v10837
        %v10966 = vsel %vm10710, %v10582, %v10838
        %v10967 = vsel %vm10711, %v10583, %v10839
        %v10968 = vsel %vm10712, %v10584, %v10840
        %v10969 = vsel %vm10713, %v10585, %v10841
        %v10970 = vsel %vm10714, %v10586, %v10842
        %v10971 = vsel %vm10715, %v10587, %v10843
        %v10972 = vsel %vm10716, %v10588, %v10844
        %v10973 = vsel %vm10717, %v10589, %v10845
        %v10974 = vsel %vm10718, %v10590, %v10846
        %v10975 = vsel %vm10719, %v10591, %v10847
        %v10976 = vsel %vm10720, %v10592, %v10848
        %v10977 = vsel %vm10721, %v10593, %v10849
        %v10978 = vsel %vm10722, %v10594, %v10850
        %v10979 = vsel %vm10723, %v10595, %v10851
        %v10980 = vsel %vm10724, %v10596, %v10852
        %v10981 = vsel %vm10725, %v10597, %v10853
        %v10982 = vsel %vm10726, %v10598, %v10854
        %v10983 = vsel %vm10727, %v10599, %v10855
        %v10984 = vsel %vm10728, %v10600, %v10856
        %v10985 = vsel %vm10729, %v10601, %v10857
        %v10986 = vsel %vm10730, %v10602, %v10858
        %v10987 = vsel %vm10731, %v10603, %v10859
        %v10988 = vld [vmem:[%s10] sm:$0xff]
        %v10989 = vld [vmem:[%s12] sm:$0x1]
        %v10991 = vlaneseq
        %v10992 = vshrl.u32 %v10991, 7
        %v10993 = vsub.s32 0, %v10992
        %v10994 = vrot.slane %v10989, %v10993
        %v11124 = vrot.slane %v10861, 7
        %vm11125 = vcmask 1041409
        %v11126 = vsel %vm11125, %v11124, %v10860
        %v11127 = vrot.slane %v10862, 6
        %vm11128 = vcmask 1042434
        %v11129 = vsel %vm11128, %v11127, %v11126
        %v11130 = vrot.slane %v10863, 5
        %vm11131 = vcmask 1043459
        %v11132 = vsel %vm11131, %v11130, %v11129
        %v11133 = vrot.slane %v10864, 4
        %vm11134 = vcmask 1044484
        %v11135 = vsel %vm11134, %v11133, %v11132
        %v11136 = vrot.slane %v10865, 3
        %vm11137 = vcmask 1045509
        %v11138 = vsel %vm11137, %v11136, %v11135
        %v11139 = vrot.slane %v10866, 2
        %vm11140 = vcmask 1046534
        %v11141 = vsel %vm11140, %v11139, %v11138
        %v11142 = vrot.slane %v10867, 1
        %vm11143 = vcmask 1047559
        %v11144 = vsel %vm11143, %v11142, %v11141
        %v11145 = vrot.slane %v10869, 7
        %v11146 = vsel %vm11125, %v11145, %v10868
        %v11147 = vrot.slane %v10870, 6
        %v11148 = vsel %vm11128, %v11147, %v11146
        %v11149 = vrot.slane %v10871, 5
        %v11150 = vsel %vm11131, %v11149, %v11148
        %v11151 = vrot.slane %v10872, 4
        %v11152 = vsel %vm11134, %v11151, %v11150
        %v11153 = vrot.slane %v10873, 3
        %v11154 = vsel %vm11137, %v11153, %v11152
        %v11155 = vrot.slane %v10874, 2
        %v11156 = vsel %vm11140, %v11155, %v11154
        %v11157 = vrot.slane %v10875, 1
        %v11158 = vsel %vm11143, %v11157, %v11156
        %v11159 = vrot.slane %v10877, 7
        %v11160 = vsel %vm11125, %v11159, %v10876
        %v11161 = vrot.slane %v10878, 6
        %v11162 = vsel %vm11128, %v11161, %v11160
        %v11163 = vrot.slane %v10879, 5
        %v11164 = vsel %vm11131, %v11163, %v11162
        %v11165 = vrot.slane %v10880, 4
        %v11166 = vsel %vm11134, %v11165, %v11164
        %v11167 = vrot.slane %v10881, 3
        %v11168 = vsel %vm11137, %v11167, %v11166
        %v11169 = vrot.slane %v10882, 2
        %v11170 = vsel %vm11140, %v11169, %v11168
        %v11171 = vrot.slane %v10883, 1
        %v11172 = vsel %vm11143, %v11171, %v11170
        %v11173 = vrot.slane %v10885, 7
        %v11174 = vsel %vm11125, %v11173, %v10884
        %v11175 = vrot.slane %v10886, 6
        %v11176 = vsel %vm11128, %v11175, %v11174
        %v11177 = vrot.slane %v10887, 5
        %v11178 = vsel %vm11131, %v11177, %v11176
        %v11179 = vrot.slane %v10888, 4
        %v11180 = vsel %vm11134, %v11179, %v11178
        %v11181 = vrot.slane %v10889, 3
        %v11182 = vsel %vm11137, %v11181, %v11180
        %v11183 = vrot.slane %v10890, 2
        %v11184 = vsel %vm11140, %v11183, %v11182
        %v11185 = vrot.slane %v10891, 1
        %v11186 = vsel %vm11143, %v11185, %v11184
        %v11187 = vrot.slane %v10893, 7
        %v11188 = vsel %vm11125, %v11187, %v10892
        %v11189 = vrot.slane %v10894, 6
        %v11190 = vsel %vm11128, %v11189, %v11188
        %v11191 = vrot.slane %v10895, 5
        %v11192 = vsel %vm11131, %v11191, %v11190
        %v11193 = vrot.slane %v10896, 4
        %v11194 = vsel %vm11134, %v11193, %v11192
        %v11195 = vrot.slane %v10897, 3
        %v11196 = vsel %vm11137, %v11195, %v11194
        %v11197 = vrot.slane %v10898, 2
        %v11198 = vsel %vm11140, %v11197, %v11196
        %v11199 = vrot.slane %v10899, 1
        %v11200 = vsel %vm11143, %v11199, %v11198
        %v11201 = vrot.slane %v10901, 7
        %v11202 = vsel %vm11125, %v11201, %v10900
        %v11203 = vrot.slane %v10902, 6
        %v11204 = vsel %vm11128, %v11203, %v11202
        %v11205 = vrot.slane %v10903, 5
        %v11206 = vsel %vm11131, %v11205, %v11204
        %v11207 = vrot.slane %v10904, 4
        %v11208 = vsel %vm11134, %v11207, %v11206
        %v11209 = vrot.slane %v10905, 3
        %v11210 = vsel %vm11137, %v11209, %v11208
        %v11211 = vrot.slane %v10906, 2
        %v11212 = vsel %vm11140, %v11211, %v11210
        %v11213 = vrot.slane %v10907, 1
        %v11214 = vsel %vm11143, %v11213, %v11212
        %v11215 = vrot.slane %v10909, 7
        %v11216 = vsel %vm11125, %v11215, %v10908
        %v11217 = vrot.slane %v10910, 6
        %v11218 = vsel %vm11128, %v11217, %v11216
        %v11219 = vrot.slane %v10911, 5
        %v11220 = vsel %vm11131, %v11219, %v11218
        %v11221 = vrot.slane %v10912, 4
        %v11222 = vsel %vm11134, %v11221, %v11220
        %v11223 = vrot.slane %v10913, 3
        %v11224 = vsel %vm11137, %v11223, %v11222
        %v11225 = vrot.slane %v10914, 2
        %v11226 = vsel %vm11140, %v11225, %v11224
        %v11227 = vrot.slane %v10915, 1
        %v11228 = vsel %vm11143, %v11227, %v11226
        %v11229 = vrot.slane %v10917, 7
        %v11230 = vsel %vm11125, %v11229, %v10916
        %v11231 = vrot.slane %v10918, 6
        %v11232 = vsel %vm11128, %v11231, %v11230
        %v11233 = vrot.slane %v10919, 5
        %v11234 = vsel %vm11131, %v11233, %v11232
        %v11235 = vrot.slane %v10920, 4
        %v11236 = vsel %vm11134, %v11235, %v11234
        %v11237 = vrot.slane %v10921, 3
        %v11238 = vsel %vm11137, %v11237, %v11236
        %v11239 = vrot.slane %v10922, 2
        %v11240 = vsel %vm11140, %v11239, %v11238
        %v11241 = vrot.slane %v10923, 1
        %v11242 = vsel %vm11143, %v11241, %v11240
        %v11243 = vrot.slane %v10925, 7
        %v11244 = vsel %vm11125, %v11243, %v10924
        %v11245 = vrot.slane %v10926, 6
        %v11246 = vsel %vm11128, %v11245, %v11244
        %v11247 = vrot.slane %v10927, 5
        %v11248 = vsel %vm11131, %v11247, %v11246
        %v11249 = vrot.slane %v10928, 4
        %v11250 = vsel %vm11134, %v11249, %v11248
        %v11251 = vrot.slane %v10929, 3
        %v11252 = vsel %vm11137, %v11251, %v11250
        %v11253 = vrot.slane %v10930, 2
        %v11254 = vsel %vm11140, %v11253, %v11252
        %v11255 = vrot.slane %v10931, 1
        %v11256 = vsel %vm11143, %v11255, %v11254
        %v11257 = vrot.slane %v10933, 7
        %v11258 = vsel %vm11125, %v11257, %v10932
        %v11259 = vrot.slane %v10934, 6
        %v11260 = vsel %vm11128, %v11259, %v11258
        %v11261 = vrot.slane %v10935, 5
        %v11262 = vsel %vm11131, %v11261, %v11260
        %v11263 = vrot.slane %v10936, 4
        %v11264 = vsel %vm11134, %v11263, %v11262
        %v11265 = vrot.slane %v10937, 3
        %v11266 = vsel %vm11137, %v11265, %v11264
        %v11267 = vrot.slane %v10938, 2
        %v11268 = vsel %vm11140, %v11267, %v11266
        %v11269 = vrot.slane %v10939, 1
        %v11270 = vsel %vm11143, %v11269, %v11268
        %v11271 = vrot.slane %v10941, 7
        %v11272 = vsel %vm11125, %v11271, %v10940
        %v11273 = vrot.slane %v10942, 6
        %v11274 = vsel %vm11128, %v11273, %v11272
        %v11275 = vrot.slane %v10943, 5
        %v11276 = vsel %vm11131, %v11275, %v11274
        %v11277 = vrot.slane %v10944, 4
        %v11278 = vsel %vm11134, %v11277, %v11276
        %v11279 = vrot.slane %v10945, 3
        %v11280 = vsel %vm11137, %v11279, %v11278
        %v11281 = vrot.slane %v10946, 2
        %v11282 = vsel %vm11140, %v11281, %v11280
        %v11283 = vrot.slane %v10947, 1
        %v11284 = vsel %vm11143, %v11283, %v11282
        %v11285 = vrot.slane %v10949, 7
        %v11286 = vsel %vm11125, %v11285, %v10948
        %v11287 = vrot.slane %v10950, 6
        %v11288 = vsel %vm11128, %v11287, %v11286
        %v11289 = vrot.slane %v10951, 5
        %v11290 = vsel %vm11131, %v11289, %v11288
        %v11291 = vrot.slane %v10952, 4
        %v11292 = vsel %vm11134, %v11291, %v11290
        %v11293 = vrot.slane %v10953, 3
        %v11294 = vsel %vm11137, %v11293, %v11292
        %v11295 = vrot.slane %v10954, 2
        %v11296 = vsel %vm11140, %v11295, %v11294
        %v11297 = vrot.slane %v10955, 1
        %v11298 = vsel %vm11143, %v11297, %v11296
        %v11299 = vrot.slane %v10957, 7
        %v11300 = vsel %vm11125, %v11299, %v10956
        %v11301 = vrot.slane %v10958, 6
        %v11302 = vsel %vm11128, %v11301, %v11300
        %v11303 = vrot.slane %v10959, 5
        %v11304 = vsel %vm11131, %v11303, %v11302
        %v11305 = vrot.slane %v10960, 4
        %v11306 = vsel %vm11134, %v11305, %v11304
        %v11307 = vrot.slane %v10961, 3
        %v11308 = vsel %vm11137, %v11307, %v11306
        %v11309 = vrot.slane %v10962, 2
        %v11310 = vsel %vm11140, %v11309, %v11308
        %v11311 = vrot.slane %v10963, 1
        %v11312 = vsel %vm11143, %v11311, %v11310
        %v11313 = vrot.slane %v10965, 7
        %v11314 = vsel %vm11125, %v11313, %v10964
        %v11315 = vrot.slane %v10966, 6
        %v11316 = vsel %vm11128, %v11315, %v11314
        %v11317 = vrot.slane %v10967, 5
        %v11318 = vsel %vm11131, %v11317, %v11316
        %v11319 = vrot.slane %v10968, 4
        %v11320 = vsel %vm11134, %v11319, %v11318
        %v11321 = vrot.slane %v10969, 3
        %v11322 = vsel %vm11137, %v11321, %v11320
        %v11323 = vrot.slane %v10970, 2
        %v11324 = vsel %vm11140, %v11323, %v11322
        %v11325 = vrot.slane %v10971, 1
        %v11326 = vsel %vm11143, %v11325, %v11324
        %v11327 = vrot.slane %v10973, 7
        %v11328 = vsel %vm11125, %v11327, %v10972
        %v11329 = vrot.slane %v10974, 6
        %v11330 = vsel %vm11128, %v11329, %v11328
        %v11331 = vrot.slane %v10975, 5
        %v11332 = vsel %vm11131, %v11331, %v11330
        %v11333 = vrot.slane %v10976, 4
        %v11334 = vsel %vm11134, %v11333, %v11332
        %v11335 = vrot.slane %v10977, 3
        %v11336 = vsel %vm11137, %v11335, %v11334
        %v11337 = vrot.slane %v10978, 2
        %v11338 = vsel %vm11140, %v11337, %v11336
        %v11339 = vrot.slane %v10979, 1
        %v11340 = vsel %vm11143, %v11339, %v11338
        %v11341 = vrot.slane %v10981, 7
        %v11342 = vsel %vm11125, %v11341, %v10980
        %v11343 = vrot.slane %v10982, 6
        %v11344 = vsel %vm11128, %v11343, %v11342
        %v11345 = vrot.slane %v10983, 5
        %v11346 = vsel %vm11131, %v11345, %v11344
        %v11347 = vrot.slane %v10984, 4
        %v11348 = vsel %vm11134, %v11347, %v11346
        %v11349 = vrot.slane %v10985, 3
        %v11350 = vsel %vm11137, %v11349, %v11348
        %v11351 = vrot.slane %v10986, 2
        %v11352 = vsel %vm11140, %v11351, %v11350
        %v11353 = vrot.slane %v10987, 1
        %v11354 = vsel %vm11143, %v11353, %v11352
        %v11355 = vsel %vm860, %v11144, 0
        %v11357 = vsel %vm860, %v11158, 0
        %v11359 = vsel %vm860, %v11172, 0
        %v11361 = vsel %vm860, %v11186, 0
        %v11363 = vsel %vm860, %v11200, 0
        %v11365 = vsel %vm860, %v11214, 0
        %v11367 = vsel %vm860, %v11228, 0
        %v11369 = vsel %vm860, %v11242, 0
        %v11371 = vsel %vm860, %v11256, 0
        %v11373 = vsel %vm860, %v11270, 0
        %v11375 = vsel %vm860, %v11284, 0
        %v11377 = vsel %vm860, %v11298, 0
        %v11379 = vsel %vm860, %v11312, 0
        %v11381 = vsel %vm860, %v11326, 0
        %v11383 = vsel %vm860, %v11340, 0
        %v11385 = vsel %vm860, %v11354, 0
        %11387 = vmatprep.subr.mxu0 0.0
        %11388 = vmatpush1.msra.mxu0 %v10988
        %11389 = vmatprep.subr.mxu0 0.0
        %11390 = vmatpush1.msra.mxu0 0.0
        %11391 = vmatprep.subr.mxu0 0.0
        %11392 = vmatpush1.msra.mxu0 0.0
        %11393 = vmatprep.subr.mxu0 0.0
        %11394 = vmatpush1.msra.mxu0 0.0
        %11395 = vmatprep.subr.mxu0 0.0
        %11396 = vmatpush1.msra.mxu0 0.0
        %11397 = vmatprep.subr.mxu0 0.0
        %11398 = vmatpush1.msra.mxu0 0.0
        %11399 = vmatprep.subr.mxu0 0.0
        %11400 = vmatpush1.msra.mxu0 0.0
        %11401 = vmatprep.subr.mxu0 0.0
        %11402 = vmatpush1.msra.mxu0 0.0
        %11403 = vmatprep.subr.mxu0 0.0
        %11404 = vmatpush1.msra.mxu0 0.0
        %11405 = vmatprep.subr.mxu0 0.0
        %11406 = vmatpush1.msra.mxu0 0.0
        %11407 = vmatprep.subr.mxu0 0.0
        %11408 = vmatpush1.msra.mxu0 0.0
        %11409 = vmatprep.subr.mxu0 0.0
        %11410 = vmatpush1.msra.mxu0 0.0
        %11411 = vmatprep.subr.mxu0 0.0
        %11412 = vmatpush1.msra.mxu0 0.0
        %11413 = vmatprep.subr.mxu0 0.0
        %11414 = vmatpush1.msra.mxu0 0.0
        %11415 = vmatprep.subr.mxu0 0.0
        %11416 = vmatpush1.msra.mxu0 0.0
        %11417 = vmatprep.subr.mxu0 0.0
        %11418 = vmatpush1.msra.mxu0 0.0
        %11419 = vmatprep.subr.mxu0 0.0
        %11420 = vmatpush1.msra.mxu0 0.0
        %11421 = vmatprep.subr.mxu0 0.0
        %11422 = vmatpush1.msra.mxu0 0.0
        %11423 = vmatprep.subr.mxu0 0.0
        %11424 = vmatpush1.msra.mxu0 0.0
        %11425 = vmatprep.subr.mxu0 0.0
        %11426 = vmatpush1.msra.mxu0 0.0
        %11427 = vmatprep.subr.mxu0 0.0
        %11428 = vmatpush1.msra.mxu0 0.0
        %11429 = vmatprep.subr.mxu0 0.0
        %11430 = vmatpush1.msra.mxu0 0.0
        %11431 = vmatprep.subr.mxu0 0.0
        %11432 = vmatpush1.msra.mxu0 0.0
        %11433 = vmatprep.subr.mxu0 0.0
        %11434 = vmatpush1.msra.mxu0 0.0
        %11435 = vmatprep.subr.mxu0 0.0
        %11436 = vmatpush1.msra.mxu0 0.0
        %11437 = vmatprep.subr.mxu0 0.0
        %11438 = vmatpush1.msra.mxu0 0.0
        %11439 = vmatprep.subr.mxu0 0.0
        %11440 = vmatpush1.msra.mxu0 0.0
        %11441 = vmatprep.subr.mxu0 0.0
        %11442 = vmatpush1.msra.mxu0 0.0
        %11443 = vmatprep.subr.mxu0 0.0
        %11444 = vmatpush1.msra.mxu0 0.0
        %11445 = vmatprep.subr.mxu0 0.0
        %11446 = vmatpush1.msra.mxu0 0.0
        %11447 = vmatprep.subr.mxu0 0.0
        %11448 = vmatpush1.msra.mxu0 0.0
        %11449 = vmatprep.subr.mxu0 0.0
        %11450 = vmatpush1.msra.mxu0 0.0
        %11451 = vmatprep.mubr.f32.mxu0 0.0
        %11452 = vmatmul.mubr.f32.gmra.mrb[0].mxu0 %v11355
        %v11453 = vpop.f32.mrb[0].mxu0
        %v11454 = vadd.f32 %v10994, %v11453
        %v11455 = vpop.f32.mrb[0].mxu0
        %11456 = vmatprep.mubr.f32.mxu0 0.0
        %11457 = vmatmul.mubr.f32.gmra.mrb[0].mxu0 %v11357
        %v11458 = vpop.f32.mrb[0].mxu0
        %v11459 = vadd.f32 %v10994, %v11458
        %v11460 = vpop.f32.mrb[0].mxu0
        %11461 = vmatprep.mubr.f32.mxu0 0.0
        %11462 = vmatmul.mubr.f32.gmra.mrb[0].mxu0 %v11359
        %v11463 = vpop.f32.mrb[0].mxu0
        %v11464 = vadd.f32 %v10994, %v11463
        %v11465 = vpop.f32.mrb[0].mxu0
        %11466 = vmatprep.mubr.f32.mxu0 0.0
        %11467 = vmatmul.mubr.f32.gmra.mrb[0].mxu0 %v11361
        %v11468 = vpop.f32.mrb[0].mxu0
        %v11469 = vadd.f32 %v10994, %v11468
        %v11470 = vpop.f32.mrb[0].mxu0
        %11471 = vmatprep.mubr.f32.mxu0 0.0
        %11472 = vmatmul.mubr.f32.gmra.mrb[0].mxu0 %v11363
        %v11473 = vpop.f32.mrb[0].mxu0
        %v11474 = vadd.f32 %v10994, %v11473
        %v11475 = vpop.f32.mrb[0].mxu0
        %11476 = vmatprep.mubr.f32.mxu0 0.0
        %11477 = vmatmul.mubr.f32.gmra.mrb[0].mxu0 %v11365
        %v11478 = vpop.f32.mrb[0].mxu0
        %v11479 = vadd.f32 %v10994, %v11478
        %v11480 = vpop.f32.mrb[0].mxu0
        %11481 = vmatprep.mubr.f32.mxu0 0.0
        %11482 = vmatmul.mubr.f32.gmra.mrb[0].mxu0 %v11367
        %v11483 = vpop.f32.mrb[0].mxu0
        %v11484 = vadd.f32 %v10994, %v11483
        %v11485 = vpop.f32.mrb[0].mxu0
        %11486 = vmatprep.mubr.f32.mxu0 0.0
        %11487 = vmatmul.mubr.f32.gmra.mrb[0].mxu0 %v11369
        %v11488 = vpop.f32.mrb[0].mxu0
        %v11489 = vadd.f32 %v10994, %v11488
        %v11490 = vpop.f32.mrb[0].mxu0
        %11491 = vmatprep.mubr.f32.mxu0 0.0
        %11492 = vmatmul.mubr.f32.gmra.mrb[0].mxu0 %v11371
        %v11493 = vpop.f32.mrb[0].mxu0
        %v11494 = vadd.f32 %v10994, %v11493
        %v11495 = vpop.f32.mrb[0].mxu0
        %11496 = vmatprep.mubr.f32.mxu0 0.0
        %11497 = vmatmul.mubr.f32.gmra.mrb[0].mxu0 %v11373
        %v11498 = vpop.f32.mrb[0].mxu0
        %v11499 = vadd.f32 %v10994, %v11498
        %v11500 = vpop.f32.mrb[0].mxu0
        %11501 = vmatprep.mubr.f32.mxu0 0.0
        %11502 = vmatmul.mubr.f32.gmra.mrb[0].mxu0 %v11375
        %v11503 = vpop.f32.mrb[0].mxu0
        %v11504 = vadd.f32 %v10994, %v11503
        %v11505 = vpop.f32.mrb[0].mxu0
        %11506 = vmatprep.mubr.f32.mxu0 0.0
        %11507 = vmatmul.mubr.f32.gmra.mrb[0].mxu0 %v11377
        %v11508 = vpop.f32.mrb[0].mxu0
        %v11509 = vadd.f32 %v10994, %v11508
        %v11510 = vpop.f32.mrb[0].mxu0
        %11511 = vmatprep.mubr.f32.mxu0 0.0
        %11512 = vmatmul.mubr.f32.gmra.mrb[0].mxu0 %v11379
        %v11513 = vpop.f32.mrb[0].mxu0
        %v11514 = vadd.f32 %v10994, %v11513
        %v11515 = vpop.f32.mrb[0].mxu0
        %11516 = vmatprep.mubr.f32.mxu0 0.0
        %11517 = vmatmul.mubr.f32.gmra.mrb[0].mxu0 %v11381
        %v11518 = vpop.f32.mrb[0].mxu0
        %v11519 = vadd.f32 %v10994, %v11518
        %v11520 = vpop.f32.mrb[0].mxu0
        %11521 = vmatprep.mubr.f32.mxu0 0.0
        %11522 = vmatmul.mubr.f32.gmra.mrb[0].mxu0 %v11383
        %v11523 = vpop.f32.mrb[0].mxu0
        %v11524 = vadd.f32 %v10994, %v11523
        %v11525 = vpop.f32.mrb[0].mxu0
        %11526 = vmatprep.mubr.f32.mxu0 0.0
        %11527 = vmatmul.mubr.f32.gmra.mrb[0].mxu0 %v11385
        %v11528 = vpop.f32.mrb[0].mxu0
        %v11529 = vadd.f32 %v10994, %v11528
        %v11530 = vpop.f32.mrb[0].mxu0
        %11531 = vdwg.mxu0
        %11532 = vst.msk [vmem:[#allocation3] sm:$0xff] %vm860, %v11454
        %11533 = vst.msk [vmem:[#allocation3 + $0x8] sm:$0xff] %vm860, %v11459
        %11534 = vst.msk [vmem:[#allocation3 + $0x10] sm:$0xff] %vm860, %v11464
        %11535 = vst.msk [vmem:[#allocation3 + $0x18] sm:$0xff] %vm860, %v11469
        %11536 = vst.msk [vmem:[#allocation3 + $0x20] sm:$0xff] %vm860, %v11474
        %11537 = vst.msk [vmem:[#allocation3 + $0x28] sm:$0xff] %vm860, %v11479
        %11538 = vst.msk [vmem:[#allocation3 + $0x30] sm:$0xff] %vm860, %v11484
        %11539 = vst.msk [vmem:[#allocation3 + $0x38] sm:$0xff] %vm860, %v11489
        %11540 = vst.msk [vmem:[#allocation3 + $0x40] sm:$0xff] %vm860, %v11494
        %11541 = vst.msk [vmem:[#allocation3 + $0x48] sm:$0xff] %vm860, %v11499
        %11542 = vst.msk [vmem:[#allocation3 + $0x50] sm:$0xff] %vm860, %v11504
        %11543 = vst.msk [vmem:[#allocation3 + $0x58] sm:$0xff] %vm860, %v11509
        %11544 = vst.msk [vmem:[#allocation3 + $0x60] sm:$0xff] %vm860, %v11514
        %11545 = vst.msk [vmem:[#allocation3 + $0x68] sm:$0xff] %vm860, %v11519
        %11546 = vst.msk [vmem:[#allocation3 + $0x70] sm:$0xff] %vm860, %v11524
        %11547 = vst.msk [vmem:[#allocation3 + $0x78] sm:$0xff] %vm860, %v11529
        %v11548 = vld [vmem:[%s11] sm:$0xff]
        %v11549 = vld [vmem:[#allocation2] sm:$0x1]
        loop: start=0, step=1, limit=128
        $region93: #{tpu_custom_call.1} parent=87 // loop_pre_header
          _
        $region94: #{tpu_custom_call.1} parent=87 // loop_header
          %s11551 = sphi 0, %s11555
          %p11552 = scmp.ge.s32.totalorder %s11551, 128
          %v11556 = vphi %v11549, %v11643
        $region95: #{tpu_custom_call.1} parent=87 // loop_header_branch
          %11554 = sbr.rel (%p11552) target = $region99
        $region96: #{tpu_custom_call.1} parent=87 // loop_body
          %s11557 = scalar_lea.vmem [#allocation3], %s11551
          %v11558 = vld [vmem:[%s11557] sm:$0x1]
          %v11560 = vsel %vm860, %v11556, 0
          %11562 = vmatprep.subr.mxu0 0.0
          %11563 = vmatpush1.msra.mxu0 %v11548
          %11564 = vmatprep.subr.mxu0 0.0
          %11565 = vmatpush1.msra.mxu0 0.0
          %11566 = vmatprep.subr.mxu0 0.0
          %11567 = vmatpush1.msra.mxu0 0.0
          %11568 = vmatprep.subr.mxu0 0.0
          %11569 = vmatpush1.msra.mxu0 0.0
          %11570 = vmatprep.subr.mxu0 0.0
          %11571 = vmatpush1.msra.mxu0 0.0
          %11572 = vmatprep.subr.mxu0 0.0
          %11573 = vmatpush1.msra.mxu0 0.0
          %11574 = vmatprep.subr.mxu0 0.0
          %11575 = vmatpush1.msra.mxu0 0.0
          %11576 = vmatprep.subr.mxu0 0.0
          %11577 = vmatpush1.msra.mxu0 0.0
          %11578 = vmatprep.subr.mxu0 0.0
          %11579 = vmatpush1.msra.mxu0 0.0
          %11580 = vmatprep.subr.mxu0 0.0
          %11581 = vmatpush1.msra.mxu0 0.0
          %11582 = vmatprep.subr.mxu0 0.0
          %11583 = vmatpush1.msra.mxu0 0.0
          %11584 = vmatprep.subr.mxu0 0.0
          %11585 = vmatpush1.msra.mxu0 0.0
          %11586 = vmatprep.subr.mxu0 0.0
          %11587 = vmatpush1.msra.mxu0 0.0
          %11588 = vmatprep.subr.mxu0 0.0
          %11589 = vmatpush1.msra.mxu0 0.0
          %11590 = vmatprep.subr.mxu0 0.0
          %11591 = vmatpush1.msra.mxu0 0.0
          %11592 = vmatprep.subr.mxu0 0.0
          %11593 = vmatpush1.msra.mxu0 0.0
          %11594 = vmatprep.subr.mxu0 0.0
          %11595 = vmatpush1.msra.mxu0 0.0
          %11596 = vmatprep.subr.mxu0 0.0
          %11597 = vmatpush1.msra.mxu0 0.0
          %11598 = vmatprep.subr.mxu0 0.0
          %11599 = vmatpush1.msra.mxu0 0.0
          %11600 = vmatprep.subr.mxu0 0.0
          %11601 = vmatpush1.msra.mxu0 0.0
          %11602 = vmatprep.subr.mxu0 0.0
          %11603 = vmatpush1.msra.mxu0 0.0
          %11604 = vmatprep.subr.mxu0 0.0
          %11605 = vmatpush1.msra.mxu0 0.0
          %11606 = vmatprep.subr.mxu0 0.0
          %11607 = vmatpush1.msra.mxu0 0.0
          %11608 = vmatprep.subr.mxu0 0.0
          %11609 = vmatpush1.msra.mxu0 0.0
          %11610 = vmatprep.subr.mxu0 0.0
          %11611 = vmatpush1.msra.mxu0 0.0
          %11612 = vmatprep.subr.mxu0 0.0
          %11613 = vmatpush1.msra.mxu0 0.0
          %11614 = vmatprep.subr.mxu0 0.0
          %11615 = vmatpush1.msra.mxu0 0.0
          %11616 = vmatprep.subr.mxu0 0.0
          %11617 = vmatpush1.msra.mxu0 0.0
          %11618 = vmatprep.subr.mxu0 0.0
          %11619 = vmatpush1.msra.mxu0 0.0
          %11620 = vmatprep.subr.mxu0 0.0
          %11621 = vmatpush1.msra.mxu0 0.0
          %11622 = vmatprep.subr.mxu0 0.0
          %11623 = vmatpush1.msra.mxu0 0.0
          %11624 = vmatprep.subr.mxu0 0.0
          %11625 = vmatpush1.msra.mxu0 0.0
          %11626 = vmatprep.mubr.f32.mxu0 0.0
          %11627 = vmatmul.mubr.f32.gmra.mrb[0].mxu0 %v11560
          %v11628 = vpop.f32.mrb[0].mxu0
          %v11629 = vadd.f32 0.0, %v11628
          %v11630 = vpop.f32.mrb[0].mxu0
          %11631 = vdwg.mxu0
          %v11632 = vadd.f32 %v11558, %v11629
          %v11633 = vtanh.pop %v11632
          %s11634 = scalar_lea.vmem [#allocation4], %s11551
          %vm11635 = vcmask 57344
          %11636 = vst.msk [vmem:[%s11634] sm:$0x1] %vm11635, %v11633
          %s11637 = smul.u32 %s38, 128
          %s11638 = sadd.s32 %s11637, %s11551
          %p11639 = scmp.lt.s32.totalorder %s11638, 200
          %s11640 = scalar_select %p11639, 1, 0
          %v11641 = vstv %s11640
          %vm11642 = vcmp.eq.s32.totalorder %v11641, 1
          %v11643 = vsel %vm11642, %v11633, %v11556
        $region97: #{tpu_custom_call.1} parent=87 // loop_footer
          %s11555 = sadd.s32 1, %s11551
        $region98: #{tpu_custom_call.1} parent=87 // loop_footer_branch
          %11550 = sbr.rel target = $region94
        $region99: #{tpu_custom_call.1} parent=87 // loop_exit
          _
        %vm11644 = vcmask 57344
        %11645 = vst.msk [vmem:[#allocation2] sm:$0x1] %vm11644, %v11556
        %v11646 = vld [vmem:[#allocation4] sm:$0xff]
        %v11647 = vld [vmem:[#allocation4 + $0x8] sm:$0xff]
        %v11648 = vld [vmem:[#allocation4 + $0x10] sm:$0xff]
        %v11649 = vld [vmem:[#allocation4 + $0x18] sm:$0xff]
        %v11650 = vld [vmem:[#allocation4 + $0x20] sm:$0xff]
        %v11651 = vld [vmem:[#allocation4 + $0x28] sm:$0xff]
        %v11652 = vld [vmem:[#allocation4 + $0x30] sm:$0xff]
        %v11653 = vld [vmem:[#allocation4 + $0x38] sm:$0xff]
        %v11654 = vld [vmem:[#allocation4 + $0x40] sm:$0xff]
        %v11655 = vld [vmem:[#allocation4 + $0x48] sm:$0xff]
        %v11656 = vld [vmem:[#allocation4 + $0x50] sm:$0xff]
        %v11657 = vld [vmem:[#allocation4 + $0x58] sm:$0xff]
        %v11658 = vld [vmem:[#allocation4 + $0x60] sm:$0xff]
        %v11659 = vld [vmem:[#allocation4 + $0x68] sm:$0xff]
        %v11660 = vld [vmem:[#allocation4 + $0x70] sm:$0xff]
        %v11661 = vld [vmem:[#allocation4 + $0x78] sm:$0xff]
        %v11662 = vld [vmem:[%s13] sm:$0xff]
        %v11663 = vld [vmem:[%s14] sm:$0x1]
        %v11665 = vlaneseq
        %v11666 = vshrl.u32 %v11665, 7
        %v11667 = vsub.s32 0, %v11666
        %v11668 = vrot.slane %v11663, %v11667
        %v11671 = vsel %vm860, %v11646, 0
        %v11674 = vsel %vm860, %v11647, 0
        %v11677 = vsel %vm860, %v11648, 0
        %v11680 = vsel %vm860, %v11649, 0
        %v11683 = vsel %vm860, %v11650, 0
        %v11686 = vsel %vm860, %v11651, 0
        %v11689 = vsel %vm860, %v11652, 0
        %v11692 = vsel %vm860, %v11653, 0
        %v11695 = vsel %vm860, %v11654, 0
        %v11698 = vsel %vm860, %v11655, 0
        %v11701 = vsel %vm860, %v11656, 0
        %v11704 = vsel %vm860, %v11657, 0
        %v11707 = vsel %vm860, %v11658, 0
        %v11710 = vsel %vm860, %v11659, 0
        %v11713 = vsel %vm860, %v11660, 0
        %v11716 = vsel %vm860, %v11661, 0
        %11718 = vmatprep.subr.mxu0 0.0
        %11719 = vmatpush1.msra.mxu0 %v11662
        %11720 = vmatprep.subr.mxu0 0.0
        %11721 = vmatpush1.msra.mxu0 0.0
        %11722 = vmatprep.subr.mxu0 0.0
        %11723 = vmatpush1.msra.mxu0 0.0
        %11724 = vmatprep.subr.mxu0 0.0
        %11725 = vmatpush1.msra.mxu0 0.0
        %11726 = vmatprep.subr.mxu0 0.0
        %11727 = vmatpush1.msra.mxu0 0.0
        %11728 = vmatprep.subr.mxu0 0.0
        %11729 = vmatpush1.msra.mxu0 0.0
        %11730 = vmatprep.subr.mxu0 0.0
        %11731 = vmatpush1.msra.mxu0 0.0
        %11732 = vmatprep.subr.mxu0 0.0
        %11733 = vmatpush1.msra.mxu0 0.0
        %11734 = vmatprep.subr.mxu0 0.0
        %11735 = vmatpush1.msra.mxu0 0.0
        %11736 = vmatprep.subr.mxu0 0.0
        %11737 = vmatpush1.msra.mxu0 0.0
        %11738 = vmatprep.subr.mxu0 0.0
        %11739 = vmatpush1.msra.mxu0 0.0
        %11740 = vmatprep.subr.mxu0 0.0
        %11741 = vmatpush1.msra.mxu0 0.0
        %11742 = vmatprep.subr.mxu0 0.0
        %11743 = vmatpush1.msra.mxu0 0.0
        %11744 = vmatprep.subr.mxu0 0.0
        %11745 = vmatpush1.msra.mxu0 0.0
        %11746 = vmatprep.subr.mxu0 0.0
        %11747 = vmatpush1.msra.mxu0 0.0
        %11748 = vmatprep.subr.mxu0 0.0
        %11749 = vmatpush1.msra.mxu0 0.0
        %11750 = vmatprep.subr.mxu0 0.0
        %11751 = vmatpush1.msra.mxu0 0.0
        %11752 = vmatprep.subr.mxu0 0.0
        %11753 = vmatpush1.msra.mxu0 0.0
        %11754 = vmatprep.subr.mxu0 0.0
        %11755 = vmatpush1.msra.mxu0 0.0
        %11756 = vmatprep.subr.mxu0 0.0
        %11757 = vmatpush1.msra.mxu0 0.0
        %11758 = vmatprep.subr.mxu0 0.0
        %11759 = vmatpush1.msra.mxu0 0.0
        %11760 = vmatprep.subr.mxu0 0.0
        %11761 = vmatpush1.msra.mxu0 0.0
        %11762 = vmatprep.subr.mxu0 0.0
        %11763 = vmatpush1.msra.mxu0 0.0
        %11764 = vmatprep.subr.mxu0 0.0
        %11765 = vmatpush1.msra.mxu0 0.0
        %11766 = vmatprep.subr.mxu0 0.0
        %11767 = vmatpush1.msra.mxu0 0.0
        %11768 = vmatprep.subr.mxu0 0.0
        %11769 = vmatpush1.msra.mxu0 0.0
        %11770 = vmatprep.subr.mxu0 0.0
        %11771 = vmatpush1.msra.mxu0 0.0
        %11772 = vmatprep.subr.mxu0 0.0
        %11773 = vmatpush1.msra.mxu0 0.0
        %11774 = vmatprep.subr.mxu0 0.0
        %11775 = vmatpush1.msra.mxu0 0.0
        %11776 = vmatprep.subr.mxu0 0.0
        %11777 = vmatpush1.msra.mxu0 0.0
        %11778 = vmatprep.subr.mxu0 0.0
        %11779 = vmatpush1.msra.mxu0 0.0
        %11780 = vmatprep.subr.mxu0 0.0
        %11781 = vmatpush1.msra.mxu0 0.0
        %11782 = vmatprep.mubr.f32.mxu0 0.0
        %11783 = vmatmul.mubr.f32.gmra.mrb[0].mxu0 %v11671
        %v11784 = vpop.f32.mrb[0].mxu0
        %v11785 = vadd.f32 %v11668, %v11784
        %v11786 = vpop.f32.mrb[0].mxu0
        %11787 = vmatprep.mubr.f32.mxu0 0.0
        %11788 = vmatmul.mubr.f32.gmra.mrb[0].mxu0 %v11674
        %v11789 = vpop.f32.mrb[0].mxu0
        %v11790 = vadd.f32 %v11668, %v11789
        %v11791 = vpop.f32.mrb[0].mxu0
        %11792 = vmatprep.mubr.f32.mxu0 0.0
        %11793 = vmatmul.mubr.f32.gmra.mrb[0].mxu0 %v11677
        %v11794 = vpop.f32.mrb[0].mxu0
        %v11795 = vadd.f32 %v11668, %v11794
        %v11796 = vpop.f32.mrb[0].mxu0
        %11797 = vmatprep.mubr.f32.mxu0 0.0
        %11798 = vmatmul.mubr.f32.gmra.mrb[0].mxu0 %v11680
        %v11799 = vpop.f32.mrb[0].mxu0
        %v11800 = vadd.f32 %v11668, %v11799
        %v11801 = vpop.f32.mrb[0].mxu0
        %11802 = vmatprep.mubr.f32.mxu0 0.0
        %11803 = vmatmul.mubr.f32.gmra.mrb[0].mxu0 %v11683
        %v11804 = vpop.f32.mrb[0].mxu0
        %v11805 = vadd.f32 %v11668, %v11804
        %v11806 = vpop.f32.mrb[0].mxu0
        %11807 = vmatprep.mubr.f32.mxu0 0.0
        %11808 = vmatmul.mubr.f32.gmra.mrb[0].mxu0 %v11686
        %v11809 = vpop.f32.mrb[0].mxu0
        %v11810 = vadd.f32 %v11668, %v11809
        %v11811 = vpop.f32.mrb[0].mxu0
        %11812 = vmatprep.mubr.f32.mxu0 0.0
        %11813 = vmatmul.mubr.f32.gmra.mrb[0].mxu0 %v11689
        %v11814 = vpop.f32.mrb[0].mxu0
        %v11815 = vadd.f32 %v11668, %v11814
        %v11816 = vpop.f32.mrb[0].mxu0
        %11817 = vmatprep.mubr.f32.mxu0 0.0
        %11818 = vmatmul.mubr.f32.gmra.mrb[0].mxu0 %v11692
        %v11819 = vpop.f32.mrb[0].mxu0
        %v11820 = vadd.f32 %v11668, %v11819
        %v11821 = vpop.f32.mrb[0].mxu0
        %11822 = vmatprep.mubr.f32.mxu0 0.0
        %11823 = vmatmul.mubr.f32.gmra.mrb[0].mxu0 %v11695
        %v11824 = vpop.f32.mrb[0].mxu0
        %v11825 = vadd.f32 %v11668, %v11824
        %v11826 = vpop.f32.mrb[0].mxu0
        %11827 = vmatprep.mubr.f32.mxu0 0.0
        %11828 = vmatmul.mubr.f32.gmra.mrb[0].mxu0 %v11698
        %v11829 = vpop.f32.mrb[0].mxu0
        %v11830 = vadd.f32 %v11668, %v11829
        %v11831 = vpop.f32.mrb[0].mxu0
        %11832 = vmatprep.mubr.f32.mxu0 0.0
        %11833 = vmatmul.mubr.f32.gmra.mrb[0].mxu0 %v11701
        %v11834 = vpop.f32.mrb[0].mxu0
        %v11835 = vadd.f32 %v11668, %v11834
        %v11836 = vpop.f32.mrb[0].mxu0
        %11837 = vmatprep.mubr.f32.mxu0 0.0
        %11838 = vmatmul.mubr.f32.gmra.mrb[0].mxu0 %v11704
        %v11839 = vpop.f32.mrb[0].mxu0
        %v11840 = vadd.f32 %v11668, %v11839
        %v11841 = vpop.f32.mrb[0].mxu0
        %11842 = vmatprep.mubr.f32.mxu0 0.0
        %11843 = vmatmul.mubr.f32.gmra.mrb[0].mxu0 %v11707
        %v11844 = vpop.f32.mrb[0].mxu0
        %v11845 = vadd.f32 %v11668, %v11844
        %v11846 = vpop.f32.mrb[0].mxu0
        %11847 = vmatprep.mubr.f32.mxu0 0.0
        %11848 = vmatmul.mubr.f32.gmra.mrb[0].mxu0 %v11710
        %v11849 = vpop.f32.mrb[0].mxu0
        %v11850 = vadd.f32 %v11668, %v11849
        %v11851 = vpop.f32.mrb[0].mxu0
        %11852 = vmatprep.mubr.f32.mxu0 0.0
        %11853 = vmatmul.mubr.f32.gmra.mrb[0].mxu0 %v11713
        %v11854 = vpop.f32.mrb[0].mxu0
        %v11855 = vadd.f32 %v11668, %v11854
        %v11856 = vpop.f32.mrb[0].mxu0
        %11857 = vmatprep.mubr.f32.mxu0 0.0
        %11858 = vmatmul.mubr.f32.gmra.mrb[0].mxu0 %v11716
        %v11859 = vpop.f32.mrb[0].mxu0
        %v11860 = vadd.f32 %v11668, %v11859
        %v11861 = vpop.f32.mrb[0].mxu0
        %11862 = vdwg.mxu0
        %vm11863 = vcmp.ge.f32.partialorder %v11785, 0.0
        %vm11864 = vcmp.ge.f32.partialorder %v11790, 0.0
        %vm11865 = vcmp.ge.f32.partialorder %v11795, 0.0
        %vm11866 = vcmp.ge.f32.partialorder %v11800, 0.0
        %vm11867 = vcmp.ge.f32.partialorder %v11805, 0.0
        %vm11868 = vcmp.ge.f32.partialorder %v11810, 0.0
        %vm11869 = vcmp.ge.f32.partialorder %v11815, 0.0
        %vm11870 = vcmp.ge.f32.partialorder %v11820, 0.0
        %vm11871 = vcmp.ge.f32.partialorder %v11825, 0.0
        %vm11872 = vcmp.ge.f32.partialorder %v11830, 0.0
        %vm11873 = vcmp.ge.f32.partialorder %v11835, 0.0
        %vm11874 = vcmp.ge.f32.partialorder %v11840, 0.0
        %vm11875 = vcmp.ge.f32.partialorder %v11845, 0.0
        %vm11876 = vcmp.ge.f32.partialorder %v11850, 0.0
        %vm11877 = vcmp.ge.f32.partialorder %v11855, 0.0
        %vm11878 = vcmp.ge.f32.partialorder %v11860, 0.0
        %v11879 = vmul.f32 %v11785, 0.2
        %v11880 = vmul.f32 %v11790, 0.2
        %v11881 = vmul.f32 %v11795, 0.2
        %v11882 = vmul.f32 %v11800, 0.2
        %v11883 = vmul.f32 %v11805, 0.2
        %v11884 = vmul.f32 %v11810, 0.2
        %v11885 = vmul.f32 %v11815, 0.2
        %v11886 = vmul.f32 %v11820, 0.2
        %v11887 = vmul.f32 %v11825, 0.2
        %v11888 = vmul.f32 %v11830, 0.2
        %v11889 = vmul.f32 %v11835, 0.2
        %v11890 = vmul.f32 %v11840, 0.2
        %v11891 = vmul.f32 %v11845, 0.2
        %v11892 = vmul.f32 %v11850, 0.2
        %v11893 = vmul.f32 %v11855, 0.2
        %v11894 = vmul.f32 %v11860, 0.2
        %v11895 = vsel %vm11863, %v11785, %v11879
        %v11896 = vsel %vm11864, %v11790, %v11880
        %v11897 = vsel %vm11865, %v11795, %v11881
        %v11898 = vsel %vm11866, %v11800, %v11882
        %v11899 = vsel %vm11867, %v11805, %v11883
        %v11900 = vsel %vm11868, %v11810, %v11884
        %v11901 = vsel %vm11869, %v11815, %v11885
        %v11902 = vsel %vm11870, %v11820, %v11886
        %v11903 = vsel %vm11871, %v11825, %v11887
        %v11904 = vsel %vm11872, %v11830, %v11888
        %v11905 = vsel %vm11873, %v11835, %v11889
        %v11906 = vsel %vm11874, %v11840, %v11890
        %v11907 = vsel %vm11875, %v11845, %v11891
        %v11908 = vsel %vm11876, %v11850, %v11892
        %v11909 = vsel %vm11877, %v11855, %v11893
        %v11910 = vsel %vm11878, %v11860, %v11894
        %v11911 = vld [vmem:[%s15] sm:$0xff]
        %v11912 = vld [vmem:[%s16] sm:$0x1]
        %v11914 = vlaneseq
        %v11915 = vshrl.u32 %v11914, 7
        %v11916 = vsub.s32 0, %v11915
        %v11917 = vrot.slane %v11912, %v11916
        %v11920 = vsel %vm860, %v11895, 0
        %v11923 = vsel %vm860, %v11896, 0
        %v11926 = vsel %vm860, %v11897, 0
        %v11929 = vsel %vm860, %v11898, 0
        %v11932 = vsel %vm860, %v11899, 0
        %v11935 = vsel %vm860, %v11900, 0
        %v11938 = vsel %vm860, %v11901, 0
        %v11941 = vsel %vm860, %v11902, 0
        %v11944 = vsel %vm860, %v11903, 0
        %v11947 = vsel %vm860, %v11904, 0
        %v11950 = vsel %vm860, %v11905, 0
        %v11953 = vsel %vm860, %v11906, 0
        %v11956 = vsel %vm860, %v11907, 0
        %v11959 = vsel %vm860, %v11908, 0
        %v11962 = vsel %vm860, %v11909, 0
        %v11965 = vsel %vm860, %v11910, 0
        %11967 = vmatprep.subr.mxu0 0.0
        %11968 = vmatpush1.msra.mxu0 %v11911
        %11969 = vmatprep.subr.mxu0 0.0
        %11970 = vmatpush1.msra.mxu0 0.0
        %11971 = vmatprep.subr.mxu0 0.0
        %11972 = vmatpush1.msra.mxu0 0.0
        %11973 = vmatprep.subr.mxu0 0.0
        %11974 = vmatpush1.msra.mxu0 0.0
        %11975 = vmatprep.subr.mxu0 0.0
        %11976 = vmatpush1.msra.mxu0 0.0
        %11977 = vmatprep.subr.mxu0 0.0
        %11978 = vmatpush1.msra.mxu0 0.0
        %11979 = vmatprep.subr.mxu0 0.0
        %11980 = vmatpush1.msra.mxu0 0.0
        %11981 = vmatprep.subr.mxu0 0.0
        %11982 = vmatpush1.msra.mxu0 0.0
        %11983 = vmatprep.subr.mxu0 0.0
        %11984 = vmatpush1.msra.mxu0 0.0
        %11985 = vmatprep.subr.mxu0 0.0
        %11986 = vmatpush1.msra.mxu0 0.0
        %11987 = vmatprep.subr.mxu0 0.0
        %11988 = vmatpush1.msra.mxu0 0.0
        %11989 = vmatprep.subr.mxu0 0.0
        %11990 = vmatpush1.msra.mxu0 0.0
        %11991 = vmatprep.subr.mxu0 0.0
        %11992 = vmatpush1.msra.mxu0 0.0
        %11993 = vmatprep.subr.mxu0 0.0
        %11994 = vmatpush1.msra.mxu0 0.0
        %11995 = vmatprep.subr.mxu0 0.0
        %11996 = vmatpush1.msra.mxu0 0.0
        %11997 = vmatprep.subr.mxu0 0.0
        %11998 = vmatpush1.msra.mxu0 0.0
        %11999 = vmatprep.subr.mxu0 0.0
        %12000 = vmatpush1.msra.mxu0 0.0
        %12001 = vmatprep.subr.mxu0 0.0
        %12002 = vmatpush1.msra.mxu0 0.0
        %12003 = vmatprep.subr.mxu0 0.0
        %12004 = vmatpush1.msra.mxu0 0.0
        %12005 = vmatprep.subr.mxu0 0.0
        %12006 = vmatpush1.msra.mxu0 0.0
        %12007 = vmatprep.subr.mxu0 0.0
        %12008 = vmatpush1.msra.mxu0 0.0
        %12009 = vmatprep.subr.mxu0 0.0
        %12010 = vmatpush1.msra.mxu0 0.0
        %12011 = vmatprep.subr.mxu0 0.0
        %12012 = vmatpush1.msra.mxu0 0.0
        %12013 = vmatprep.subr.mxu0 0.0
        %12014 = vmatpush1.msra.mxu0 0.0
        %12015 = vmatprep.subr.mxu0 0.0
        %12016 = vmatpush1.msra.mxu0 0.0
        %12017 = vmatprep.subr.mxu0 0.0
        %12018 = vmatpush1.msra.mxu0 0.0
        %12019 = vmatprep.subr.mxu0 0.0
        %12020 = vmatpush1.msra.mxu0 0.0
        %12021 = vmatprep.subr.mxu0 0.0
        %12022 = vmatpush1.msra.mxu0 0.0
        %12023 = vmatprep.subr.mxu0 0.0
        %12024 = vmatpush1.msra.mxu0 0.0
        %12025 = vmatprep.subr.mxu0 0.0
        %12026 = vmatpush1.msra.mxu0 0.0
        %12027 = vmatprep.subr.mxu0 0.0
        %12028 = vmatpush1.msra.mxu0 0.0
        %12029 = vmatprep.subr.mxu0 0.0
        %12030 = vmatpush1.msra.mxu0 0.0
        %12031 = vmatprep.mubr.f32.mxu0 0.0
        %12032 = vmatmul.mubr.f32.gmra.mrb[0].mxu0 %v11920
        %v12033 = vpop.f32.mrb[0].mxu0
        %v12034 = vadd.f32 %v11917, %v12033
        %v12035 = vpop.f32.mrb[0].mxu0
        %12036 = vmatprep.mubr.f32.mxu0 0.0
        %12037 = vmatmul.mubr.f32.gmra.mrb[0].mxu0 %v11923
        %v12038 = vpop.f32.mrb[0].mxu0
        %v12039 = vadd.f32 %v11917, %v12038
        %v12040 = vpop.f32.mrb[0].mxu0
        %12041 = vmatprep.mubr.f32.mxu0 0.0
        %12042 = vmatmul.mubr.f32.gmra.mrb[0].mxu0 %v11926
        %v12043 = vpop.f32.mrb[0].mxu0
        %v12044 = vadd.f32 %v11917, %v12043
        %v12045 = vpop.f32.mrb[0].mxu0
        %12046 = vmatprep.mubr.f32.mxu0 0.0
        %12047 = vmatmul.mubr.f32.gmra.mrb[0].mxu0 %v11929
        %v12048 = vpop.f32.mrb[0].mxu0
        %v12049 = vadd.f32 %v11917, %v12048
        %v12050 = vpop.f32.mrb[0].mxu0
        %12051 = vmatprep.mubr.f32.mxu0 0.0
        %12052 = vmatmul.mubr.f32.gmra.mrb[0].mxu0 %v11932
        %v12053 = vpop.f32.mrb[0].mxu0
        %v12054 = vadd.f32 %v11917, %v12053
        %v12055 = vpop.f32.mrb[0].mxu0
        %12056 = vmatprep.mubr.f32.mxu0 0.0
        %12057 = vmatmul.mubr.f32.gmra.mrb[0].mxu0 %v11935
        %v12058 = vpop.f32.mrb[0].mxu0
        %v12059 = vadd.f32 %v11917, %v12058
        %v12060 = vpop.f32.mrb[0].mxu0
        %12061 = vmatprep.mubr.f32.mxu0 0.0
        %12062 = vmatmul.mubr.f32.gmra.mrb[0].mxu0 %v11938
        %v12063 = vpop.f32.mrb[0].mxu0
        %v12064 = vadd.f32 %v11917, %v12063
        %v12065 = vpop.f32.mrb[0].mxu0
        %12066 = vmatprep.mubr.f32.mxu0 0.0
        %12067 = vmatmul.mubr.f32.gmra.mrb[0].mxu0 %v11941
        %v12068 = vpop.f32.mrb[0].mxu0
        %v12069 = vadd.f32 %v11917, %v12068
        %v12070 = vpop.f32.mrb[0].mxu0
        %12071 = vmatprep.mubr.f32.mxu0 0.0
        %12072 = vmatmul.mubr.f32.gmra.mrb[0].mxu0 %v11944
        %v12073 = vpop.f32.mrb[0].mxu0
        %v12074 = vadd.f32 %v11917, %v12073
        %v12075 = vpop.f32.mrb[0].mxu0
        %12076 = vmatprep.mubr.f32.mxu0 0.0
        %12077 = vmatmul.mubr.f32.gmra.mrb[0].mxu0 %v11947
        %v12078 = vpop.f32.mrb[0].mxu0
        %v12079 = vadd.f32 %v11917, %v12078
        %v12080 = vpop.f32.mrb[0].mxu0
        %12081 = vmatprep.mubr.f32.mxu0 0.0
        %12082 = vmatmul.mubr.f32.gmra.mrb[0].mxu0 %v11950
        %v12083 = vpop.f32.mrb[0].mxu0
        %v12084 = vadd.f32 %v11917, %v12083
        %v12085 = vpop.f32.mrb[0].mxu0
        %12086 = vmatprep.mubr.f32.mxu0 0.0
        %12087 = vmatmul.mubr.f32.gmra.mrb[0].mxu0 %v11953
        %v12088 = vpop.f32.mrb[0].mxu0
        %v12089 = vadd.f32 %v11917, %v12088
        %v12090 = vpop.f32.mrb[0].mxu0
        %12091 = vmatprep.mubr.f32.mxu0 0.0
        %12092 = vmatmul.mubr.f32.gmra.mrb[0].mxu0 %v11956
        %v12093 = vpop.f32.mrb[0].mxu0
        %v12094 = vadd.f32 %v11917, %v12093
        %v12095 = vpop.f32.mrb[0].mxu0
        %12096 = vmatprep.mubr.f32.mxu0 0.0
        %12097 = vmatmul.mubr.f32.gmra.mrb[0].mxu0 %v11959
        %v12098 = vpop.f32.mrb[0].mxu0
        %v12099 = vadd.f32 %v11917, %v12098
        %v12100 = vpop.f32.mrb[0].mxu0
        %12101 = vmatprep.mubr.f32.mxu0 0.0
        %12102 = vmatmul.mubr.f32.gmra.mrb[0].mxu0 %v11962
        %v12103 = vpop.f32.mrb[0].mxu0
        %v12104 = vadd.f32 %v11917, %v12103
        %v12105 = vpop.f32.mrb[0].mxu0
        %12106 = vmatprep.mubr.f32.mxu0 0.0
        %12107 = vmatmul.mubr.f32.gmra.mrb[0].mxu0 %v11965
        %v12108 = vpop.f32.mrb[0].mxu0
        %v12109 = vadd.f32 %v11917, %v12108
        %v12110 = vpop.f32.mrb[0].mxu0
        %12111 = vdwg.mxu0
        %vm12112 = vcmask 23552
        %12113 = vst.msk [vmem:[%s654] sm:$0xff] %vm12112, %v12034
        %12114 = vst.msk [vmem:[%s654 + $0x8] sm:$0xff] %vm12112, %v12039
        %12115 = vst.msk [vmem:[%s654 + $0x10] sm:$0xff] %vm12112, %v12044
        %12116 = vst.msk [vmem:[%s654 + $0x18] sm:$0xff] %vm12112, %v12049
        %12117 = vst.msk [vmem:[%s654 + $0x20] sm:$0xff] %vm12112, %v12054
        %12118 = vst.msk [vmem:[%s654 + $0x28] sm:$0xff] %vm12112, %v12059
        %12119 = vst.msk [vmem:[%s654 + $0x30] sm:$0xff] %vm12112, %v12064
        %12120 = vst.msk [vmem:[%s654 + $0x38] sm:$0xff] %vm12112, %v12069
        %12121 = vst.msk [vmem:[%s654 + $0x40] sm:$0xff] %vm12112, %v12074
        %12122 = vst.msk [vmem:[%s654 + $0x48] sm:$0xff] %vm12112, %v12079
        %12123 = vst.msk [vmem:[%s654 + $0x50] sm:$0xff] %vm12112, %v12084
        %12124 = vst.msk [vmem:[%s654 + $0x58] sm:$0xff] %vm12112, %v12089
        %12125 = vst.msk [vmem:[%s654 + $0x60] sm:$0xff] %vm12112, %v12094
        %12126 = vst.msk [vmem:[%s654 + $0x68] sm:$0xff] %vm12112, %v12099
        %12127 = vst.msk [vmem:[%s654 + $0x70] sm:$0xff] %vm12112, %v12104
        %12128 = vst.msk [vmem:[%s654 + $0x78] sm:$0xff] %vm12112, %v12109
        %p12129 = scmp.eq.s32.totalorder %s38, 1
        // Predicated region
        $region100: #{tpu_custom_call.1} parent=87 // pred_check
          %p12130 = pneg %p12129
        $region101: #{tpu_custom_call.1} parent=87 // pred_check_branch
          %12132 = sbr.rel (%p12130) target = $region103
        $region102: #{tpu_custom_call.1} parent=87 // pred_region
          %v12133 = vld [vmem:[#allocation2] sm:$0x1]
          %12134 = vst.msk [vmem:[%s628] sm:$0x1] %vm11644, %v12133
        $region103: #{tpu_custom_call.1} parent=87 // pred_fallthru
          _
        %s12135 = smul.u32 16, %s38
        %p12136 = scmp.lt.s32.totalorder %s37, 1
        %s12137 = scalar_select %p12136, %s37, 1
        %p12138 = scmp.lt.s32.totalorder %s12135, 31
        %s12139 = scalar_select %p12138, %s12135, 31
        %s12140 = smul.addr %s12137, 32
        %s12141 = sadd.s32 %s12139, %s12140
        %s12142 = smul.addr %s12141, 8
        %s12143 = scalar_lea.vmem %s17, %s12142
        %s12144 = sand.u32 %s455, 1
        %s12145 = scalar_lea.sflag [#allocation6], %s12144
        %s12146 = sand.u32 %s455, 1
        %s12147 = scalar_lea.vmem [#allocation5], %s12146
        // Predicated region
        $region104: #{tpu_custom_call.1} parent=87 // pred_check
          %p12148 = pneg %p439
        $region105: #{tpu_custom_call.1} parent=87 // pred_check_branch
          %12150 = sbr.rel (%p12148) target = $region107
        $region106: #{tpu_custom_call.1} parent=87 // pred_region
          %s12151 = smul.u32 16, %s38
        $region107: #{tpu_custom_call.1} parent=87 // pred_fallthru
          _
        // Predicated region
        $region108: #{tpu_custom_call.1} parent=87 // pred_check
          %p12152 = pneg %p465
        $region109: #{tpu_custom_call.1} parent=87 // pred_check_branch
          %12154 = sbr.rel (%p12152) target = $region111
        $region110: #{tpu_custom_call.1} parent=87 // pred_region
          %s12156 = ssub.s32 16, 16
          %12157 = vsyncadd %s12145, %s12156
          %s12158 = smul.addr %s37, 16
          %s12159 = scalar_lea.hbm %s18, %s12158
          %s12161 = sshll.u32 %s12147, 4
          %s12162 = int_to_ptr.vmem [resolvable:$true] %s12161
          %12164 = dma.vmem_to_hbm [thread:$0]  %s12162, 16, %s12159, %s12145
        $region111: #{tpu_custom_call.1} parent=87 // pred_fallthru
          _
      $region88: #{tpu_custom_call.1} parent=5 // pred_fallthru
        _
      %p12165 = scmp.le.s32.totalorder 2, %s28
      // Predicated region
      $region112: #{tpu_custom_call.1} parent=5 // pred_check
        %p12166 = pneg %p12165
      $region113: #{tpu_custom_call.1} parent=5 // pred_check_branch
        %12168 = sbr.rel (%p12166) target = $region115
      $region114: #{tpu_custom_call.1} parent=5 // pred_region
        %s12169 = ssub.s32 %s28, 2
        // Predicated region
        $region116: #{tpu_custom_call.1} parent=114 // pred_check
          %p12170 = pneg %p445
        $region117: #{tpu_custom_call.1} parent=114 // pred_check_branch
          %12172 = sbr.rel (%p12170) target = $region119
        $region118: #{tpu_custom_call.1} parent=114 // pred_region
          %s12173 = smul.u32 16, %s40
          %p12174 = scmp.lt.s32.totalorder %s39, 1
          %s12175 = scalar_select %p12174, %s39, 1
          %p12176 = scmp.lt.s32.totalorder %s12173, 31
          %s12177 = scalar_select %p12176, %s12173, 31
          %s12178 = smul.addr %s12175, 32
          %s12179 = sadd.s32 %s12177, %s12178
          %s12180 = smul.addr %s12179, 8
          %s12181 = scalar_lea.vmem %s17, %s12180
        $region119: #{tpu_custom_call.1} parent=114 // pred_fallthru
          _
        // Predicated region
        $region120: #{tpu_custom_call.1} parent=114 // pred_check
          %p12182 = pneg %p471
        $region121: #{tpu_custom_call.1} parent=114 // pred_check_branch
          %12184 = sbr.rel (%p12182) target = $region123
        $region122: #{tpu_custom_call.1} parent=114 // pred_region
          %s12185 = sand.u32 %s456, 1
          %s12186 = scalar_lea.sflag [#allocation6], %s12185
          %s12187 = sand.u32 %s456, 1
          %s12188 = scalar_lea.vmem [#allocation5], %s12187
          %12189 = dma.done %s12186, 16
        $region123: #{tpu_custom_call.1} parent=114 // pred_fallthru
          _
      $region115: #{tpu_custom_call.1} parent=5 // pred_fallthru
        _
    $region6: #{tpu_custom_call.1} parent=1 // loop_footer
      %s32 = sadd.s32 1, %s28
    $region7: #{tpu_custom_call.1} parent=1 // loop_footer_branch
      %27 = sbr.rel target = $region3
    $region8: #{tpu_custom_call.1} parent=1 // loop_exit
      _
    %12190 = vsyncpa [#allocation6], 1
    %s12191 = scalar_lea.sflag [#allocation6], 1
    %12192 = vsyncpa %s12191, 1

</llo_original>
